<compile_context>
chip_gen: v7x
topology: tpu7x:2x2x1
jax: 0.10.0
libtpu: 0.0.40
codegen_flags: <defaults>
</compile_context>

<pallas_src>
import jax
import jax.numpy as jnp
from jax import lax
from jax.experimental import pallas as pl
from jax.experimental.pallas import tpu as pltpu

EPS = 1e-5


def down_kernel(x_ref, w1_ref, g1_ref, bb1_ref, w2_ref, g2_ref, bb2_ref,
                x1_ref, pool_ref,
                pad_ref, col_ref):
    N, H, W, Cin = x_ref.shape
    Cout = w2_ref.shape[1]
    Cpad = pad_ref.shape[3]
    H2, W2 = H // 2, W // 2
    inv_cnt = 1.0 / float(N * H * W)

    # ---- zero only the 1-pixel halo of the shared padded scratch (done once;
    #      the halo stays zero across both convs, interiors get overwritten). ---
    pad_ref[:, 0:1, :, :] = jnp.zeros((N, 1, W + 2, Cpad), jnp.float32)
    pad_ref[:, H + 1:H + 2, :, :] = jnp.zeros((N, 1, W + 2, Cpad), jnp.float32)
    pad_ref[:, :, 0:1, :] = jnp.zeros((N, H + 2, 1, Cpad), jnp.float32)
    pad_ref[:, :, W + 1:W + 2, :] = jnp.zeros((N, H + 2, 1, Cpad), jnp.float32)

    def conv3x3(cin, w_ref):
        """3x3 conv as a single matmul: scatter the 9 shifted taps into the
        im2col scratch (lane axis = (tap, ci)), then one MXU dot with K=9*cin."""
        for k in range(9):                                   # static unroll
            dy, dx = divmod(k, 3)
            col_ref[:, :, :, k * cin:(k + 1) * cin] = \
                pad_ref[:, dy:dy + H, dx:dx + W, :cin]
        # Layout-preserving collapse (W % 8 == 0), no per-tap relayout.
        patches = col_ref[:, :, :, :9 * cin].reshape(N * H * W, 9 * cin)
        return jnp.dot(patches, w_ref[...], preferred_element_type=jnp.float32)

    def bn_relu(acc, g_ref, beta_ref):
        """Fused BatchNorm (batch stats) + ReLU: one reduction pass + one FMA
        pass.  Conv bias only shifts the batch mean, so it cancels exactly."""
        ssum = jnp.sum(acc, axis=0, keepdims=True)           # (1, Cout)
        ssq = jnp.sum(acc * acc, axis=0, keepdims=True)      # (1, Cout)
        mean = ssum * inv_cnt
        var = ssq * inv_cnt - mean * mean
        scale = g_ref[...] * lax.rsqrt(var + EPS)
        shift = beta_ref[...] - mean * scale
        return jnp.maximum(acc * scale + shift, 0.0)

    # ---- conv1 -> BN1 -> ReLU ------------------------------------------------
    pad_ref[:, 1:H + 1, 1:W + 1, :Cin] = x_ref[...]
    y = bn_relu(conv3x3(Cin, w1_ref), g1_ref, bb1_ref)       # (N*H*W, Cout)

    # ---- conv2 -> BN2 -> ReLU ------------------------------------------------
    pad_ref[:, 1:H + 1, 1:W + 1, :Cout] = y.reshape(N, H, W, Cout)
    z = bn_relu(conv3x3(Cout, w2_ref), g2_ref, bb2_ref)      # (N*H*W, Cout)

    x1_ref[...] = z.reshape(N, H, W, Cout)                   # skip-connection out

    # ---- maxpool 2x2 stride 2 --------------------------------------------------
    # H pairs reduced in registers (leading-dim regroup, layout preserving);
    # W pairs reduced via strided reads of a half-size slab staged in the now
    # free pad scratch (avoids re-reading the full x1 output).
    zr = z.reshape(N * H2, 2, W, Cout)
    rowmax = jnp.maximum(zr[:, 0], zr[:, 1])                 # (N*H2, W, Cout)
    pad_ref[:, 0:H2, 0:W, :Cout] = rowmax.reshape(N, H2, W, Cout)
    pool_ref[...] = jnp.maximum(
        pad_ref[:, 0:H2, pl.ds(0, W2, stride=2), :Cout],
        pad_ref[:, 0:H2, pl.ds(1, W2, stride=2), :Cout])


def down_forward(x_nchw, params):
    """Wrapper mimicking Down.forward: returns (maxpool(x1), x1), both NCHW."""
    w1, b1, g1, bb1, w2, b2, g2, bb2 = params
    del b1, b2          # conv bias cancels exactly under batch-statistics BN
    N, Cin, H, W = x_nchw.shape
    Cout = w1.shape[2]
    Cpad = max(Cin, Cout)

    # glue: NCHW -> NHWC; the zero padding happens inside the kernel.
    x_nhwc = jnp.transpose(x_nchw, (0, 2, 3, 1)).astype(jnp.float32)
    w1m = w1.reshape(9 * Cin, Cout).astype(jnp.float32)      # rows = (tap, ci)
    w2m = w2.reshape(9 * Cout, Cout).astype(jnp.float32)

    vmem = pl.BlockSpec(memory_space=pltpu.MemorySpace.VMEM)

    x1_nhwc, pool_nhwc = pl.pallas_call(
        down_kernel,
        out_shape=(
            jax.ShapeDtypeStruct((N, H, W, Cout), jnp.float32),
            jax.ShapeDtypeStruct((N, H // 2, W // 2, Cout), jnp.float32),
        ),
        in_specs=[vmem] * 7,
        out_specs=(vmem, vmem),
        scratch_shapes=[
            pltpu.VMEM((N, H + 2, W + 2, Cpad), jnp.float32),   # shared padded buf
            pltpu.VMEM((N, H, W, 9 * Cpad), jnp.float32),       # im2col patches
        ],
        compiler_params=pltpu.CompilerParams(
            vmem_limit_bytes=32 * 1024 * 1024),                 # > v5e 16MiB default
    )(x_nhwc, w1m, g1, bb1, w2m, g2, bb2)

    # glue: NHWC -> NCHW, match PyTorch return order (pooled, skip)
    pool_nchw = jnp.transpose(pool_nhwc, (0, 3, 1, 2))
    x1_nchw = jnp.transpose(x1_nhwc, (0, 3, 1, 2))
    return pool_nchw, x1_nchw


# ----------------------------- pure-JAX reference -----------------------------
def _ref_forward(x_nchw, params):
    w1, b1, g1, bb1, w2, b2, g2, bb2 = params
    Cout = w1.shape[2]
    x = jnp.transpose(x_nchw, (0, 2, 3, 1)).astype(jnp.float32)   # NHWC

    def conv(inp, w_flat, b):
        w_hwio = w_flat.reshape(3, 3, w_flat.shape[1], Cout)
        y = lax.conv_general_dilated(
            inp, w_hwio, window_strides=(1, 1), padding="SAME",
            dimension_numbers=("NHWC", "HWIO", "NHWC"))
        return y + b.reshape(1, 1, 1, Cout)

    def bn_relu(y, g, b):
        m = jnp.mean(y, axis=(0, 1, 2), keepdims=True)
        v = jnp.mean((y - m) ** 2, axis=(0, 1, 2), keepdims=True)
        y = (y - m) * lax.rsqrt(v + EPS)
        return jnp.maximum(y * g.reshape(1, 1, 1, Cout) + b.reshape(1, 1, 1, Cout), 0.0)

    y = bn_relu(conv(x, w1, b1), g1, bb1)
    z = bn_relu(conv(y, w2, b2), g2, bb2)
    pooled = lax.reduce_window(z, -jnp.inf, lax.max,
                               (1, 2, 2, 1), (1, 2, 2, 1), "VALID")
    return jnp.transpose(pooled, (0, 3, 1, 2)), jnp.transpose(z, (0, 3, 1, 2))


if __name__ == "__main__":
    # small shapes consistent with the module: batch=2, in_ch=4, out_ch=8, 16x16
    N, Cin, Cout, H, W = 2, 4, 8, 16, 16

    key = jax.random.PRNGKey(0)
    kx, kw1, kb1, kg1, kbb1, kw2, kb2, kg2, kbb2 = jax.random.split(key, 9)

    x = jax.random.normal(kx, (N, Cin, H, W), jnp.float32)

    # deterministic synthetic parameters (conv weights stored as (kh*kw, Cin, Cout))
    w1 = jax.random.normal(kw1, (9, Cin, Cout), jnp.float32) * 0.1
    b1 = jax.random.normal(kb1, (1, Cout), jnp.float32) * 0.1
    g1 = 1.0 + 0.1 * jax.random.normal(kg1, (1, Cout), jnp.float32)
    bb1 = 0.1 * jax.random.normal(kbb1, (1, Cout), jnp.float32)
    w2 = jax.random.normal(kw2, (9, Cout, Cout), jnp.float32) * 0.1
    b2 = jax.random.normal(kb2, (1, Cout), jnp.float32) * 0.1
    g2 = 1.0 + 0.1 * jax.random.normal(kg2, (1, Cout), jnp.float32)
    bb2 = 0.1 * jax.random.normal(kbb2, (1, Cout), jnp.float32)
    params = (w1, b1, g1, bb1, w2, b2, g2, bb2)

    pooled, skip = jax.block_until_ready(down_forward(x, params))
    assert pooled.shape == (N, Cout, H // 2, W // 2)
    assert skip.shape == (N, Cout, H, W)

    ref_pooled, ref_skip = jax.block_until_ready(_ref_forward(x, params))
    assert jnp.allclose(pooled, ref_pooled, atol=1e-3, rtol=1e-3)
    assert jnp.allclose(skip, ref_skip, atol=1e-3, rtol=1e-3)

    print("KERNEL_OK")
</pallas_src>

<mosaic_0001>
module attributes {stable_mosaic.version = 11 : i64} {
  func.func @down_kernel(%arg0: memref<2x16x16x4xf32, #tpu.memory_space<vmem>>, %arg1: memref<36x8xf32, #tpu.memory_space<vmem>>, %arg2: memref<1x8xf32, #tpu.memory_space<vmem>>, %arg3: memref<1x8xf32, #tpu.memory_space<vmem>>, %arg4: memref<72x8xf32, #tpu.memory_space<vmem>>, %arg5: memref<1x8xf32, #tpu.memory_space<vmem>>, %arg6: memref<1x8xf32, #tpu.memory_space<vmem>>, %arg7: memref<2x16x16x8xf32, #tpu.memory_space<vmem>>, %arg8: memref<2x8x8x8xf32, #tpu.memory_space<vmem>>, %arg9: memref<2x18x18x8xf32, #tpu.memory_space<vmem>>, %arg10: memref<2x16x16x72xf32, #tpu.memory_space<vmem>>) attributes {dimension_semantics = [], scalar_prefetch = 0 : i64, scratch_operands = 2 : i64, tpu.core_type = #tpu.core_type<tc>} {
    %cst = arith.constant 0.000000e+00 : f32
    %0 = vector.broadcast %cst : f32 to vector<2x1x18x8xf32>
    %c0 = arith.constant 0 : index
    %c0_0 = arith.constant 0 : index
    %c0_1 = arith.constant 0 : index
    %c0_2 = arith.constant 0 : index
    %1 = vector.load %arg9[%c0, %c0_0, %c0_1, %c0_2] : memref<2x18x18x8xf32, #tpu.memory_space<vmem>>, vector<2x1x18x8xf32>
    tpu.vector_store %arg9[%c0, %c0_0, %c0_1, %c0_2], %0 {strides = array<i32>} : memref<2x18x18x8xf32, #tpu.memory_space<vmem>>, vector<2x1x18x8xf32>,
    %cst_3 = arith.constant 0.000000e+00 : f32
    %2 = vector.broadcast %cst_3 : f32 to vector<2x1x18x8xf32>
    %c0_4 = arith.constant 0 : index
    %c17 = arith.constant 17 : index
    %c0_5 = arith.constant 0 : index
    %c0_6 = arith.constant 0 : index
    %3 = vector.load %arg9[%c0_4, %c17, %c0_5, %c0_6] : memref<2x18x18x8xf32, #tpu.memory_space<vmem>>, vector<2x1x18x8xf32>
    tpu.vector_store %arg9[%c0_4, %c17, %c0_5, %c0_6], %2 {strides = array<i32>} : memref<2x18x18x8xf32, #tpu.memory_space<vmem>>, vector<2x1x18x8xf32>,
    %cst_7 = arith.constant 0.000000e+00 : f32
    %4 = vector.broadcast %cst_7 : f32 to vector<2x18x1x8xf32>
    %c0_8 = arith.constant 0 : index
    %c0_9 = arith.constant 0 : index
    %c0_10 = arith.constant 0 : index
    %c0_11 = arith.constant 0 : index
    %5 = vector.load %arg9[%c0_8, %c0_9, %c0_10, %c0_11] : memref<2x18x18x8xf32, #tpu.memory_space<vmem>>, vector<2x18x1x8xf32>
    tpu.vector_store %arg9[%c0_8, %c0_9, %c0_10, %c0_11], %4 {strides = array<i32>} : memref<2x18x18x8xf32, #tpu.memory_space<vmem>>, vector<2x18x1x8xf32>,
    %cst_12 = arith.constant 0.000000e+00 : f32
    %6 = vector.broadcast %cst_12 : f32 to vector<2x18x1x8xf32>
    %c0_13 = arith.constant 0 : index
    %c0_14 = arith.constant 0 : index
    %c17_15 = arith.constant 17 : index
    %c0_16 = arith.constant 0 : index
    %7 = vector.load %arg9[%c0_13, %c0_14, %c17_15, %c0_16] : memref<2x18x18x8xf32, #tpu.memory_space<vmem>>, vector<2x18x1x8xf32>
    tpu.vector_store %arg9[%c0_13, %c0_14, %c17_15, %c0_16], %6 {strides = array<i32>} : memref<2x18x18x8xf32, #tpu.memory_space<vmem>>, vector<2x18x1x8xf32>,
    %c0_17 = arith.constant 0 : index
    %c0_18 = arith.constant 0 : index
    %c0_19 = arith.constant 0 : index
    %c0_20 = arith.constant 0 : index
    %8 = vector.load %arg0[%c0_17, %c0_18, %c0_19, %c0_20] : memref<2x16x16x4xf32, #tpu.memory_space<vmem>>, vector<2x16x16x4xf32>
    %c0_21 = arith.constant 0 : index
    %c1 = arith.constant 1 : index
    %c1_22 = arith.constant 1 : index
    %c0_23 = arith.constant 0 : index
    %9 = vector.load %arg9[%c0_21, %c1, %c1_22, %c0_23] : memref<2x18x18x8xf32, #tpu.memory_space<vmem>>, vector<2x16x16x4xf32>
    tpu.vector_store %arg9[%c0_21, %c1, %c1_22, %c0_23], %8 {strides = array<i32>} : memref<2x18x18x8xf32, #tpu.memory_space<vmem>>, vector<2x16x16x4xf32>,
    %c0_24 = arith.constant 0 : index
    %c0_25 = arith.constant 0 : index
    %c0_26 = arith.constant 0 : index
    %c0_27 = arith.constant 0 : index
    %10 = vector.load %arg9[%c0_24, %c0_25, %c0_26, %c0_27] : memref<2x18x18x8xf32, #tpu.memory_space<vmem>>, vector<2x16x16x4xf32>
    %c0_28 = arith.constant 0 : index
    %c0_29 = arith.constant 0 : index
    %c0_30 = arith.constant 0 : index
    %c0_31 = arith.constant 0 : index
    %11 = vector.load %arg10[%c0_28, %c0_29, %c0_30, %c0_31] : memref<2x16x16x72xf32, #tpu.memory_space<vmem>>, vector<2x16x16x4xf32>
    tpu.vector_store %arg10[%c0_28, %c0_29, %c0_30, %c0_31], %10 {strides = array<i32>} : memref<2x16x16x72xf32, #tpu.memory_space<vmem>>, vector<2x16x16x4xf32>,
    %c0_32 = arith.constant 0 : index
    %c0_33 = arith.constant 0 : index
    %c1_34 = arith.constant 1 : index
    %c0_35 = arith.constant 0 : index
    %12 = vector.load %arg9[%c0_32, %c0_33, %c1_34, %c0_35] : memref<2x18x18x8xf32, #tpu.memory_space<vmem>>, vector<2x16x16x4xf32>
    %c0_36 = arith.constant 0 : index
    %c0_37 = arith.constant 0 : index
    %c0_38 = arith.constant 0 : index
    %c4 = arith.constant 4 : index
    %13 = vector.load %arg10[%c0_36, %c0_37, %c0_38, %c4] : memref<2x16x16x72xf32, #tpu.memory_space<vmem>>, vector<2x16x16x4xf32>
    tpu.vector_store %arg10[%c0_36, %c0_37, %c0_38, %c4], %12 {strides = array<i32>} : memref<2x16x16x72xf32, #tpu.memory_space<vmem>>, vector<2x16x16x4xf32>,
    %c0_39 = arith.constant 0 : index
    %c0_40 = arith.constant 0 : index
    %c2 = arith.constant 2 : index
    %c0_41 = arith.constant 0 : index
    %14 = vector.load %arg9[%c0_39, %c0_40, %c2, %c0_41] : memref<2x18x18x8xf32, #tpu.memory_space<vmem>>, vector<2x16x16x4xf32>
    %c0_42 = arith.constant 0 : index
    %c0_43 = arith.constant 0 : index
    %c0_44 = arith.constant 0 : index
    %c8 = arith.constant 8 : index
    %15 = vector.load %arg10[%c0_42, %c0_43, %c0_44, %c8] : memref<2x16x16x72xf32, #tpu.memory_space<vmem>>, vector<2x16x16x4xf32>
    tpu.vector_store %arg10[%c0_42, %c0_43, %c0_44, %c8], %14 {strides = array<i32>} : memref<2x16x16x72xf32, #tpu.memory_space<vmem>>, vector<2x16x16x4xf32>,
    %c0_45 = arith.constant 0 : index
    %c1_46 = arith.constant 1 : index
    %c0_47 = arith.constant 0 : index
    %c0_48 = arith.constant 0 : index
    %16 = vector.load %arg9[%c0_45, %c1_46, %c0_47, %c0_48] : memref<2x18x18x8xf32, #tpu.memory_space<vmem>>, vector<2x16x16x4xf32>
    %c0_49 = arith.constant 0 : index
    %c0_50 = arith.constant 0 : index
    %c0_51 = arith.constant 0 : index
    %c12 = arith.constant 12 : index
    %17 = vector.load %arg10[%c0_49, %c0_50, %c0_51, %c12] : memref<2x16x16x72xf32, #tpu.memory_space<vmem>>, vector<2x16x16x4xf32>
    tpu.vector_store %arg10[%c0_49, %c0_50, %c0_51, %c12], %16 {strides = array<i32>} : memref<2x16x16x72xf32, #tpu.memory_space<vmem>>, vector<2x16x16x4xf32>,
    %c0_52 = arith.constant 0 : index
    %c1_53 = arith.constant 1 : index
    %c1_54 = arith.constant 1 : index
    %c0_55 = arith.constant 0 : index
    %18 = vector.load %arg9[%c0_52, %c1_53, %c1_54, %c0_55] : memref<2x18x18x8xf32, #tpu.memory_space<vmem>>, vector<2x16x16x4xf32>
    %c0_56 = arith.constant 0 : index
    %c0_57 = arith.constant 0 : index
    %c0_58 = arith.constant 0 : index
    %c16 = arith.constant 16 : index
    %19 = vector.load %arg10[%c0_56, %c0_57, %c0_58, %c16] : memref<2x16x16x72xf32, #tpu.memory_space<vmem>>, vector<2x16x16x4xf32>
    tpu.vector_store %arg10[%c0_56, %c0_57, %c0_58, %c16], %18 {strides = array<i32>} : memref<2x16x16x72xf32, #tpu.memory_space<vmem>>, vector<2x16x16x4xf32>,
    %c0_59 = arith.constant 0 : index
    %c1_60 = arith.constant 1 : index
    %c2_61 = arith.constant 2 : index
    %c0_62 = arith.constant 0 : index
    %20 = vector.load %arg9[%c0_59, %c1_60, %c2_61, %c0_62] : memref<2x18x18x8xf32, #tpu.memory_space<vmem>>, vector<2x16x16x4xf32>
    %c0_63 = arith.constant 0 : index
    %c0_64 = arith.constant 0 : index
    %c0_65 = arith.constant 0 : index
    %c20 = arith.constant 20 : index
    %21 = vector.load %arg10[%c0_63, %c0_64, %c0_65, %c20] : memref<2x16x16x72xf32, #tpu.memory_space<vmem>>, vector<2x16x16x4xf32>
    tpu.vector_store %arg10[%c0_63, %c0_64, %c0_65, %c20], %20 {strides = array<i32>} : memref<2x16x16x72xf32, #tpu.memory_space<vmem>>, vector<2x16x16x4xf32>,
    %c0_66 = arith.constant 0 : index
    %c2_67 = arith.constant 2 : index
    %c0_68 = arith.constant 0 : index
    %c0_69 = arith.constant 0 : index
    %22 = vector.load %arg9[%c0_66, %c2_67, %c0_68, %c0_69] : memref<2x18x18x8xf32, #tpu.memory_space<vmem>>, vector<2x16x16x4xf32>
    %c0_70 = arith.constant 0 : index
    %c0_71 = arith.constant 0 : index
    %c0_72 = arith.constant 0 : index
    %c24 = arith.constant 24 : index
    %23 = vector.load %arg10[%c0_70, %c0_71, %c0_72, %c24] : memref<2x16x16x72xf32, #tpu.memory_space<vmem>>, vector<2x16x16x4xf32>
    tpu.vector_store %arg10[%c0_70, %c0_71, %c0_72, %c24], %22 {strides = array<i32>} : memref<2x16x16x72xf32, #tpu.memory_space<vmem>>, vector<2x16x16x4xf32>,
    %c0_73 = arith.constant 0 : index
    %c2_74 = arith.constant 2 : index
    %c1_75 = arith.constant 1 : index
    %c0_76 = arith.constant 0 : index
    %24 = vector.load %arg9[%c0_73, %c2_74, %c1_75, %c0_76] : memref<2x18x18x8xf32, #tpu.memory_space<vmem>>, vector<2x16x16x4xf32>
    %c0_77 = arith.constant 0 : index
    %c0_78 = arith.constant 0 : index
    %c0_79 = arith.constant 0 : index
    %c28 = arith.constant 28 : index
    %25 = vector.load %arg10[%c0_77, %c0_78, %c0_79, %c28] : memref<2x16x16x72xf32, #tpu.memory_space<vmem>>, vector<2x16x16x4xf32>
    tpu.vector_store %arg10[%c0_77, %c0_78, %c0_79, %c28], %24 {strides = array<i32>} : memref<2x16x16x72xf32, #tpu.memory_space<vmem>>, vector<2x16x16x4xf32>,
    %c0_80 = arith.constant 0 : index
    %c2_81 = arith.constant 2 : index
    %c2_82 = arith.constant 2 : index
    %c0_83 = arith.constant 0 : index
    %26 = vector.load %arg9[%c0_80, %c2_81, %c2_82, %c0_83] : memref<2x18x18x8xf32, #tpu.memory_space<vmem>>, vector<2x16x16x4xf32>
    %c0_84 = arith.constant 0 : index
    %c0_85 = arith.constant 0 : index
    %c0_86 = arith.constant 0 : index
    %c32 = arith.constant 32 : index
    %27 = vector.load %arg10[%c0_84, %c0_85, %c0_86, %c32] : memref<2x16x16x72xf32, #tpu.memory_space<vmem>>, vector<2x16x16x4xf32>
    tpu.vector_store %arg10[%c0_84, %c0_85, %c0_86, %c32], %26 {strides = array<i32>} : memref<2x16x16x72xf32, #tpu.memory_space<vmem>>, vector<2x16x16x4xf32>,
    %c0_87 = arith.constant 0 : index
    %c0_88 = arith.constant 0 : index
    %c0_89 = arith.constant 0 : index
    %c0_90 = arith.constant 0 : index
    %28 = vector.load %arg10[%c0_87, %c0_88, %c0_89, %c0_90] : memref<2x16x16x72xf32, #tpu.memory_space<vmem>>, vector<2x16x16x36xf32>
    %29 = vector.shape_cast %28 : vector<2x16x16x36xf32> to vector<512x36xf32>
    %c0_91 = arith.constant 0 : index
    %c0_92 = arith.constant 0 : index
    %30 = vector.load %arg1[%c0_91, %c0_92] : memref<36x8xf32, #tpu.memory_space<vmem>>, vector<36x8xf32>
    %cst_93 = arith.constant dense<0.000000e+00> : vector<512x8xf32>
    %31 = tpu.matmul %29, %30, %cst_93 {dimension_numbers = #tpu.dot_dimension_numbers<[1], [0], [0], [1], [0, 0, 1, 1], [], []>} : vector<512x36xf32>, vector<36x8xf32>, vector<512x8xf32> -> vector<512x8xf32>
    %cst_94 = arith.constant dense<0.000000e+00> : vector<8xf32>
    %32 = vector.multi_reduction <add>, %31, %cst_94 [0] : vector<512x8xf32> to vector<8xf32>
    %33 = vector.shape_cast %32 : vector<8xf32> to vector<1x8xf32>
    %34 = arith.mulf %31, %31 : vector<512x8xf32>
    %cst_95 = arith.constant dense<0.000000e+00> : vector<8xf32>
    %35 = vector.multi_reduction <add>, %34, %cst_95 [0] : vector<512x8xf32> to vector<8xf32>
    %36 = vector.shape_cast %35 : vector<8xf32> to vector<1x8xf32>
    %cst_96 = arith.constant 0.001953125 : f32
    %37 = vector.broadcast %cst_96 : f32 to vector<1x8xf32>
    %38 = arith.mulf %33, %37 : vector<1x8xf32>
    %cst_97 = arith.constant 0.001953125 : f32
    %39 = vector.broadcast %cst_97 : f32 to vector<1x8xf32>
    %40 = arith.mulf %36, %39 : vector<1x8xf32>
    %41 = arith.mulf %38, %38 : vector<1x8xf32>
    %42 = arith.subf %40, %41 : vector<1x8xf32>
    %c0_98 = arith.constant 0 : index
    %c0_99 = arith.constant 0 : index
    %43 = vector.load %arg2[%c0_98, %c0_99] : memref<1x8xf32, #tpu.memory_space<vmem>>, vector<1x8xf32>
    %cst_100 = arith.constant 9.99999974E-6 : f32
    %44 = vector.broadcast %cst_100 : f32 to vector<1x8xf32>
    %45 = arith.addf %42, %44 : vector<1x8xf32>
    %46 = math.rsqrt %45 : vector<1x8xf32>
    %47 = arith.mulf %43, %46 : vector<1x8xf32>
    %c0_101 = arith.constant 0 : index
    %c0_102 = arith.constant 0 : index
    %48 = vector.load %arg3[%c0_101, %c0_102] : memref<1x8xf32, #tpu.memory_space<vmem>>, vector<1x8xf32>
    %49 = arith.mulf %38, %47 : vector<1x8xf32>
    %50 = arith.subf %48, %49 : vector<1x8xf32>
    %51 = vector.broadcast %47 : vector<1x8xf32> to vector<512x8xf32>
    %52 = arith.mulf %31, %51 : vector<512x8xf32>
    %53 = vector.broadcast %50 : vector<1x8xf32> to vector<512x8xf32>
    %54 = arith.addf %52, %53 : vector<512x8xf32>
    %cst_103 = arith.constant 0.000000e+00 : f32
    %55 = vector.broadcast %cst_103 : f32 to vector<512x8xf32>
    %56 = arith.maximumf %54, %55 : vector<512x8xf32>
    %57 = vector.shape_cast %56 : vector<512x8xf32> to vector<2x16x16x8xf32>
    %c0_104 = arith.constant 0 : index
    %c1_105 = arith.constant 1 : index
    %c1_106 = arith.constant 1 : index
    %c0_107 = arith.constant 0 : index
    %58 = vector.load %arg9[%c0_104, %c1_105, %c1_106, %c0_107] : memref<2x18x18x8xf32, #tpu.memory_space<vmem>>, vector<2x16x16x8xf32>
    tpu.vector_store %arg9[%c0_104, %c1_105, %c1_106, %c0_107], %57 {strides = array<i32>} : memref<2x18x18x8xf32, #tpu.memory_space<vmem>>, vector<2x16x16x8xf32>,
    %c0_108 = arith.constant 0 : index
    %c0_109 = arith.constant 0 : index
    %c0_110 = arith.constant 0 : index
    %c0_111 = arith.constant 0 : index
    %59 = vector.load %arg9[%c0_108, %c0_109, %c0_110, %c0_111] : memref<2x18x18x8xf32, #tpu.memory_space<vmem>>, vector<2x16x16x8xf32>
    %c0_112 = arith.constant 0 : index
    %c0_113 = arith.constant 0 : index
    %c0_114 = arith.constant 0 : index
    %c0_115 = arith.constant 0 : index
    %60 = vector.load %arg10[%c0_112, %c0_113, %c0_114, %c0_115] : memref<2x16x16x72xf32, #tpu.memory_space<vmem>>, vector<2x16x16x8xf32>
    tpu.vector_store %arg10[%c0_112, %c0_113, %c0_114, %c0_115], %59 {strides = array<i32>} : memref<2x16x16x72xf32, #tpu.memory_space<vmem>>, vector<2x16x16x8xf32>,
    %c0_116 = arith.constant 0 : index
    %c0_117 = arith.constant 0 : index
    %c1_118 = arith.constant 1 : index
    %c0_119 = arith.constant 0 : index
    %61 = vector.load %arg9[%c0_116, %c0_117, %c1_118, %c0_119] : memref<2x18x18x8xf32, #tpu.memory_space<vmem>>, vector<2x16x16x8xf32>
    %c0_120 = arith.constant 0 : index
    %c0_121 = arith.constant 0 : index
    %c0_122 = arith.constant 0 : index
    %c8_123 = arith.constant 8 : index
    %62 = vector.load %arg10[%c0_120, %c0_121, %c0_122, %c8_123] : memref<2x16x16x72xf32, #tpu.memory_space<vmem>>, vector<2x16x16x8xf32>
    tpu.vector_store %arg10[%c0_120, %c0_121, %c0_122, %c8_123], %61 {strides = array<i32>} : memref<2x16x16x72xf32, #tpu.memory_space<vmem>>, vector<2x16x16x8xf32>,
    %c0_124 = arith.constant 0 : index
    %c0_125 = arith.constant 0 : index
    %c2_126 = arith.constant 2 : index
    %c0_127 = arith.constant 0 : index
    %63 = vector.load %arg9[%c0_124, %c0_125, %c2_126, %c0_127] : memref<2x18x18x8xf32, #tpu.memory_space<vmem>>, vector<2x16x16x8xf32>
    %c0_128 = arith.constant 0 : index
    %c0_129 = arith.constant 0 : index
    %c0_130 = arith.constant 0 : index
    %c16_131 = arith.constant 16 : index
    %64 = vector.load %arg10[%c0_128, %c0_129, %c0_130, %c16_131] : memref<2x16x16x72xf32, #tpu.memory_space<vmem>>, vector<2x16x16x8xf32>
    tpu.vector_store %arg10[%c0_128, %c0_129, %c0_130, %c16_131], %63 {strides = array<i32>} : memref<2x16x16x72xf32, #tpu.memory_space<vmem>>, vector<2x16x16x8xf32>,
    %c0_132 = arith.constant 0 : index
    %c1_133 = arith.constant 1 : index
    %c0_134 = arith.constant 0 : index
    %c0_135 = arith.constant 0 : index
    %65 = vector.load %arg9[%c0_132, %c1_133, %c0_134, %c0_135] : memref<2x18x18x8xf32, #tpu.memory_space<vmem>>, vector<2x16x16x8xf32>
    %c0_136 = arith.constant 0 : index
    %c0_137 = arith.constant 0 : index
    %c0_138 = arith.constant 0 : index
    %c24_139 = arith.constant 24 : index
    %66 = vector.load %arg10[%c0_136, %c0_137, %c0_138, %c24_139] : memref<2x16x16x72xf32, #tpu.memory_space<vmem>>, vector<2x16x16x8xf32>
    tpu.vector_store %arg10[%c0_136, %c0_137, %c0_138, %c24_139], %65 {strides = array<i32>} : memref<2x16x16x72xf32, #tpu.memory_space<vmem>>, vector<2x16x16x8xf32>,
    %c0_140 = arith.constant 0 : index
    %c1_141 = arith.constant 1 : index
    %c1_142 = arith.constant 1 : index
    %c0_143 = arith.constant 0 : index
    %67 = vector.load %arg9[%c0_140, %c1_141, %c1_142, %c0_143] : memref<2x18x18x8xf32, #tpu.memory_space<vmem>>, vector<2x16x16x8xf32>
    %c0_144 = arith.constant 0 : index
    %c0_145 = arith.constant 0 : index
    %c0_146 = arith.constant 0 : index
    %c32_147 = arith.constant 32 : index
    %68 = vector.load %arg10[%c0_144, %c0_145, %c0_146, %c32_147] : memref<2x16x16x72xf32, #tpu.memory_space<vmem>>, vector<2x16x16x8xf32>
    tpu.vector_store %arg10[%c0_144, %c0_145, %c0_146, %c32_147], %67 {strides = array<i32>} : memref<2x16x16x72xf32, #tpu.memory_space<vmem>>, vector<2x16x16x8xf32>,
    %c0_148 = arith.constant 0 : index
    %c1_149 = arith.constant 1 : index
    %c2_150 = arith.constant 2 : index
    %c0_151 = arith.constant 0 : index
    %69 = vector.load %arg9[%c0_148, %c1_149, %c2_150, %c0_151] : memref<2x18x18x8xf32, #tpu.memory_space<vmem>>, vector<2x16x16x8xf32>
    %c0_152 = arith.constant 0 : index
    %c0_153 = arith.constant 0 : index
    %c0_154 = arith.constant 0 : index
    %c40 = arith.constant 40 : index
    %70 = vector.load %arg10[%c0_152, %c0_153, %c0_154, %c40] : memref<2x16x16x72xf32, #tpu.memory_space<vmem>>, vector<2x16x16x8xf32>
    tpu.vector_store %arg10[%c0_152, %c0_153, %c0_154, %c40], %69 {strides = array<i32>} : memref<2x16x16x72xf32, #tpu.memory_space<vmem>>, vector<2x16x16x8xf32>,
    %c0_155 = arith.constant 0 : index
    %c2_156 = arith.constant 2 : index
    %c0_157 = arith.constant 0 : index
    %c0_158 = arith.constant 0 : index
    %71 = vector.load %arg9[%c0_155, %c2_156, %c0_157, %c0_158] : memref<2x18x18x8xf32, #tpu.memory_space<vmem>>, vector<2x16x16x8xf32>
    %c0_159 = arith.constant 0 : index
    %c0_160 = arith.constant 0 : index
    %c0_161 = arith.constant 0 : index
    %c48 = arith.constant 48 : index
    %72 = vector.load %arg10[%c0_159, %c0_160, %c0_161, %c48] : memref<2x16x16x72xf32, #tpu.memory_space<vmem>>, vector<2x16x16x8xf32>
    tpu.vector_store %arg10[%c0_159, %c0_160, %c0_161, %c48], %71 {strides = array<i32>} : memref<2x16x16x72xf32, #tpu.memory_space<vmem>>, vector<2x16x16x8xf32>,
    %c0_162 = arith.constant 0 : index
    %c2_163 = arith.constant 2 : index
    %c1_164 = arith.constant 1 : index
    %c0_165 = arith.constant 0 : index
    %73 = vector.load %arg9[%c0_162, %c2_163, %c1_164, %c0_165] : memref<2x18x18x8xf32, #tpu.memory_space<vmem>>, vector<2x16x16x8xf32>
    %c0_166 = arith.constant 0 : index
    %c0_167 = arith.constant 0 : index
    %c0_168 = arith.constant 0 : index
    %c56 = arith.constant 56 : index
    %74 = vector.load %arg10[%c0_166, %c0_167, %c0_168, %c56] : memref<2x16x16x72xf32, #tpu.memory_space<vmem>>, vector<2x16x16x8xf32>
    tpu.vector_store %arg10[%c0_166, %c0_167, %c0_168, %c56], %73 {strides = array<i32>} : memref<2x16x16x72xf32, #tpu.memory_space<vmem>>, vector<2x16x16x8xf32>,
    %c0_169 = arith.constant 0 : index
    %c2_170 = arith.constant 2 : index
    %c2_171 = arith.constant 2 : index
    %c0_172 = arith.constant 0 : index
    %75 = vector.load %arg9[%c0_169, %c2_170, %c2_171, %c0_172] : memref<2x18x18x8xf32, #tpu.memory_space<vmem>>, vector<2x16x16x8xf32>
    %c0_173 = arith.constant 0 : index
    %c0_174 = arith.constant 0 : index
    %c0_175 = arith.constant 0 : index
    %c64 = arith.constant 64 : index
    %76 = vector.load %arg10[%c0_173, %c0_174, %c0_175, %c64] : memref<2x16x16x72xf32, #tpu.memory_space<vmem>>, vector<2x16x16x8xf32>
    tpu.vector_store %arg10[%c0_173, %c0_174, %c0_175, %c64], %75 {strides = array<i32>} : memref<2x16x16x72xf32, #tpu.memory_space<vmem>>, vector<2x16x16x8xf32>,
    %c0_176 = arith.constant 0 : index
    %c0_177 = arith.constant 0 : index
    %c0_178 = arith.constant 0 : index
    %c0_179 = arith.constant 0 : index
    %77 = vector.load %arg10[%c0_176, %c0_177, %c0_178, %c0_179] : memref<2x16x16x72xf32, #tpu.memory_space<vmem>>, vector<2x16x16x72xf32>
    %78 = vector.shape_cast %77 : vector<2x16x16x72xf32> to vector<512x72xf32>
    %c0_180 = arith.constant 0 : index
    %c0_181 = arith.constant 0 : index
    %79 = vector.load %arg4[%c0_180, %c0_181] : memref<72x8xf32, #tpu.memory_space<vmem>>, vector<72x8xf32>
    %cst_182 = arith.constant dense<0.000000e+00> : vector<512x8xf32>
    %80 = tpu.matmul %78, %79, %cst_182 {dimension_numbers = #tpu.dot_dimension_numbers<[1], [0], [0], [1], [0, 0, 1, 1], [], []>} : vector<512x72xf32>, vector<72x8xf32>, vector<512x8xf32> -> vector<512x8xf32>
    %cst_183 = arith.constant dense<0.000000e+00> : vector<8xf32>
    %81 = vector.multi_reduction <add>, %80, %cst_183 [0] : vector<512x8xf32> to vector<8xf32>
    %82 = vector.shape_cast %81 : vector<8xf32> to vector<1x8xf32>
    %83 = arith.mulf %80, %80 : vector<512x8xf32>
    %cst_184 = arith.constant dense<0.000000e+00> : vector<8xf32>
    %84 = vector.multi_reduction <add>, %83, %cst_184 [0] : vector<512x8xf32> to vector<8xf32>
    %85 = vector.shape_cast %84 : vector<8xf32> to vector<1x8xf32>
    %cst_185 = arith.constant 0.001953125 : f32
    %86 = vector.broadcast %cst_185 : f32 to vector<1x8xf32>
    %87 = arith.mulf %82, %86 : vector<1x8xf32>
    %cst_186 = arith.constant 0.001953125 : f32
    %88 = vector.broadcast %cst_186 : f32 to vector<1x8xf32>
    %89 = arith.mulf %85, %88 : vector<1x8xf32>
    %90 = arith.mulf %87, %87 : vector<1x8xf32>
    %91 = arith.subf %89, %90 : vector<1x8xf32>
    %c0_187 = arith.constant 0 : index
    %c0_188 = arith.constant 0 : index
    %92 = vector.load %arg5[%c0_187, %c0_188] : memref<1x8xf32, #tpu.memory_space<vmem>>, vector<1x8xf32>
    %cst_189 = arith.constant 9.99999974E-6 : f32
    %93 = vector.broadcast %cst_189 : f32 to vector<1x8xf32>
    %94 = arith.addf %91, %93 : vector<1x8xf32>
    %95 = math.rsqrt %94 : vector<1x8xf32>
    %96 = arith.mulf %92, %95 : vector<1x8xf32>
    %c0_190 = arith.constant 0 : index
    %c0_191 = arith.constant 0 : index
    %97 = vector.load %arg6[%c0_190, %c0_191] : memref<1x8xf32, #tpu.memory_space<vmem>>, vector<1x8xf32>
    %98 = arith.mulf %87, %96 : vector<1x8xf32>
    %99 = arith.subf %97, %98 : vector<1x8xf32>
    %100 = vector.broadcast %96 : vector<1x8xf32> to vector<512x8xf32>
    %101 = arith.mulf %80, %100 : vector<512x8xf32>
    %102 = vector.broadcast %99 : vector<1x8xf32> to vector<512x8xf32>
    %103 = arith.addf %101, %102 : vector<512x8xf32>
    %cst_192 = arith.constant 0.000000e+00 : f32
    %104 = vector.broadcast %cst_192 : f32 to vector<512x8xf32>
    %105 = arith.maximumf %103, %104 : vector<512x8xf32>
    %106 = vector.shape_cast %105 : vector<512x8xf32> to vector<2x16x16x8xf32>
    %c0_193 = arith.constant 0 : index
    %c0_194 = arith.constant 0 : index
    %c0_195 = arith.constant 0 : index
    %c0_196 = arith.constant 0 : index
    %107 = vector.load %arg7[%c0_193, %c0_194, %c0_195, %c0_196] : memref<2x16x16x8xf32, #tpu.memory_space<vmem>>, vector<2x16x16x8xf32>
    tpu.vector_store %arg7[%c0_193, %c0_194, %c0_195, %c0_196], %106 {strides = array<i32>} : memref<2x16x16x8xf32, #tpu.memory_space<vmem>>, vector<2x16x16x8xf32>,
    %108 = vector.shape_cast %105 : vector<512x8xf32> to vector<16x2x16x8xf32>
    %109 = vector.extract_strided_slice %108 {offsets = [0, 0, 0, 0], sizes = [16, 1, 16, 8], strides = [1, 1, 1, 1]} : vector<16x2x16x8xf32> to vector<16x1x16x8xf32>
    %110 = vector.shape_cast %109 : vector<16x1x16x8xf32> to vector<16x16x8xf32>
    %111 = vector.extract_strided_slice %108 {offsets = [0, 1, 0, 0], sizes = [16, 1, 16, 8], strides = [1, 1, 1, 1]} : vector<16x2x16x8xf32> to vector<16x1x16x8xf32>
    %112 = vector.shape_cast %111 : vector<16x1x16x8xf32> to vector<16x16x8xf32>
    %113 = arith.maximumf %110, %112 : vector<16x16x8xf32>
    %114 = vector.shape_cast %113 : vector<16x16x8xf32> to vector<2x8x16x8xf32>
    %c0_197 = arith.constant 0 : index
    %c0_198 = arith.constant 0 : index
    %c0_199 = arith.constant 0 : index
    %c0_200 = arith.constant 0 : index
    %115 = vector.load %arg9[%c0_197, %c0_198, %c0_199, %c0_200] : memref<2x18x18x8xf32, #tpu.memory_space<vmem>>, vector<2x8x16x8xf32>
    tpu.vector_store %arg9[%c0_197, %c0_198, %c0_199, %c0_200], %114 {strides = array<i32>} : memref<2x18x18x8xf32, #tpu.memory_space<vmem>>, vector<2x8x16x8xf32>,
    %c0_201 = arith.constant 0 : index
    %c0_202 = arith.constant 0 : index
    %c0_203 = arith.constant 0 : index
    %c0_204 = arith.constant 0 : index
    %116 = tpu.strided_load %arg9[%c0_201, %c0_202, %c0_203, %c0_204] {strides = array<i32: 1, 1, 2, 1>} : memref<2x18x18x8xf32, #tpu.memory_space<vmem>>, vector<2x8x8x8xf32>
    %c0_205 = arith.constant 0 : index
    %c0_206 = arith.constant 0 : index
    %c1_207 = arith.constant 1 : index
    %c0_208 = arith.constant 0 : index
    %117 = tpu.strided_load %arg9[%c0_205, %c0_206, %c1_207, %c0_208] {strides = array<i32: 1, 1, 2, 1>} : memref<2x18x18x8xf32, #tpu.memory_space<vmem>>, vector<2x8x8x8xf32>
    %118 = arith.maximumf %116, %117 : vector<2x8x8x8xf32>
    %c0_209 = arith.constant 0 : index
    %c0_210 = arith.constant 0 : index
    %c0_211 = arith.constant 0 : index
    %c0_212 = arith.constant 0 : index
    %119 = vector.load %arg8[%c0_209, %c0_210, %c0_211, %c0_212] : memref<2x8x8x8xf32, #tpu.memory_space<vmem>>, vector<2x8x8x8xf32>
    tpu.vector_store %arg8[%c0_209, %c0_210, %c0_211, %c0_212], %118 {strides = array<i32>} : memref<2x8x8x8xf32, #tpu.memory_space<vmem>>, vector<2x8x8x8xf32>,
    return
  }
}

</mosaic_0001>

<llo_original>
// kernel: tpu_custom_call.1
$region0: #{tpu_custom_call.1}
  #allocation0 [shape = 'u32[]', space=smem, size = 0x4, offset = 0x4, fixed_abs, tag = 'smem constant byte address 0x4 - core index']
  #allocation1 [shape = 'u32[144,128]{1,0:T(1,128)}', space=vmem, size = 0x12000, scoped, tag = 'internal scratch']
  #allocation2 [shape = 'f32[2,18,18,8]{3,2,1,0:T(8,128)}', space=vmem, size = 0x6c000, scoped, tag = 'scratch operand']
  #allocation3 [shape = 'f32[2,16,16,72]{3,2,1,0:T(8,128)}', space=vmem, size = 0x40000, scoped, tag = 'scratch operand']
  %s0 = inlined_call_operand.vmem [shape: f32[2,16,16,4], index: 0, kind: input, shape index: {}]
  %s1 = inlined_call_operand.vmem [shape: f32[36,8], index: 1, kind: input, shape index: {}]
  %s2 = inlined_call_operand.vmem [shape: f32[1,8], index: 2, kind: input, shape index: {}]
  %s3 = inlined_call_operand.vmem [shape: f32[1,8], index: 3, kind: input, shape index: {}]
  %s4 = inlined_call_operand.vmem [shape: f32[72,8], index: 4, kind: input, shape index: {}]
  %s5 = inlined_call_operand.vmem [shape: f32[1,8], index: 5, kind: input, shape index: {}]
  %s6 = inlined_call_operand.vmem [shape: f32[1,8], index: 6, kind: input, shape index: {}]
  %s7 = inlined_call_operand.vmem [shape: f32[2,16,16,8], index: 7, kind: output, shape index: {0}]
  %s8 = inlined_call_operand.hbm [shape: f32[2,8,8,8], index: 8, kind: output, shape index: {1}]
  %9 = xla_tuple %s7, %s8
  %s10 = sld [smem:[#allocation0]]
  $region46: #{tpu_custom_call.1} parent=0
    _
  %s12 = ssub.s32 1, %s10
  %s13 = scalar_select 0, %s12, %s10
  $region1: #{tpu_custom_call.1} parent=0
    #allocation4 [shape = 'u8[65536]{0}', space=vmem, size = 0x10000, scoped, tag = 'output window, operand 1, single buffered']
    #allocation5 [shape = 's32[1]{0}', space=sflag, size = 0x4, scoped, tag = 'scoped memory for tpu_custom_call.1']
    %14 = vsyncpa [#allocation5], 0
    // Predicated region
    $region2: #{tpu_custom_call.1} parent=1 // pred_check
      _
    $region3: #{tpu_custom_call.1} parent=1 // pred_check_branch
      %16 = sbr.rel (0) target = $region5
    $region4: #{tpu_custom_call.1} parent=1 // pred_region
      _
    $region5: #{tpu_custom_call.1} parent=1 // pred_fallthru
      _
    // Predicated region
    $region6: #{tpu_custom_call.1} parent=1 // pred_check
      _
    $region7: #{tpu_custom_call.1} parent=1 // pred_check_branch
      %18 = sbr.rel (0) target = $region9
    $region8: #{tpu_custom_call.1} parent=1 // pred_region
      _
    $region9: #{tpu_custom_call.1} parent=1 // pred_fallthru
      _
    // Predicated region
    $region10: #{tpu_custom_call.1} parent=1 // pred_check
      _
    $region11: #{tpu_custom_call.1} parent=1 // pred_check_branch
      %20 = sbr.rel (0) target = $region13
    $region12: #{tpu_custom_call.1} parent=1 // pred_region
      _
    $region13: #{tpu_custom_call.1} parent=1 // pred_fallthru
      _
    // Predicated region
    $region14: #{tpu_custom_call.1} parent=1 // pred_check
      _
    $region15: #{tpu_custom_call.1} parent=1 // pred_check_branch
      %22 = sbr.rel (0) target = $region17
    $region16: #{tpu_custom_call.1} parent=1 // pred_region
      _
    $region17: #{tpu_custom_call.1} parent=1 // pred_fallthru
      _
    // Predicated region
    $region18: #{tpu_custom_call.1} parent=1 // pred_check
      _
    $region19: #{tpu_custom_call.1} parent=1 // pred_check_branch
      %24 = sbr.rel (0) target = $region21
    $region20: #{tpu_custom_call.1} parent=1 // pred_region
      _
    $region21: #{tpu_custom_call.1} parent=1 // pred_fallthru
      _
    // Predicated region
    $region22: #{tpu_custom_call.1} parent=1 // pred_check
      _
    $region23: #{tpu_custom_call.1} parent=1 // pred_check_branch
      %26 = sbr.rel (0) target = $region25
    $region24: #{tpu_custom_call.1} parent=1 // pred_region
      _
    $region25: #{tpu_custom_call.1} parent=1 // pred_fallthru
      _
    // Predicated region
    $region26: #{tpu_custom_call.1} parent=1 // pred_check
      _
    $region27: #{tpu_custom_call.1} parent=1 // pred_check_branch
      %28 = sbr.rel (0) target = $region29
    $region28: #{tpu_custom_call.1} parent=1 // pred_region
      _
    $region29: #{tpu_custom_call.1} parent=1 // pred_fallthru
      _
    %vm29 = vcmask 64512
    %30 = vst.msk [vmem:[#allocation2] sm:$0xff] %vm29, 0.0
    %31 = vst.msk [vmem:[#allocation2 + $0x8] sm:$0xff] %vm29, 0.0
    %vm32 = vcmask 58368
    %33 = vst.msk [vmem:[#allocation2 + $0x10] sm:$0x3] %vm32, 0.0
    %34 = vst.msk [vmem:[#allocation2 + $0x1b0] sm:$0xff] %vm29, 0.0
    %35 = vst.msk [vmem:[#allocation2 + $0x1b8] sm:$0xff] %vm29, 0.0
    %36 = vst.msk [vmem:[#allocation2 + $0x1c0] sm:$0x3] %vm32, 0.0
    %s37 = scalar_lea.vmem [#allocation2], 408
    %38 = vst.msk [vmem:[%s37] sm:$0xff] %vm29, 0.0
    %39 = vst.msk [vmem:[%s37 + $0x8] sm:$0xff] %vm29, 0.0
    %40 = vst.msk [vmem:[%s37 + $0x10] sm:$0x3] %vm32, 0.0
    %41 = vst.msk [vmem:[%s37 + $0x1b0] sm:$0xff] %vm29, 0.0
    %42 = vst.msk [vmem:[%s37 + $0x1b8] sm:$0xff] %vm29, 0.0
    %43 = vst.msk [vmem:[%s37 + $0x1c0] sm:$0x3] %vm32, 0.0
    %vm44 = vcmask 57344
    %45 = vst.msk [vmem:[#allocation2] sm:$0x1] %vm44, 0.0
    %46 = vst.msk [vmem:[#allocation2 + $0x18] sm:$0x1] %vm44, 0.0
    %47 = vst.msk [vmem:[#allocation2 + $0x30] sm:$0x1] %vm44, 0.0
    %48 = vst.msk [vmem:[#allocation2 + $0x48] sm:$0x1] %vm44, 0.0
    %49 = vst.msk [vmem:[#allocation2 + $0x60] sm:$0x1] %vm44, 0.0
    %50 = vst.msk [vmem:[#allocation2 + $0x78] sm:$0x1] %vm44, 0.0
    %51 = vst.msk [vmem:[#allocation2 + $0x90] sm:$0x1] %vm44, 0.0
    %52 = vst.msk [vmem:[#allocation2 + $0xa8] sm:$0x1] %vm44, 0.0
    %53 = vst.msk [vmem:[#allocation2 + $0xc0] sm:$0x1] %vm44, 0.0
    %54 = vst.msk [vmem:[#allocation2 + $0xd8] sm:$0x1] %vm44, 0.0
    %55 = vst.msk [vmem:[#allocation2 + $0xf0] sm:$0x1] %vm44, 0.0
    %56 = vst.msk [vmem:[#allocation2 + $0x108] sm:$0x1] %vm44, 0.0
    %57 = vst.msk [vmem:[#allocation2 + $0x120] sm:$0x1] %vm44, 0.0
    %58 = vst.msk [vmem:[#allocation2 + $0x138] sm:$0x1] %vm44, 0.0
    %59 = vst.msk [vmem:[#allocation2 + $0x150] sm:$0x1] %vm44, 0.0
    %60 = vst.msk [vmem:[#allocation2 + $0x168] sm:$0x1] %vm44, 0.0
    %61 = vst.msk [vmem:[#allocation2 + $0x180] sm:$0x1] %vm44, 0.0
    %62 = vst.msk [vmem:[#allocation2 + $0x198] sm:$0x1] %vm44, 0.0
    %63 = vst.msk [vmem:[#allocation2 + $0x1b0] sm:$0x1] %vm44, 0.0
    %64 = vst.msk [vmem:[#allocation2 + $0x1c8] sm:$0x1] %vm44, 0.0
    %65 = vst.msk [vmem:[#allocation2 + $0x1e0] sm:$0x1] %vm44, 0.0
    %66 = vst.msk [vmem:[#allocation2 + $0x1f8] sm:$0x1] %vm44, 0.0
    %67 = vst.msk [vmem:[#allocation2 + $0x210] sm:$0x1] %vm44, 0.0
    %68 = vst.msk [vmem:[#allocation2 + $0x228] sm:$0x1] %vm44, 0.0
    %69 = vst.msk [vmem:[#allocation2 + $0x240] sm:$0x1] %vm44, 0.0
    %70 = vst.msk [vmem:[#allocation2 + $0x258] sm:$0x1] %vm44, 0.0
    %71 = vst.msk [vmem:[#allocation2 + $0x270] sm:$0x1] %vm44, 0.0
    %72 = vst.msk [vmem:[#allocation2 + $0x288] sm:$0x1] %vm44, 0.0
    %73 = vst.msk [vmem:[#allocation2 + $0x2a0] sm:$0x1] %vm44, 0.0
    %74 = vst.msk [vmem:[#allocation2 + $0x2b8] sm:$0x1] %vm44, 0.0
    %75 = vst.msk [vmem:[#allocation2 + $0x2d0] sm:$0x1] %vm44, 0.0
    %76 = vst.msk [vmem:[#allocation2 + $0x2e8] sm:$0x1] %vm44, 0.0
    %77 = vst.msk [vmem:[#allocation2 + $0x300] sm:$0x1] %vm44, 0.0
    %78 = vst.msk [vmem:[#allocation2 + $0x318] sm:$0x1] %vm44, 0.0
    %79 = vst.msk [vmem:[#allocation2 + $0x330] sm:$0x1] %vm44, 0.0
    %80 = vst.msk [vmem:[#allocation2 + $0x348] sm:$0x1] %vm44, 0.0
    %81 = vst.msk [vmem:[#allocation2 + $0x11] sm:$0x1] %vm44, 0.0
    %82 = vst.msk [vmem:[#allocation2 + $0x29] sm:$0x1] %vm44, 0.0
    %83 = vst.msk [vmem:[#allocation2 + $0x41] sm:$0x1] %vm44, 0.0
    %84 = vst.msk [vmem:[#allocation2 + $0x59] sm:$0x1] %vm44, 0.0
    %85 = vst.msk [vmem:[#allocation2 + $0x71] sm:$0x1] %vm44, 0.0
    %86 = vst.msk [vmem:[#allocation2 + $0x89] sm:$0x1] %vm44, 0.0
    %87 = vst.msk [vmem:[#allocation2 + $0xa1] sm:$0x1] %vm44, 0.0
    %88 = vst.msk [vmem:[#allocation2 + $0xb9] sm:$0x1] %vm44, 0.0
    %89 = vst.msk [vmem:[#allocation2 + $0xd1] sm:$0x1] %vm44, 0.0
    %90 = vst.msk [vmem:[#allocation2 + $0xe9] sm:$0x1] %vm44, 0.0
    %91 = vst.msk [vmem:[#allocation2 + $0x101] sm:$0x1] %vm44, 0.0
    %92 = vst.msk [vmem:[#allocation2 + $0x119] sm:$0x1] %vm44, 0.0
    %93 = vst.msk [vmem:[#allocation2 + $0x131] sm:$0x1] %vm44, 0.0
    %94 = vst.msk [vmem:[#allocation2 + $0x149] sm:$0x1] %vm44, 0.0
    %95 = vst.msk [vmem:[#allocation2 + $0x161] sm:$0x1] %vm44, 0.0
    %96 = vst.msk [vmem:[#allocation2 + $0x179] sm:$0x1] %vm44, 0.0
    %97 = vst.msk [vmem:[#allocation2 + $0x191] sm:$0x1] %vm44, 0.0
    %98 = vst.msk [vmem:[#allocation2 + $0x1a9] sm:$0x1] %vm44, 0.0
    %99 = vst.msk [vmem:[#allocation2 + $0x1c1] sm:$0x1] %vm44, 0.0
    %100 = vst.msk [vmem:[#allocation2 + $0x1d9] sm:$0x1] %vm44, 0.0
    %101 = vst.msk [vmem:[#allocation2 + $0x1f1] sm:$0x1] %vm44, 0.0
    %102 = vst.msk [vmem:[#allocation2 + $0x209] sm:$0x1] %vm44, 0.0
    %103 = vst.msk [vmem:[#allocation2 + $0x221] sm:$0x1] %vm44, 0.0
    %104 = vst.msk [vmem:[#allocation2 + $0x239] sm:$0x1] %vm44, 0.0
    %105 = vst.msk [vmem:[#allocation2 + $0x251] sm:$0x1] %vm44, 0.0
    %106 = vst.msk [vmem:[#allocation2 + $0x269] sm:$0x1] %vm44, 0.0
    %107 = vst.msk [vmem:[#allocation2 + $0x281] sm:$0x1] %vm44, 0.0
    %108 = vst.msk [vmem:[#allocation2 + $0x299] sm:$0x1] %vm44, 0.0
    %109 = vst.msk [vmem:[#allocation2 + $0x2b1] sm:$0x1] %vm44, 0.0
    %110 = vst.msk [vmem:[#allocation2 + $0x2c9] sm:$0x1] %vm44, 0.0
    %111 = vst.msk [vmem:[#allocation2 + $0x2e1] sm:$0x1] %vm44, 0.0
    %112 = vst.msk [vmem:[#allocation2 + $0x2f9] sm:$0x1] %vm44, 0.0
    %113 = vst.msk [vmem:[#allocation2 + $0x311] sm:$0x1] %vm44, 0.0
    %114 = vst.msk [vmem:[#allocation2 + $0x329] sm:$0x1] %vm44, 0.0
    %115 = vst.msk [vmem:[#allocation2 + $0x341] sm:$0x1] %vm44, 0.0
    %116 = vst.msk [vmem:[#allocation2 + $0x359] sm:$0x1] %vm44, 0.0
    %v117 = vld [vmem:[%s0] sm:$0xff]
    %v118 = vld [vmem:[%s0 + $0x8] sm:$0xff]
    %v119 = vld [vmem:[%s0 + $0x10] sm:$0xff]
    %v120 = vld [vmem:[%s0 + $0x18] sm:$0xff]
    %v121 = vld [vmem:[%s0 + $0x20] sm:$0xff]
    %v122 = vld [vmem:[%s0 + $0x28] sm:$0xff]
    %v123 = vld [vmem:[%s0 + $0x30] sm:$0xff]
    %v124 = vld [vmem:[%s0 + $0x38] sm:$0xff]
    %v125 = vld [vmem:[%s0 + $0x40] sm:$0xff]
    %v126 = vld [vmem:[%s0 + $0x48] sm:$0xff]
    %v127 = vld [vmem:[%s0 + $0x50] sm:$0xff]
    %v128 = vld [vmem:[%s0 + $0x58] sm:$0xff]
    %v129 = vld [vmem:[%s0 + $0x60] sm:$0xff]
    %v130 = vld [vmem:[%s0 + $0x68] sm:$0xff]
    %v131 = vld [vmem:[%s0 + $0x70] sm:$0xff]
    %v132 = vld [vmem:[%s0 + $0x78] sm:$0xff]
    %v133 = vld [vmem:[%s0 + $0x80] sm:$0xff]
    %v134 = vld [vmem:[%s0 + $0x88] sm:$0xff]
    %v135 = vld [vmem:[%s0 + $0x90] sm:$0xff]
    %v136 = vld [vmem:[%s0 + $0x98] sm:$0xff]
    %v137 = vld [vmem:[%s0 + $0xa0] sm:$0xff]
    %v138 = vld [vmem:[%s0 + $0xa8] sm:$0xff]
    %v139 = vld [vmem:[%s0 + $0xb0] sm:$0xff]
    %v140 = vld [vmem:[%s0 + $0xb8] sm:$0xff]
    %v141 = vld [vmem:[%s0 + $0xc0] sm:$0xff]
    %v142 = vld [vmem:[%s0 + $0xc8] sm:$0xff]
    %v143 = vld [vmem:[%s0 + $0xd0] sm:$0xff]
    %v144 = vld [vmem:[%s0 + $0xd8] sm:$0xff]
    %v145 = vld [vmem:[%s0 + $0xe0] sm:$0xff]
    %v146 = vld [vmem:[%s0 + $0xe8] sm:$0xff]
    %v147 = vld [vmem:[%s0 + $0xf0] sm:$0xff]
    %v148 = vld [vmem:[%s0 + $0xf8] sm:$0xff]
    %v149 = vld [vmem:[%s0 + $0x100] sm:$0xff]
    %v150 = vld [vmem:[%s0 + $0x108] sm:$0xff]
    %v151 = vld [vmem:[%s0 + $0x110] sm:$0xff]
    %v152 = vld [vmem:[%s0 + $0x118] sm:$0xff]
    %v153 = vld [vmem:[%s0 + $0x120] sm:$0xff]
    %v154 = vld [vmem:[%s0 + $0x128] sm:$0xff]
    %v155 = vld [vmem:[%s0 + $0x130] sm:$0xff]
    %v156 = vld [vmem:[%s0 + $0x138] sm:$0xff]
    %v157 = vld [vmem:[%s0 + $0x140] sm:$0xff]
    %v158 = vld [vmem:[%s0 + $0x148] sm:$0xff]
    %v159 = vld [vmem:[%s0 + $0x150] sm:$0xff]
    %v160 = vld [vmem:[%s0 + $0x158] sm:$0xff]
    %v161 = vld [vmem:[%s0 + $0x160] sm:$0xff]
    %v162 = vld [vmem:[%s0 + $0x168] sm:$0xff]
    %v163 = vld [vmem:[%s0 + $0x170] sm:$0xff]
    %v164 = vld [vmem:[%s0 + $0x178] sm:$0xff]
    %v165 = vld [vmem:[%s0 + $0x180] sm:$0xff]
    %v166 = vld [vmem:[%s0 + $0x188] sm:$0xff]
    %v167 = vld [vmem:[%s0 + $0x190] sm:$0xff]
    %v168 = vld [vmem:[%s0 + $0x198] sm:$0xff]
    %v169 = vld [vmem:[%s0 + $0x1a0] sm:$0xff]
    %v170 = vld [vmem:[%s0 + $0x1a8] sm:$0xff]
    %v171 = vld [vmem:[%s0 + $0x1b0] sm:$0xff]
    %v172 = vld [vmem:[%s0 + $0x1b8] sm:$0xff]
    %v173 = vld [vmem:[%s0 + $0x1c0] sm:$0xff]
    %v174 = vld [vmem:[%s0 + $0x1c8] sm:$0xff]
    %v175 = vld [vmem:[%s0 + $0x1d0] sm:$0xff]
    %v176 = vld [vmem:[%s0 + $0x1d8] sm:$0xff]
    %v177 = vld [vmem:[%s0 + $0x1e0] sm:$0xff]
    %v178 = vld [vmem:[%s0 + $0x1e8] sm:$0xff]
    %v179 = vld [vmem:[%s0 + $0x1f0] sm:$0xff]
    %v180 = vld [vmem:[%s0 + $0x1f8] sm:$0xff]
    %s181 = scalar_lea.vmem [#allocation2], 24
    %vm182 = vcmask 31744
    %183 = vst.msk [vmem:[%s181 + $0x1] sm:$0xff] %vm182, %v117
    %184 = vst.msk [vmem:[%s181 + $0x9] sm:$0xff] %vm182, %v118
    %185 = vst.msk [vmem:[%s181 + $0x19] sm:$0xff] %vm182, %v119
    %186 = vst.msk [vmem:[%s181 + $0x21] sm:$0xff] %vm182, %v120
    %187 = vst.msk [vmem:[%s181 + $0x31] sm:$0xff] %vm182, %v121
    %188 = vst.msk [vmem:[%s181 + $0x39] sm:$0xff] %vm182, %v122
    %189 = vst.msk [vmem:[%s181 + $0x49] sm:$0xff] %vm182, %v123
    %190 = vst.msk [vmem:[%s181 + $0x51] sm:$0xff] %vm182, %v124
    %191 = vst.msk [vmem:[%s181 + $0x61] sm:$0xff] %vm182, %v125
    %192 = vst.msk [vmem:[%s181 + $0x69] sm:$0xff] %vm182, %v126
    %193 = vst.msk [vmem:[%s181 + $0x79] sm:$0xff] %vm182, %v127
    %194 = vst.msk [vmem:[%s181 + $0x81] sm:$0xff] %vm182, %v128
    %195 = vst.msk [vmem:[%s181 + $0x91] sm:$0xff] %vm182, %v129
    %196 = vst.msk [vmem:[%s181 + $0x99] sm:$0xff] %vm182, %v130
    %197 = vst.msk [vmem:[%s181 + $0xa9] sm:$0xff] %vm182, %v131
    %198 = vst.msk [vmem:[%s181 + $0xb1] sm:$0xff] %vm182, %v132
    %199 = vst.msk [vmem:[%s181 + $0xc1] sm:$0xff] %vm182, %v133
    %200 = vst.msk [vmem:[%s181 + $0xc9] sm:$0xff] %vm182, %v134
    %201 = vst.msk [vmem:[%s181 + $0xd9] sm:$0xff] %vm182, %v135
    %202 = vst.msk [vmem:[%s181 + $0xe1] sm:$0xff] %vm182, %v136
    %203 = vst.msk [vmem:[%s181 + $0xf1] sm:$0xff] %vm182, %v137
    %204 = vst.msk [vmem:[%s181 + $0xf9] sm:$0xff] %vm182, %v138
    %205 = vst.msk [vmem:[%s181 + $0x109] sm:$0xff] %vm182, %v139
    %206 = vst.msk [vmem:[%s181 + $0x111] sm:$0xff] %vm182, %v140
    %207 = vst.msk [vmem:[%s181 + $0x121] sm:$0xff] %vm182, %v141
    %208 = vst.msk [vmem:[%s181 + $0x129] sm:$0xff] %vm182, %v142
    %209 = vst.msk [vmem:[%s181 + $0x139] sm:$0xff] %vm182, %v143
    %210 = vst.msk [vmem:[%s181 + $0x141] sm:$0xff] %vm182, %v144
    %211 = vst.msk [vmem:[%s181 + $0x151] sm:$0xff] %vm182, %v145
    %212 = vst.msk [vmem:[%s181 + $0x159] sm:$0xff] %vm182, %v146
    %213 = vst.msk [vmem:[%s181 + $0x169] sm:$0xff] %vm182, %v147
    %214 = vst.msk [vmem:[%s181 + $0x171] sm:$0xff] %vm182, %v148
    %215 = vst.msk [vmem:[%s181 + $0x1b1] sm:$0xff] %vm182, %v149
    %216 = vst.msk [vmem:[%s181 + $0x1b9] sm:$0xff] %vm182, %v150
    %217 = vst.msk [vmem:[%s181 + $0x1c9] sm:$0xff] %vm182, %v151
    %218 = vst.msk [vmem:[%s181 + $0x1d1] sm:$0xff] %vm182, %v152
    %219 = vst.msk [vmem:[%s181 + $0x1e1] sm:$0xff] %vm182, %v153
    %220 = vst.msk [vmem:[%s181 + $0x1e9] sm:$0xff] %vm182, %v154
    %221 = vst.msk [vmem:[%s181 + $0x1f9] sm:$0xff] %vm182, %v155
    %222 = vst.msk [vmem:[%s181 + $0x201] sm:$0xff] %vm182, %v156
    %223 = vst.msk [vmem:[%s181 + $0x211] sm:$0xff] %vm182, %v157
    %224 = vst.msk [vmem:[%s181 + $0x219] sm:$0xff] %vm182, %v158
    %225 = vst.msk [vmem:[%s181 + $0x229] sm:$0xff] %vm182, %v159
    %226 = vst.msk [vmem:[%s181 + $0x231] sm:$0xff] %vm182, %v160
    %227 = vst.msk [vmem:[%s181 + $0x241] sm:$0xff] %vm182, %v161
    %228 = vst.msk [vmem:[%s181 + $0x249] sm:$0xff] %vm182, %v162
    %229 = vst.msk [vmem:[%s181 + $0x259] sm:$0xff] %vm182, %v163
    %230 = vst.msk [vmem:[%s181 + $0x261] sm:$0xff] %vm182, %v164
    %231 = vst.msk [vmem:[%s181 + $0x271] sm:$0xff] %vm182, %v165
    %232 = vst.msk [vmem:[%s181 + $0x279] sm:$0xff] %vm182, %v166
    %233 = vst.msk [vmem:[%s181 + $0x289] sm:$0xff] %vm182, %v167
    %234 = vst.msk [vmem:[%s181 + $0x291] sm:$0xff] %vm182, %v168
    %235 = vst.msk [vmem:[%s181 + $0x2a1] sm:$0xff] %vm182, %v169
    %236 = vst.msk [vmem:[%s181 + $0x2a9] sm:$0xff] %vm182, %v170
    %237 = vst.msk [vmem:[%s181 + $0x2b9] sm:$0xff] %vm182, %v171
    %238 = vst.msk [vmem:[%s181 + $0x2c1] sm:$0xff] %vm182, %v172
    %239 = vst.msk [vmem:[%s181 + $0x2d1] sm:$0xff] %vm182, %v173
    %240 = vst.msk [vmem:[%s181 + $0x2d9] sm:$0xff] %vm182, %v174
    %241 = vst.msk [vmem:[%s181 + $0x2e9] sm:$0xff] %vm182, %v175
    %242 = vst.msk [vmem:[%s181 + $0x2f1] sm:$0xff] %vm182, %v176
    %243 = vst.msk [vmem:[%s181 + $0x301] sm:$0xff] %vm182, %v177
    %244 = vst.msk [vmem:[%s181 + $0x309] sm:$0xff] %vm182, %v178
    %245 = vst.msk [vmem:[%s181 + $0x319] sm:$0xff] %vm182, %v179
    %246 = vst.msk [vmem:[%s181 + $0x321] sm:$0xff] %vm182, %v180
    %v247 = vld [vmem:[#allocation2] sm:$0xff]
    %v248 = vld [vmem:[#allocation2 + $0x8] sm:$0xff]
    %v249 = vld [vmem:[#allocation2 + $0x18] sm:$0xff]
    %v250 = vld [vmem:[#allocation2 + $0x20] sm:$0xff]
    %v251 = vld [vmem:[#allocation2 + $0x30] sm:$0xff]
    %v252 = vld [vmem:[#allocation2 + $0x38] sm:$0xff]
    %v253 = vld [vmem:[#allocation2 + $0x48] sm:$0xff]
    %v254 = vld [vmem:[#allocation2 + $0x50] sm:$0xff]
    %v255 = vld [vmem:[#allocation2 + $0x60] sm:$0xff]
    %v256 = vld [vmem:[#allocation2 + $0x68] sm:$0xff]
    %v257 = vld [vmem:[#allocation2 + $0x78] sm:$0xff]
    %v258 = vld [vmem:[#allocation2 + $0x80] sm:$0xff]
    %v259 = vld [vmem:[#allocation2 + $0x90] sm:$0xff]
    %v260 = vld [vmem:[#allocation2 + $0x98] sm:$0xff]
    %v261 = vld [vmem:[#allocation2 + $0xa8] sm:$0xff]
    %v262 = vld [vmem:[#allocation2 + $0xb0] sm:$0xff]
    %v263 = vld [vmem:[#allocation2 + $0xc0] sm:$0xff]
    %v264 = vld [vmem:[#allocation2 + $0xc8] sm:$0xff]
    %v265 = vld [vmem:[#allocation2 + $0xd8] sm:$0xff]
    %v266 = vld [vmem:[#allocation2 + $0xe0] sm:$0xff]
    %v267 = vld [vmem:[#allocation2 + $0xf0] sm:$0xff]
    %v268 = vld [vmem:[#allocation2 + $0xf8] sm:$0xff]
    %v269 = vld [vmem:[#allocation2 + $0x108] sm:$0xff]
    %v270 = vld [vmem:[#allocation2 + $0x110] sm:$0xff]
    %v271 = vld [vmem:[#allocation2 + $0x120] sm:$0xff]
    %v272 = vld [vmem:[#allocation2 + $0x128] sm:$0xff]
    %v273 = vld [vmem:[#allocation2 + $0x138] sm:$0xff]
    %v274 = vld [vmem:[#allocation2 + $0x140] sm:$0xff]
    %v275 = vld [vmem:[#allocation2 + $0x150] sm:$0xff]
    %v276 = vld [vmem:[#allocation2 + $0x158] sm:$0xff]
    %v277 = vld [vmem:[#allocation2 + $0x168] sm:$0xff]
    %v278 = vld [vmem:[#allocation2 + $0x170] sm:$0xff]
    %v279 = vld [vmem:[#allocation2 + $0x1b0] sm:$0xff]
    %v280 = vld [vmem:[#allocation2 + $0x1b8] sm:$0xff]
    %v281 = vld [vmem:[#allocation2 + $0x1c8] sm:$0xff]
    %v282 = vld [vmem:[#allocation2 + $0x1d0] sm:$0xff]
    %v283 = vld [vmem:[#allocation2 + $0x1e0] sm:$0xff]
    %v284 = vld [vmem:[#allocation2 + $0x1e8] sm:$0xff]
    %v285 = vld [vmem:[#allocation2 + $0x1f8] sm:$0xff]
    %v286 = vld [vmem:[#allocation2 + $0x200] sm:$0xff]
    %v287 = vld [vmem:[#allocation2 + $0x210] sm:$0xff]
    %v288 = vld [vmem:[#allocation2 + $0x218] sm:$0xff]
    %v289 = vld [vmem:[#allocation2 + $0x228] sm:$0xff]
    %v290 = vld [vmem:[#allocation2 + $0x230] sm:$0xff]
    %v291 = vld [vmem:[#allocation2 + $0x240] sm:$0xff]
    %v292 = vld [vmem:[#allocation2 + $0x248] sm:$0xff]
    %v293 = vld [vmem:[#allocation2 + $0x258] sm:$0xff]
    %v294 = vld [vmem:[#allocation2 + $0x260] sm:$0xff]
    %v295 = vld [vmem:[#allocation2 + $0x270] sm:$0xff]
    %v296 = vld [vmem:[#allocation2 + $0x278] sm:$0xff]
    %v297 = vld [vmem:[#allocation2 + $0x288] sm:$0xff]
    %v298 = vld [vmem:[#allocation2 + $0x290] sm:$0xff]
    %v299 = vld [vmem:[#allocation2 + $0x2a0] sm:$0xff]
    %v300 = vld [vmem:[#allocation2 + $0x2a8] sm:$0xff]
    %v301 = vld [vmem:[#allocation2 + $0x2b8] sm:$0xff]
    %v302 = vld [vmem:[#allocation2 + $0x2c0] sm:$0xff]
    %v303 = vld [vmem:[#allocation2 + $0x2d0] sm:$0xff]
    %v304 = vld [vmem:[#allocation2 + $0x2d8] sm:$0xff]
    %v305 = vld [vmem:[#allocation2 + $0x2e8] sm:$0xff]
    %v306 = vld [vmem:[#allocation2 + $0x2f0] sm:$0xff]
    %v307 = vld [vmem:[#allocation2 + $0x300] sm:$0xff]
    %v308 = vld [vmem:[#allocation2 + $0x308] sm:$0xff]
    %v309 = vld [vmem:[#allocation2 + $0x318] sm:$0xff]
    %v310 = vld [vmem:[#allocation2 + $0x320] sm:$0xff]
    %311 = vst.msk [vmem:[#allocation3] sm:$0xff] %vm182, %v247
    %312 = vst.msk [vmem:[#allocation3 + $0x8] sm:$0xff] %vm182, %v248
    %313 = vst.msk [vmem:[#allocation3 + $0x10] sm:$0xff] %vm182, %v249
    %314 = vst.msk [vmem:[#allocation3 + $0x18] sm:$0xff] %vm182, %v250
    %315 = vst.msk [vmem:[#allocation3 + $0x20] sm:$0xff] %vm182, %v251
    %316 = vst.msk [vmem:[#allocation3 + $0x28] sm:$0xff] %vm182, %v252
    %317 = vst.msk [vmem:[#allocation3 + $0x30] sm:$0xff] %vm182, %v253
    %318 = vst.msk [vmem:[#allocation3 + $0x38] sm:$0xff] %vm182, %v254
    %319 = vst.msk [vmem:[#allocation3 + $0x40] sm:$0xff] %vm182, %v255
    %320 = vst.msk [vmem:[#allocation3 + $0x48] sm:$0xff] %vm182, %v256
    %321 = vst.msk [vmem:[#allocation3 + $0x50] sm:$0xff] %vm182, %v257
    %322 = vst.msk [vmem:[#allocation3 + $0x58] sm:$0xff] %vm182, %v258
    %323 = vst.msk [vmem:[#allocation3 + $0x60] sm:$0xff] %vm182, %v259
    %324 = vst.msk [vmem:[#allocation3 + $0x68] sm:$0xff] %vm182, %v260
    %325 = vst.msk [vmem:[#allocation3 + $0x70] sm:$0xff] %vm182, %v261
    %326 = vst.msk [vmem:[#allocation3 + $0x78] sm:$0xff] %vm182, %v262
    %327 = vst.msk [vmem:[#allocation3 + $0x80] sm:$0xff] %vm182, %v263
    %328 = vst.msk [vmem:[#allocation3 + $0x88] sm:$0xff] %vm182, %v264
    %329 = vst.msk [vmem:[#allocation3 + $0x90] sm:$0xff] %vm182, %v265
    %330 = vst.msk [vmem:[#allocation3 + $0x98] sm:$0xff] %vm182, %v266
    %331 = vst.msk [vmem:[#allocation3 + $0xa0] sm:$0xff] %vm182, %v267
    %332 = vst.msk [vmem:[#allocation3 + $0xa8] sm:$0xff] %vm182, %v268
    %333 = vst.msk [vmem:[#allocation3 + $0xb0] sm:$0xff] %vm182, %v269
    %334 = vst.msk [vmem:[#allocation3 + $0xb8] sm:$0xff] %vm182, %v270
    %335 = vst.msk [vmem:[#allocation3 + $0xc0] sm:$0xff] %vm182, %v271
    %336 = vst.msk [vmem:[#allocation3 + $0xc8] sm:$0xff] %vm182, %v272
    %337 = vst.msk [vmem:[#allocation3 + $0xd0] sm:$0xff] %vm182, %v273
    %338 = vst.msk [vmem:[#allocation3 + $0xd8] sm:$0xff] %vm182, %v274
    %339 = vst.msk [vmem:[#allocation3 + $0xe0] sm:$0xff] %vm182, %v275
    %340 = vst.msk [vmem:[#allocation3 + $0xe8] sm:$0xff] %vm182, %v276
    %341 = vst.msk [vmem:[#allocation3 + $0xf0] sm:$0xff] %vm182, %v277
    %342 = vst.msk [vmem:[#allocation3 + $0xf8] sm:$0xff] %vm182, %v278
    %343 = vst.msk [vmem:[#allocation3 + $0x100] sm:$0xff] %vm182, %v279
    %344 = vst.msk [vmem:[#allocation3 + $0x108] sm:$0xff] %vm182, %v280
    %345 = vst.msk [vmem:[#allocation3 + $0x110] sm:$0xff] %vm182, %v281
    %346 = vst.msk [vmem:[#allocation3 + $0x118] sm:$0xff] %vm182, %v282
    %347 = vst.msk [vmem:[#allocation3 + $0x120] sm:$0xff] %vm182, %v283
    %348 = vst.msk [vmem:[#allocation3 + $0x128] sm:$0xff] %vm182, %v284
    %349 = vst.msk [vmem:[#allocation3 + $0x130] sm:$0xff] %vm182, %v285
    %350 = vst.msk [vmem:[#allocation3 + $0x138] sm:$0xff] %vm182, %v286
    %351 = vst.msk [vmem:[#allocation3 + $0x140] sm:$0xff] %vm182, %v287
    %352 = vst.msk [vmem:[#allocation3 + $0x148] sm:$0xff] %vm182, %v288
    %353 = vst.msk [vmem:[#allocation3 + $0x150] sm:$0xff] %vm182, %v289
    %354 = vst.msk [vmem:[#allocation3 + $0x158] sm:$0xff] %vm182, %v290
    %355 = vst.msk [vmem:[#allocation3 + $0x160] sm:$0xff] %vm182, %v291
    %356 = vst.msk [vmem:[#allocation3 + $0x168] sm:$0xff] %vm182, %v292
    %357 = vst.msk [vmem:[#allocation3 + $0x170] sm:$0xff] %vm182, %v293
    %358 = vst.msk [vmem:[#allocation3 + $0x178] sm:$0xff] %vm182, %v294
    %359 = vst.msk [vmem:[#allocation3 + $0x180] sm:$0xff] %vm182, %v295
    %360 = vst.msk [vmem:[#allocation3 + $0x188] sm:$0xff] %vm182, %v296
    %361 = vst.msk [vmem:[#allocation3 + $0x190] sm:$0xff] %vm182, %v297
    %362 = vst.msk [vmem:[#allocation3 + $0x198] sm:$0xff] %vm182, %v298
    %363 = vst.msk [vmem:[#allocation3 + $0x1a0] sm:$0xff] %vm182, %v299
    %364 = vst.msk [vmem:[#allocation3 + $0x1a8] sm:$0xff] %vm182, %v300
    %365 = vst.msk [vmem:[#allocation3 + $0x1b0] sm:$0xff] %vm182, %v301
    %366 = vst.msk [vmem:[#allocation3 + $0x1b8] sm:$0xff] %vm182, %v302
    %367 = vst.msk [vmem:[#allocation3 + $0x1c0] sm:$0xff] %vm182, %v303
    %368 = vst.msk [vmem:[#allocation3 + $0x1c8] sm:$0xff] %vm182, %v304
    %369 = vst.msk [vmem:[#allocation3 + $0x1d0] sm:$0xff] %vm182, %v305
    %370 = vst.msk [vmem:[#allocation3 + $0x1d8] sm:$0xff] %vm182, %v306
    %371 = vst.msk [vmem:[#allocation3 + $0x1e0] sm:$0xff] %vm182, %v307
    %372 = vst.msk [vmem:[#allocation3 + $0x1e8] sm:$0xff] %vm182, %v308
    %373 = vst.msk [vmem:[#allocation3 + $0x1f0] sm:$0xff] %vm182, %v309
    %374 = vst.msk [vmem:[#allocation3 + $0x1f8] sm:$0xff] %vm182, %v310
    %v375 = vld [vmem:[#allocation2 + $0x1] sm:$0xff]
    %v376 = vld [vmem:[#allocation2 + $0x9] sm:$0xff]
    %v377 = vld [vmem:[#allocation2 + $0x19] sm:$0xff]
    %v378 = vld [vmem:[#allocation2 + $0x21] sm:$0xff]
    %v379 = vld [vmem:[#allocation2 + $0x31] sm:$0xff]
    %v380 = vld [vmem:[#allocation2 + $0x39] sm:$0xff]
    %v381 = vld [vmem:[#allocation2 + $0x49] sm:$0xff]
    %v382 = vld [vmem:[#allocation2 + $0x51] sm:$0xff]
    %v383 = vld [vmem:[#allocation2 + $0x61] sm:$0xff]
    %v384 = vld [vmem:[#allocation2 + $0x69] sm:$0xff]
    %v385 = vld [vmem:[#allocation2 + $0x79] sm:$0xff]
    %v386 = vld [vmem:[#allocation2 + $0x81] sm:$0xff]
    %v387 = vld [vmem:[#allocation2 + $0x91] sm:$0xff]
    %v388 = vld [vmem:[#allocation2 + $0x99] sm:$0xff]
    %v389 = vld [vmem:[#allocation2 + $0xa9] sm:$0xff]
    %v390 = vld [vmem:[#allocation2 + $0xb1] sm:$0xff]
    %v391 = vld [vmem:[#allocation2 + $0xc1] sm:$0xff]
    %v392 = vld [vmem:[#allocation2 + $0xc9] sm:$0xff]
    %v393 = vld [vmem:[#allocation2 + $0xd9] sm:$0xff]
    %v394 = vld [vmem:[#allocation2 + $0xe1] sm:$0xff]
    %v395 = vld [vmem:[#allocation2 + $0xf1] sm:$0xff]
    %v396 = vld [vmem:[#allocation2 + $0xf9] sm:$0xff]
    %v397 = vld [vmem:[#allocation2 + $0x109] sm:$0xff]
    %v398 = vld [vmem:[#allocation2 + $0x111] sm:$0xff]
    %v399 = vld [vmem:[#allocation2 + $0x121] sm:$0xff]
    %v400 = vld [vmem:[#allocation2 + $0x129] sm:$0xff]
    %v401 = vld [vmem:[#allocation2 + $0x139] sm:$0xff]
    %v402 = vld [vmem:[#allocation2 + $0x141] sm:$0xff]
    %v403 = vld [vmem:[#allocation2 + $0x151] sm:$0xff]
    %v404 = vld [vmem:[#allocation2 + $0x159] sm:$0xff]
    %v405 = vld [vmem:[#allocation2 + $0x169] sm:$0xff]
    %v406 = vld [vmem:[#allocation2 + $0x171] sm:$0xff]
    %v407 = vld [vmem:[#allocation2 + $0x1b1] sm:$0xff]
    %v408 = vld [vmem:[#allocation2 + $0x1b9] sm:$0xff]
    %v409 = vld [vmem:[#allocation2 + $0x1c9] sm:$0xff]
    %v410 = vld [vmem:[#allocation2 + $0x1d1] sm:$0xff]
    %v411 = vld [vmem:[#allocation2 + $0x1e1] sm:$0xff]
    %v412 = vld [vmem:[#allocation2 + $0x1e9] sm:$0xff]
    %v413 = vld [vmem:[#allocation2 + $0x1f9] sm:$0xff]
    %v414 = vld [vmem:[#allocation2 + $0x201] sm:$0xff]
    %v415 = vld [vmem:[#allocation2 + $0x211] sm:$0xff]
    %v416 = vld [vmem:[#allocation2 + $0x219] sm:$0xff]
    %v417 = vld [vmem:[#allocation2 + $0x229] sm:$0xff]
    %v418 = vld [vmem:[#allocation2 + $0x231] sm:$0xff]
    %v419 = vld [vmem:[#allocation2 + $0x241] sm:$0xff]
    %v420 = vld [vmem:[#allocation2 + $0x249] sm:$0xff]
    %v421 = vld [vmem:[#allocation2 + $0x259] sm:$0xff]
    %v422 = vld [vmem:[#allocation2 + $0x261] sm:$0xff]
    %v423 = vld [vmem:[#allocation2 + $0x271] sm:$0xff]
    %v424 = vld [vmem:[#allocation2 + $0x279] sm:$0xff]
    %v425 = vld [vmem:[#allocation2 + $0x289] sm:$0xff]
    %v426 = vld [vmem:[#allocation2 + $0x291] sm:$0xff]
    %v427 = vld [vmem:[#allocation2 + $0x2a1] sm:$0xff]
    %v428 = vld [vmem:[#allocation2 + $0x2a9] sm:$0xff]
    %v429 = vld [vmem:[#allocation2 + $0x2b9] sm:$0xff]
    %v430 = vld [vmem:[#allocation2 + $0x2c1] sm:$0xff]
    %v431 = vld [vmem:[#allocation2 + $0x2d1] sm:$0xff]
    %v432 = vld [vmem:[#allocation2 + $0x2d9] sm:$0xff]
    %v433 = vld [vmem:[#allocation2 + $0x2e9] sm:$0xff]
    %v434 = vld [vmem:[#allocation2 + $0x2f1] sm:$0xff]
    %v435 = vld [vmem:[#allocation2 + $0x301] sm:$0xff]
    %v436 = vld [vmem:[#allocation2 + $0x309] sm:$0xff]
    %v437 = vld [vmem:[#allocation2 + $0x319] sm:$0xff]
    %v438 = vld [vmem:[#allocation2 + $0x321] sm:$0xff]
    %503 = vrot.lane.b32.xlu0 %v375, 4
    %v504 = vpop.permute.xlu0 %503
    %505 = vrot.lane.b32.xlu0 %v376, 4
    %v506 = vpop.permute.xlu0 %505
    %507 = vrot.lane.b32.xlu0 %v377, 4
    %v508 = vpop.permute.xlu0 %507
    %509 = vrot.lane.b32.xlu0 %v378, 4
    %v510 = vpop.permute.xlu0 %509
    %511 = vrot.lane.b32.xlu0 %v379, 4
    %v512 = vpop.permute.xlu0 %511
    %513 = vrot.lane.b32.xlu0 %v380, 4
    %v514 = vpop.permute.xlu0 %513
    %515 = vrot.lane.b32.xlu0 %v381, 4
    %v516 = vpop.permute.xlu0 %515
    %517 = vrot.lane.b32.xlu0 %v382, 4
    %v518 = vpop.permute.xlu0 %517
    %519 = vrot.lane.b32.xlu0 %v383, 4
    %v520 = vpop.permute.xlu0 %519
    %521 = vrot.lane.b32.xlu0 %v384, 4
    %v522 = vpop.permute.xlu0 %521
    %523 = vrot.lane.b32.xlu0 %v385, 4
    %v524 = vpop.permute.xlu0 %523
    %525 = vrot.lane.b32.xlu0 %v386, 4
    %v526 = vpop.permute.xlu0 %525
    %527 = vrot.lane.b32.xlu0 %v387, 4
    %v528 = vpop.permute.xlu0 %527
    %529 = vrot.lane.b32.xlu0 %v388, 4
    %v530 = vpop.permute.xlu0 %529
    %531 = vrot.lane.b32.xlu0 %v389, 4
    %v532 = vpop.permute.xlu0 %531
    %533 = vrot.lane.b32.xlu0 %v390, 4
    %v534 = vpop.permute.xlu0 %533
    %535 = vrot.lane.b32.xlu0 %v391, 4
    %v536 = vpop.permute.xlu0 %535
    %537 = vrot.lane.b32.xlu0 %v392, 4
    %v538 = vpop.permute.xlu0 %537
    %539 = vrot.lane.b32.xlu0 %v393, 4
    %v540 = vpop.permute.xlu0 %539
    %541 = vrot.lane.b32.xlu0 %v394, 4
    %v542 = vpop.permute.xlu0 %541
    %543 = vrot.lane.b32.xlu0 %v395, 4
    %v544 = vpop.permute.xlu0 %543
    %545 = vrot.lane.b32.xlu0 %v396, 4
    %v546 = vpop.permute.xlu0 %545
    %547 = vrot.lane.b32.xlu0 %v397, 4
    %v548 = vpop.permute.xlu0 %547
    %549 = vrot.lane.b32.xlu0 %v398, 4
    %v550 = vpop.permute.xlu0 %549
    %551 = vrot.lane.b32.xlu0 %v399, 4
    %v552 = vpop.permute.xlu0 %551
    %553 = vrot.lane.b32.xlu0 %v400, 4
    %v554 = vpop.permute.xlu0 %553
    %555 = vrot.lane.b32.xlu0 %v401, 4
    %v556 = vpop.permute.xlu0 %555
    %557 = vrot.lane.b32.xlu0 %v402, 4
    %v558 = vpop.permute.xlu0 %557
    %559 = vrot.lane.b32.xlu0 %v403, 4
    %v560 = vpop.permute.xlu0 %559
    %561 = vrot.lane.b32.xlu0 %v404, 4
    %v562 = vpop.permute.xlu0 %561
    %563 = vrot.lane.b32.xlu0 %v405, 4
    %v564 = vpop.permute.xlu0 %563
    %565 = vrot.lane.b32.xlu0 %v406, 4
    %v566 = vpop.permute.xlu0 %565
    %567 = vrot.lane.b32.xlu0 %v407, 4
    %v568 = vpop.permute.xlu0 %567
    %569 = vrot.lane.b32.xlu0 %v408, 4
    %v570 = vpop.permute.xlu0 %569
    %571 = vrot.lane.b32.xlu0 %v409, 4
    %v572 = vpop.permute.xlu0 %571
    %573 = vrot.lane.b32.xlu0 %v410, 4
    %v574 = vpop.permute.xlu0 %573
    %575 = vrot.lane.b32.xlu0 %v411, 4
    %v576 = vpop.permute.xlu0 %575
    %577 = vrot.lane.b32.xlu0 %v412, 4
    %v578 = vpop.permute.xlu0 %577
    %579 = vrot.lane.b32.xlu0 %v413, 4
    %v580 = vpop.permute.xlu0 %579
    %581 = vrot.lane.b32.xlu0 %v414, 4
    %v582 = vpop.permute.xlu0 %581
    %583 = vrot.lane.b32.xlu0 %v415, 4
    %v584 = vpop.permute.xlu0 %583
    %585 = vrot.lane.b32.xlu0 %v416, 4
    %v586 = vpop.permute.xlu0 %585
    %587 = vrot.lane.b32.xlu0 %v417, 4
    %v588 = vpop.permute.xlu0 %587
    %589 = vrot.lane.b32.xlu0 %v418, 4
    %v590 = vpop.permute.xlu0 %589
    %591 = vrot.lane.b32.xlu0 %v419, 4
    %v592 = vpop.permute.xlu0 %591
    %593 = vrot.lane.b32.xlu0 %v420, 4
    %v594 = vpop.permute.xlu0 %593
    %595 = vrot.lane.b32.xlu0 %v421, 4
    %v596 = vpop.permute.xlu0 %595
    %597 = vrot.lane.b32.xlu0 %v422, 4
    %v598 = vpop.permute.xlu0 %597
    %599 = vrot.lane.b32.xlu0 %v423, 4
    %v600 = vpop.permute.xlu0 %599
    %601 = vrot.lane.b32.xlu0 %v424, 4
    %v602 = vpop.permute.xlu0 %601
    %603 = vrot.lane.b32.xlu0 %v425, 4
    %v604 = vpop.permute.xlu0 %603
    %605 = vrot.lane.b32.xlu0 %v426, 4
    %v606 = vpop.permute.xlu0 %605
    %607 = vrot.lane.b32.xlu0 %v427, 4
    %v608 = vpop.permute.xlu0 %607
    %609 = vrot.lane.b32.xlu0 %v428, 4
    %v610 = vpop.permute.xlu0 %609
    %611 = vrot.lane.b32.xlu0 %v429, 4
    %v612 = vpop.permute.xlu0 %611
    %613 = vrot.lane.b32.xlu0 %v430, 4
    %v614 = vpop.permute.xlu0 %613
    %615 = vrot.lane.b32.xlu0 %v431, 4
    %v616 = vpop.permute.xlu0 %615
    %617 = vrot.lane.b32.xlu0 %v432, 4
    %v618 = vpop.permute.xlu0 %617
    %619 = vrot.lane.b32.xlu0 %v433, 4
    %v620 = vpop.permute.xlu0 %619
    %621 = vrot.lane.b32.xlu0 %v434, 4
    %v622 = vpop.permute.xlu0 %621
    %623 = vrot.lane.b32.xlu0 %v435, 4
    %v624 = vpop.permute.xlu0 %623
    %625 = vrot.lane.b32.xlu0 %v436, 4
    %v626 = vpop.permute.xlu0 %625
    %627 = vrot.lane.b32.xlu0 %v437, 4
    %v628 = vpop.permute.xlu0 %627
    %629 = vrot.lane.b32.xlu0 %v438, 4
    %v630 = vpop.permute.xlu0 %629
    %vm695 = vcmask 64544
    %696 = vst.msk [vmem:[#allocation3] sm:$0xff] %vm695, %v504
    %697 = vst.msk [vmem:[#allocation3 + $0x8] sm:$0xff] %vm695, %v506
    %698 = vst.msk [vmem:[#allocation3 + $0x10] sm:$0xff] %vm695, %v508
    %699 = vst.msk [vmem:[#allocation3 + $0x18] sm:$0xff] %vm695, %v510
    %700 = vst.msk [vmem:[#allocation3 + $0x20] sm:$0xff] %vm695, %v512
    %701 = vst.msk [vmem:[#allocation3 + $0x28] sm:$0xff] %vm695, %v514
    %702 = vst.msk [vmem:[#allocation3 + $0x30] sm:$0xff] %vm695, %v516
    %703 = vst.msk [vmem:[#allocation3 + $0x38] sm:$0xff] %vm695, %v518
    %704 = vst.msk [vmem:[#allocation3 + $0x40] sm:$0xff] %vm695, %v520
    %705 = vst.msk [vmem:[#allocation3 + $0x48] sm:$0xff] %vm695, %v522
    %706 = vst.msk [vmem:[#allocation3 + $0x50] sm:$0xff] %vm695, %v524
    %707 = vst.msk [vmem:[#allocation3 + $0x58] sm:$0xff] %vm695, %v526
    %708 = vst.msk [vmem:[#allocation3 + $0x60] sm:$0xff] %vm695, %v528
    %709 = vst.msk [vmem:[#allocation3 + $0x68] sm:$0xff] %vm695, %v530
    %710 = vst.msk [vmem:[#allocation3 + $0x70] sm:$0xff] %vm695, %v532
    %711 = vst.msk [vmem:[#allocation3 + $0x78] sm:$0xff] %vm695, %v534
    %712 = vst.msk [vmem:[#allocation3 + $0x80] sm:$0xff] %vm695, %v536
    %713 = vst.msk [vmem:[#allocation3 + $0x88] sm:$0xff] %vm695, %v538
    %714 = vst.msk [vmem:[#allocation3 + $0x90] sm:$0xff] %vm695, %v540
    %715 = vst.msk [vmem:[#allocation3 + $0x98] sm:$0xff] %vm695, %v542
    %716 = vst.msk [vmem:[#allocation3 + $0xa0] sm:$0xff] %vm695, %v544
    %717 = vst.msk [vmem:[#allocation3 + $0xa8] sm:$0xff] %vm695, %v546
    %718 = vst.msk [vmem:[#allocation3 + $0xb0] sm:$0xff] %vm695, %v548
    %719 = vst.msk [vmem:[#allocation3 + $0xb8] sm:$0xff] %vm695, %v550
    %720 = vst.msk [vmem:[#allocation3 + $0xc0] sm:$0xff] %vm695, %v552
    %721 = vst.msk [vmem:[#allocation3 + $0xc8] sm:$0xff] %vm695, %v554
    %722 = vst.msk [vmem:[#allocation3 + $0xd0] sm:$0xff] %vm695, %v556
    %723 = vst.msk [vmem:[#allocation3 + $0xd8] sm:$0xff] %vm695, %v558
    %724 = vst.msk [vmem:[#allocation3 + $0xe0] sm:$0xff] %vm695, %v560
    %725 = vst.msk [vmem:[#allocation3 + $0xe8] sm:$0xff] %vm695, %v562
    %726 = vst.msk [vmem:[#allocation3 + $0xf0] sm:$0xff] %vm695, %v564
    %727 = vst.msk [vmem:[#allocation3 + $0xf8] sm:$0xff] %vm695, %v566
    %728 = vst.msk [vmem:[#allocation3 + $0x100] sm:$0xff] %vm695, %v568
    %729 = vst.msk [vmem:[#allocation3 + $0x108] sm:$0xff] %vm695, %v570
    %730 = vst.msk [vmem:[#allocation3 + $0x110] sm:$0xff] %vm695, %v572
    %731 = vst.msk [vmem:[#allocation3 + $0x118] sm:$0xff] %vm695, %v574
    %732 = vst.msk [vmem:[#allocation3 + $0x120] sm:$0xff] %vm695, %v576
    %733 = vst.msk [vmem:[#allocation3 + $0x128] sm:$0xff] %vm695, %v578
    %734 = vst.msk [vmem:[#allocation3 + $0x130] sm:$0xff] %vm695, %v580
    %735 = vst.msk [vmem:[#allocation3 + $0x138] sm:$0xff] %vm695, %v582
    %736 = vst.msk [vmem:[#allocation3 + $0x140] sm:$0xff] %vm695, %v584
    %737 = vst.msk [vmem:[#allocation3 + $0x148] sm:$0xff] %vm695, %v586
    %738 = vst.msk [vmem:[#allocation3 + $0x150] sm:$0xff] %vm695, %v588
    %739 = vst.msk [vmem:[#allocation3 + $0x158] sm:$0xff] %vm695, %v590
    %740 = vst.msk [vmem:[#allocation3 + $0x160] sm:$0xff] %vm695, %v592
    %741 = vst.msk [vmem:[#allocation3 + $0x168] sm:$0xff] %vm695, %v594
    %742 = vst.msk [vmem:[#allocation3 + $0x170] sm:$0xff] %vm695, %v596
    %743 = vst.msk [vmem:[#allocation3 + $0x178] sm:$0xff] %vm695, %v598
    %744 = vst.msk [vmem:[#allocation3 + $0x180] sm:$0xff] %vm695, %v600
    %745 = vst.msk [vmem:[#allocation3 + $0x188] sm:$0xff] %vm695, %v602
    %746 = vst.msk [vmem:[#allocation3 + $0x190] sm:$0xff] %vm695, %v604
    %747 = vst.msk [vmem:[#allocation3 + $0x198] sm:$0xff] %vm695, %v606
    %748 = vst.msk [vmem:[#allocation3 + $0x1a0] sm:$0xff] %vm695, %v608
    %749 = vst.msk [vmem:[#allocation3 + $0x1a8] sm:$0xff] %vm695, %v610
    %750 = vst.msk [vmem:[#allocation3 + $0x1b0] sm:$0xff] %vm695, %v612
    %751 = vst.msk [vmem:[#allocation3 + $0x1b8] sm:$0xff] %vm695, %v614
    %752 = vst.msk [vmem:[#allocation3 + $0x1c0] sm:$0xff] %vm695, %v616
    %753 = vst.msk [vmem:[#allocation3 + $0x1c8] sm:$0xff] %vm695, %v618
    %754 = vst.msk [vmem:[#allocation3 + $0x1d0] sm:$0xff] %vm695, %v620
    %755 = vst.msk [vmem:[#allocation3 + $0x1d8] sm:$0xff] %vm695, %v622
    %756 = vst.msk [vmem:[#allocation3 + $0x1e0] sm:$0xff] %vm695, %v624
    %757 = vst.msk [vmem:[#allocation3 + $0x1e8] sm:$0xff] %vm695, %v626
    %758 = vst.msk [vmem:[#allocation3 + $0x1f0] sm:$0xff] %vm695, %v628
    %759 = vst.msk [vmem:[#allocation3 + $0x1f8] sm:$0xff] %vm695, %v630
    %v760 = vld [vmem:[#allocation2 + $0x2] sm:$0xff]
    %v761 = vld [vmem:[#allocation2 + $0xa] sm:$0xff]
    %v762 = vld [vmem:[#allocation2 + $0x1a] sm:$0xff]
    %v763 = vld [vmem:[#allocation2 + $0x22] sm:$0xff]
    %v764 = vld [vmem:[#allocation2 + $0x32] sm:$0xff]
    %v765 = vld [vmem:[#allocation2 + $0x3a] sm:$0xff]
    %v766 = vld [vmem:[#allocation2 + $0x4a] sm:$0xff]
    %v767 = vld [vmem:[#allocation2 + $0x52] sm:$0xff]
    %v768 = vld [vmem:[#allocation2 + $0x62] sm:$0xff]
    %v769 = vld [vmem:[#allocation2 + $0x6a] sm:$0xff]
    %v770 = vld [vmem:[#allocation2 + $0x7a] sm:$0xff]
    %v771 = vld [vmem:[#allocation2 + $0x82] sm:$0xff]
    %v772 = vld [vmem:[#allocation2 + $0x92] sm:$0xff]
    %v773 = vld [vmem:[#allocation2 + $0x9a] sm:$0xff]
    %v774 = vld [vmem:[#allocation2 + $0xaa] sm:$0xff]
    %v775 = vld [vmem:[#allocation2 + $0xb2] sm:$0xff]
    %v776 = vld [vmem:[#allocation2 + $0xc2] sm:$0xff]
    %v777 = vld [vmem:[#allocation2 + $0xca] sm:$0xff]
    %v778 = vld [vmem:[#allocation2 + $0xda] sm:$0xff]
    %v779 = vld [vmem:[#allocation2 + $0xe2] sm:$0xff]
    %v780 = vld [vmem:[#allocation2 + $0xf2] sm:$0xff]
    %v781 = vld [vmem:[#allocation2 + $0xfa] sm:$0xff]
    %v782 = vld [vmem:[#allocation2 + $0x10a] sm:$0xff]
    %v783 = vld [vmem:[#allocation2 + $0x112] sm:$0xff]
    %v784 = vld [vmem:[#allocation2 + $0x122] sm:$0xff]
    %v785 = vld [vmem:[#allocation2 + $0x12a] sm:$0xff]
    %v786 = vld [vmem:[#allocation2 + $0x13a] sm:$0xff]
    %v787 = vld [vmem:[#allocation2 + $0x142] sm:$0xff]
    %v788 = vld [vmem:[#allocation2 + $0x152] sm:$0xff]
    %v789 = vld [vmem:[#allocation2 + $0x15a] sm:$0xff]
    %v790 = vld [vmem:[#allocation2 + $0x16a] sm:$0xff]
    %v791 = vld [vmem:[#allocation2 + $0x172] sm:$0xff]
    %v792 = vld [vmem:[#allocation2 + $0x1b2] sm:$0xff]
    %v793 = vld [vmem:[#allocation2 + $0x1ba] sm:$0xff]
    %v794 = vld [vmem:[#allocation2 + $0x1ca] sm:$0xff]
    %v795 = vld [vmem:[#allocation2 + $0x1d2] sm:$0xff]
    %v796 = vld [vmem:[#allocation2 + $0x1e2] sm:$0xff]
    %v797 = vld [vmem:[#allocation2 + $0x1ea] sm:$0xff]
    %v798 = vld [vmem:[#allocation2 + $0x1fa] sm:$0xff]
    %v799 = vld [vmem:[#allocation2 + $0x202] sm:$0xff]
    %v800 = vld [vmem:[#allocation2 + $0x212] sm:$0xff]
    %v801 = vld [vmem:[#allocation2 + $0x21a] sm:$0xff]
    %v802 = vld [vmem:[#allocation2 + $0x22a] sm:$0xff]
    %v803 = vld [vmem:[#allocation2 + $0x232] sm:$0xff]
    %v804 = vld [vmem:[#allocation2 + $0x242] sm:$0xff]
    %v805 = vld [vmem:[#allocation2 + $0x24a] sm:$0xff]
    %v806 = vld [vmem:[#allocation2 + $0x25a] sm:$0xff]
    %v807 = vld [vmem:[#allocation2 + $0x262] sm:$0xff]
    %v808 = vld [vmem:[#allocation2 + $0x272] sm:$0xff]
    %v809 = vld [vmem:[#allocation2 + $0x27a] sm:$0xff]
    %v810 = vld [vmem:[#allocation2 + $0x28a] sm:$0xff]
    %v811 = vld [vmem:[#allocation2 + $0x292] sm:$0xff]
    %v812 = vld [vmem:[#allocation2 + $0x2a2] sm:$0xff]
    %v813 = vld [vmem:[#allocation2 + $0x2aa] sm:$0xff]
    %v814 = vld [vmem:[#allocation2 + $0x2ba] sm:$0xff]
    %v815 = vld [vmem:[#allocation2 + $0x2c2] sm:$0xff]
    %v816 = vld [vmem:[#allocation2 + $0x2d2] sm:$0xff]
    %v817 = vld [vmem:[#allocation2 + $0x2da] sm:$0xff]
    %v818 = vld [vmem:[#allocation2 + $0x2ea] sm:$0xff]
    %v819 = vld [vmem:[#allocation2 + $0x2f2] sm:$0xff]
    %v820 = vld [vmem:[#allocation2 + $0x302] sm:$0xff]
    %v821 = vld [vmem:[#allocation2 + $0x30a] sm:$0xff]
    %v822 = vld [vmem:[#allocation2 + $0x31a] sm:$0xff]
    %v823 = vld [vmem:[#allocation2 + $0x322] sm:$0xff]
    %888 = vrot.lane.b32.xlu0 %v760, 8
    %v889 = vpop.permute.xlu0 %888
    %890 = vrot.lane.b32.xlu0 %v761, 8
    %v891 = vpop.permute.xlu0 %890
    %892 = vrot.lane.b32.xlu0 %v762, 8
    %v893 = vpop.permute.xlu0 %892
    %894 = vrot.lane.b32.xlu0 %v763, 8
    %v895 = vpop.permute.xlu0 %894
    %896 = vrot.lane.b32.xlu0 %v764, 8
    %v897 = vpop.permute.xlu0 %896
    %898 = vrot.lane.b32.xlu0 %v765, 8
    %v899 = vpop.permute.xlu0 %898
    %900 = vrot.lane.b32.xlu0 %v766, 8
    %v901 = vpop.permute.xlu0 %900
    %902 = vrot.lane.b32.xlu0 %v767, 8
    %v903 = vpop.permute.xlu0 %902
    %904 = vrot.lane.b32.xlu0 %v768, 8
    %v905 = vpop.permute.xlu0 %904
    %906 = vrot.lane.b32.xlu0 %v769, 8
    %v907 = vpop.permute.xlu0 %906
    %908 = vrot.lane.b32.xlu0 %v770, 8
    %v909 = vpop.permute.xlu0 %908
    %910 = vrot.lane.b32.xlu0 %v771, 8
    %v911 = vpop.permute.xlu0 %910
    %912 = vrot.lane.b32.xlu0 %v772, 8
    %v913 = vpop.permute.xlu0 %912
    %914 = vrot.lane.b32.xlu0 %v773, 8
    %v915 = vpop.permute.xlu0 %914
    %916 = vrot.lane.b32.xlu0 %v774, 8
    %v917 = vpop.permute.xlu0 %916
    %918 = vrot.lane.b32.xlu0 %v775, 8
    %v919 = vpop.permute.xlu0 %918
    %920 = vrot.lane.b32.xlu0 %v776, 8
    %v921 = vpop.permute.xlu0 %920
    %922 = vrot.lane.b32.xlu0 %v777, 8
    %v923 = vpop.permute.xlu0 %922
    %924 = vrot.lane.b32.xlu0 %v778, 8
    %v925 = vpop.permute.xlu0 %924
    %926 = vrot.lane.b32.xlu0 %v779, 8
    %v927 = vpop.permute.xlu0 %926
    %928 = vrot.lane.b32.xlu0 %v780, 8
    %v929 = vpop.permute.xlu0 %928
    %930 = vrot.lane.b32.xlu0 %v781, 8
    %v931 = vpop.permute.xlu0 %930
    %932 = vrot.lane.b32.xlu0 %v782, 8
    %v933 = vpop.permute.xlu0 %932
    %934 = vrot.lane.b32.xlu0 %v783, 8
    %v935 = vpop.permute.xlu0 %934
    %936 = vrot.lane.b32.xlu0 %v784, 8
    %v937 = vpop.permute.xlu0 %936
    %938 = vrot.lane.b32.xlu0 %v785, 8
    %v939 = vpop.permute.xlu0 %938
    %940 = vrot.lane.b32.xlu0 %v786, 8
    %v941 = vpop.permute.xlu0 %940
    %942 = vrot.lane.b32.xlu0 %v787, 8
    %v943 = vpop.permute.xlu0 %942
    %944 = vrot.lane.b32.xlu0 %v788, 8
    %v945 = vpop.permute.xlu0 %944
    %946 = vrot.lane.b32.xlu0 %v789, 8
    %v947 = vpop.permute.xlu0 %946
    %948 = vrot.lane.b32.xlu0 %v790, 8
    %v949 = vpop.permute.xlu0 %948
    %950 = vrot.lane.b32.xlu0 %v791, 8
    %v951 = vpop.permute.xlu0 %950
    %952 = vrot.lane.b32.xlu0 %v792, 8
    %v953 = vpop.permute.xlu0 %952
    %954 = vrot.lane.b32.xlu0 %v793, 8
    %v955 = vpop.permute.xlu0 %954
    %956 = vrot.lane.b32.xlu0 %v794, 8
    %v957 = vpop.permute.xlu0 %956
    %958 = vrot.lane.b32.xlu0 %v795, 8
    %v959 = vpop.permute.xlu0 %958
    %960 = vrot.lane.b32.xlu0 %v796, 8
    %v961 = vpop.permute.xlu0 %960
    %962 = vrot.lane.b32.xlu0 %v797, 8
    %v963 = vpop.permute.xlu0 %962
    %964 = vrot.lane.b32.xlu0 %v798, 8
    %v965 = vpop.permute.xlu0 %964
    %966 = vrot.lane.b32.xlu0 %v799, 8
    %v967 = vpop.permute.xlu0 %966
    %968 = vrot.lane.b32.xlu0 %v800, 8
    %v969 = vpop.permute.xlu0 %968
    %970 = vrot.lane.b32.xlu0 %v801, 8
    %v971 = vpop.permute.xlu0 %970
    %972 = vrot.lane.b32.xlu0 %v802, 8
    %v973 = vpop.permute.xlu0 %972
    %974 = vrot.lane.b32.xlu0 %v803, 8
    %v975 = vpop.permute.xlu0 %974
    %976 = vrot.lane.b32.xlu0 %v804, 8
    %v977 = vpop.permute.xlu0 %976
    %978 = vrot.lane.b32.xlu0 %v805, 8
    %v979 = vpop.permute.xlu0 %978
    %980 = vrot.lane.b32.xlu0 %v806, 8
    %v981 = vpop.permute.xlu0 %980
    %982 = vrot.lane.b32.xlu0 %v807, 8
    %v983 = vpop.permute.xlu0 %982
    %984 = vrot.lane.b32.xlu0 %v808, 8
    %v985 = vpop.permute.xlu0 %984
    %986 = vrot.lane.b32.xlu0 %v809, 8
    %v987 = vpop.permute.xlu0 %986
    %988 = vrot.lane.b32.xlu0 %v810, 8
    %v989 = vpop.permute.xlu0 %988
    %990 = vrot.lane.b32.xlu0 %v811, 8
    %v991 = vpop.permute.xlu0 %990
    %992 = vrot.lane.b32.xlu0 %v812, 8
    %v993 = vpop.permute.xlu0 %992
    %994 = vrot.lane.b32.xlu0 %v813, 8
    %v995 = vpop.permute.xlu0 %994
    %996 = vrot.lane.b32.xlu0 %v814, 8
    %v997 = vpop.permute.xlu0 %996
    %998 = vrot.lane.b32.xlu0 %v815, 8
    %v999 = vpop.permute.xlu0 %998
    %1000 = vrot.lane.b32.xlu0 %v816, 8
    %v1001 = vpop.permute.xlu0 %1000
    %1002 = vrot.lane.b32.xlu0 %v817, 8
    %v1003 = vpop.permute.xlu0 %1002
    %1004 = vrot.lane.b32.xlu0 %v818, 8
    %v1005 = vpop.permute.xlu0 %1004
    %1006 = vrot.lane.b32.xlu0 %v819, 8
    %v1007 = vpop.permute.xlu0 %1006
    %1008 = vrot.lane.b32.xlu0 %v820, 8
    %v1009 = vpop.permute.xlu0 %1008
    %1010 = vrot.lane.b32.xlu0 %v821, 8
    %v1011 = vpop.permute.xlu0 %1010
    %1012 = vrot.lane.b32.xlu0 %v822, 8
    %v1013 = vpop.permute.xlu0 %1012
    %1014 = vrot.lane.b32.xlu0 %v823, 8
    %v1015 = vpop.permute.xlu0 %1014
    %vm1080 = vcmask 97344
    %1081 = vst.msk [vmem:[#allocation3] sm:$0xff] %vm1080, %v889
    %1082 = vst.msk [vmem:[#allocation3 + $0x8] sm:$0xff] %vm1080, %v891
    %1083 = vst.msk [vmem:[#allocation3 + $0x10] sm:$0xff] %vm1080, %v893
    %1084 = vst.msk [vmem:[#allocation3 + $0x18] sm:$0xff] %vm1080, %v895
    %1085 = vst.msk [vmem:[#allocation3 + $0x20] sm:$0xff] %vm1080, %v897
    %1086 = vst.msk [vmem:[#allocation3 + $0x28] sm:$0xff] %vm1080, %v899
    %1087 = vst.msk [vmem:[#allocation3 + $0x30] sm:$0xff] %vm1080, %v901
    %1088 = vst.msk [vmem:[#allocation3 + $0x38] sm:$0xff] %vm1080, %v903
    %1089 = vst.msk [vmem:[#allocation3 + $0x40] sm:$0xff] %vm1080, %v905
    %1090 = vst.msk [vmem:[#allocation3 + $0x48] sm:$0xff] %vm1080, %v907
    %1091 = vst.msk [vmem:[#allocation3 + $0x50] sm:$0xff] %vm1080, %v909
    %1092 = vst.msk [vmem:[#allocation3 + $0x58] sm:$0xff] %vm1080, %v911
    %1093 = vst.msk [vmem:[#allocation3 + $0x60] sm:$0xff] %vm1080, %v913
    %1094 = vst.msk [vmem:[#allocation3 + $0x68] sm:$0xff] %vm1080, %v915
    %1095 = vst.msk [vmem:[#allocation3 + $0x70] sm:$0xff] %vm1080, %v917
    %1096 = vst.msk [vmem:[#allocation3 + $0x78] sm:$0xff] %vm1080, %v919
    %1097 = vst.msk [vmem:[#allocation3 + $0x80] sm:$0xff] %vm1080, %v921
    %1098 = vst.msk [vmem:[#allocation3 + $0x88] sm:$0xff] %vm1080, %v923
    %1099 = vst.msk [vmem:[#allocation3 + $0x90] sm:$0xff] %vm1080, %v925
    %1100 = vst.msk [vmem:[#allocation3 + $0x98] sm:$0xff] %vm1080, %v927
    %1101 = vst.msk [vmem:[#allocation3 + $0xa0] sm:$0xff] %vm1080, %v929
    %1102 = vst.msk [vmem:[#allocation3 + $0xa8] sm:$0xff] %vm1080, %v931
    %1103 = vst.msk [vmem:[#allocation3 + $0xb0] sm:$0xff] %vm1080, %v933
    %1104 = vst.msk [vmem:[#allocation3 + $0xb8] sm:$0xff] %vm1080, %v935
    %1105 = vst.msk [vmem:[#allocation3 + $0xc0] sm:$0xff] %vm1080, %v937
    %1106 = vst.msk [vmem:[#allocation3 + $0xc8] sm:$0xff] %vm1080, %v939
    %1107 = vst.msk [vmem:[#allocation3 + $0xd0] sm:$0xff] %vm1080, %v941
    %1108 = vst.msk [vmem:[#allocation3 + $0xd8] sm:$0xff] %vm1080, %v943
    %1109 = vst.msk [vmem:[#allocation3 + $0xe0] sm:$0xff] %vm1080, %v945
    %1110 = vst.msk [vmem:[#allocation3 + $0xe8] sm:$0xff] %vm1080, %v947
    %1111 = vst.msk [vmem:[#allocation3 + $0xf0] sm:$0xff] %vm1080, %v949
    %1112 = vst.msk [vmem:[#allocation3 + $0xf8] sm:$0xff] %vm1080, %v951
    %1113 = vst.msk [vmem:[#allocation3 + $0x100] sm:$0xff] %vm1080, %v953
    %1114 = vst.msk [vmem:[#allocation3 + $0x108] sm:$0xff] %vm1080, %v955
    %1115 = vst.msk [vmem:[#allocation3 + $0x110] sm:$0xff] %vm1080, %v957
    %1116 = vst.msk [vmem:[#allocation3 + $0x118] sm:$0xff] %vm1080, %v959
    %1117 = vst.msk [vmem:[#allocation3 + $0x120] sm:$0xff] %vm1080, %v961
    %1118 = vst.msk [vmem:[#allocation3 + $0x128] sm:$0xff] %vm1080, %v963
    %1119 = vst.msk [vmem:[#allocation3 + $0x130] sm:$0xff] %vm1080, %v965
    %1120 = vst.msk [vmem:[#allocation3 + $0x138] sm:$0xff] %vm1080, %v967
    %1121 = vst.msk [vmem:[#allocation3 + $0x140] sm:$0xff] %vm1080, %v969
    %1122 = vst.msk [vmem:[#allocation3 + $0x148] sm:$0xff] %vm1080, %v971
    %1123 = vst.msk [vmem:[#allocation3 + $0x150] sm:$0xff] %vm1080, %v973
    %1124 = vst.msk [vmem:[#allocation3 + $0x158] sm:$0xff] %vm1080, %v975
    %1125 = vst.msk [vmem:[#allocation3 + $0x160] sm:$0xff] %vm1080, %v977
    %1126 = vst.msk [vmem:[#allocation3 + $0x168] sm:$0xff] %vm1080, %v979
    %1127 = vst.msk [vmem:[#allocation3 + $0x170] sm:$0xff] %vm1080, %v981
    %1128 = vst.msk [vmem:[#allocation3 + $0x178] sm:$0xff] %vm1080, %v983
    %1129 = vst.msk [vmem:[#allocation3 + $0x180] sm:$0xff] %vm1080, %v985
    %1130 = vst.msk [vmem:[#allocation3 + $0x188] sm:$0xff] %vm1080, %v987
    %1131 = vst.msk [vmem:[#allocation3 + $0x190] sm:$0xff] %vm1080, %v989
    %1132 = vst.msk [vmem:[#allocation3 + $0x198] sm:$0xff] %vm1080, %v991
    %1133 = vst.msk [vmem:[#allocation3 + $0x1a0] sm:$0xff] %vm1080, %v993
    %1134 = vst.msk [vmem:[#allocation3 + $0x1a8] sm:$0xff] %vm1080, %v995
    %1135 = vst.msk [vmem:[#allocation3 + $0x1b0] sm:$0xff] %vm1080, %v997
    %1136 = vst.msk [vmem:[#allocation3 + $0x1b8] sm:$0xff] %vm1080, %v999
    %1137 = vst.msk [vmem:[#allocation3 + $0x1c0] sm:$0xff] %vm1080, %v1001
    %1138 = vst.msk [vmem:[#allocation3 + $0x1c8] sm:$0xff] %vm1080, %v1003
    %1139 = vst.msk [vmem:[#allocation3 + $0x1d0] sm:$0xff] %vm1080, %v1005
    %1140 = vst.msk [vmem:[#allocation3 + $0x1d8] sm:$0xff] %vm1080, %v1007
    %1141 = vst.msk [vmem:[#allocation3 + $0x1e0] sm:$0xff] %vm1080, %v1009
    %1142 = vst.msk [vmem:[#allocation3 + $0x1e8] sm:$0xff] %vm1080, %v1011
    %1143 = vst.msk [vmem:[#allocation3 + $0x1f0] sm:$0xff] %vm1080, %v1013
    %1144 = vst.msk [vmem:[#allocation3 + $0x1f8] sm:$0xff] %vm1080, %v1015
    %v1145 = vld [vmem:[%s181] sm:$0xff]
    %v1146 = vld [vmem:[%s181 + $0x8] sm:$0xff]
    %v1147 = vld [vmem:[%s181 + $0x18] sm:$0xff]
    %v1148 = vld [vmem:[%s181 + $0x20] sm:$0xff]
    %v1149 = vld [vmem:[%s181 + $0x30] sm:$0xff]
    %v1150 = vld [vmem:[%s181 + $0x38] sm:$0xff]
    %v1151 = vld [vmem:[%s181 + $0x48] sm:$0xff]
    %v1152 = vld [vmem:[%s181 + $0x50] sm:$0xff]
    %v1153 = vld [vmem:[%s181 + $0x60] sm:$0xff]
    %v1154 = vld [vmem:[%s181 + $0x68] sm:$0xff]
    %v1155 = vld [vmem:[%s181 + $0x78] sm:$0xff]
    %v1156 = vld [vmem:[%s181 + $0x80] sm:$0xff]
    %v1157 = vld [vmem:[%s181 + $0x90] sm:$0xff]
    %v1158 = vld [vmem:[%s181 + $0x98] sm:$0xff]
    %v1159 = vld [vmem:[%s181 + $0xa8] sm:$0xff]
    %v1160 = vld [vmem:[%s181 + $0xb0] sm:$0xff]
    %v1161 = vld [vmem:[%s181 + $0xc0] sm:$0xff]
    %v1162 = vld [vmem:[%s181 + $0xc8] sm:$0xff]
    %v1163 = vld [vmem:[%s181 + $0xd8] sm:$0xff]
    %v1164 = vld [vmem:[%s181 + $0xe0] sm:$0xff]
    %v1165 = vld [vmem:[%s181 + $0xf0] sm:$0xff]
    %v1166 = vld [vmem:[%s181 + $0xf8] sm:$0xff]
    %v1167 = vld [vmem:[%s181 + $0x108] sm:$0xff]
    %v1168 = vld [vmem:[%s181 + $0x110] sm:$0xff]
    %v1169 = vld [vmem:[%s181 + $0x120] sm:$0xff]
    %v1170 = vld [vmem:[%s181 + $0x128] sm:$0xff]
    %v1171 = vld [vmem:[%s181 + $0x138] sm:$0xff]
    %v1172 = vld [vmem:[%s181 + $0x140] sm:$0xff]
    %v1173 = vld [vmem:[%s181 + $0x150] sm:$0xff]
    %v1174 = vld [vmem:[%s181 + $0x158] sm:$0xff]
    %v1175 = vld [vmem:[%s181 + $0x168] sm:$0xff]
    %v1176 = vld [vmem:[%s181 + $0x170] sm:$0xff]
    %v1177 = vld [vmem:[%s181 + $0x1b0] sm:$0xff]
    %v1178 = vld [vmem:[%s181 + $0x1b8] sm:$0xff]
    %v1179 = vld [vmem:[%s181 + $0x1c8] sm:$0xff]
    %v1180 = vld [vmem:[%s181 + $0x1d0] sm:$0xff]
    %v1181 = vld [vmem:[%s181 + $0x1e0] sm:$0xff]
    %v1182 = vld [vmem:[%s181 + $0x1e8] sm:$0xff]
    %v1183 = vld [vmem:[%s181 + $0x1f8] sm:$0xff]
    %v1184 = vld [vmem:[%s181 + $0x200] sm:$0xff]
    %v1185 = vld [vmem:[%s181 + $0x210] sm:$0xff]
    %v1186 = vld [vmem:[%s181 + $0x218] sm:$0xff]
    %v1187 = vld [vmem:[%s181 + $0x228] sm:$0xff]
    %v1188 = vld [vmem:[%s181 + $0x230] sm:$0xff]
    %v1189 = vld [vmem:[%s181 + $0x240] sm:$0xff]
    %v1190 = vld [vmem:[%s181 + $0x248] sm:$0xff]
    %v1191 = vld [vmem:[%s181 + $0x258] sm:$0xff]
    %v1192 = vld [vmem:[%s181 + $0x260] sm:$0xff]
    %v1193 = vld [vmem:[%s181 + $0x270] sm:$0xff]
    %v1194 = vld [vmem:[%s181 + $0x278] sm:$0xff]
    %v1195 = vld [vmem:[%s181 + $0x288] sm:$0xff]
    %v1196 = vld [vmem:[%s181 + $0x290] sm:$0xff]
    %v1197 = vld [vmem:[%s181 + $0x2a0] sm:$0xff]
    %v1198 = vld [vmem:[%s181 + $0x2a8] sm:$0xff]
    %v1199 = vld [vmem:[%s181 + $0x2b8] sm:$0xff]
    %v1200 = vld [vmem:[%s181 + $0x2c0] sm:$0xff]
    %v1201 = vld [vmem:[%s181 + $0x2d0] sm:$0xff]
    %v1202 = vld [vmem:[%s181 + $0x2d8] sm:$0xff]
    %v1203 = vld [vmem:[%s181 + $0x2e8] sm:$0xff]
    %v1204 = vld [vmem:[%s181 + $0x2f0] sm:$0xff]
    %v1205 = vld [vmem:[%s181 + $0x300] sm:$0xff]
    %v1206 = vld [vmem:[%s181 + $0x308] sm:$0xff]
    %v1207 = vld [vmem:[%s181 + $0x318] sm:$0xff]
    %v1208 = vld [vmem:[%s181 + $0x320] sm:$0xff]
    %1273 = vrot.lane.b32.xlu0 %v1145, 12
    %v1274 = vpop.permute.xlu0 %1273
    %1275 = vrot.lane.b32.xlu0 %v1146, 12
    %v1276 = vpop.permute.xlu0 %1275
    %1277 = vrot.lane.b32.xlu0 %v1147, 12
    %v1278 = vpop.permute.xlu0 %1277
    %1279 = vrot.lane.b32.xlu0 %v1148, 12
    %v1280 = vpop.permute.xlu0 %1279
    %1281 = vrot.lane.b32.xlu0 %v1149, 12
    %v1282 = vpop.permute.xlu0 %1281
    %1283 = vrot.lane.b32.xlu0 %v1150, 12
    %v1284 = vpop.permute.xlu0 %1283
    %1285 = vrot.lane.b32.xlu0 %v1151, 12
    %v1286 = vpop.permute.xlu0 %1285
    %1287 = vrot.lane.b32.xlu0 %v1152, 12
    %v1288 = vpop.permute.xlu0 %1287
    %1289 = vrot.lane.b32.xlu0 %v1153, 12
    %v1290 = vpop.permute.xlu0 %1289
    %1291 = vrot.lane.b32.xlu0 %v1154, 12
    %v1292 = vpop.permute.xlu0 %1291
    %1293 = vrot.lane.b32.xlu0 %v1155, 12
    %v1294 = vpop.permute.xlu0 %1293
    %1295 = vrot.lane.b32.xlu0 %v1156, 12
    %v1296 = vpop.permute.xlu0 %1295
    %1297 = vrot.lane.b32.xlu0 %v1157, 12
    %v1298 = vpop.permute.xlu0 %1297
    %1299 = vrot.lane.b32.xlu0 %v1158, 12
    %v1300 = vpop.permute.xlu0 %1299
    %1301 = vrot.lane.b32.xlu0 %v1159, 12
    %v1302 = vpop.permute.xlu0 %1301
    %1303 = vrot.lane.b32.xlu0 %v1160, 12
    %v1304 = vpop.permute.xlu0 %1303
    %1305 = vrot.lane.b32.xlu0 %v1161, 12
    %v1306 = vpop.permute.xlu0 %1305
    %1307 = vrot.lane.b32.xlu0 %v1162, 12
    %v1308 = vpop.permute.xlu0 %1307
    %1309 = vrot.lane.b32.xlu0 %v1163, 12
    %v1310 = vpop.permute.xlu0 %1309
    %1311 = vrot.lane.b32.xlu0 %v1164, 12
    %v1312 = vpop.permute.xlu0 %1311
    %1313 = vrot.lane.b32.xlu0 %v1165, 12
    %v1314 = vpop.permute.xlu0 %1313
    %1315 = vrot.lane.b32.xlu0 %v1166, 12
    %v1316 = vpop.permute.xlu0 %1315
    %1317 = vrot.lane.b32.xlu0 %v1167, 12
    %v1318 = vpop.permute.xlu0 %1317
    %1319 = vrot.lane.b32.xlu0 %v1168, 12
    %v1320 = vpop.permute.xlu0 %1319
    %1321 = vrot.lane.b32.xlu0 %v1169, 12
    %v1322 = vpop.permute.xlu0 %1321
    %1323 = vrot.lane.b32.xlu0 %v1170, 12
    %v1324 = vpop.permute.xlu0 %1323
    %1325 = vrot.lane.b32.xlu0 %v1171, 12
    %v1326 = vpop.permute.xlu0 %1325
    %1327 = vrot.lane.b32.xlu0 %v1172, 12
    %v1328 = vpop.permute.xlu0 %1327
    %1329 = vrot.lane.b32.xlu0 %v1173, 12
    %v1330 = vpop.permute.xlu0 %1329
    %1331 = vrot.lane.b32.xlu0 %v1174, 12
    %v1332 = vpop.permute.xlu0 %1331
    %1333 = vrot.lane.b32.xlu0 %v1175, 12
    %v1334 = vpop.permute.xlu0 %1333
    %1335 = vrot.lane.b32.xlu0 %v1176, 12
    %v1336 = vpop.permute.xlu0 %1335
    %1337 = vrot.lane.b32.xlu0 %v1177, 12
    %v1338 = vpop.permute.xlu0 %1337
    %1339 = vrot.lane.b32.xlu0 %v1178, 12
    %v1340 = vpop.permute.xlu0 %1339
    %1341 = vrot.lane.b32.xlu0 %v1179, 12
    %v1342 = vpop.permute.xlu0 %1341
    %1343 = vrot.lane.b32.xlu0 %v1180, 12
    %v1344 = vpop.permute.xlu0 %1343
    %1345 = vrot.lane.b32.xlu0 %v1181, 12
    %v1346 = vpop.permute.xlu0 %1345
    %1347 = vrot.lane.b32.xlu0 %v1182, 12
    %v1348 = vpop.permute.xlu0 %1347
    %1349 = vrot.lane.b32.xlu0 %v1183, 12
    %v1350 = vpop.permute.xlu0 %1349
    %1351 = vrot.lane.b32.xlu0 %v1184, 12
    %v1352 = vpop.permute.xlu0 %1351
    %1353 = vrot.lane.b32.xlu0 %v1185, 12
    %v1354 = vpop.permute.xlu0 %1353
    %1355 = vrot.lane.b32.xlu0 %v1186, 12
    %v1356 = vpop.permute.xlu0 %1355
    %1357 = vrot.lane.b32.xlu0 %v1187, 12
    %v1358 = vpop.permute.xlu0 %1357
    %1359 = vrot.lane.b32.xlu0 %v1188, 12
    %v1360 = vpop.permute.xlu0 %1359
    %1361 = vrot.lane.b32.xlu0 %v1189, 12
    %v1362 = vpop.permute.xlu0 %1361
    %1363 = vrot.lane.b32.xlu0 %v1190, 12
    %v1364 = vpop.permute.xlu0 %1363
    %1365 = vrot.lane.b32.xlu0 %v1191, 12
    %v1366 = vpop.permute.xlu0 %1365
    %1367 = vrot.lane.b32.xlu0 %v1192, 12
    %v1368 = vpop.permute.xlu0 %1367
    %1369 = vrot.lane.b32.xlu0 %v1193, 12
    %v1370 = vpop.permute.xlu0 %1369
    %1371 = vrot.lane.b32.xlu0 %v1194, 12
    %v1372 = vpop.permute.xlu0 %1371
    %1373 = vrot.lane.b32.xlu0 %v1195, 12
    %v1374 = vpop.permute.xlu0 %1373
    %1375 = vrot.lane.b32.xlu0 %v1196, 12
    %v1376 = vpop.permute.xlu0 %1375
    %1377 = vrot.lane.b32.xlu0 %v1197, 12
    %v1378 = vpop.permute.xlu0 %1377
    %1379 = vrot.lane.b32.xlu0 %v1198, 12
    %v1380 = vpop.permute.xlu0 %1379
    %1381 = vrot.lane.b32.xlu0 %v1199, 12
    %v1382 = vpop.permute.xlu0 %1381
    %1383 = vrot.lane.b32.xlu0 %v1200, 12
    %v1384 = vpop.permute.xlu0 %1383
    %1385 = vrot.lane.b32.xlu0 %v1201, 12
    %v1386 = vpop.permute.xlu0 %1385
    %1387 = vrot.lane.b32.xlu0 %v1202, 12
    %v1388 = vpop.permute.xlu0 %1387
    %1389 = vrot.lane.b32.xlu0 %v1203, 12
    %v1390 = vpop.permute.xlu0 %1389
    %1391 = vrot.lane.b32.xlu0 %v1204, 12
    %v1392 = vpop.permute.xlu0 %1391
    %1393 = vrot.lane.b32.xlu0 %v1205, 12
    %v1394 = vpop.permute.xlu0 %1393
    %1395 = vrot.lane.b32.xlu0 %v1206, 12
    %v1396 = vpop.permute.xlu0 %1395
    %1397 = vrot.lane.b32.xlu0 %v1207, 12
    %v1398 = vpop.permute.xlu0 %1397
    %1399 = vrot.lane.b32.xlu0 %v1208, 12
    %v1400 = vpop.permute.xlu0 %1399
    %vm1465 = vcmask 130144
    %1466 = vst.msk [vmem:[#allocation3] sm:$0xff] %vm1465, %v1274
    %1467 = vst.msk [vmem:[#allocation3 + $0x8] sm:$0xff] %vm1465, %v1276
    %1468 = vst.msk [vmem:[#allocation3 + $0x10] sm:$0xff] %vm1465, %v1278
    %1469 = vst.msk [vmem:[#allocation3 + $0x18] sm:$0xff] %vm1465, %v1280
    %1470 = vst.msk [vmem:[#allocation3 + $0x20] sm:$0xff] %vm1465, %v1282
    %1471 = vst.msk [vmem:[#allocation3 + $0x28] sm:$0xff] %vm1465, %v1284
    %1472 = vst.msk [vmem:[#allocation3 + $0x30] sm:$0xff] %vm1465, %v1286
    %1473 = vst.msk [vmem:[#allocation3 + $0x38] sm:$0xff] %vm1465, %v1288
    %1474 = vst.msk [vmem:[#allocation3 + $0x40] sm:$0xff] %vm1465, %v1290
    %1475 = vst.msk [vmem:[#allocation3 + $0x48] sm:$0xff] %vm1465, %v1292
    %1476 = vst.msk [vmem:[#allocation3 + $0x50] sm:$0xff] %vm1465, %v1294
    %1477 = vst.msk [vmem:[#allocation3 + $0x58] sm:$0xff] %vm1465, %v1296
    %1478 = vst.msk [vmem:[#allocation3 + $0x60] sm:$0xff] %vm1465, %v1298
    %1479 = vst.msk [vmem:[#allocation3 + $0x68] sm:$0xff] %vm1465, %v1300
    %1480 = vst.msk [vmem:[#allocation3 + $0x70] sm:$0xff] %vm1465, %v1302
    %1481 = vst.msk [vmem:[#allocation3 + $0x78] sm:$0xff] %vm1465, %v1304
    %1482 = vst.msk [vmem:[#allocation3 + $0x80] sm:$0xff] %vm1465, %v1306
    %1483 = vst.msk [vmem:[#allocation3 + $0x88] sm:$0xff] %vm1465, %v1308
    %1484 = vst.msk [vmem:[#allocation3 + $0x90] sm:$0xff] %vm1465, %v1310
    %1485 = vst.msk [vmem:[#allocation3 + $0x98] sm:$0xff] %vm1465, %v1312
    %1486 = vst.msk [vmem:[#allocation3 + $0xa0] sm:$0xff] %vm1465, %v1314
    %1487 = vst.msk [vmem:[#allocation3 + $0xa8] sm:$0xff] %vm1465, %v1316
    %1488 = vst.msk [vmem:[#allocation3 + $0xb0] sm:$0xff] %vm1465, %v1318
    %1489 = vst.msk [vmem:[#allocation3 + $0xb8] sm:$0xff] %vm1465, %v1320
    %1490 = vst.msk [vmem:[#allocation3 + $0xc0] sm:$0xff] %vm1465, %v1322
    %1491 = vst.msk [vmem:[#allocation3 + $0xc8] sm:$0xff] %vm1465, %v1324
    %1492 = vst.msk [vmem:[#allocation3 + $0xd0] sm:$0xff] %vm1465, %v1326
    %1493 = vst.msk [vmem:[#allocation3 + $0xd8] sm:$0xff] %vm1465, %v1328
    %1494 = vst.msk [vmem:[#allocation3 + $0xe0] sm:$0xff] %vm1465, %v1330
    %1495 = vst.msk [vmem:[#allocation3 + $0xe8] sm:$0xff] %vm1465, %v1332
    %1496 = vst.msk [vmem:[#allocation3 + $0xf0] sm:$0xff] %vm1465, %v1334
    %1497 = vst.msk [vmem:[#allocation3 + $0xf8] sm:$0xff] %vm1465, %v1336
    %1498 = vst.msk [vmem:[#allocation3 + $0x100] sm:$0xff] %vm1465, %v1338
    %1499 = vst.msk [vmem:[#allocation3 + $0x108] sm:$0xff] %vm1465, %v1340
    %1500 = vst.msk [vmem:[#allocation3 + $0x110] sm:$0xff] %vm1465, %v1342
    %1501 = vst.msk [vmem:[#allocation3 + $0x118] sm:$0xff] %vm1465, %v1344
    %1502 = vst.msk [vmem:[#allocation3 + $0x120] sm:$0xff] %vm1465, %v1346
    %1503 = vst.msk [vmem:[#allocation3 + $0x128] sm:$0xff] %vm1465, %v1348
    %1504 = vst.msk [vmem:[#allocation3 + $0x130] sm:$0xff] %vm1465, %v1350
    %1505 = vst.msk [vmem:[#allocation3 + $0x138] sm:$0xff] %vm1465, %v1352
    %1506 = vst.msk [vmem:[#allocation3 + $0x140] sm:$0xff] %vm1465, %v1354
    %1507 = vst.msk [vmem:[#allocation3 + $0x148] sm:$0xff] %vm1465, %v1356
    %1508 = vst.msk [vmem:[#allocation3 + $0x150] sm:$0xff] %vm1465, %v1358
    %1509 = vst.msk [vmem:[#allocation3 + $0x158] sm:$0xff] %vm1465, %v1360
    %1510 = vst.msk [vmem:[#allocation3 + $0x160] sm:$0xff] %vm1465, %v1362
    %1511 = vst.msk [vmem:[#allocation3 + $0x168] sm:$0xff] %vm1465, %v1364
    %1512 = vst.msk [vmem:[#allocation3 + $0x170] sm:$0xff] %vm1465, %v1366
    %1513 = vst.msk [vmem:[#allocation3 + $0x178] sm:$0xff] %vm1465, %v1368
    %1514 = vst.msk [vmem:[#allocation3 + $0x180] sm:$0xff] %vm1465, %v1370
    %1515 = vst.msk [vmem:[#allocation3 + $0x188] sm:$0xff] %vm1465, %v1372
    %1516 = vst.msk [vmem:[#allocation3 + $0x190] sm:$0xff] %vm1465, %v1374
    %1517 = vst.msk [vmem:[#allocation3 + $0x198] sm:$0xff] %vm1465, %v1376
    %1518 = vst.msk [vmem:[#allocation3 + $0x1a0] sm:$0xff] %vm1465, %v1378
    %1519 = vst.msk [vmem:[#allocation3 + $0x1a8] sm:$0xff] %vm1465, %v1380
    %1520 = vst.msk [vmem:[#allocation3 + $0x1b0] sm:$0xff] %vm1465, %v1382
    %1521 = vst.msk [vmem:[#allocation3 + $0x1b8] sm:$0xff] %vm1465, %v1384
    %1522 = vst.msk [vmem:[#allocation3 + $0x1c0] sm:$0xff] %vm1465, %v1386
    %1523 = vst.msk [vmem:[#allocation3 + $0x1c8] sm:$0xff] %vm1465, %v1388
    %1524 = vst.msk [vmem:[#allocation3 + $0x1d0] sm:$0xff] %vm1465, %v1390
    %1525 = vst.msk [vmem:[#allocation3 + $0x1d8] sm:$0xff] %vm1465, %v1392
    %1526 = vst.msk [vmem:[#allocation3 + $0x1e0] sm:$0xff] %vm1465, %v1394
    %1527 = vst.msk [vmem:[#allocation3 + $0x1e8] sm:$0xff] %vm1465, %v1396
    %1528 = vst.msk [vmem:[#allocation3 + $0x1f0] sm:$0xff] %vm1465, %v1398
    %1529 = vst.msk [vmem:[#allocation3 + $0x1f8] sm:$0xff] %vm1465, %v1400
    %v1530 = vld [vmem:[%s181 + $0x1] sm:$0xff]
    %v1531 = vld [vmem:[%s181 + $0x9] sm:$0xff]
    %v1532 = vld [vmem:[%s181 + $0x19] sm:$0xff]
    %v1533 = vld [vmem:[%s181 + $0x21] sm:$0xff]
    %v1534 = vld [vmem:[%s181 + $0x31] sm:$0xff]
    %v1535 = vld [vmem:[%s181 + $0x39] sm:$0xff]
    %v1536 = vld [vmem:[%s181 + $0x49] sm:$0xff]
    %v1537 = vld [vmem:[%s181 + $0x51] sm:$0xff]
    %v1538 = vld [vmem:[%s181 + $0x61] sm:$0xff]
    %v1539 = vld [vmem:[%s181 + $0x69] sm:$0xff]
    %v1540 = vld [vmem:[%s181 + $0x79] sm:$0xff]
    %v1541 = vld [vmem:[%s181 + $0x81] sm:$0xff]
    %v1542 = vld [vmem:[%s181 + $0x91] sm:$0xff]
    %v1543 = vld [vmem:[%s181 + $0x99] sm:$0xff]
    %v1544 = vld [vmem:[%s181 + $0xa9] sm:$0xff]
    %v1545 = vld [vmem:[%s181 + $0xb1] sm:$0xff]
    %v1546 = vld [vmem:[%s181 + $0xc1] sm:$0xff]
    %v1547 = vld [vmem:[%s181 + $0xc9] sm:$0xff]
    %v1548 = vld [vmem:[%s181 + $0xd9] sm:$0xff]
    %v1549 = vld [vmem:[%s181 + $0xe1] sm:$0xff]
    %v1550 = vld [vmem:[%s181 + $0xf1] sm:$0xff]
    %v1551 = vld [vmem:[%s181 + $0xf9] sm:$0xff]
    %v1552 = vld [vmem:[%s181 + $0x109] sm:$0xff]
    %v1553 = vld [vmem:[%s181 + $0x111] sm:$0xff]
    %v1554 = vld [vmem:[%s181 + $0x121] sm:$0xff]
    %v1555 = vld [vmem:[%s181 + $0x129] sm:$0xff]
    %v1556 = vld [vmem:[%s181 + $0x139] sm:$0xff]
    %v1557 = vld [vmem:[%s181 + $0x141] sm:$0xff]
    %v1558 = vld [vmem:[%s181 + $0x151] sm:$0xff]
    %v1559 = vld [vmem:[%s181 + $0x159] sm:$0xff]
    %v1560 = vld [vmem:[%s181 + $0x169] sm:$0xff]
    %v1561 = vld [vmem:[%s181 + $0x171] sm:$0xff]
    %v1562 = vld [vmem:[%s181 + $0x1b1] sm:$0xff]
    %v1563 = vld [vmem:[%s181 + $0x1b9] sm:$0xff]
    %v1564 = vld [vmem:[%s181 + $0x1c9] sm:$0xff]
    %v1565 = vld [vmem:[%s181 + $0x1d1] sm:$0xff]
    %v1566 = vld [vmem:[%s181 + $0x1e1] sm:$0xff]
    %v1567 = vld [vmem:[%s181 + $0x1e9] sm:$0xff]
    %v1568 = vld [vmem:[%s181 + $0x1f9] sm:$0xff]
    %v1569 = vld [vmem:[%s181 + $0x201] sm:$0xff]
    %v1570 = vld [vmem:[%s181 + $0x211] sm:$0xff]
    %v1571 = vld [vmem:[%s181 + $0x219] sm:$0xff]
    %v1572 = vld [vmem:[%s181 + $0x229] sm:$0xff]
    %v1573 = vld [vmem:[%s181 + $0x231] sm:$0xff]
    %v1574 = vld [vmem:[%s181 + $0x241] sm:$0xff]
    %v1575 = vld [vmem:[%s181 + $0x249] sm:$0xff]
    %v1576 = vld [vmem:[%s181 + $0x259] sm:$0xff]
    %v1577 = vld [vmem:[%s181 + $0x261] sm:$0xff]
    %v1578 = vld [vmem:[%s181 + $0x271] sm:$0xff]
    %v1579 = vld [vmem:[%s181 + $0x279] sm:$0xff]
    %v1580 = vld [vmem:[%s181 + $0x289] sm:$0xff]
    %v1581 = vld [vmem:[%s181 + $0x291] sm:$0xff]
    %v1582 = vld [vmem:[%s181 + $0x2a1] sm:$0xff]
    %v1583 = vld [vmem:[%s181 + $0x2a9] sm:$0xff]
    %v1584 = vld [vmem:[%s181 + $0x2b9] sm:$0xff]
    %v1585 = vld [vmem:[%s181 + $0x2c1] sm:$0xff]
    %v1586 = vld [vmem:[%s181 + $0x2d1] sm:$0xff]
    %v1587 = vld [vmem:[%s181 + $0x2d9] sm:$0xff]
    %v1588 = vld [vmem:[%s181 + $0x2e9] sm:$0xff]
    %v1589 = vld [vmem:[%s181 + $0x2f1] sm:$0xff]
    %v1590 = vld [vmem:[%s181 + $0x301] sm:$0xff]
    %v1591 = vld [vmem:[%s181 + $0x309] sm:$0xff]
    %v1592 = vld [vmem:[%s181 + $0x319] sm:$0xff]
    %v1593 = vld [vmem:[%s181 + $0x321] sm:$0xff]
    %1658 = vrot.lane.b32.xlu0 %v1530, 16
    %v1659 = vpop.permute.xlu0 %1658
    %1660 = vrot.lane.b32.xlu0 %v1531, 16
    %v1661 = vpop.permute.xlu0 %1660
    %1662 = vrot.lane.b32.xlu0 %v1532, 16
    %v1663 = vpop.permute.xlu0 %1662
    %1664 = vrot.lane.b32.xlu0 %v1533, 16
    %v1665 = vpop.permute.xlu0 %1664
    %1666 = vrot.lane.b32.xlu0 %v1534, 16
    %v1667 = vpop.permute.xlu0 %1666
    %1668 = vrot.lane.b32.xlu0 %v1535, 16
    %v1669 = vpop.permute.xlu0 %1668
    %1670 = vrot.lane.b32.xlu0 %v1536, 16
    %v1671 = vpop.permute.xlu0 %1670
    %1672 = vrot.lane.b32.xlu0 %v1537, 16
    %v1673 = vpop.permute.xlu0 %1672
    %1674 = vrot.lane.b32.xlu0 %v1538, 16
    %v1675 = vpop.permute.xlu0 %1674
    %1676 = vrot.lane.b32.xlu0 %v1539, 16
    %v1677 = vpop.permute.xlu0 %1676
    %1678 = vrot.lane.b32.xlu0 %v1540, 16
    %v1679 = vpop.permute.xlu0 %1678
    %1680 = vrot.lane.b32.xlu0 %v1541, 16
    %v1681 = vpop.permute.xlu0 %1680
    %1682 = vrot.lane.b32.xlu0 %v1542, 16
    %v1683 = vpop.permute.xlu0 %1682
    %1684 = vrot.lane.b32.xlu0 %v1543, 16
    %v1685 = vpop.permute.xlu0 %1684
    %1686 = vrot.lane.b32.xlu0 %v1544, 16
    %v1687 = vpop.permute.xlu0 %1686
    %1688 = vrot.lane.b32.xlu0 %v1545, 16
    %v1689 = vpop.permute.xlu0 %1688
    %1690 = vrot.lane.b32.xlu0 %v1546, 16
    %v1691 = vpop.permute.xlu0 %1690
    %1692 = vrot.lane.b32.xlu0 %v1547, 16
    %v1693 = vpop.permute.xlu0 %1692
    %1694 = vrot.lane.b32.xlu0 %v1548, 16
    %v1695 = vpop.permute.xlu0 %1694
    %1696 = vrot.lane.b32.xlu0 %v1549, 16
    %v1697 = vpop.permute.xlu0 %1696
    %1698 = vrot.lane.b32.xlu0 %v1550, 16
    %v1699 = vpop.permute.xlu0 %1698
    %1700 = vrot.lane.b32.xlu0 %v1551, 16
    %v1701 = vpop.permute.xlu0 %1700
    %1702 = vrot.lane.b32.xlu0 %v1552, 16
    %v1703 = vpop.permute.xlu0 %1702
    %1704 = vrot.lane.b32.xlu0 %v1553, 16
    %v1705 = vpop.permute.xlu0 %1704
    %1706 = vrot.lane.b32.xlu0 %v1554, 16
    %v1707 = vpop.permute.xlu0 %1706
    %1708 = vrot.lane.b32.xlu0 %v1555, 16
    %v1709 = vpop.permute.xlu0 %1708
    %1710 = vrot.lane.b32.xlu0 %v1556, 16
    %v1711 = vpop.permute.xlu0 %1710
    %1712 = vrot.lane.b32.xlu0 %v1557, 16
    %v1713 = vpop.permute.xlu0 %1712
    %1714 = vrot.lane.b32.xlu0 %v1558, 16
    %v1715 = vpop.permute.xlu0 %1714
    %1716 = vrot.lane.b32.xlu0 %v1559, 16
    %v1717 = vpop.permute.xlu0 %1716
    %1718 = vrot.lane.b32.xlu0 %v1560, 16
    %v1719 = vpop.permute.xlu0 %1718
    %1720 = vrot.lane.b32.xlu0 %v1561, 16
    %v1721 = vpop.permute.xlu0 %1720
    %1722 = vrot.lane.b32.xlu0 %v1562, 16
    %v1723 = vpop.permute.xlu0 %1722
    %1724 = vrot.lane.b32.xlu0 %v1563, 16
    %v1725 = vpop.permute.xlu0 %1724
    %1726 = vrot.lane.b32.xlu0 %v1564, 16
    %v1727 = vpop.permute.xlu0 %1726
    %1728 = vrot.lane.b32.xlu0 %v1565, 16
    %v1729 = vpop.permute.xlu0 %1728
    %1730 = vrot.lane.b32.xlu0 %v1566, 16
    %v1731 = vpop.permute.xlu0 %1730
    %1732 = vrot.lane.b32.xlu0 %v1567, 16
    %v1733 = vpop.permute.xlu0 %1732
    %1734 = vrot.lane.b32.xlu0 %v1568, 16
    %v1735 = vpop.permute.xlu0 %1734
    %1736 = vrot.lane.b32.xlu0 %v1569, 16
    %v1737 = vpop.permute.xlu0 %1736
    %1738 = vrot.lane.b32.xlu0 %v1570, 16
    %v1739 = vpop.permute.xlu0 %1738
    %1740 = vrot.lane.b32.xlu0 %v1571, 16
    %v1741 = vpop.permute.xlu0 %1740
    %1742 = vrot.lane.b32.xlu0 %v1572, 16
    %v1743 = vpop.permute.xlu0 %1742
    %1744 = vrot.lane.b32.xlu0 %v1573, 16
    %v1745 = vpop.permute.xlu0 %1744
    %1746 = vrot.lane.b32.xlu0 %v1574, 16
    %v1747 = vpop.permute.xlu0 %1746
    %1748 = vrot.lane.b32.xlu0 %v1575, 16
    %v1749 = vpop.permute.xlu0 %1748
    %1750 = vrot.lane.b32.xlu0 %v1576, 16
    %v1751 = vpop.permute.xlu0 %1750
    %1752 = vrot.lane.b32.xlu0 %v1577, 16
    %v1753 = vpop.permute.xlu0 %1752
    %1754 = vrot.lane.b32.xlu0 %v1578, 16
    %v1755 = vpop.permute.xlu0 %1754
    %1756 = vrot.lane.b32.xlu0 %v1579, 16
    %v1757 = vpop.permute.xlu0 %1756
    %1758 = vrot.lane.b32.xlu0 %v1580, 16
    %v1759 = vpop.permute.xlu0 %1758
    %1760 = vrot.lane.b32.xlu0 %v1581, 16
    %v1761 = vpop.permute.xlu0 %1760
    %1762 = vrot.lane.b32.xlu0 %v1582, 16
    %v1763 = vpop.permute.xlu0 %1762
    %1764 = vrot.lane.b32.xlu0 %v1583, 16
    %v1765 = vpop.permute.xlu0 %1764
    %1766 = vrot.lane.b32.xlu0 %v1584, 16
    %v1767 = vpop.permute.xlu0 %1766
    %1768 = vrot.lane.b32.xlu0 %v1585, 16
    %v1769 = vpop.permute.xlu0 %1768
    %1770 = vrot.lane.b32.xlu0 %v1586, 16
    %v1771 = vpop.permute.xlu0 %1770
    %1772 = vrot.lane.b32.xlu0 %v1587, 16
    %v1773 = vpop.permute.xlu0 %1772
    %1774 = vrot.lane.b32.xlu0 %v1588, 16
    %v1775 = vpop.permute.xlu0 %1774
    %1776 = vrot.lane.b32.xlu0 %v1589, 16
    %v1777 = vpop.permute.xlu0 %1776
    %1778 = vrot.lane.b32.xlu0 %v1590, 16
    %v1779 = vpop.permute.xlu0 %1778
    %1780 = vrot.lane.b32.xlu0 %v1591, 16
    %v1781 = vpop.permute.xlu0 %1780
    %1782 = vrot.lane.b32.xlu0 %v1592, 16
    %v1783 = vpop.permute.xlu0 %1782
    %1784 = vrot.lane.b32.xlu0 %v1593, 16
    %v1785 = vpop.permute.xlu0 %1784
    %vm1850 = vcmask 162944
    %1851 = vst.msk [vmem:[#allocation3] sm:$0xff] %vm1850, %v1659
    %1852 = vst.msk [vmem:[#allocation3 + $0x8] sm:$0xff] %vm1850, %v1661
    %1853 = vst.msk [vmem:[#allocation3 + $0x10] sm:$0xff] %vm1850, %v1663
    %1854 = vst.msk [vmem:[#allocation3 + $0x18] sm:$0xff] %vm1850, %v1665
    %1855 = vst.msk [vmem:[#allocation3 + $0x20] sm:$0xff] %vm1850, %v1667
    %1856 = vst.msk [vmem:[#allocation3 + $0x28] sm:$0xff] %vm1850, %v1669
    %1857 = vst.msk [vmem:[#allocation3 + $0x30] sm:$0xff] %vm1850, %v1671
    %1858 = vst.msk [vmem:[#allocation3 + $0x38] sm:$0xff] %vm1850, %v1673
    %1859 = vst.msk [vmem:[#allocation3 + $0x40] sm:$0xff] %vm1850, %v1675
    %1860 = vst.msk [vmem:[#allocation3 + $0x48] sm:$0xff] %vm1850, %v1677
    %1861 = vst.msk [vmem:[#allocation3 + $0x50] sm:$0xff] %vm1850, %v1679
    %1862 = vst.msk [vmem:[#allocation3 + $0x58] sm:$0xff] %vm1850, %v1681
    %1863 = vst.msk [vmem:[#allocation3 + $0x60] sm:$0xff] %vm1850, %v1683
    %1864 = vst.msk [vmem:[#allocation3 + $0x68] sm:$0xff] %vm1850, %v1685
    %1865 = vst.msk [vmem:[#allocation3 + $0x70] sm:$0xff] %vm1850, %v1687
    %1866 = vst.msk [vmem:[#allocation3 + $0x78] sm:$0xff] %vm1850, %v1689
    %1867 = vst.msk [vmem:[#allocation3 + $0x80] sm:$0xff] %vm1850, %v1691
    %1868 = vst.msk [vmem:[#allocation3 + $0x88] sm:$0xff] %vm1850, %v1693
    %1869 = vst.msk [vmem:[#allocation3 + $0x90] sm:$0xff] %vm1850, %v1695
    %1870 = vst.msk [vmem:[#allocation3 + $0x98] sm:$0xff] %vm1850, %v1697
    %1871 = vst.msk [vmem:[#allocation3 + $0xa0] sm:$0xff] %vm1850, %v1699
    %1872 = vst.msk [vmem:[#allocation3 + $0xa8] sm:$0xff] %vm1850, %v1701
    %1873 = vst.msk [vmem:[#allocation3 + $0xb0] sm:$0xff] %vm1850, %v1703
    %1874 = vst.msk [vmem:[#allocation3 + $0xb8] sm:$0xff] %vm1850, %v1705
    %1875 = vst.msk [vmem:[#allocation3 + $0xc0] sm:$0xff] %vm1850, %v1707
    %1876 = vst.msk [vmem:[#allocation3 + $0xc8] sm:$0xff] %vm1850, %v1709
    %1877 = vst.msk [vmem:[#allocation3 + $0xd0] sm:$0xff] %vm1850, %v1711
    %1878 = vst.msk [vmem:[#allocation3 + $0xd8] sm:$0xff] %vm1850, %v1713
    %1879 = vst.msk [vmem:[#allocation3 + $0xe0] sm:$0xff] %vm1850, %v1715
    %1880 = vst.msk [vmem:[#allocation3 + $0xe8] sm:$0xff] %vm1850, %v1717
    %1881 = vst.msk [vmem:[#allocation3 + $0xf0] sm:$0xff] %vm1850, %v1719
    %1882 = vst.msk [vmem:[#allocation3 + $0xf8] sm:$0xff] %vm1850, %v1721
    %1883 = vst.msk [vmem:[#allocation3 + $0x100] sm:$0xff] %vm1850, %v1723
    %1884 = vst.msk [vmem:[#allocation3 + $0x108] sm:$0xff] %vm1850, %v1725
    %1885 = vst.msk [vmem:[#allocation3 + $0x110] sm:$0xff] %vm1850, %v1727
    %1886 = vst.msk [vmem:[#allocation3 + $0x118] sm:$0xff] %vm1850, %v1729
    %1887 = vst.msk [vmem:[#allocation3 + $0x120] sm:$0xff] %vm1850, %v1731
    %1888 = vst.msk [vmem:[#allocation3 + $0x128] sm:$0xff] %vm1850, %v1733
    %1889 = vst.msk [vmem:[#allocation3 + $0x130] sm:$0xff] %vm1850, %v1735
    %1890 = vst.msk [vmem:[#allocation3 + $0x138] sm:$0xff] %vm1850, %v1737
    %1891 = vst.msk [vmem:[#allocation3 + $0x140] sm:$0xff] %vm1850, %v1739
    %1892 = vst.msk [vmem:[#allocation3 + $0x148] sm:$0xff] %vm1850, %v1741
    %1893 = vst.msk [vmem:[#allocation3 + $0x150] sm:$0xff] %vm1850, %v1743
    %1894 = vst.msk [vmem:[#allocation3 + $0x158] sm:$0xff] %vm1850, %v1745
    %1895 = vst.msk [vmem:[#allocation3 + $0x160] sm:$0xff] %vm1850, %v1747
    %1896 = vst.msk [vmem:[#allocation3 + $0x168] sm:$0xff] %vm1850, %v1749
    %1897 = vst.msk [vmem:[#allocation3 + $0x170] sm:$0xff] %vm1850, %v1751
    %1898 = vst.msk [vmem:[#allocation3 + $0x178] sm:$0xff] %vm1850, %v1753
    %1899 = vst.msk [vmem:[#allocation3 + $0x180] sm:$0xff] %vm1850, %v1755
    %1900 = vst.msk [vmem:[#allocation3 + $0x188] sm:$0xff] %vm1850, %v1757
    %1901 = vst.msk [vmem:[#allocation3 + $0x190] sm:$0xff] %vm1850, %v1759
    %1902 = vst.msk [vmem:[#allocation3 + $0x198] sm:$0xff] %vm1850, %v1761
    %1903 = vst.msk [vmem:[#allocation3 + $0x1a0] sm:$0xff] %vm1850, %v1763
    %1904 = vst.msk [vmem:[#allocation3 + $0x1a8] sm:$0xff] %vm1850, %v1765
    %1905 = vst.msk [vmem:[#allocation3 + $0x1b0] sm:$0xff] %vm1850, %v1767
    %1906 = vst.msk [vmem:[#allocation3 + $0x1b8] sm:$0xff] %vm1850, %v1769
    %1907 = vst.msk [vmem:[#allocation3 + $0x1c0] sm:$0xff] %vm1850, %v1771
    %1908 = vst.msk [vmem:[#allocation3 + $0x1c8] sm:$0xff] %vm1850, %v1773
    %1909 = vst.msk [vmem:[#allocation3 + $0x1d0] sm:$0xff] %vm1850, %v1775
    %1910 = vst.msk [vmem:[#allocation3 + $0x1d8] sm:$0xff] %vm1850, %v1777
    %1911 = vst.msk [vmem:[#allocation3 + $0x1e0] sm:$0xff] %vm1850, %v1779
    %1912 = vst.msk [vmem:[#allocation3 + $0x1e8] sm:$0xff] %vm1850, %v1781
    %1913 = vst.msk [vmem:[#allocation3 + $0x1f0] sm:$0xff] %vm1850, %v1783
    %1914 = vst.msk [vmem:[#allocation3 + $0x1f8] sm:$0xff] %vm1850, %v1785
    %v1915 = vld [vmem:[%s181 + $0x2] sm:$0xff]
    %v1916 = vld [vmem:[%s181 + $0xa] sm:$0xff]
    %v1917 = vld [vmem:[%s181 + $0x1a] sm:$0xff]
    %v1918 = vld [vmem:[%s181 + $0x22] sm:$0xff]
    %v1919 = vld [vmem:[%s181 + $0x32] sm:$0xff]
    %v1920 = vld [vmem:[%s181 + $0x3a] sm:$0xff]
    %v1921 = vld [vmem:[%s181 + $0x4a] sm:$0xff]
    %v1922 = vld [vmem:[%s181 + $0x52] sm:$0xff]
    %v1923 = vld [vmem:[%s181 + $0x62] sm:$0xff]
    %v1924 = vld [vmem:[%s181 + $0x6a] sm:$0xff]
    %v1925 = vld [vmem:[%s181 + $0x7a] sm:$0xff]
    %v1926 = vld [vmem:[%s181 + $0x82] sm:$0xff]
    %v1927 = vld [vmem:[%s181 + $0x92] sm:$0xff]
    %v1928 = vld [vmem:[%s181 + $0x9a] sm:$0xff]
    %v1929 = vld [vmem:[%s181 + $0xaa] sm:$0xff]
    %v1930 = vld [vmem:[%s181 + $0xb2] sm:$0xff]
    %v1931 = vld [vmem:[%s181 + $0xc2] sm:$0xff]
    %v1932 = vld [vmem:[%s181 + $0xca] sm:$0xff]
    %v1933 = vld [vmem:[%s181 + $0xda] sm:$0xff]
    %v1934 = vld [vmem:[%s181 + $0xe2] sm:$0xff]
    %v1935 = vld [vmem:[%s181 + $0xf2] sm:$0xff]
    %v1936 = vld [vmem:[%s181 + $0xfa] sm:$0xff]
    %v1937 = vld [vmem:[%s181 + $0x10a] sm:$0xff]
    %v1938 = vld [vmem:[%s181 + $0x112] sm:$0xff]
    %v1939 = vld [vmem:[%s181 + $0x122] sm:$0xff]
    %v1940 = vld [vmem:[%s181 + $0x12a] sm:$0xff]
    %v1941 = vld [vmem:[%s181 + $0x13a] sm:$0xff]
    %v1942 = vld [vmem:[%s181 + $0x142] sm:$0xff]
    %v1943 = vld [vmem:[%s181 + $0x152] sm:$0xff]
    %v1944 = vld [vmem:[%s181 + $0x15a] sm:$0xff]
    %v1945 = vld [vmem:[%s181 + $0x16a] sm:$0xff]
    %v1946 = vld [vmem:[%s181 + $0x172] sm:$0xff]
    %v1947 = vld [vmem:[%s181 + $0x1b2] sm:$0xff]
    %v1948 = vld [vmem:[%s181 + $0x1ba] sm:$0xff]
    %v1949 = vld [vmem:[%s181 + $0x1ca] sm:$0xff]
    %v1950 = vld [vmem:[%s181 + $0x1d2] sm:$0xff]
    %v1951 = vld [vmem:[%s181 + $0x1e2] sm:$0xff]
    %v1952 = vld [vmem:[%s181 + $0x1ea] sm:$0xff]
    %v1953 = vld [vmem:[%s181 + $0x1fa] sm:$0xff]
    %v1954 = vld [vmem:[%s181 + $0x202] sm:$0xff]
    %v1955 = vld [vmem:[%s181 + $0x212] sm:$0xff]
    %v1956 = vld [vmem:[%s181 + $0x21a] sm:$0xff]
    %v1957 = vld [vmem:[%s181 + $0x22a] sm:$0xff]
    %v1958 = vld [vmem:[%s181 + $0x232] sm:$0xff]
    %v1959 = vld [vmem:[%s181 + $0x242] sm:$0xff]
    %v1960 = vld [vmem:[%s181 + $0x24a] sm:$0xff]
    %v1961 = vld [vmem:[%s181 + $0x25a] sm:$0xff]
    %v1962 = vld [vmem:[%s181 + $0x262] sm:$0xff]
    %v1963 = vld [vmem:[%s181 + $0x272] sm:$0xff]
    %v1964 = vld [vmem:[%s181 + $0x27a] sm:$0xff]
    %v1965 = vld [vmem:[%s181 + $0x28a] sm:$0xff]
    %v1966 = vld [vmem:[%s181 + $0x292] sm:$0xff]
    %v1967 = vld [vmem:[%s181 + $0x2a2] sm:$0xff]
    %v1968 = vld [vmem:[%s181 + $0x2aa] sm:$0xff]
    %v1969 = vld [vmem:[%s181 + $0x2ba] sm:$0xff]
    %v1970 = vld [vmem:[%s181 + $0x2c2] sm:$0xff]
    %v1971 = vld [vmem:[%s181 + $0x2d2] sm:$0xff]
    %v1972 = vld [vmem:[%s181 + $0x2da] sm:$0xff]
    %v1973 = vld [vmem:[%s181 + $0x2ea] sm:$0xff]
    %v1974 = vld [vmem:[%s181 + $0x2f2] sm:$0xff]
    %v1975 = vld [vmem:[%s181 + $0x302] sm:$0xff]
    %v1976 = vld [vmem:[%s181 + $0x30a] sm:$0xff]
    %v1977 = vld [vmem:[%s181 + $0x31a] sm:$0xff]
    %v1978 = vld [vmem:[%s181 + $0x322] sm:$0xff]
    %2043 = vrot.lane.b32.xlu0 %v1915, 20
    %v2044 = vpop.permute.xlu0 %2043
    %2045 = vrot.lane.b32.xlu0 %v1916, 20
    %v2046 = vpop.permute.xlu0 %2045
    %2047 = vrot.lane.b32.xlu0 %v1917, 20
    %v2048 = vpop.permute.xlu0 %2047
    %2049 = vrot.lane.b32.xlu0 %v1918, 20
    %v2050 = vpop.permute.xlu0 %2049
    %2051 = vrot.lane.b32.xlu0 %v1919, 20
    %v2052 = vpop.permute.xlu0 %2051
    %2053 = vrot.lane.b32.xlu0 %v1920, 20
    %v2054 = vpop.permute.xlu0 %2053
    %2055 = vrot.lane.b32.xlu0 %v1921, 20
    %v2056 = vpop.permute.xlu0 %2055
    %2057 = vrot.lane.b32.xlu0 %v1922, 20
    %v2058 = vpop.permute.xlu0 %2057
    %2059 = vrot.lane.b32.xlu0 %v1923, 20
    %v2060 = vpop.permute.xlu0 %2059
    %2061 = vrot.lane.b32.xlu0 %v1924, 20
    %v2062 = vpop.permute.xlu0 %2061
    %2063 = vrot.lane.b32.xlu0 %v1925, 20
    %v2064 = vpop.permute.xlu0 %2063
    %2065 = vrot.lane.b32.xlu0 %v1926, 20
    %v2066 = vpop.permute.xlu0 %2065
    %2067 = vrot.lane.b32.xlu0 %v1927, 20
    %v2068 = vpop.permute.xlu0 %2067
    %2069 = vrot.lane.b32.xlu0 %v1928, 20
    %v2070 = vpop.permute.xlu0 %2069
    %2071 = vrot.lane.b32.xlu0 %v1929, 20
    %v2072 = vpop.permute.xlu0 %2071
    %2073 = vrot.lane.b32.xlu0 %v1930, 20
    %v2074 = vpop.permute.xlu0 %2073
    %2075 = vrot.lane.b32.xlu0 %v1931, 20
    %v2076 = vpop.permute.xlu0 %2075
    %2077 = vrot.lane.b32.xlu0 %v1932, 20
    %v2078 = vpop.permute.xlu0 %2077
    %2079 = vrot.lane.b32.xlu0 %v1933, 20
    %v2080 = vpop.permute.xlu0 %2079
    %2081 = vrot.lane.b32.xlu0 %v1934, 20
    %v2082 = vpop.permute.xlu0 %2081
    %2083 = vrot.lane.b32.xlu0 %v1935, 20
    %v2084 = vpop.permute.xlu0 %2083
    %2085 = vrot.lane.b32.xlu0 %v1936, 20
    %v2086 = vpop.permute.xlu0 %2085
    %2087 = vrot.lane.b32.xlu0 %v1937, 20
    %v2088 = vpop.permute.xlu0 %2087
    %2089 = vrot.lane.b32.xlu0 %v1938, 20
    %v2090 = vpop.permute.xlu0 %2089
    %2091 = vrot.lane.b32.xlu0 %v1939, 20
    %v2092 = vpop.permute.xlu0 %2091
    %2093 = vrot.lane.b32.xlu0 %v1940, 20
    %v2094 = vpop.permute.xlu0 %2093
    %2095 = vrot.lane.b32.xlu0 %v1941, 20
    %v2096 = vpop.permute.xlu0 %2095
    %2097 = vrot.lane.b32.xlu0 %v1942, 20
    %v2098 = vpop.permute.xlu0 %2097
    %2099 = vrot.lane.b32.xlu0 %v1943, 20
    %v2100 = vpop.permute.xlu0 %2099
    %2101 = vrot.lane.b32.xlu0 %v1944, 20
    %v2102 = vpop.permute.xlu0 %2101
    %2103 = vrot.lane.b32.xlu0 %v1945, 20
    %v2104 = vpop.permute.xlu0 %2103
    %2105 = vrot.lane.b32.xlu0 %v1946, 20
    %v2106 = vpop.permute.xlu0 %2105
    %2107 = vrot.lane.b32.xlu0 %v1947, 20
    %v2108 = vpop.permute.xlu0 %2107
    %2109 = vrot.lane.b32.xlu0 %v1948, 20
    %v2110 = vpop.permute.xlu0 %2109
    %2111 = vrot.lane.b32.xlu0 %v1949, 20
    %v2112 = vpop.permute.xlu0 %2111
    %2113 = vrot.lane.b32.xlu0 %v1950, 20
    %v2114 = vpop.permute.xlu0 %2113
    %2115 = vrot.lane.b32.xlu0 %v1951, 20
    %v2116 = vpop.permute.xlu0 %2115
    %2117 = vrot.lane.b32.xlu0 %v1952, 20
    %v2118 = vpop.permute.xlu0 %2117
    %2119 = vrot.lane.b32.xlu0 %v1953, 20
    %v2120 = vpop.permute.xlu0 %2119
    %2121 = vrot.lane.b32.xlu0 %v1954, 20
    %v2122 = vpop.permute.xlu0 %2121
    %2123 = vrot.lane.b32.xlu0 %v1955, 20
    %v2124 = vpop.permute.xlu0 %2123
    %2125 = vrot.lane.b32.xlu0 %v1956, 20
    %v2126 = vpop.permute.xlu0 %2125
    %2127 = vrot.lane.b32.xlu0 %v1957, 20
    %v2128 = vpop.permute.xlu0 %2127
    %2129 = vrot.lane.b32.xlu0 %v1958, 20
    %v2130 = vpop.permute.xlu0 %2129
    %2131 = vrot.lane.b32.xlu0 %v1959, 20
    %v2132 = vpop.permute.xlu0 %2131
    %2133 = vrot.lane.b32.xlu0 %v1960, 20
    %v2134 = vpop.permute.xlu0 %2133
    %2135 = vrot.lane.b32.xlu0 %v1961, 20
    %v2136 = vpop.permute.xlu0 %2135
    %2137 = vrot.lane.b32.xlu0 %v1962, 20
    %v2138 = vpop.permute.xlu0 %2137
    %2139 = vrot.lane.b32.xlu0 %v1963, 20
    %v2140 = vpop.permute.xlu0 %2139
    %2141 = vrot.lane.b32.xlu0 %v1964, 20
    %v2142 = vpop.permute.xlu0 %2141
    %2143 = vrot.lane.b32.xlu0 %v1965, 20
    %v2144 = vpop.permute.xlu0 %2143
    %2145 = vrot.lane.b32.xlu0 %v1966, 20
    %v2146 = vpop.permute.xlu0 %2145
    %2147 = vrot.lane.b32.xlu0 %v1967, 20
    %v2148 = vpop.permute.xlu0 %2147
    %2149 = vrot.lane.b32.xlu0 %v1968, 20
    %v2150 = vpop.permute.xlu0 %2149
    %2151 = vrot.lane.b32.xlu0 %v1969, 20
    %v2152 = vpop.permute.xlu0 %2151
    %2153 = vrot.lane.b32.xlu0 %v1970, 20
    %v2154 = vpop.permute.xlu0 %2153
    %2155 = vrot.lane.b32.xlu0 %v1971, 20
    %v2156 = vpop.permute.xlu0 %2155
    %2157 = vrot.lane.b32.xlu0 %v1972, 20
    %v2158 = vpop.permute.xlu0 %2157
    %2159 = vrot.lane.b32.xlu0 %v1973, 20
    %v2160 = vpop.permute.xlu0 %2159
    %2161 = vrot.lane.b32.xlu0 %v1974, 20
    %v2162 = vpop.permute.xlu0 %2161
    %2163 = vrot.lane.b32.xlu0 %v1975, 20
    %v2164 = vpop.permute.xlu0 %2163
    %2165 = vrot.lane.b32.xlu0 %v1976, 20
    %v2166 = vpop.permute.xlu0 %2165
    %2167 = vrot.lane.b32.xlu0 %v1977, 20
    %v2168 = vpop.permute.xlu0 %2167
    %2169 = vrot.lane.b32.xlu0 %v1978, 20
    %v2170 = vpop.permute.xlu0 %2169
    %vm2235 = vcmask 195744
    %2236 = vst.msk [vmem:[#allocation3] sm:$0xff] %vm2235, %v2044
    %2237 = vst.msk [vmem:[#allocation3 + $0x8] sm:$0xff] %vm2235, %v2046
    %2238 = vst.msk [vmem:[#allocation3 + $0x10] sm:$0xff] %vm2235, %v2048
    %2239 = vst.msk [vmem:[#allocation3 + $0x18] sm:$0xff] %vm2235, %v2050
    %2240 = vst.msk [vmem:[#allocation3 + $0x20] sm:$0xff] %vm2235, %v2052
    %2241 = vst.msk [vmem:[#allocation3 + $0x28] sm:$0xff] %vm2235, %v2054
    %2242 = vst.msk [vmem:[#allocation3 + $0x30] sm:$0xff] %vm2235, %v2056
    %2243 = vst.msk [vmem:[#allocation3 + $0x38] sm:$0xff] %vm2235, %v2058
    %2244 = vst.msk [vmem:[#allocation3 + $0x40] sm:$0xff] %vm2235, %v2060
    %2245 = vst.msk [vmem:[#allocation3 + $0x48] sm:$0xff] %vm2235, %v2062
    %2246 = vst.msk [vmem:[#allocation3 + $0x50] sm:$0xff] %vm2235, %v2064
    %2247 = vst.msk [vmem:[#allocation3 + $0x58] sm:$0xff] %vm2235, %v2066
    %2248 = vst.msk [vmem:[#allocation3 + $0x60] sm:$0xff] %vm2235, %v2068
    %2249 = vst.msk [vmem:[#allocation3 + $0x68] sm:$0xff] %vm2235, %v2070
    %2250 = vst.msk [vmem:[#allocation3 + $0x70] sm:$0xff] %vm2235, %v2072
    %2251 = vst.msk [vmem:[#allocation3 + $0x78] sm:$0xff] %vm2235, %v2074
    %2252 = vst.msk [vmem:[#allocation3 + $0x80] sm:$0xff] %vm2235, %v2076
    %2253 = vst.msk [vmem:[#allocation3 + $0x88] sm:$0xff] %vm2235, %v2078
    %2254 = vst.msk [vmem:[#allocation3 + $0x90] sm:$0xff] %vm2235, %v2080
    %2255 = vst.msk [vmem:[#allocation3 + $0x98] sm:$0xff] %vm2235, %v2082
    %2256 = vst.msk [vmem:[#allocation3 + $0xa0] sm:$0xff] %vm2235, %v2084
    %2257 = vst.msk [vmem:[#allocation3 + $0xa8] sm:$0xff] %vm2235, %v2086
    %2258 = vst.msk [vmem:[#allocation3 + $0xb0] sm:$0xff] %vm2235, %v2088
    %2259 = vst.msk [vmem:[#allocation3 + $0xb8] sm:$0xff] %vm2235, %v2090
    %2260 = vst.msk [vmem:[#allocation3 + $0xc0] sm:$0xff] %vm2235, %v2092
    %2261 = vst.msk [vmem:[#allocation3 + $0xc8] sm:$0xff] %vm2235, %v2094
    %2262 = vst.msk [vmem:[#allocation3 + $0xd0] sm:$0xff] %vm2235, %v2096
    %2263 = vst.msk [vmem:[#allocation3 + $0xd8] sm:$0xff] %vm2235, %v2098
    %2264 = vst.msk [vmem:[#allocation3 + $0xe0] sm:$0xff] %vm2235, %v2100
    %2265 = vst.msk [vmem:[#allocation3 + $0xe8] sm:$0xff] %vm2235, %v2102
    %2266 = vst.msk [vmem:[#allocation3 + $0xf0] sm:$0xff] %vm2235, %v2104
    %2267 = vst.msk [vmem:[#allocation3 + $0xf8] sm:$0xff] %vm2235, %v2106
    %2268 = vst.msk [vmem:[#allocation3 + $0x100] sm:$0xff] %vm2235, %v2108
    %2269 = vst.msk [vmem:[#allocation3 + $0x108] sm:$0xff] %vm2235, %v2110
    %2270 = vst.msk [vmem:[#allocation3 + $0x110] sm:$0xff] %vm2235, %v2112
    %2271 = vst.msk [vmem:[#allocation3 + $0x118] sm:$0xff] %vm2235, %v2114
    %2272 = vst.msk [vmem:[#allocation3 + $0x120] sm:$0xff] %vm2235, %v2116
    %2273 = vst.msk [vmem:[#allocation3 + $0x128] sm:$0xff] %vm2235, %v2118
    %2274 = vst.msk [vmem:[#allocation3 + $0x130] sm:$0xff] %vm2235, %v2120
    %2275 = vst.msk [vmem:[#allocation3 + $0x138] sm:$0xff] %vm2235, %v2122
    %2276 = vst.msk [vmem:[#allocation3 + $0x140] sm:$0xff] %vm2235, %v2124
    %2277 = vst.msk [vmem:[#allocation3 + $0x148] sm:$0xff] %vm2235, %v2126
    %2278 = vst.msk [vmem:[#allocation3 + $0x150] sm:$0xff] %vm2235, %v2128
    %2279 = vst.msk [vmem:[#allocation3 + $0x158] sm:$0xff] %vm2235, %v2130
    %2280 = vst.msk [vmem:[#allocation3 + $0x160] sm:$0xff] %vm2235, %v2132
    %2281 = vst.msk [vmem:[#allocation3 + $0x168] sm:$0xff] %vm2235, %v2134
    %2282 = vst.msk [vmem:[#allocation3 + $0x170] sm:$0xff] %vm2235, %v2136
    %2283 = vst.msk [vmem:[#allocation3 + $0x178] sm:$0xff] %vm2235, %v2138
    %2284 = vst.msk [vmem:[#allocation3 + $0x180] sm:$0xff] %vm2235, %v2140
    %2285 = vst.msk [vmem:[#allocation3 + $0x188] sm:$0xff] %vm2235, %v2142
    %2286 = vst.msk [vmem:[#allocation3 + $0x190] sm:$0xff] %vm2235, %v2144
    %2287 = vst.msk [vmem:[#allocation3 + $0x198] sm:$0xff] %vm2235, %v2146
    %2288 = vst.msk [vmem:[#allocation3 + $0x1a0] sm:$0xff] %vm2235, %v2148
    %2289 = vst.msk [vmem:[#allocation3 + $0x1a8] sm:$0xff] %vm2235, %v2150
    %2290 = vst.msk [vmem:[#allocation3 + $0x1b0] sm:$0xff] %vm2235, %v2152
    %2291 = vst.msk [vmem:[#allocation3 + $0x1b8] sm:$0xff] %vm2235, %v2154
    %2292 = vst.msk [vmem:[#allocation3 + $0x1c0] sm:$0xff] %vm2235, %v2156
    %2293 = vst.msk [vmem:[#allocation3 + $0x1c8] sm:$0xff] %vm2235, %v2158
    %2294 = vst.msk [vmem:[#allocation3 + $0x1d0] sm:$0xff] %vm2235, %v2160
    %2295 = vst.msk [vmem:[#allocation3 + $0x1d8] sm:$0xff] %vm2235, %v2162
    %2296 = vst.msk [vmem:[#allocation3 + $0x1e0] sm:$0xff] %vm2235, %v2164
    %2297 = vst.msk [vmem:[#allocation3 + $0x1e8] sm:$0xff] %vm2235, %v2166
    %2298 = vst.msk [vmem:[#allocation3 + $0x1f0] sm:$0xff] %vm2235, %v2168
    %2299 = vst.msk [vmem:[#allocation3 + $0x1f8] sm:$0xff] %vm2235, %v2170
    %s2300 = scalar_lea.vmem [#allocation2], 48
    %v2301 = vld [vmem:[%s2300] sm:$0xff]
    %v2302 = vld [vmem:[%s2300 + $0x8] sm:$0xff]
    %v2303 = vld [vmem:[%s2300 + $0x18] sm:$0xff]
    %v2304 = vld [vmem:[%s2300 + $0x20] sm:$0xff]
    %v2305 = vld [vmem:[%s2300 + $0x30] sm:$0xff]
    %v2306 = vld [vmem:[%s2300 + $0x38] sm:$0xff]
    %v2307 = vld [vmem:[%s2300 + $0x48] sm:$0xff]
    %v2308 = vld [vmem:[%s2300 + $0x50] sm:$0xff]
    %v2309 = vld [vmem:[%s2300 + $0x60] sm:$0xff]
    %v2310 = vld [vmem:[%s2300 + $0x68] sm:$0xff]
    %v2311 = vld [vmem:[%s2300 + $0x78] sm:$0xff]
    %v2312 = vld [vmem:[%s2300 + $0x80] sm:$0xff]
    %v2313 = vld [vmem:[%s2300 + $0x90] sm:$0xff]
    %v2314 = vld [vmem:[%s2300 + $0x98] sm:$0xff]
    %v2315 = vld [vmem:[%s2300 + $0xa8] sm:$0xff]
    %v2316 = vld [vmem:[%s2300 + $0xb0] sm:$0xff]
    %v2317 = vld [vmem:[%s2300 + $0xc0] sm:$0xff]
    %v2318 = vld [vmem:[%s2300 + $0xc8] sm:$0xff]
    %v2319 = vld [vmem:[%s2300 + $0xd8] sm:$0xff]
    %v2320 = vld [vmem:[%s2300 + $0xe0] sm:$0xff]
    %v2321 = vld [vmem:[%s2300 + $0xf0] sm:$0xff]
    %v2322 = vld [vmem:[%s2300 + $0xf8] sm:$0xff]
    %v2323 = vld [vmem:[%s2300 + $0x108] sm:$0xff]
    %v2324 = vld [vmem:[%s2300 + $0x110] sm:$0xff]
    %v2325 = vld [vmem:[%s2300 + $0x120] sm:$0xff]
    %v2326 = vld [vmem:[%s2300 + $0x128] sm:$0xff]
    %v2327 = vld [vmem:[%s2300 + $0x138] sm:$0xff]
    %v2328 = vld [vmem:[%s2300 + $0x140] sm:$0xff]
    %v2329 = vld [vmem:[%s2300 + $0x150] sm:$0xff]
    %v2330 = vld [vmem:[%s2300 + $0x158] sm:$0xff]
    %v2331 = vld [vmem:[%s2300 + $0x168] sm:$0xff]
    %v2332 = vld [vmem:[%s2300 + $0x170] sm:$0xff]
    %v2333 = vld [vmem:[%s2300 + $0x1b0] sm:$0xff]
    %v2334 = vld [vmem:[%s2300 + $0x1b8] sm:$0xff]
    %v2335 = vld [vmem:[%s2300 + $0x1c8] sm:$0xff]
    %v2336 = vld [vmem:[%s2300 + $0x1d0] sm:$0xff]
    %v2337 = vld [vmem:[%s2300 + $0x1e0] sm:$0xff]
    %v2338 = vld [vmem:[%s2300 + $0x1e8] sm:$0xff]
    %v2339 = vld [vmem:[%s2300 + $0x1f8] sm:$0xff]
    %v2340 = vld [vmem:[%s2300 + $0x200] sm:$0xff]
    %v2341 = vld [vmem:[%s2300 + $0x210] sm:$0xff]
    %v2342 = vld [vmem:[%s2300 + $0x218] sm:$0xff]
    %v2343 = vld [vmem:[%s2300 + $0x228] sm:$0xff]
    %v2344 = vld [vmem:[%s2300 + $0x230] sm:$0xff]
    %v2345 = vld [vmem:[%s2300 + $0x240] sm:$0xff]
    %v2346 = vld [vmem:[%s2300 + $0x248] sm:$0xff]
    %v2347 = vld [vmem:[%s2300 + $0x258] sm:$0xff]
    %v2348 = vld [vmem:[%s2300 + $0x260] sm:$0xff]
    %v2349 = vld [vmem:[%s2300 + $0x270] sm:$0xff]
    %v2350 = vld [vmem:[%s2300 + $0x278] sm:$0xff]
    %v2351 = vld [vmem:[%s2300 + $0x288] sm:$0xff]
    %v2352 = vld [vmem:[%s2300 + $0x290] sm:$0xff]
    %v2353 = vld [vmem:[%s2300 + $0x2a0] sm:$0xff]
    %v2354 = vld [vmem:[%s2300 + $0x2a8] sm:$0xff]
    %v2355 = vld [vmem:[%s2300 + $0x2b8] sm:$0xff]
    %v2356 = vld [vmem:[%s2300 + $0x2c0] sm:$0xff]
    %v2357 = vld [vmem:[%s2300 + $0x2d0] sm:$0xff]
    %v2358 = vld [vmem:[%s2300 + $0x2d8] sm:$0xff]
    %v2359 = vld [vmem:[%s2300 + $0x2e8] sm:$0xff]
    %v2360 = vld [vmem:[%s2300 + $0x2f0] sm:$0xff]
    %v2361 = vld [vmem:[%s2300 + $0x300] sm:$0xff]
    %v2362 = vld [vmem:[%s2300 + $0x308] sm:$0xff]
    %v2363 = vld [vmem:[%s2300 + $0x318] sm:$0xff]
    %v2364 = vld [vmem:[%s2300 + $0x320] sm:$0xff]
    %2429 = vrot.lane.b32.xlu0 %v2301, 24
    %v2430 = vpop.permute.xlu0 %2429
    %2431 = vrot.lane.b32.xlu0 %v2302, 24
    %v2432 = vpop.permute.xlu0 %2431
    %2433 = vrot.lane.b32.xlu0 %v2303, 24
    %v2434 = vpop.permute.xlu0 %2433
    %2435 = vrot.lane.b32.xlu0 %v2304, 24
    %v2436 = vpop.permute.xlu0 %2435
    %2437 = vrot.lane.b32.xlu0 %v2305, 24
    %v2438 = vpop.permute.xlu0 %2437
    %2439 = vrot.lane.b32.xlu0 %v2306, 24
    %v2440 = vpop.permute.xlu0 %2439
    %2441 = vrot.lane.b32.xlu0 %v2307, 24
    %v2442 = vpop.permute.xlu0 %2441
    %2443 = vrot.lane.b32.xlu0 %v2308, 24
    %v2444 = vpop.permute.xlu0 %2443
    %2445 = vrot.lane.b32.xlu0 %v2309, 24
    %v2446 = vpop.permute.xlu0 %2445
    %2447 = vrot.lane.b32.xlu0 %v2310, 24
    %v2448 = vpop.permute.xlu0 %2447
    %2449 = vrot.lane.b32.xlu0 %v2311, 24
    %v2450 = vpop.permute.xlu0 %2449
    %2451 = vrot.lane.b32.xlu0 %v2312, 24
    %v2452 = vpop.permute.xlu0 %2451
    %2453 = vrot.lane.b32.xlu0 %v2313, 24
    %v2454 = vpop.permute.xlu0 %2453
    %2455 = vrot.lane.b32.xlu0 %v2314, 24
    %v2456 = vpop.permute.xlu0 %2455
    %2457 = vrot.lane.b32.xlu0 %v2315, 24
    %v2458 = vpop.permute.xlu0 %2457
    %2459 = vrot.lane.b32.xlu0 %v2316, 24
    %v2460 = vpop.permute.xlu0 %2459
    %2461 = vrot.lane.b32.xlu0 %v2317, 24
    %v2462 = vpop.permute.xlu0 %2461
    %2463 = vrot.lane.b32.xlu0 %v2318, 24
    %v2464 = vpop.permute.xlu0 %2463
    %2465 = vrot.lane.b32.xlu0 %v2319, 24
    %v2466 = vpop.permute.xlu0 %2465
    %2467 = vrot.lane.b32.xlu0 %v2320, 24
    %v2468 = vpop.permute.xlu0 %2467
    %2469 = vrot.lane.b32.xlu0 %v2321, 24
    %v2470 = vpop.permute.xlu0 %2469
    %2471 = vrot.lane.b32.xlu0 %v2322, 24
    %v2472 = vpop.permute.xlu0 %2471
    %2473 = vrot.lane.b32.xlu0 %v2323, 24
    %v2474 = vpop.permute.xlu0 %2473
    %2475 = vrot.lane.b32.xlu0 %v2324, 24
    %v2476 = vpop.permute.xlu0 %2475
    %2477 = vrot.lane.b32.xlu0 %v2325, 24
    %v2478 = vpop.permute.xlu0 %2477
    %2479 = vrot.lane.b32.xlu0 %v2326, 24
    %v2480 = vpop.permute.xlu0 %2479
    %2481 = vrot.lane.b32.xlu0 %v2327, 24
    %v2482 = vpop.permute.xlu0 %2481
    %2483 = vrot.lane.b32.xlu0 %v2328, 24
    %v2484 = vpop.permute.xlu0 %2483
    %2485 = vrot.lane.b32.xlu0 %v2329, 24
    %v2486 = vpop.permute.xlu0 %2485
    %2487 = vrot.lane.b32.xlu0 %v2330, 24
    %v2488 = vpop.permute.xlu0 %2487
    %2489 = vrot.lane.b32.xlu0 %v2331, 24
    %v2490 = vpop.permute.xlu0 %2489
    %2491 = vrot.lane.b32.xlu0 %v2332, 24
    %v2492 = vpop.permute.xlu0 %2491
    %2493 = vrot.lane.b32.xlu0 %v2333, 24
    %v2494 = vpop.permute.xlu0 %2493
    %2495 = vrot.lane.b32.xlu0 %v2334, 24
    %v2496 = vpop.permute.xlu0 %2495
    %2497 = vrot.lane.b32.xlu0 %v2335, 24
    %v2498 = vpop.permute.xlu0 %2497
    %2499 = vrot.lane.b32.xlu0 %v2336, 24
    %v2500 = vpop.permute.xlu0 %2499
    %2501 = vrot.lane.b32.xlu0 %v2337, 24
    %v2502 = vpop.permute.xlu0 %2501
    %2503 = vrot.lane.b32.xlu0 %v2338, 24
    %v2504 = vpop.permute.xlu0 %2503
    %2505 = vrot.lane.b32.xlu0 %v2339, 24
    %v2506 = vpop.permute.xlu0 %2505
    %2507 = vrot.lane.b32.xlu0 %v2340, 24
    %v2508 = vpop.permute.xlu0 %2507
    %2509 = vrot.lane.b32.xlu0 %v2341, 24
    %v2510 = vpop.permute.xlu0 %2509
    %2511 = vrot.lane.b32.xlu0 %v2342, 24
    %v2512 = vpop.permute.xlu0 %2511
    %2513 = vrot.lane.b32.xlu0 %v2343, 24
    %v2514 = vpop.permute.xlu0 %2513
    %2515 = vrot.lane.b32.xlu0 %v2344, 24
    %v2516 = vpop.permute.xlu0 %2515
    %2517 = vrot.lane.b32.xlu0 %v2345, 24
    %v2518 = vpop.permute.xlu0 %2517
    %2519 = vrot.lane.b32.xlu0 %v2346, 24
    %v2520 = vpop.permute.xlu0 %2519
    %2521 = vrot.lane.b32.xlu0 %v2347, 24
    %v2522 = vpop.permute.xlu0 %2521
    %2523 = vrot.lane.b32.xlu0 %v2348, 24
    %v2524 = vpop.permute.xlu0 %2523
    %2525 = vrot.lane.b32.xlu0 %v2349, 24
    %v2526 = vpop.permute.xlu0 %2525
    %2527 = vrot.lane.b32.xlu0 %v2350, 24
    %v2528 = vpop.permute.xlu0 %2527
    %2529 = vrot.lane.b32.xlu0 %v2351, 24
    %v2530 = vpop.permute.xlu0 %2529
    %2531 = vrot.lane.b32.xlu0 %v2352, 24
    %v2532 = vpop.permute.xlu0 %2531
    %2533 = vrot.lane.b32.xlu0 %v2353, 24
    %v2534 = vpop.permute.xlu0 %2533
    %2535 = vrot.lane.b32.xlu0 %v2354, 24
    %v2536 = vpop.permute.xlu0 %2535
    %2537 = vrot.lane.b32.xlu0 %v2355, 24
    %v2538 = vpop.permute.xlu0 %2537
    %2539 = vrot.lane.b32.xlu0 %v2356, 24
    %v2540 = vpop.permute.xlu0 %2539
    %2541 = vrot.lane.b32.xlu0 %v2357, 24
    %v2542 = vpop.permute.xlu0 %2541
    %2543 = vrot.lane.b32.xlu0 %v2358, 24
    %v2544 = vpop.permute.xlu0 %2543
    %2545 = vrot.lane.b32.xlu0 %v2359, 24
    %v2546 = vpop.permute.xlu0 %2545
    %2547 = vrot.lane.b32.xlu0 %v2360, 24
    %v2548 = vpop.permute.xlu0 %2547
    %2549 = vrot.lane.b32.xlu0 %v2361, 24
    %v2550 = vpop.permute.xlu0 %2549
    %2551 = vrot.lane.b32.xlu0 %v2362, 24
    %v2552 = vpop.permute.xlu0 %2551
    %2553 = vrot.lane.b32.xlu0 %v2363, 24
    %v2554 = vpop.permute.xlu0 %2553
    %2555 = vrot.lane.b32.xlu0 %v2364, 24
    %v2556 = vpop.permute.xlu0 %2555
    %vm2621 = vcmask 228544
    %2622 = vst.msk [vmem:[#allocation3] sm:$0xff] %vm2621, %v2430
    %2623 = vst.msk [vmem:[#allocation3 + $0x8] sm:$0xff] %vm2621, %v2432
    %2624 = vst.msk [vmem:[#allocation3 + $0x10] sm:$0xff] %vm2621, %v2434
    %2625 = vst.msk [vmem:[#allocation3 + $0x18] sm:$0xff] %vm2621, %v2436
    %2626 = vst.msk [vmem:[#allocation3 + $0x20] sm:$0xff] %vm2621, %v2438
    %2627 = vst.msk [vmem:[#allocation3 + $0x28] sm:$0xff] %vm2621, %v2440
    %2628 = vst.msk [vmem:[#allocation3 + $0x30] sm:$0xff] %vm2621, %v2442
    %2629 = vst.msk [vmem:[#allocation3 + $0x38] sm:$0xff] %vm2621, %v2444
    %2630 = vst.msk [vmem:[#allocation3 + $0x40] sm:$0xff] %vm2621, %v2446
    %2631 = vst.msk [vmem:[#allocation3 + $0x48] sm:$0xff] %vm2621, %v2448
    %2632 = vst.msk [vmem:[#allocation3 + $0x50] sm:$0xff] %vm2621, %v2450
    %2633 = vst.msk [vmem:[#allocation3 + $0x58] sm:$0xff] %vm2621, %v2452
    %2634 = vst.msk [vmem:[#allocation3 + $0x60] sm:$0xff] %vm2621, %v2454
    %2635 = vst.msk [vmem:[#allocation3 + $0x68] sm:$0xff] %vm2621, %v2456
    %2636 = vst.msk [vmem:[#allocation3 + $0x70] sm:$0xff] %vm2621, %v2458
    %2637 = vst.msk [vmem:[#allocation3 + $0x78] sm:$0xff] %vm2621, %v2460
    %2638 = vst.msk [vmem:[#allocation3 + $0x80] sm:$0xff] %vm2621, %v2462
    %2639 = vst.msk [vmem:[#allocation3 + $0x88] sm:$0xff] %vm2621, %v2464
    %2640 = vst.msk [vmem:[#allocation3 + $0x90] sm:$0xff] %vm2621, %v2466
    %2641 = vst.msk [vmem:[#allocation3 + $0x98] sm:$0xff] %vm2621, %v2468
    %2642 = vst.msk [vmem:[#allocation3 + $0xa0] sm:$0xff] %vm2621, %v2470
    %2643 = vst.msk [vmem:[#allocation3 + $0xa8] sm:$0xff] %vm2621, %v2472
    %2644 = vst.msk [vmem:[#allocation3 + $0xb0] sm:$0xff] %vm2621, %v2474
    %2645 = vst.msk [vmem:[#allocation3 + $0xb8] sm:$0xff] %vm2621, %v2476
    %2646 = vst.msk [vmem:[#allocation3 + $0xc0] sm:$0xff] %vm2621, %v2478
    %2647 = vst.msk [vmem:[#allocation3 + $0xc8] sm:$0xff] %vm2621, %v2480
    %2648 = vst.msk [vmem:[#allocation3 + $0xd0] sm:$0xff] %vm2621, %v2482
    %2649 = vst.msk [vmem:[#allocation3 + $0xd8] sm:$0xff] %vm2621, %v2484
    %2650 = vst.msk [vmem:[#allocation3 + $0xe0] sm:$0xff] %vm2621, %v2486
    %2651 = vst.msk [vmem:[#allocation3 + $0xe8] sm:$0xff] %vm2621, %v2488
    %2652 = vst.msk [vmem:[#allocation3 + $0xf0] sm:$0xff] %vm2621, %v2490
    %2653 = vst.msk [vmem:[#allocation3 + $0xf8] sm:$0xff] %vm2621, %v2492
    %2654 = vst.msk [vmem:[#allocation3 + $0x100] sm:$0xff] %vm2621, %v2494
    %2655 = vst.msk [vmem:[#allocation3 + $0x108] sm:$0xff] %vm2621, %v2496
    %2656 = vst.msk [vmem:[#allocation3 + $0x110] sm:$0xff] %vm2621, %v2498
    %2657 = vst.msk [vmem:[#allocation3 + $0x118] sm:$0xff] %vm2621, %v2500
    %2658 = vst.msk [vmem:[#allocation3 + $0x120] sm:$0xff] %vm2621, %v2502
    %2659 = vst.msk [vmem:[#allocation3 + $0x128] sm:$0xff] %vm2621, %v2504
    %2660 = vst.msk [vmem:[#allocation3 + $0x130] sm:$0xff] %vm2621, %v2506
    %2661 = vst.msk [vmem:[#allocation3 + $0x138] sm:$0xff] %vm2621, %v2508
    %2662 = vst.msk [vmem:[#allocation3 + $0x140] sm:$0xff] %vm2621, %v2510
    %2663 = vst.msk [vmem:[#allocation3 + $0x148] sm:$0xff] %vm2621, %v2512
    %2664 = vst.msk [vmem:[#allocation3 + $0x150] sm:$0xff] %vm2621, %v2514
    %2665 = vst.msk [vmem:[#allocation3 + $0x158] sm:$0xff] %vm2621, %v2516
    %2666 = vst.msk [vmem:[#allocation3 + $0x160] sm:$0xff] %vm2621, %v2518
    %2667 = vst.msk [vmem:[#allocation3 + $0x168] sm:$0xff] %vm2621, %v2520
    %2668 = vst.msk [vmem:[#allocation3 + $0x170] sm:$0xff] %vm2621, %v2522
    %2669 = vst.msk [vmem:[#allocation3 + $0x178] sm:$0xff] %vm2621, %v2524
    %2670 = vst.msk [vmem:[#allocation3 + $0x180] sm:$0xff] %vm2621, %v2526
    %2671 = vst.msk [vmem:[#allocation3 + $0x188] sm:$0xff] %vm2621, %v2528
    %2672 = vst.msk [vmem:[#allocation3 + $0x190] sm:$0xff] %vm2621, %v2530
    %2673 = vst.msk [vmem:[#allocation3 + $0x198] sm:$0xff] %vm2621, %v2532
    %2674 = vst.msk [vmem:[#allocation3 + $0x1a0] sm:$0xff] %vm2621, %v2534
    %2675 = vst.msk [vmem:[#allocation3 + $0x1a8] sm:$0xff] %vm2621, %v2536
    %2676 = vst.msk [vmem:[#allocation3 + $0x1b0] sm:$0xff] %vm2621, %v2538
    %2677 = vst.msk [vmem:[#allocation3 + $0x1b8] sm:$0xff] %vm2621, %v2540
    %2678 = vst.msk [vmem:[#allocation3 + $0x1c0] sm:$0xff] %vm2621, %v2542
    %2679 = vst.msk [vmem:[#allocation3 + $0x1c8] sm:$0xff] %vm2621, %v2544
    %2680 = vst.msk [vmem:[#allocation3 + $0x1d0] sm:$0xff] %vm2621, %v2546
    %2681 = vst.msk [vmem:[#allocation3 + $0x1d8] sm:$0xff] %vm2621, %v2548
    %2682 = vst.msk [vmem:[#allocation3 + $0x1e0] sm:$0xff] %vm2621, %v2550
    %2683 = vst.msk [vmem:[#allocation3 + $0x1e8] sm:$0xff] %vm2621, %v2552
    %2684 = vst.msk [vmem:[#allocation3 + $0x1f0] sm:$0xff] %vm2621, %v2554
    %2685 = vst.msk [vmem:[#allocation3 + $0x1f8] sm:$0xff] %vm2621, %v2556
    %v2686 = vld [vmem:[%s2300 + $0x1] sm:$0xff]
    %v2687 = vld [vmem:[%s2300 + $0x9] sm:$0xff]
    %v2688 = vld [vmem:[%s2300 + $0x19] sm:$0xff]
    %v2689 = vld [vmem:[%s2300 + $0x21] sm:$0xff]
    %v2690 = vld [vmem:[%s2300 + $0x31] sm:$0xff]
    %v2691 = vld [vmem:[%s2300 + $0x39] sm:$0xff]
    %v2692 = vld [vmem:[%s2300 + $0x49] sm:$0xff]
    %v2693 = vld [vmem:[%s2300 + $0x51] sm:$0xff]
    %v2694 = vld [vmem:[%s2300 + $0x61] sm:$0xff]
    %v2695 = vld [vmem:[%s2300 + $0x69] sm:$0xff]
    %v2696 = vld [vmem:[%s2300 + $0x79] sm:$0xff]
    %v2697 = vld [vmem:[%s2300 + $0x81] sm:$0xff]
    %v2698 = vld [vmem:[%s2300 + $0x91] sm:$0xff]
    %v2699 = vld [vmem:[%s2300 + $0x99] sm:$0xff]
    %v2700 = vld [vmem:[%s2300 + $0xa9] sm:$0xff]
    %v2701 = vld [vmem:[%s2300 + $0xb1] sm:$0xff]
    %v2702 = vld [vmem:[%s2300 + $0xc1] sm:$0xff]
    %v2703 = vld [vmem:[%s2300 + $0xc9] sm:$0xff]
    %v2704 = vld [vmem:[%s2300 + $0xd9] sm:$0xff]
    %v2705 = vld [vmem:[%s2300 + $0xe1] sm:$0xff]
    %v2706 = vld [vmem:[%s2300 + $0xf1] sm:$0xff]
    %v2707 = vld [vmem:[%s2300 + $0xf9] sm:$0xff]
    %v2708 = vld [vmem:[%s2300 + $0x109] sm:$0xff]
    %v2709 = vld [vmem:[%s2300 + $0x111] sm:$0xff]
    %v2710 = vld [vmem:[%s2300 + $0x121] sm:$0xff]
    %v2711 = vld [vmem:[%s2300 + $0x129] sm:$0xff]
    %v2712 = vld [vmem:[%s2300 + $0x139] sm:$0xff]
    %v2713 = vld [vmem:[%s2300 + $0x141] sm:$0xff]
    %v2714 = vld [vmem:[%s2300 + $0x151] sm:$0xff]
    %v2715 = vld [vmem:[%s2300 + $0x159] sm:$0xff]
    %v2716 = vld [vmem:[%s2300 + $0x169] sm:$0xff]
    %v2717 = vld [vmem:[%s2300 + $0x171] sm:$0xff]
    %v2718 = vld [vmem:[%s2300 + $0x1b1] sm:$0xff]
    %v2719 = vld [vmem:[%s2300 + $0x1b9] sm:$0xff]
    %v2720 = vld [vmem:[%s2300 + $0x1c9] sm:$0xff]
    %v2721 = vld [vmem:[%s2300 + $0x1d1] sm:$0xff]
    %v2722 = vld [vmem:[%s2300 + $0x1e1] sm:$0xff]
    %v2723 = vld [vmem:[%s2300 + $0x1e9] sm:$0xff]
    %v2724 = vld [vmem:[%s2300 + $0x1f9] sm:$0xff]
    %v2725 = vld [vmem:[%s2300 + $0x201] sm:$0xff]
    %v2726 = vld [vmem:[%s2300 + $0x211] sm:$0xff]
    %v2727 = vld [vmem:[%s2300 + $0x219] sm:$0xff]
    %v2728 = vld [vmem:[%s2300 + $0x229] sm:$0xff]
    %v2729 = vld [vmem:[%s2300 + $0x231] sm:$0xff]
    %v2730 = vld [vmem:[%s2300 + $0x241] sm:$0xff]
    %v2731 = vld [vmem:[%s2300 + $0x249] sm:$0xff]
    %v2732 = vld [vmem:[%s2300 + $0x259] sm:$0xff]
    %v2733 = vld [vmem:[%s2300 + $0x261] sm:$0xff]
    %v2734 = vld [vmem:[%s2300 + $0x271] sm:$0xff]
    %v2735 = vld [vmem:[%s2300 + $0x279] sm:$0xff]
    %v2736 = vld [vmem:[%s2300 + $0x289] sm:$0xff]
    %v2737 = vld [vmem:[%s2300 + $0x291] sm:$0xff]
    %v2738 = vld [vmem:[%s2300 + $0x2a1] sm:$0xff]
    %v2739 = vld [vmem:[%s2300 + $0x2a9] sm:$0xff]
    %v2740 = vld [vmem:[%s2300 + $0x2b9] sm:$0xff]
    %v2741 = vld [vmem:[%s2300 + $0x2c1] sm:$0xff]
    %v2742 = vld [vmem:[%s2300 + $0x2d1] sm:$0xff]
    %v2743 = vld [vmem:[%s2300 + $0x2d9] sm:$0xff]
    %v2744 = vld [vmem:[%s2300 + $0x2e9] sm:$0xff]
    %v2745 = vld [vmem:[%s2300 + $0x2f1] sm:$0xff]
    %v2746 = vld [vmem:[%s2300 + $0x301] sm:$0xff]
    %v2747 = vld [vmem:[%s2300 + $0x309] sm:$0xff]
    %v2748 = vld [vmem:[%s2300 + $0x319] sm:$0xff]
    %v2749 = vld [vmem:[%s2300 + $0x321] sm:$0xff]
    %2814 = vrot.lane.b32.xlu0 %v2686, 28
    %v2815 = vpop.permute.xlu0 %2814
    %2816 = vrot.lane.b32.xlu0 %v2687, 28
    %v2817 = vpop.permute.xlu0 %2816
    %2818 = vrot.lane.b32.xlu0 %v2688, 28
    %v2819 = vpop.permute.xlu0 %2818
    %2820 = vrot.lane.b32.xlu0 %v2689, 28
    %v2821 = vpop.permute.xlu0 %2820
    %2822 = vrot.lane.b32.xlu0 %v2690, 28
    %v2823 = vpop.permute.xlu0 %2822
    %2824 = vrot.lane.b32.xlu0 %v2691, 28
    %v2825 = vpop.permute.xlu0 %2824
    %2826 = vrot.lane.b32.xlu0 %v2692, 28
    %v2827 = vpop.permute.xlu0 %2826
    %2828 = vrot.lane.b32.xlu0 %v2693, 28
    %v2829 = vpop.permute.xlu0 %2828
    %2830 = vrot.lane.b32.xlu0 %v2694, 28
    %v2831 = vpop.permute.xlu0 %2830
    %2832 = vrot.lane.b32.xlu0 %v2695, 28
    %v2833 = vpop.permute.xlu0 %2832
    %2834 = vrot.lane.b32.xlu0 %v2696, 28
    %v2835 = vpop.permute.xlu0 %2834
    %2836 = vrot.lane.b32.xlu0 %v2697, 28
    %v2837 = vpop.permute.xlu0 %2836
    %2838 = vrot.lane.b32.xlu0 %v2698, 28
    %v2839 = vpop.permute.xlu0 %2838
    %2840 = vrot.lane.b32.xlu0 %v2699, 28
    %v2841 = vpop.permute.xlu0 %2840
    %2842 = vrot.lane.b32.xlu0 %v2700, 28
    %v2843 = vpop.permute.xlu0 %2842
    %2844 = vrot.lane.b32.xlu0 %v2701, 28
    %v2845 = vpop.permute.xlu0 %2844
    %2846 = vrot.lane.b32.xlu0 %v2702, 28
    %v2847 = vpop.permute.xlu0 %2846
    %2848 = vrot.lane.b32.xlu0 %v2703, 28
    %v2849 = vpop.permute.xlu0 %2848
    %2850 = vrot.lane.b32.xlu0 %v2704, 28
    %v2851 = vpop.permute.xlu0 %2850
    %2852 = vrot.lane.b32.xlu0 %v2705, 28
    %v2853 = vpop.permute.xlu0 %2852
    %2854 = vrot.lane.b32.xlu0 %v2706, 28
    %v2855 = vpop.permute.xlu0 %2854
    %2856 = vrot.lane.b32.xlu0 %v2707, 28
    %v2857 = vpop.permute.xlu0 %2856
    %2858 = vrot.lane.b32.xlu0 %v2708, 28
    %v2859 = vpop.permute.xlu0 %2858
    %2860 = vrot.lane.b32.xlu0 %v2709, 28
    %v2861 = vpop.permute.xlu0 %2860
    %2862 = vrot.lane.b32.xlu0 %v2710, 28
    %v2863 = vpop.permute.xlu0 %2862
    %2864 = vrot.lane.b32.xlu0 %v2711, 28
    %v2865 = vpop.permute.xlu0 %2864
    %2866 = vrot.lane.b32.xlu0 %v2712, 28
    %v2867 = vpop.permute.xlu0 %2866
    %2868 = vrot.lane.b32.xlu0 %v2713, 28
    %v2869 = vpop.permute.xlu0 %2868
    %2870 = vrot.lane.b32.xlu0 %v2714, 28
    %v2871 = vpop.permute.xlu0 %2870
    %2872 = vrot.lane.b32.xlu0 %v2715, 28
    %v2873 = vpop.permute.xlu0 %2872
    %2874 = vrot.lane.b32.xlu0 %v2716, 28
    %v2875 = vpop.permute.xlu0 %2874
    %2876 = vrot.lane.b32.xlu0 %v2717, 28
    %v2877 = vpop.permute.xlu0 %2876
    %2878 = vrot.lane.b32.xlu0 %v2718, 28
    %v2879 = vpop.permute.xlu0 %2878
    %2880 = vrot.lane.b32.xlu0 %v2719, 28
    %v2881 = vpop.permute.xlu0 %2880
    %2882 = vrot.lane.b32.xlu0 %v2720, 28
    %v2883 = vpop.permute.xlu0 %2882
    %2884 = vrot.lane.b32.xlu0 %v2721, 28
    %v2885 = vpop.permute.xlu0 %2884
    %2886 = vrot.lane.b32.xlu0 %v2722, 28
    %v2887 = vpop.permute.xlu0 %2886
    %2888 = vrot.lane.b32.xlu0 %v2723, 28
    %v2889 = vpop.permute.xlu0 %2888
    %2890 = vrot.lane.b32.xlu0 %v2724, 28
    %v2891 = vpop.permute.xlu0 %2890
    %2892 = vrot.lane.b32.xlu0 %v2725, 28
    %v2893 = vpop.permute.xlu0 %2892
    %2894 = vrot.lane.b32.xlu0 %v2726, 28
    %v2895 = vpop.permute.xlu0 %2894
    %2896 = vrot.lane.b32.xlu0 %v2727, 28
    %v2897 = vpop.permute.xlu0 %2896
    %2898 = vrot.lane.b32.xlu0 %v2728, 28
    %v2899 = vpop.permute.xlu0 %2898
    %2900 = vrot.lane.b32.xlu0 %v2729, 28
    %v2901 = vpop.permute.xlu0 %2900
    %2902 = vrot.lane.b32.xlu0 %v2730, 28
    %v2903 = vpop.permute.xlu0 %2902
    %2904 = vrot.lane.b32.xlu0 %v2731, 28
    %v2905 = vpop.permute.xlu0 %2904
    %2906 = vrot.lane.b32.xlu0 %v2732, 28
    %v2907 = vpop.permute.xlu0 %2906
    %2908 = vrot.lane.b32.xlu0 %v2733, 28
    %v2909 = vpop.permute.xlu0 %2908
    %2910 = vrot.lane.b32.xlu0 %v2734, 28
    %v2911 = vpop.permute.xlu0 %2910
    %2912 = vrot.lane.b32.xlu0 %v2735, 28
    %v2913 = vpop.permute.xlu0 %2912
    %2914 = vrot.lane.b32.xlu0 %v2736, 28
    %v2915 = vpop.permute.xlu0 %2914
    %2916 = vrot.lane.b32.xlu0 %v2737, 28
    %v2917 = vpop.permute.xlu0 %2916
    %2918 = vrot.lane.b32.xlu0 %v2738, 28
    %v2919 = vpop.permute.xlu0 %2918
    %2920 = vrot.lane.b32.xlu0 %v2739, 28
    %v2921 = vpop.permute.xlu0 %2920
    %2922 = vrot.lane.b32.xlu0 %v2740, 28
    %v2923 = vpop.permute.xlu0 %2922
    %2924 = vrot.lane.b32.xlu0 %v2741, 28
    %v2925 = vpop.permute.xlu0 %2924
    %2926 = vrot.lane.b32.xlu0 %v2742, 28
    %v2927 = vpop.permute.xlu0 %2926
    %2928 = vrot.lane.b32.xlu0 %v2743, 28
    %v2929 = vpop.permute.xlu0 %2928
    %2930 = vrot.lane.b32.xlu0 %v2744, 28
    %v2931 = vpop.permute.xlu0 %2930
    %2932 = vrot.lane.b32.xlu0 %v2745, 28
    %v2933 = vpop.permute.xlu0 %2932
    %2934 = vrot.lane.b32.xlu0 %v2746, 28
    %v2935 = vpop.permute.xlu0 %2934
    %2936 = vrot.lane.b32.xlu0 %v2747, 28
    %v2937 = vpop.permute.xlu0 %2936
    %2938 = vrot.lane.b32.xlu0 %v2748, 28
    %v2939 = vpop.permute.xlu0 %2938
    %2940 = vrot.lane.b32.xlu0 %v2749, 28
    %v2941 = vpop.permute.xlu0 %2940
    %vm3006 = vcmask 261344
    %3007 = vst.msk [vmem:[#allocation3] sm:$0xff] %vm3006, %v2815
    %3008 = vst.msk [vmem:[#allocation3 + $0x8] sm:$0xff] %vm3006, %v2817
    %3009 = vst.msk [vmem:[#allocation3 + $0x10] sm:$0xff] %vm3006, %v2819
    %3010 = vst.msk [vmem:[#allocation3 + $0x18] sm:$0xff] %vm3006, %v2821
    %3011 = vst.msk [vmem:[#allocation3 + $0x20] sm:$0xff] %vm3006, %v2823
    %3012 = vst.msk [vmem:[#allocation3 + $0x28] sm:$0xff] %vm3006, %v2825
    %3013 = vst.msk [vmem:[#allocation3 + $0x30] sm:$0xff] %vm3006, %v2827
    %3014 = vst.msk [vmem:[#allocation3 + $0x38] sm:$0xff] %vm3006, %v2829
    %3015 = vst.msk [vmem:[#allocation3 + $0x40] sm:$0xff] %vm3006, %v2831
    %3016 = vst.msk [vmem:[#allocation3 + $0x48] sm:$0xff] %vm3006, %v2833
    %3017 = vst.msk [vmem:[#allocation3 + $0x50] sm:$0xff] %vm3006, %v2835
    %3018 = vst.msk [vmem:[#allocation3 + $0x58] sm:$0xff] %vm3006, %v2837
    %3019 = vst.msk [vmem:[#allocation3 + $0x60] sm:$0xff] %vm3006, %v2839
    %3020 = vst.msk [vmem:[#allocation3 + $0x68] sm:$0xff] %vm3006, %v2841
    %3021 = vst.msk [vmem:[#allocation3 + $0x70] sm:$0xff] %vm3006, %v2843
    %3022 = vst.msk [vmem:[#allocation3 + $0x78] sm:$0xff] %vm3006, %v2845
    %3023 = vst.msk [vmem:[#allocation3 + $0x80] sm:$0xff] %vm3006, %v2847
    %3024 = vst.msk [vmem:[#allocation3 + $0x88] sm:$0xff] %vm3006, %v2849
    %3025 = vst.msk [vmem:[#allocation3 + $0x90] sm:$0xff] %vm3006, %v2851
    %3026 = vst.msk [vmem:[#allocation3 + $0x98] sm:$0xff] %vm3006, %v2853
    %3027 = vst.msk [vmem:[#allocation3 + $0xa0] sm:$0xff] %vm3006, %v2855
    %3028 = vst.msk [vmem:[#allocation3 + $0xa8] sm:$0xff] %vm3006, %v2857
    %3029 = vst.msk [vmem:[#allocation3 + $0xb0] sm:$0xff] %vm3006, %v2859
    %3030 = vst.msk [vmem:[#allocation3 + $0xb8] sm:$0xff] %vm3006, %v2861
    %3031 = vst.msk [vmem:[#allocation3 + $0xc0] sm:$0xff] %vm3006, %v2863
    %3032 = vst.msk [vmem:[#allocation3 + $0xc8] sm:$0xff] %vm3006, %v2865
    %3033 = vst.msk [vmem:[#allocation3 + $0xd0] sm:$0xff] %vm3006, %v2867
    %3034 = vst.msk [vmem:[#allocation3 + $0xd8] sm:$0xff] %vm3006, %v2869
    %3035 = vst.msk [vmem:[#allocation3 + $0xe0] sm:$0xff] %vm3006, %v2871
    %3036 = vst.msk [vmem:[#allocation3 + $0xe8] sm:$0xff] %vm3006, %v2873
    %3037 = vst.msk [vmem:[#allocation3 + $0xf0] sm:$0xff] %vm3006, %v2875
    %3038 = vst.msk [vmem:[#allocation3 + $0xf8] sm:$0xff] %vm3006, %v2877
    %3039 = vst.msk [vmem:[#allocation3 + $0x100] sm:$0xff] %vm3006, %v2879
    %3040 = vst.msk [vmem:[#allocation3 + $0x108] sm:$0xff] %vm3006, %v2881
    %3041 = vst.msk [vmem:[#allocation3 + $0x110] sm:$0xff] %vm3006, %v2883
    %3042 = vst.msk [vmem:[#allocation3 + $0x118] sm:$0xff] %vm3006, %v2885
    %3043 = vst.msk [vmem:[#allocation3 + $0x120] sm:$0xff] %vm3006, %v2887
    %3044 = vst.msk [vmem:[#allocation3 + $0x128] sm:$0xff] %vm3006, %v2889
    %3045 = vst.msk [vmem:[#allocation3 + $0x130] sm:$0xff] %vm3006, %v2891
    %3046 = vst.msk [vmem:[#allocation3 + $0x138] sm:$0xff] %vm3006, %v2893
    %3047 = vst.msk [vmem:[#allocation3 + $0x140] sm:$0xff] %vm3006, %v2895
    %3048 = vst.msk [vmem:[#allocation3 + $0x148] sm:$0xff] %vm3006, %v2897
    %3049 = vst.msk [vmem:[#allocation3 + $0x150] sm:$0xff] %vm3006, %v2899
    %3050 = vst.msk [vmem:[#allocation3 + $0x158] sm:$0xff] %vm3006, %v2901
    %3051 = vst.msk [vmem:[#allocation3 + $0x160] sm:$0xff] %vm3006, %v2903
    %3052 = vst.msk [vmem:[#allocation3 + $0x168] sm:$0xff] %vm3006, %v2905
    %3053 = vst.msk [vmem:[#allocation3 + $0x170] sm:$0xff] %vm3006, %v2907
    %3054 = vst.msk [vmem:[#allocation3 + $0x178] sm:$0xff] %vm3006, %v2909
    %3055 = vst.msk [vmem:[#allocation3 + $0x180] sm:$0xff] %vm3006, %v2911
    %3056 = vst.msk [vmem:[#allocation3 + $0x188] sm:$0xff] %vm3006, %v2913
    %3057 = vst.msk [vmem:[#allocation3 + $0x190] sm:$0xff] %vm3006, %v2915
    %3058 = vst.msk [vmem:[#allocation3 + $0x198] sm:$0xff] %vm3006, %v2917
    %3059 = vst.msk [vmem:[#allocation3 + $0x1a0] sm:$0xff] %vm3006, %v2919
    %3060 = vst.msk [vmem:[#allocation3 + $0x1a8] sm:$0xff] %vm3006, %v2921
    %3061 = vst.msk [vmem:[#allocation3 + $0x1b0] sm:$0xff] %vm3006, %v2923
    %3062 = vst.msk [vmem:[#allocation3 + $0x1b8] sm:$0xff] %vm3006, %v2925
    %3063 = vst.msk [vmem:[#allocation3 + $0x1c0] sm:$0xff] %vm3006, %v2927
    %3064 = vst.msk [vmem:[#allocation3 + $0x1c8] sm:$0xff] %vm3006, %v2929
    %3065 = vst.msk [vmem:[#allocation3 + $0x1d0] sm:$0xff] %vm3006, %v2931
    %3066 = vst.msk [vmem:[#allocation3 + $0x1d8] sm:$0xff] %vm3006, %v2933
    %3067 = vst.msk [vmem:[#allocation3 + $0x1e0] sm:$0xff] %vm3006, %v2935
    %3068 = vst.msk [vmem:[#allocation3 + $0x1e8] sm:$0xff] %vm3006, %v2937
    %3069 = vst.msk [vmem:[#allocation3 + $0x1f0] sm:$0xff] %vm3006, %v2939
    %3070 = vst.msk [vmem:[#allocation3 + $0x1f8] sm:$0xff] %vm3006, %v2941
    %v3071 = vld [vmem:[%s2300 + $0x2] sm:$0xff]
    %v3072 = vld [vmem:[%s2300 + $0xa] sm:$0xff]
    %v3073 = vld [vmem:[%s2300 + $0x1a] sm:$0xff]
    %v3074 = vld [vmem:[%s2300 + $0x22] sm:$0xff]
    %v3075 = vld [vmem:[%s2300 + $0x32] sm:$0xff]
    %v3076 = vld [vmem:[%s2300 + $0x3a] sm:$0xff]
    %v3077 = vld [vmem:[%s2300 + $0x4a] sm:$0xff]
    %v3078 = vld [vmem:[%s2300 + $0x52] sm:$0xff]
    %v3079 = vld [vmem:[%s2300 + $0x62] sm:$0xff]
    %v3080 = vld [vmem:[%s2300 + $0x6a] sm:$0xff]
    %v3081 = vld [vmem:[%s2300 + $0x7a] sm:$0xff]
    %v3082 = vld [vmem:[%s2300 + $0x82] sm:$0xff]
    %v3083 = vld [vmem:[%s2300 + $0x92] sm:$0xff]
    %v3084 = vld [vmem:[%s2300 + $0x9a] sm:$0xff]
    %v3085 = vld [vmem:[%s2300 + $0xaa] sm:$0xff]
    %v3086 = vld [vmem:[%s2300 + $0xb2] sm:$0xff]
    %v3087 = vld [vmem:[%s2300 + $0xc2] sm:$0xff]
    %v3088 = vld [vmem:[%s2300 + $0xca] sm:$0xff]
    %v3089 = vld [vmem:[%s2300 + $0xda] sm:$0xff]
    %v3090 = vld [vmem:[%s2300 + $0xe2] sm:$0xff]
    %v3091 = vld [vmem:[%s2300 + $0xf2] sm:$0xff]
    %v3092 = vld [vmem:[%s2300 + $0xfa] sm:$0xff]
    %v3093 = vld [vmem:[%s2300 + $0x10a] sm:$0xff]
    %v3094 = vld [vmem:[%s2300 + $0x112] sm:$0xff]
    %v3095 = vld [vmem:[%s2300 + $0x122] sm:$0xff]
    %v3096 = vld [vmem:[%s2300 + $0x12a] sm:$0xff]
    %v3097 = vld [vmem:[%s2300 + $0x13a] sm:$0xff]
    %v3098 = vld [vmem:[%s2300 + $0x142] sm:$0xff]
    %v3099 = vld [vmem:[%s2300 + $0x152] sm:$0xff]
    %v3100 = vld [vmem:[%s2300 + $0x15a] sm:$0xff]
    %v3101 = vld [vmem:[%s2300 + $0x16a] sm:$0xff]
    %v3102 = vld [vmem:[%s2300 + $0x172] sm:$0xff]
    %v3103 = vld [vmem:[%s2300 + $0x1b2] sm:$0xff]
    %v3104 = vld [vmem:[%s2300 + $0x1ba] sm:$0xff]
    %v3105 = vld [vmem:[%s2300 + $0x1ca] sm:$0xff]
    %v3106 = vld [vmem:[%s2300 + $0x1d2] sm:$0xff]
    %v3107 = vld [vmem:[%s2300 + $0x1e2] sm:$0xff]
    %v3108 = vld [vmem:[%s2300 + $0x1ea] sm:$0xff]
    %v3109 = vld [vmem:[%s2300 + $0x1fa] sm:$0xff]
    %v3110 = vld [vmem:[%s2300 + $0x202] sm:$0xff]
    %v3111 = vld [vmem:[%s2300 + $0x212] sm:$0xff]
    %v3112 = vld [vmem:[%s2300 + $0x21a] sm:$0xff]
    %v3113 = vld [vmem:[%s2300 + $0x22a] sm:$0xff]
    %v3114 = vld [vmem:[%s2300 + $0x232] sm:$0xff]
    %v3115 = vld [vmem:[%s2300 + $0x242] sm:$0xff]
    %v3116 = vld [vmem:[%s2300 + $0x24a] sm:$0xff]
    %v3117 = vld [vmem:[%s2300 + $0x25a] sm:$0xff]
    %v3118 = vld [vmem:[%s2300 + $0x262] sm:$0xff]
    %v3119 = vld [vmem:[%s2300 + $0x272] sm:$0xff]
    %v3120 = vld [vmem:[%s2300 + $0x27a] sm:$0xff]
    %v3121 = vld [vmem:[%s2300 + $0x28a] sm:$0xff]
    %v3122 = vld [vmem:[%s2300 + $0x292] sm:$0xff]
    %v3123 = vld [vmem:[%s2300 + $0x2a2] sm:$0xff]
    %v3124 = vld [vmem:[%s2300 + $0x2aa] sm:$0xff]
    %v3125 = vld [vmem:[%s2300 + $0x2ba] sm:$0xff]
    %v3126 = vld [vmem:[%s2300 + $0x2c2] sm:$0xff]
    %v3127 = vld [vmem:[%s2300 + $0x2d2] sm:$0xff]
    %v3128 = vld [vmem:[%s2300 + $0x2da] sm:$0xff]
    %v3129 = vld [vmem:[%s2300 + $0x2ea] sm:$0xff]
    %v3130 = vld [vmem:[%s2300 + $0x2f2] sm:$0xff]
    %v3131 = vld [vmem:[%s2300 + $0x302] sm:$0xff]
    %v3132 = vld [vmem:[%s2300 + $0x30a] sm:$0xff]
    %v3133 = vld [vmem:[%s2300 + $0x31a] sm:$0xff]
    %v3134 = vld [vmem:[%s2300 + $0x322] sm:$0xff]
    %3199 = vrot.lane.b32.xlu0 %v3071, 32
    %v3200 = vpop.permute.xlu0 %3199
    %3201 = vrot.lane.b32.xlu0 %v3072, 32
    %v3202 = vpop.permute.xlu0 %3201
    %3203 = vrot.lane.b32.xlu0 %v3073, 32
    %v3204 = vpop.permute.xlu0 %3203
    %3205 = vrot.lane.b32.xlu0 %v3074, 32
    %v3206 = vpop.permute.xlu0 %3205
    %3207 = vrot.lane.b32.xlu0 %v3075, 32
    %v3208 = vpop.permute.xlu0 %3207
    %3209 = vrot.lane.b32.xlu0 %v3076, 32
    %v3210 = vpop.permute.xlu0 %3209
    %3211 = vrot.lane.b32.xlu0 %v3077, 32
    %v3212 = vpop.permute.xlu0 %3211
    %3213 = vrot.lane.b32.xlu0 %v3078, 32
    %v3214 = vpop.permute.xlu0 %3213
    %3215 = vrot.lane.b32.xlu0 %v3079, 32
    %v3216 = vpop.permute.xlu0 %3215
    %3217 = vrot.lane.b32.xlu0 %v3080, 32
    %v3218 = vpop.permute.xlu0 %3217
    %3219 = vrot.lane.b32.xlu0 %v3081, 32
    %v3220 = vpop.permute.xlu0 %3219
    %3221 = vrot.lane.b32.xlu0 %v3082, 32
    %v3222 = vpop.permute.xlu0 %3221
    %3223 = vrot.lane.b32.xlu0 %v3083, 32
    %v3224 = vpop.permute.xlu0 %3223
    %3225 = vrot.lane.b32.xlu0 %v3084, 32
    %v3226 = vpop.permute.xlu0 %3225
    %3227 = vrot.lane.b32.xlu0 %v3085, 32
    %v3228 = vpop.permute.xlu0 %3227
    %3229 = vrot.lane.b32.xlu0 %v3086, 32
    %v3230 = vpop.permute.xlu0 %3229
    %3231 = vrot.lane.b32.xlu0 %v3087, 32
    %v3232 = vpop.permute.xlu0 %3231
    %3233 = vrot.lane.b32.xlu0 %v3088, 32
    %v3234 = vpop.permute.xlu0 %3233
    %3235 = vrot.lane.b32.xlu0 %v3089, 32
    %v3236 = vpop.permute.xlu0 %3235
    %3237 = vrot.lane.b32.xlu0 %v3090, 32
    %v3238 = vpop.permute.xlu0 %3237
    %3239 = vrot.lane.b32.xlu0 %v3091, 32
    %v3240 = vpop.permute.xlu0 %3239
    %3241 = vrot.lane.b32.xlu0 %v3092, 32
    %v3242 = vpop.permute.xlu0 %3241
    %3243 = vrot.lane.b32.xlu0 %v3093, 32
    %v3244 = vpop.permute.xlu0 %3243
    %3245 = vrot.lane.b32.xlu0 %v3094, 32
    %v3246 = vpop.permute.xlu0 %3245
    %3247 = vrot.lane.b32.xlu0 %v3095, 32
    %v3248 = vpop.permute.xlu0 %3247
    %3249 = vrot.lane.b32.xlu0 %v3096, 32
    %v3250 = vpop.permute.xlu0 %3249
    %3251 = vrot.lane.b32.xlu0 %v3097, 32
    %v3252 = vpop.permute.xlu0 %3251
    %3253 = vrot.lane.b32.xlu0 %v3098, 32
    %v3254 = vpop.permute.xlu0 %3253
    %3255 = vrot.lane.b32.xlu0 %v3099, 32
    %v3256 = vpop.permute.xlu0 %3255
    %3257 = vrot.lane.b32.xlu0 %v3100, 32
    %v3258 = vpop.permute.xlu0 %3257
    %3259 = vrot.lane.b32.xlu0 %v3101, 32
    %v3260 = vpop.permute.xlu0 %3259
    %3261 = vrot.lane.b32.xlu0 %v3102, 32
    %v3262 = vpop.permute.xlu0 %3261
    %3263 = vrot.lane.b32.xlu0 %v3103, 32
    %v3264 = vpop.permute.xlu0 %3263
    %3265 = vrot.lane.b32.xlu0 %v3104, 32
    %v3266 = vpop.permute.xlu0 %3265
    %3267 = vrot.lane.b32.xlu0 %v3105, 32
    %v3268 = vpop.permute.xlu0 %3267
    %3269 = vrot.lane.b32.xlu0 %v3106, 32
    %v3270 = vpop.permute.xlu0 %3269
    %3271 = vrot.lane.b32.xlu0 %v3107, 32
    %v3272 = vpop.permute.xlu0 %3271
    %3273 = vrot.lane.b32.xlu0 %v3108, 32
    %v3274 = vpop.permute.xlu0 %3273
    %3275 = vrot.lane.b32.xlu0 %v3109, 32
    %v3276 = vpop.permute.xlu0 %3275
    %3277 = vrot.lane.b32.xlu0 %v3110, 32
    %v3278 = vpop.permute.xlu0 %3277
    %3279 = vrot.lane.b32.xlu0 %v3111, 32
    %v3280 = vpop.permute.xlu0 %3279
    %3281 = vrot.lane.b32.xlu0 %v3112, 32
    %v3282 = vpop.permute.xlu0 %3281
    %3283 = vrot.lane.b32.xlu0 %v3113, 32
    %v3284 = vpop.permute.xlu0 %3283
    %3285 = vrot.lane.b32.xlu0 %v3114, 32
    %v3286 = vpop.permute.xlu0 %3285
    %3287 = vrot.lane.b32.xlu0 %v3115, 32
    %v3288 = vpop.permute.xlu0 %3287
    %3289 = vrot.lane.b32.xlu0 %v3116, 32
    %v3290 = vpop.permute.xlu0 %3289
    %3291 = vrot.lane.b32.xlu0 %v3117, 32
    %v3292 = vpop.permute.xlu0 %3291
    %3293 = vrot.lane.b32.xlu0 %v3118, 32
    %v3294 = vpop.permute.xlu0 %3293
    %3295 = vrot.lane.b32.xlu0 %v3119, 32
    %v3296 = vpop.permute.xlu0 %3295
    %3297 = vrot.lane.b32.xlu0 %v3120, 32
    %v3298 = vpop.permute.xlu0 %3297
    %3299 = vrot.lane.b32.xlu0 %v3121, 32
    %v3300 = vpop.permute.xlu0 %3299
    %3301 = vrot.lane.b32.xlu0 %v3122, 32
    %v3302 = vpop.permute.xlu0 %3301
    %3303 = vrot.lane.b32.xlu0 %v3123, 32
    %v3304 = vpop.permute.xlu0 %3303
    %3305 = vrot.lane.b32.xlu0 %v3124, 32
    %v3306 = vpop.permute.xlu0 %3305
    %3307 = vrot.lane.b32.xlu0 %v3125, 32
    %v3308 = vpop.permute.xlu0 %3307
    %3309 = vrot.lane.b32.xlu0 %v3126, 32
    %v3310 = vpop.permute.xlu0 %3309
    %3311 = vrot.lane.b32.xlu0 %v3127, 32
    %v3312 = vpop.permute.xlu0 %3311
    %3313 = vrot.lane.b32.xlu0 %v3128, 32
    %v3314 = vpop.permute.xlu0 %3313
    %3315 = vrot.lane.b32.xlu0 %v3129, 32
    %v3316 = vpop.permute.xlu0 %3315
    %3317 = vrot.lane.b32.xlu0 %v3130, 32
    %v3318 = vpop.permute.xlu0 %3317
    %3319 = vrot.lane.b32.xlu0 %v3131, 32
    %v3320 = vpop.permute.xlu0 %3319
    %3321 = vrot.lane.b32.xlu0 %v3132, 32
    %v3322 = vpop.permute.xlu0 %3321
    %3323 = vrot.lane.b32.xlu0 %v3133, 32
    %v3324 = vpop.permute.xlu0 %3323
    %3325 = vrot.lane.b32.xlu0 %v3134, 32
    %v3326 = vpop.permute.xlu0 %3325
    %vm3391 = vcmask 294144
    %3392 = vst.msk [vmem:[#allocation3] sm:$0xff] %vm3391, %v3200
    %3393 = vst.msk [vmem:[#allocation3 + $0x8] sm:$0xff] %vm3391, %v3202
    %3394 = vst.msk [vmem:[#allocation3 + $0x10] sm:$0xff] %vm3391, %v3204
    %3395 = vst.msk [vmem:[#allocation3 + $0x18] sm:$0xff] %vm3391, %v3206
    %3396 = vst.msk [vmem:[#allocation3 + $0x20] sm:$0xff] %vm3391, %v3208
    %3397 = vst.msk [vmem:[#allocation3 + $0x28] sm:$0xff] %vm3391, %v3210
    %3398 = vst.msk [vmem:[#allocation3 + $0x30] sm:$0xff] %vm3391, %v3212
    %3399 = vst.msk [vmem:[#allocation3 + $0x38] sm:$0xff] %vm3391, %v3214
    %3400 = vst.msk [vmem:[#allocation3 + $0x40] sm:$0xff] %vm3391, %v3216
    %3401 = vst.msk [vmem:[#allocation3 + $0x48] sm:$0xff] %vm3391, %v3218
    %3402 = vst.msk [vmem:[#allocation3 + $0x50] sm:$0xff] %vm3391, %v3220
    %3403 = vst.msk [vmem:[#allocation3 + $0x58] sm:$0xff] %vm3391, %v3222
    %3404 = vst.msk [vmem:[#allocation3 + $0x60] sm:$0xff] %vm3391, %v3224
    %3405 = vst.msk [vmem:[#allocation3 + $0x68] sm:$0xff] %vm3391, %v3226
    %3406 = vst.msk [vmem:[#allocation3 + $0x70] sm:$0xff] %vm3391, %v3228
    %3407 = vst.msk [vmem:[#allocation3 + $0x78] sm:$0xff] %vm3391, %v3230
    %3408 = vst.msk [vmem:[#allocation3 + $0x80] sm:$0xff] %vm3391, %v3232
    %3409 = vst.msk [vmem:[#allocation3 + $0x88] sm:$0xff] %vm3391, %v3234
    %3410 = vst.msk [vmem:[#allocation3 + $0x90] sm:$0xff] %vm3391, %v3236
    %3411 = vst.msk [vmem:[#allocation3 + $0x98] sm:$0xff] %vm3391, %v3238
    %3412 = vst.msk [vmem:[#allocation3 + $0xa0] sm:$0xff] %vm3391, %v3240
    %3413 = vst.msk [vmem:[#allocation3 + $0xa8] sm:$0xff] %vm3391, %v3242
    %3414 = vst.msk [vmem:[#allocation3 + $0xb0] sm:$0xff] %vm3391, %v3244
    %3415 = vst.msk [vmem:[#allocation3 + $0xb8] sm:$0xff] %vm3391, %v3246
    %3416 = vst.msk [vmem:[#allocation3 + $0xc0] sm:$0xff] %vm3391, %v3248
    %3417 = vst.msk [vmem:[#allocation3 + $0xc8] sm:$0xff] %vm3391, %v3250
    %3418 = vst.msk [vmem:[#allocation3 + $0xd0] sm:$0xff] %vm3391, %v3252
    %3419 = vst.msk [vmem:[#allocation3 + $0xd8] sm:$0xff] %vm3391, %v3254
    %3420 = vst.msk [vmem:[#allocation3 + $0xe0] sm:$0xff] %vm3391, %v3256
    %3421 = vst.msk [vmem:[#allocation3 + $0xe8] sm:$0xff] %vm3391, %v3258
    %3422 = vst.msk [vmem:[#allocation3 + $0xf0] sm:$0xff] %vm3391, %v3260
    %3423 = vst.msk [vmem:[#allocation3 + $0xf8] sm:$0xff] %vm3391, %v3262
    %3424 = vst.msk [vmem:[#allocation3 + $0x100] sm:$0xff] %vm3391, %v3264
    %3425 = vst.msk [vmem:[#allocation3 + $0x108] sm:$0xff] %vm3391, %v3266
    %3426 = vst.msk [vmem:[#allocation3 + $0x110] sm:$0xff] %vm3391, %v3268
    %3427 = vst.msk [vmem:[#allocation3 + $0x118] sm:$0xff] %vm3391, %v3270
    %3428 = vst.msk [vmem:[#allocation3 + $0x120] sm:$0xff] %vm3391, %v3272
    %3429 = vst.msk [vmem:[#allocation3 + $0x128] sm:$0xff] %vm3391, %v3274
    %3430 = vst.msk [vmem:[#allocation3 + $0x130] sm:$0xff] %vm3391, %v3276
    %3431 = vst.msk [vmem:[#allocation3 + $0x138] sm:$0xff] %vm3391, %v3278
    %3432 = vst.msk [vmem:[#allocation3 + $0x140] sm:$0xff] %vm3391, %v3280
    %3433 = vst.msk [vmem:[#allocation3 + $0x148] sm:$0xff] %vm3391, %v3282
    %3434 = vst.msk [vmem:[#allocation3 + $0x150] sm:$0xff] %vm3391, %v3284
    %3435 = vst.msk [vmem:[#allocation3 + $0x158] sm:$0xff] %vm3391, %v3286
    %3436 = vst.msk [vmem:[#allocation3 + $0x160] sm:$0xff] %vm3391, %v3288
    %3437 = vst.msk [vmem:[#allocation3 + $0x168] sm:$0xff] %vm3391, %v3290
    %3438 = vst.msk [vmem:[#allocation3 + $0x170] sm:$0xff] %vm3391, %v3292
    %3439 = vst.msk [vmem:[#allocation3 + $0x178] sm:$0xff] %vm3391, %v3294
    %3440 = vst.msk [vmem:[#allocation3 + $0x180] sm:$0xff] %vm3391, %v3296
    %3441 = vst.msk [vmem:[#allocation3 + $0x188] sm:$0xff] %vm3391, %v3298
    %3442 = vst.msk [vmem:[#allocation3 + $0x190] sm:$0xff] %vm3391, %v3300
    %3443 = vst.msk [vmem:[#allocation3 + $0x198] sm:$0xff] %vm3391, %v3302
    %3444 = vst.msk [vmem:[#allocation3 + $0x1a0] sm:$0xff] %vm3391, %v3304
    %3445 = vst.msk [vmem:[#allocation3 + $0x1a8] sm:$0xff] %vm3391, %v3306
    %3446 = vst.msk [vmem:[#allocation3 + $0x1b0] sm:$0xff] %vm3391, %v3308
    %3447 = vst.msk [vmem:[#allocation3 + $0x1b8] sm:$0xff] %vm3391, %v3310
    %3448 = vst.msk [vmem:[#allocation3 + $0x1c0] sm:$0xff] %vm3391, %v3312
    %3449 = vst.msk [vmem:[#allocation3 + $0x1c8] sm:$0xff] %vm3391, %v3314
    %3450 = vst.msk [vmem:[#allocation3 + $0x1d0] sm:$0xff] %vm3391, %v3316
    %3451 = vst.msk [vmem:[#allocation3 + $0x1d8] sm:$0xff] %vm3391, %v3318
    %3452 = vst.msk [vmem:[#allocation3 + $0x1e0] sm:$0xff] %vm3391, %v3320
    %3453 = vst.msk [vmem:[#allocation3 + $0x1e8] sm:$0xff] %vm3391, %v3322
    %3454 = vst.msk [vmem:[#allocation3 + $0x1f0] sm:$0xff] %vm3391, %v3324
    %3455 = vst.msk [vmem:[#allocation3 + $0x1f8] sm:$0xff] %vm3391, %v3326
    %v3456 = vld [vmem:[#allocation3] sm:$0xff]
    %v3457 = vld [vmem:[#allocation3 + $0x8] sm:$0xff]
    %v3458 = vld [vmem:[#allocation3 + $0x10] sm:$0xff]
    %v3459 = vld [vmem:[#allocation3 + $0x18] sm:$0xff]
    %v3460 = vld [vmem:[#allocation3 + $0x20] sm:$0xff]
    %v3461 = vld [vmem:[#allocation3 + $0x28] sm:$0xff]
    %v3462 = vld [vmem:[#allocation3 + $0x30] sm:$0xff]
    %v3463 = vld [vmem:[#allocation3 + $0x38] sm:$0xff]
    %v3464 = vld [vmem:[#allocation3 + $0x40] sm:$0xff]
    %v3465 = vld [vmem:[#allocation3 + $0x48] sm:$0xff]
    %v3466 = vld [vmem:[#allocation3 + $0x50] sm:$0xff]
    %v3467 = vld [vmem:[#allocation3 + $0x58] sm:$0xff]
    %v3468 = vld [vmem:[#allocation3 + $0x60] sm:$0xff]
    %v3469 = vld [vmem:[#allocation3 + $0x68] sm:$0xff]
    %v3470 = vld [vmem:[#allocation3 + $0x70] sm:$0xff]
    %v3471 = vld [vmem:[#allocation3 + $0x78] sm:$0xff]
    %v3472 = vld [vmem:[#allocation3 + $0x80] sm:$0xff]
    %v3473 = vld [vmem:[#allocation3 + $0x88] sm:$0xff]
    %v3474 = vld [vmem:[#allocation3 + $0x90] sm:$0xff]
    %v3475 = vld [vmem:[#allocation3 + $0x98] sm:$0xff]
    %v3476 = vld [vmem:[#allocation3 + $0xa0] sm:$0xff]
    %v3477 = vld [vmem:[#allocation3 + $0xa8] sm:$0xff]
    %v3478 = vld [vmem:[#allocation3 + $0xb0] sm:$0xff]
    %v3479 = vld [vmem:[#allocation3 + $0xb8] sm:$0xff]
    %v3480 = vld [vmem:[#allocation3 + $0xc0] sm:$0xff]
    %v3481 = vld [vmem:[#allocation3 + $0xc8] sm:$0xff]
    %v3482 = vld [vmem:[#allocation3 + $0xd0] sm:$0xff]
    %v3483 = vld [vmem:[#allocation3 + $0xd8] sm:$0xff]
    %v3484 = vld [vmem:[#allocation3 + $0xe0] sm:$0xff]
    %v3485 = vld [vmem:[#allocation3 + $0xe8] sm:$0xff]
    %v3486 = vld [vmem:[#allocation3 + $0xf0] sm:$0xff]
    %v3487 = vld [vmem:[#allocation3 + $0xf8] sm:$0xff]
    %v3488 = vld [vmem:[#allocation3 + $0x100] sm:$0xff]
    %v3489 = vld [vmem:[#allocation3 + $0x108] sm:$0xff]
    %v3490 = vld [vmem:[#allocation3 + $0x110] sm:$0xff]
    %v3491 = vld [vmem:[#allocation3 + $0x118] sm:$0xff]
    %v3492 = vld [vmem:[#allocation3 + $0x120] sm:$0xff]
    %v3493 = vld [vmem:[#allocation3 + $0x128] sm:$0xff]
    %v3494 = vld [vmem:[#allocation3 + $0x130] sm:$0xff]
    %v3495 = vld [vmem:[#allocation3 + $0x138] sm:$0xff]
    %v3496 = vld [vmem:[#allocation3 + $0x140] sm:$0xff]
    %v3497 = vld [vmem:[#allocation3 + $0x148] sm:$0xff]
    %v3498 = vld [vmem:[#allocation3 + $0x150] sm:$0xff]
    %v3499 = vld [vmem:[#allocation3 + $0x158] sm:$0xff]
    %v3500 = vld [vmem:[#allocation3 + $0x160] sm:$0xff]
    %v3501 = vld [vmem:[#allocation3 + $0x168] sm:$0xff]
    %v3502 = vld [vmem:[#allocation3 + $0x170] sm:$0xff]
    %v3503 = vld [vmem:[#allocation3 + $0x178] sm:$0xff]
    %v3504 = vld [vmem:[#allocation3 + $0x180] sm:$0xff]
    %v3505 = vld [vmem:[#allocation3 + $0x188] sm:$0xff]
    %v3506 = vld [vmem:[#allocation3 + $0x190] sm:$0xff]
    %v3507 = vld [vmem:[#allocation3 + $0x198] sm:$0xff]
    %v3508 = vld [vmem:[#allocation3 + $0x1a0] sm:$0xff]
    %v3509 = vld [vmem:[#allocation3 + $0x1a8] sm:$0xff]
    %v3510 = vld [vmem:[#allocation3 + $0x1b0] sm:$0xff]
    %v3511 = vld [vmem:[#allocation3 + $0x1b8] sm:$0xff]
    %v3512 = vld [vmem:[#allocation3 + $0x1c0] sm:$0xff]
    %v3513 = vld [vmem:[#allocation3 + $0x1c8] sm:$0xff]
    %v3514 = vld [vmem:[#allocation3 + $0x1d0] sm:$0xff]
    %v3515 = vld [vmem:[#allocation3 + $0x1d8] sm:$0xff]
    %v3516 = vld [vmem:[#allocation3 + $0x1e0] sm:$0xff]
    %v3517 = vld [vmem:[#allocation3 + $0x1e8] sm:$0xff]
    %v3518 = vld [vmem:[#allocation3 + $0x1f0] sm:$0xff]
    %v3519 = vld [vmem:[#allocation3 + $0x1f8] sm:$0xff]
    %v3520 = vld [vmem:[%s1] sm:$0xff]
    %v3521 = vld [vmem:[%s1 + $0x8] sm:$0xff]
    %v3522 = vld [vmem:[%s1 + $0x10] sm:$0xff]
    %v3523 = vld [vmem:[%s1 + $0x18] sm:$0xff]
    %v3524 = vld [vmem:[%s1 + $0x20] sm:$0xf]
    %vm3525 = vcmask 293888
    %v3527 = vsel %vm3525, %v3456, 0
    %v3530 = vsel %vm3525, %v3457, 0
    %v3533 = vsel %vm3525, %v3458, 0
    %v3536 = vsel %vm3525, %v3459, 0
    %v3539 = vsel %vm3525, %v3460, 0
    %v3542 = vsel %vm3525, %v3461, 0
    %v3545 = vsel %vm3525, %v3462, 0
    %v3548 = vsel %vm3525, %v3463, 0
    %v3551 = vsel %vm3525, %v3464, 0
    %v3554 = vsel %vm3525, %v3465, 0
    %v3557 = vsel %vm3525, %v3466, 0
    %v3560 = vsel %vm3525, %v3467, 0
    %v3563 = vsel %vm3525, %v3468, 0
    %v3566 = vsel %vm3525, %v3469, 0
    %v3569 = vsel %vm3525, %v3470, 0
    %v3572 = vsel %vm3525, %v3471, 0
    %v3575 = vsel %vm3525, %v3472, 0
    %v3578 = vsel %vm3525, %v3473, 0
    %v3581 = vsel %vm3525, %v3474, 0
    %v3584 = vsel %vm3525, %v3475, 0
    %v3587 = vsel %vm3525, %v3476, 0
    %v3590 = vsel %vm3525, %v3477, 0
    %v3593 = vsel %vm3525, %v3478, 0
    %v3596 = vsel %vm3525, %v3479, 0
    %v3599 = vsel %vm3525, %v3480, 0
    %v3602 = vsel %vm3525, %v3481, 0
    %v3605 = vsel %vm3525, %v3482, 0
    %v3608 = vsel %vm3525, %v3483, 0
    %v3611 = vsel %vm3525, %v3484, 0
    %v3614 = vsel %vm3525, %v3485, 0
    %v3617 = vsel %vm3525, %v3486, 0
    %v3620 = vsel %vm3525, %v3487, 0
    %v3623 = vsel %vm3525, %v3488, 0
    %v3626 = vsel %vm3525, %v3489, 0
    %v3629 = vsel %vm3525, %v3490, 0
    %v3632 = vsel %vm3525, %v3491, 0
    %v3635 = vsel %vm3525, %v3492, 0
    %v3638 = vsel %vm3525, %v3493, 0
    %v3641 = vsel %vm3525, %v3494, 0
    %v3644 = vsel %vm3525, %v3495, 0
    %v3647 = vsel %vm3525, %v3496, 0
    %v3650 = vsel %vm3525, %v3497, 0
    %v3653 = vsel %vm3525, %v3498, 0
    %v3656 = vsel %vm3525, %v3499, 0
    %v3659 = vsel %vm3525, %v3500, 0
    %v3662 = vsel %vm3525, %v3501, 0
    %v3665 = vsel %vm3525, %v3502, 0
    %v3668 = vsel %vm3525, %v3503, 0
    %v3671 = vsel %vm3525, %v3504, 0
    %v3674 = vsel %vm3525, %v3505, 0
    %v3677 = vsel %vm3525, %v3506, 0
    %v3680 = vsel %vm3525, %v3507, 0
    %v3683 = vsel %vm3525, %v3508, 0
    %v3686 = vsel %vm3525, %v3509, 0
    %v3689 = vsel %vm3525, %v3510, 0
    %v3692 = vsel %vm3525, %v3511, 0
    %v3695 = vsel %vm3525, %v3512, 0
    %v3698 = vsel %vm3525, %v3513, 0
    %v3701 = vsel %vm3525, %v3514, 0
    %v3704 = vsel %vm3525, %v3515, 0
    %v3707 = vsel %vm3525, %v3516, 0
    %v3710 = vsel %vm3525, %v3517, 0
    %v3713 = vsel %vm3525, %v3518, 0
    %v3716 = vsel %vm3525, %v3519, 0
    %vm3718 = vcmask 1043456
    %v3720 = vsel %vm3718, %v3524, 0
    %3722 = vmatprep.subr.mxu0 0.0
    %3723 = vmatpush1.msra.mxu0 %v3520
    %3724 = vmatprep.subr.mxu0 0.0
    %3725 = vmatpush1.msra.mxu0 %v3521
    %3726 = vmatprep.subr.mxu0 0.0
    %3727 = vmatpush1.msra.mxu0 %v3522
    %3728 = vmatprep.subr.mxu0 0.0
    %3729 = vmatpush1.msra.mxu0 %v3523
    %3730 = vmatprep.subr.mxu0 0.0
    %3731 = vmatpush1.msra.mxu0 %v3720
    %3732 = vmatprep.subr.mxu0 0.0
    %3733 = vmatpush1.msra.mxu0 0.0
    %3734 = vmatprep.subr.mxu0 0.0
    %3735 = vmatpush1.msra.mxu0 0.0
    %3736 = vmatprep.subr.mxu0 0.0
    %3737 = vmatpush1.msra.mxu0 0.0
    %3738 = vmatprep.subr.mxu0 0.0
    %3739 = vmatpush1.msra.mxu0 0.0
    %3740 = vmatprep.subr.mxu0 0.0
    %3741 = vmatpush1.msra.mxu0 0.0
    %3742 = vmatprep.subr.mxu0 0.0
    %3743 = vmatpush1.msra.mxu0 0.0
    %3744 = vmatprep.subr.mxu0 0.0
    %3745 = vmatpush1.msra.mxu0 0.0
    %3746 = vmatprep.subr.mxu0 0.0
    %3747 = vmatpush1.msra.mxu0 0.0
    %3748 = vmatprep.subr.mxu0 0.0
    %3749 = vmatpush1.msra.mxu0 0.0
    %3750 = vmatprep.subr.mxu0 0.0
    %3751 = vmatpush1.msra.mxu0 0.0
    %3752 = vmatprep.subr.mxu0 0.0
    %3753 = vmatpush1.msra.mxu0 0.0
    %3754 = vmatprep.subr.mxu0 0.0
    %3755 = vmatpush1.msra.mxu0 0.0
    %3756 = vmatprep.subr.mxu0 0.0
    %3757 = vmatpush1.msra.mxu0 0.0
    %3758 = vmatprep.subr.mxu0 0.0
    %3759 = vmatpush1.msra.mxu0 0.0
    %3760 = vmatprep.subr.mxu0 0.0
    %3761 = vmatpush1.msra.mxu0 0.0
    %3762 = vmatprep.subr.mxu0 0.0
    %3763 = vmatpush1.msra.mxu0 0.0
    %3764 = vmatprep.subr.mxu0 0.0
    %3765 = vmatpush1.msra.mxu0 0.0
    %3766 = vmatprep.subr.mxu0 0.0
    %3767 = vmatpush1.msra.mxu0 0.0
    %3768 = vmatprep.subr.mxu0 0.0
    %3769 = vmatpush1.msra.mxu0 0.0
    %3770 = vmatprep.subr.mxu0 0.0
    %3771 = vmatpush1.msra.mxu0 0.0
    %3772 = vmatprep.subr.mxu0 0.0
    %3773 = vmatpush1.msra.mxu0 0.0
    %3774 = vmatprep.subr.mxu0 0.0
    %3775 = vmatpush1.msra.mxu0 0.0
    %3776 = vmatprep.subr.mxu0 0.0
    %3777 = vmatpush1.msra.mxu0 0.0
    %3778 = vmatprep.subr.mxu0 0.0
    %3779 = vmatpush1.msra.mxu0 0.0
    %3780 = vmatprep.subr.mxu0 0.0
    %3781 = vmatpush1.msra.mxu0 0.0
    %3782 = vmatprep.subr.mxu0 0.0
    %3783 = vmatpush1.msra.mxu0 0.0
    %3784 = vmatprep.subr.mxu0 0.0
    %3785 = vmatpush1.msra.mxu0 0.0
    %3786 = vmatprep.mubr.f32.mxu0 0.0
    %3787 = vmatmul.mubr.f32.gmra.mrb[0].mxu0 %v3527
    %v3788 = vpop.f32.mrb[0].mxu0
    %v3789 = vadd.f32 0.0, %v3788
    %v3790 = vpop.f32.mrb[0].mxu0
    %3791 = vmatprep.mubr.f32.mxu0 0.0
    %3792 = vmatmul.mubr.f32.gmra.mrb[0].mxu0 %v3530
    %v3793 = vpop.f32.mrb[0].mxu0
    %v3794 = vadd.f32 0.0, %v3793
    %v3795 = vpop.f32.mrb[0].mxu0
    %3796 = vmatprep.mubr.f32.mxu0 0.0
    %3797 = vmatmul.mubr.f32.gmra.mrb[0].mxu0 %v3533
    %v3798 = vpop.f32.mrb[0].mxu0
    %v3799 = vadd.f32 0.0, %v3798
    %v3800 = vpop.f32.mrb[0].mxu0
    %3801 = vmatprep.mubr.f32.mxu0 0.0
    %3802 = vmatmul.mubr.f32.gmra.mrb[0].mxu0 %v3536
    %v3803 = vpop.f32.mrb[0].mxu0
    %v3804 = vadd.f32 0.0, %v3803
    %v3805 = vpop.f32.mrb[0].mxu0
    %3806 = vmatprep.mubr.f32.mxu0 0.0
    %3807 = vmatmul.mubr.f32.gmra.mrb[0].mxu0 %v3539
    %v3808 = vpop.f32.mrb[0].mxu0
    %v3809 = vadd.f32 0.0, %v3808
    %v3810 = vpop.f32.mrb[0].mxu0
    %3811 = vmatprep.mubr.f32.mxu0 0.0
    %3812 = vmatmul.mubr.f32.gmra.mrb[0].mxu0 %v3542
    %v3813 = vpop.f32.mrb[0].mxu0
    %v3814 = vadd.f32 0.0, %v3813
    %v3815 = vpop.f32.mrb[0].mxu0
    %3816 = vmatprep.mubr.f32.mxu0 0.0
    %3817 = vmatmul.mubr.f32.gmra.mrb[0].mxu0 %v3545
    %v3818 = vpop.f32.mrb[0].mxu0
    %v3819 = vadd.f32 0.0, %v3818
    %v3820 = vpop.f32.mrb[0].mxu0
    %3821 = vmatprep.mubr.f32.mxu0 0.0
    %3822 = vmatmul.mubr.f32.gmra.mrb[0].mxu0 %v3548
    %v3823 = vpop.f32.mrb[0].mxu0
    %v3824 = vadd.f32 0.0, %v3823
    %v3825 = vpop.f32.mrb[0].mxu0
    %3826 = vmatprep.mubr.f32.mxu0 0.0
    %3827 = vmatmul.mubr.f32.gmra.mrb[0].mxu0 %v3551
    %v3828 = vpop.f32.mrb[0].mxu0
    %v3829 = vadd.f32 0.0, %v3828
    %v3830 = vpop.f32.mrb[0].mxu0
    %3831 = vmatprep.mubr.f32.mxu0 0.0
    %3832 = vmatmul.mubr.f32.gmra.mrb[0].mxu0 %v3554
    %v3833 = vpop.f32.mrb[0].mxu0
    %v3834 = vadd.f32 0.0, %v3833
    %v3835 = vpop.f32.mrb[0].mxu0
    %3836 = vmatprep.mubr.f32.mxu0 0.0
    %3837 = vmatmul.mubr.f32.gmra.mrb[0].mxu0 %v3557
    %v3838 = vpop.f32.mrb[0].mxu0
    %v3839 = vadd.f32 0.0, %v3838
    %v3840 = vpop.f32.mrb[0].mxu0
    %3841 = vmatprep.mubr.f32.mxu0 0.0
    %3842 = vmatmul.mubr.f32.gmra.mrb[0].mxu0 %v3560
    %v3843 = vpop.f32.mrb[0].mxu0
    %v3844 = vadd.f32 0.0, %v3843
    %v3845 = vpop.f32.mrb[0].mxu0
    %3846 = vmatprep.mubr.f32.mxu0 0.0
    %3847 = vmatmul.mubr.f32.gmra.mrb[0].mxu0 %v3563
    %v3848 = vpop.f32.mrb[0].mxu0
    %v3849 = vadd.f32 0.0, %v3848
    %v3850 = vpop.f32.mrb[0].mxu0
    %3851 = vmatprep.mubr.f32.mxu0 0.0
    %3852 = vmatmul.mubr.f32.gmra.mrb[0].mxu0 %v3566
    %v3853 = vpop.f32.mrb[0].mxu0
    %v3854 = vadd.f32 0.0, %v3853
    %v3855 = vpop.f32.mrb[0].mxu0
    %3856 = vmatprep.mubr.f32.mxu0 0.0
    %3857 = vmatmul.mubr.f32.gmra.mrb[0].mxu0 %v3569
    %v3858 = vpop.f32.mrb[0].mxu0
    %v3859 = vadd.f32 0.0, %v3858
    %v3860 = vpop.f32.mrb[0].mxu0
    %3861 = vmatprep.mubr.f32.mxu0 0.0
    %3862 = vmatmul.mubr.f32.gmra.mrb[0].mxu0 %v3572
    %v3863 = vpop.f32.mrb[0].mxu0
    %v3864 = vadd.f32 0.0, %v3863
    %v3865 = vpop.f32.mrb[0].mxu0
    %3866 = vmatprep.mubr.f32.mxu0 0.0
    %3867 = vmatmul.mubr.f32.gmra.mrb[0].mxu0 %v3575
    %v3868 = vpop.f32.mrb[0].mxu0
    %v3869 = vadd.f32 0.0, %v3868
    %v3870 = vpop.f32.mrb[0].mxu0
    %3871 = vmatprep.mubr.f32.mxu0 0.0
    %3872 = vmatmul.mubr.f32.gmra.mrb[0].mxu0 %v3578
    %v3873 = vpop.f32.mrb[0].mxu0
    %v3874 = vadd.f32 0.0, %v3873
    %v3875 = vpop.f32.mrb[0].mxu0
    %3876 = vmatprep.mubr.f32.mxu0 0.0
    %3877 = vmatmul.mubr.f32.gmra.mrb[0].mxu0 %v3581
    %v3878 = vpop.f32.mrb[0].mxu0
    %v3879 = vadd.f32 0.0, %v3878
    %v3880 = vpop.f32.mrb[0].mxu0
    %3881 = vmatprep.mubr.f32.mxu0 0.0
    %3882 = vmatmul.mubr.f32.gmra.mrb[0].mxu0 %v3584
    %v3883 = vpop.f32.mrb[0].mxu0
    %v3884 = vadd.f32 0.0, %v3883
    %v3885 = vpop.f32.mrb[0].mxu0
    %3886 = vmatprep.mubr.f32.mxu0 0.0
    %3887 = vmatmul.mubr.f32.gmra.mrb[0].mxu0 %v3587
    %v3888 = vpop.f32.mrb[0].mxu0
    %v3889 = vadd.f32 0.0, %v3888
    %v3890 = vpop.f32.mrb[0].mxu0
    %3891 = vmatprep.mubr.f32.mxu0 0.0
    %3892 = vmatmul.mubr.f32.gmra.mrb[0].mxu0 %v3590
    %v3893 = vpop.f32.mrb[0].mxu0
    %v3894 = vadd.f32 0.0, %v3893
    %v3895 = vpop.f32.mrb[0].mxu0
    %3896 = vmatprep.mubr.f32.mxu0 0.0
    %3897 = vmatmul.mubr.f32.gmra.mrb[0].mxu0 %v3593
    %v3898 = vpop.f32.mrb[0].mxu0
    %v3899 = vadd.f32 0.0, %v3898
    %v3900 = vpop.f32.mrb[0].mxu0
    %3901 = vmatprep.mubr.f32.mxu0 0.0
    %3902 = vmatmul.mubr.f32.gmra.mrb[0].mxu0 %v3596
    %v3903 = vpop.f32.mrb[0].mxu0
    %v3904 = vadd.f32 0.0, %v3903
    %v3905 = vpop.f32.mrb[0].mxu0
    %3906 = vmatprep.mubr.f32.mxu0 0.0
    %3907 = vmatmul.mubr.f32.gmra.mrb[0].mxu0 %v3599
    %v3908 = vpop.f32.mrb[0].mxu0
    %v3909 = vadd.f32 0.0, %v3908
    %v3910 = vpop.f32.mrb[0].mxu0
    %3911 = vmatprep.mubr.f32.mxu0 0.0
    %3912 = vmatmul.mubr.f32.gmra.mrb[0].mxu0 %v3602
    %v3913 = vpop.f32.mrb[0].mxu0
    %v3914 = vadd.f32 0.0, %v3913
    %v3915 = vpop.f32.mrb[0].mxu0
    %3916 = vmatprep.mubr.f32.mxu0 0.0
    %3917 = vmatmul.mubr.f32.gmra.mrb[0].mxu0 %v3605
    %v3918 = vpop.f32.mrb[0].mxu0
    %v3919 = vadd.f32 0.0, %v3918
    %v3920 = vpop.f32.mrb[0].mxu0
    %3921 = vmatprep.mubr.f32.mxu0 0.0
    %3922 = vmatmul.mubr.f32.gmra.mrb[0].mxu0 %v3608
    %v3923 = vpop.f32.mrb[0].mxu0
    %v3924 = vadd.f32 0.0, %v3923
    %v3925 = vpop.f32.mrb[0].mxu0
    %3926 = vmatprep.mubr.f32.mxu0 0.0
    %3927 = vmatmul.mubr.f32.gmra.mrb[0].mxu0 %v3611
    %v3928 = vpop.f32.mrb[0].mxu0
    %v3929 = vadd.f32 0.0, %v3928
    %v3930 = vpop.f32.mrb[0].mxu0
    %3931 = vmatprep.mubr.f32.mxu0 0.0
    %3932 = vmatmul.mubr.f32.gmra.mrb[0].mxu0 %v3614
    %v3933 = vpop.f32.mrb[0].mxu0
    %v3934 = vadd.f32 0.0, %v3933
    %v3935 = vpop.f32.mrb[0].mxu0
    %3936 = vmatprep.mubr.f32.mxu0 0.0
    %3937 = vmatmul.mubr.f32.gmra.mrb[0].mxu0 %v3617
    %v3938 = vpop.f32.mrb[0].mxu0
    %v3939 = vadd.f32 0.0, %v3938
    %v3940 = vpop.f32.mrb[0].mxu0
    %3941 = vmatprep.mubr.f32.mxu0 0.0
    %3942 = vmatmul.mubr.f32.gmra.mrb[0].mxu0 %v3620
    %v3943 = vpop.f32.mrb[0].mxu0
    %v3944 = vadd.f32 0.0, %v3943
    %v3945 = vpop.f32.mrb[0].mxu0
    %3946 = vmatprep.mubr.f32.mxu0 0.0
    %3947 = vmatmul.mubr.f32.gmra.mrb[0].mxu0 %v3623
    %v3948 = vpop.f32.mrb[0].mxu0
    %v3949 = vadd.f32 0.0, %v3948
    %v3950 = vpop.f32.mrb[0].mxu0
    %3951 = vmatprep.mubr.f32.mxu0 0.0
    %3952 = vmatmul.mubr.f32.gmra.mrb[0].mxu0 %v3626
    %v3953 = vpop.f32.mrb[0].mxu0
    %v3954 = vadd.f32 0.0, %v3953
    %v3955 = vpop.f32.mrb[0].mxu0
    %3956 = vmatprep.mubr.f32.mxu0 0.0
    %3957 = vmatmul.mubr.f32.gmra.mrb[0].mxu0 %v3629
    %v3958 = vpop.f32.mrb[0].mxu0
    %v3959 = vadd.f32 0.0, %v3958
    %v3960 = vpop.f32.mrb[0].mxu0
    %3961 = vmatprep.mubr.f32.mxu0 0.0
    %3962 = vmatmul.mubr.f32.gmra.mrb[0].mxu0 %v3632
    %v3963 = vpop.f32.mrb[0].mxu0
    %v3964 = vadd.f32 0.0, %v3963
    %v3965 = vpop.f32.mrb[0].mxu0
    %3966 = vmatprep.mubr.f32.mxu0 0.0
    %3967 = vmatmul.mubr.f32.gmra.mrb[0].mxu0 %v3635
    %v3968 = vpop.f32.mrb[0].mxu0
    %v3969 = vadd.f32 0.0, %v3968
    %v3970 = vpop.f32.mrb[0].mxu0
    %3971 = vmatprep.mubr.f32.mxu0 0.0
    %3972 = vmatmul.mubr.f32.gmra.mrb[0].mxu0 %v3638
    %v3973 = vpop.f32.mrb[0].mxu0
    %v3974 = vadd.f32 0.0, %v3973
    %v3975 = vpop.f32.mrb[0].mxu0
    %3976 = vmatprep.mubr.f32.mxu0 0.0
    %3977 = vmatmul.mubr.f32.gmra.mrb[0].mxu0 %v3641
    %v3978 = vpop.f32.mrb[0].mxu0
    %v3979 = vadd.f32 0.0, %v3978
    %v3980 = vpop.f32.mrb[0].mxu0
    %3981 = vmatprep.mubr.f32.mxu0 0.0
    %3982 = vmatmul.mubr.f32.gmra.mrb[0].mxu0 %v3644
    %v3983 = vpop.f32.mrb[0].mxu0
    %v3984 = vadd.f32 0.0, %v3983
    %v3985 = vpop.f32.mrb[0].mxu0
    %3986 = vmatprep.mubr.f32.mxu0 0.0
    %3987 = vmatmul.mubr.f32.gmra.mrb[0].mxu0 %v3647
    %v3988 = vpop.f32.mrb[0].mxu0
    %v3989 = vadd.f32 0.0, %v3988
    %v3990 = vpop.f32.mrb[0].mxu0
    %3991 = vmatprep.mubr.f32.mxu0 0.0
    %3992 = vmatmul.mubr.f32.gmra.mrb[0].mxu0 %v3650
    %v3993 = vpop.f32.mrb[0].mxu0
    %v3994 = vadd.f32 0.0, %v3993
    %v3995 = vpop.f32.mrb[0].mxu0
    %3996 = vmatprep.mubr.f32.mxu0 0.0
    %3997 = vmatmul.mubr.f32.gmra.mrb[0].mxu0 %v3653
    %v3998 = vpop.f32.mrb[0].mxu0
    %v3999 = vadd.f32 0.0, %v3998
    %v4000 = vpop.f32.mrb[0].mxu0
    %4001 = vmatprep.mubr.f32.mxu0 0.0
    %4002 = vmatmul.mubr.f32.gmra.mrb[0].mxu0 %v3656
    %v4003 = vpop.f32.mrb[0].mxu0
    %v4004 = vadd.f32 0.0, %v4003
    %v4005 = vpop.f32.mrb[0].mxu0
    %4006 = vmatprep.mubr.f32.mxu0 0.0
    %4007 = vmatmul.mubr.f32.gmra.mrb[0].mxu0 %v3659
    %v4008 = vpop.f32.mrb[0].mxu0
    %v4009 = vadd.f32 0.0, %v4008
    %v4010 = vpop.f32.mrb[0].mxu0
    %4011 = vmatprep.mubr.f32.mxu0 0.0
    %4012 = vmatmul.mubr.f32.gmra.mrb[0].mxu0 %v3662
    %v4013 = vpop.f32.mrb[0].mxu0
    %v4014 = vadd.f32 0.0, %v4013
    %v4015 = vpop.f32.mrb[0].mxu0
    %4016 = vmatprep.mubr.f32.mxu0 0.0
    %4017 = vmatmul.mubr.f32.gmra.mrb[0].mxu0 %v3665
    %v4018 = vpop.f32.mrb[0].mxu0
    %v4019 = vadd.f32 0.0, %v4018
    %v4020 = vpop.f32.mrb[0].mxu0
    %4021 = vmatprep.mubr.f32.mxu0 0.0
    %4022 = vmatmul.mubr.f32.gmra.mrb[0].mxu0 %v3668
    %v4023 = vpop.f32.mrb[0].mxu0
    %v4024 = vadd.f32 0.0, %v4023
    %v4025 = vpop.f32.mrb[0].mxu0
    %4026 = vmatprep.mubr.f32.mxu0 0.0
    %4027 = vmatmul.mubr.f32.gmra.mrb[0].mxu0 %v3671
    %v4028 = vpop.f32.mrb[0].mxu0
    %v4029 = vadd.f32 0.0, %v4028
    %v4030 = vpop.f32.mrb[0].mxu0
    %4031 = vmatprep.mubr.f32.mxu0 0.0
    %4032 = vmatmul.mubr.f32.gmra.mrb[0].mxu0 %v3674
    %v4033 = vpop.f32.mrb[0].mxu0
    %v4034 = vadd.f32 0.0, %v4033
    %v4035 = vpop.f32.mrb[0].mxu0
    %4036 = vmatprep.mubr.f32.mxu0 0.0
    %4037 = vmatmul.mubr.f32.gmra.mrb[0].mxu0 %v3677
    %v4038 = vpop.f32.mrb[0].mxu0
    %v4039 = vadd.f32 0.0, %v4038
    %v4040 = vpop.f32.mrb[0].mxu0
    %4041 = vmatprep.mubr.f32.mxu0 0.0
    %4042 = vmatmul.mubr.f32.gmra.mrb[0].mxu0 %v3680
    %v4043 = vpop.f32.mrb[0].mxu0
    %v4044 = vadd.f32 0.0, %v4043
    %v4045 = vpop.f32.mrb[0].mxu0
    %4046 = vmatprep.mubr.f32.mxu0 0.0
    %4047 = vmatmul.mubr.f32.gmra.mrb[0].mxu0 %v3683
    %v4048 = vpop.f32.mrb[0].mxu0
    %v4049 = vadd.f32 0.0, %v4048
    %v4050 = vpop.f32.mrb[0].mxu0
    %4051 = vmatprep.mubr.f32.mxu0 0.0
    %4052 = vmatmul.mubr.f32.gmra.mrb[0].mxu0 %v3686
    %v4053 = vpop.f32.mrb[0].mxu0
    %v4054 = vadd.f32 0.0, %v4053
    %v4055 = vpop.f32.mrb[0].mxu0
    %4056 = vmatprep.mubr.f32.mxu0 0.0
    %4057 = vmatmul.mubr.f32.gmra.mrb[0].mxu0 %v3689
    %v4058 = vpop.f32.mrb[0].mxu0
    %v4059 = vadd.f32 0.0, %v4058
    %v4060 = vpop.f32.mrb[0].mxu0
    %4061 = vmatprep.mubr.f32.mxu0 0.0
    %4062 = vmatmul.mubr.f32.gmra.mrb[0].mxu0 %v3692
    %v4063 = vpop.f32.mrb[0].mxu0
    %v4064 = vadd.f32 0.0, %v4063
    %v4065 = vpop.f32.mrb[0].mxu0
    %4066 = vmatprep.mubr.f32.mxu0 0.0
    %4067 = vmatmul.mubr.f32.gmra.mrb[0].mxu0 %v3695
    %v4068 = vpop.f32.mrb[0].mxu0
    %v4069 = vadd.f32 0.0, %v4068
    %v4070 = vpop.f32.mrb[0].mxu0
    %4071 = vmatprep.mubr.f32.mxu0 0.0
    %4072 = vmatmul.mubr.f32.gmra.mrb[0].mxu0 %v3698
    %v4073 = vpop.f32.mrb[0].mxu0
    %v4074 = vadd.f32 0.0, %v4073
    %v4075 = vpop.f32.mrb[0].mxu0
    %4076 = vmatprep.mubr.f32.mxu0 0.0
    %4077 = vmatmul.mubr.f32.gmra.mrb[0].mxu0 %v3701
    %v4078 = vpop.f32.mrb[0].mxu0
    %v4079 = vadd.f32 0.0, %v4078
    %v4080 = vpop.f32.mrb[0].mxu0
    %4081 = vmatprep.mubr.f32.mxu0 0.0
    %4082 = vmatmul.mubr.f32.gmra.mrb[0].mxu0 %v3704
    %v4083 = vpop.f32.mrb[0].mxu0
    %v4084 = vadd.f32 0.0, %v4083
    %v4085 = vpop.f32.mrb[0].mxu0
    %4086 = vmatprep.mubr.f32.mxu0 0.0
    %4087 = vmatmul.mubr.f32.gmra.mrb[0].mxu0 %v3707
    %v4088 = vpop.f32.mrb[0].mxu0
    %v4089 = vadd.f32 0.0, %v4088
    %v4090 = vpop.f32.mrb[0].mxu0
    %4091 = vmatprep.mubr.f32.mxu0 0.0
    %4092 = vmatmul.mubr.f32.gmra.mrb[0].mxu0 %v3710
    %v4093 = vpop.f32.mrb[0].mxu0
    %v4094 = vadd.f32 0.0, %v4093
    %v4095 = vpop.f32.mrb[0].mxu0
    %4096 = vmatprep.mubr.f32.mxu0 0.0
    %4097 = vmatmul.mubr.f32.gmra.mrb[0].mxu0 %v3713
    %v4098 = vpop.f32.mrb[0].mxu0
    %v4099 = vadd.f32 0.0, %v4098
    %v4100 = vpop.f32.mrb[0].mxu0
    %4101 = vmatprep.mubr.f32.mxu0 0.0
    %4102 = vmatmul.mubr.f32.gmra.mrb[0].mxu0 %v3716
    %v4103 = vpop.f32.mrb[0].mxu0
    %v4104 = vadd.f32 0.0, %v4103
    %v4105 = vpop.f32.mrb[0].mxu0
    %4106 = vdwg.mxu0
    %v4107 = vsel %vm29, %v3789, 0.0
    %v4108 = vsel %vm29, %v3794, 0.0
    %v4109 = vadd.f32 %v4107, %v4108
    %v4110 = vsel %vm29, %v3799, 0.0
    %v4111 = vadd.f32 %v4109, %v4110
    %v4112 = vsel %vm29, %v3804, 0.0
    %v4113 = vadd.f32 %v4111, %v4112
    %v4114 = vsel %vm29, %v3809, 0.0
    %v4115 = vadd.f32 %v4113, %v4114
    %v4116 = vsel %vm29, %v3814, 0.0
    %v4117 = vadd.f32 %v4115, %v4116
    %v4118 = vsel %vm29, %v3819, 0.0
    %v4119 = vadd.f32 %v4117, %v4118
    %v4120 = vsel %vm29, %v3824, 0.0
    %v4121 = vadd.f32 %v4119, %v4120
    %v4122 = vsel %vm29, %v3829, 0.0
    %v4123 = vadd.f32 %v4121, %v4122
    %v4124 = vsel %vm29, %v3834, 0.0
    %v4125 = vadd.f32 %v4123, %v4124
    %v4126 = vsel %vm29, %v3839, 0.0
    %v4127 = vadd.f32 %v4125, %v4126
    %v4128 = vsel %vm29, %v3844, 0.0
    %v4129 = vadd.f32 %v4127, %v4128
    %v4130 = vsel %vm29, %v3849, 0.0
    %v4131 = vadd.f32 %v4129, %v4130
    %v4132 = vsel %vm29, %v3854, 0.0
    %v4133 = vadd.f32 %v4131, %v4132
    %v4134 = vsel %vm29, %v3859, 0.0
    %v4135 = vadd.f32 %v4133, %v4134
    %v4136 = vsel %vm29, %v3864, 0.0
    %v4137 = vadd.f32 %v4135, %v4136
    %v4138 = vsel %vm29, %v3869, 0.0
    %v4139 = vadd.f32 %v4137, %v4138
    %v4140 = vsel %vm29, %v3874, 0.0
    %v4141 = vadd.f32 %v4139, %v4140
    %v4142 = vsel %vm29, %v3879, 0.0
    %v4143 = vadd.f32 %v4141, %v4142
    %v4144 = vsel %vm29, %v3884, 0.0
    %v4145 = vadd.f32 %v4143, %v4144
    %v4146 = vsel %vm29, %v3889, 0.0
    %v4147 = vadd.f32 %v4145, %v4146
    %v4148 = vsel %vm29, %v3894, 0.0
    %v4149 = vadd.f32 %v4147, %v4148
    %v4150 = vsel %vm29, %v3899, 0.0
    %v4151 = vadd.f32 %v4149, %v4150
    %v4152 = vsel %vm29, %v3904, 0.0
    %v4153 = vadd.f32 %v4151, %v4152
    %v4154 = vsel %vm29, %v3909, 0.0
    %v4155 = vadd.f32 %v4153, %v4154
    %v4156 = vsel %vm29, %v3914, 0.0
    %v4157 = vadd.f32 %v4155, %v4156
    %v4158 = vsel %vm29, %v3919, 0.0
    %v4159 = vadd.f32 %v4157, %v4158
    %v4160 = vsel %vm29, %v3924, 0.0
    %v4161 = vadd.f32 %v4159, %v4160
    %v4162 = vsel %vm29, %v3929, 0.0
    %v4163 = vadd.f32 %v4161, %v4162
    %v4164 = vsel %vm29, %v3934, 0.0
    %v4165 = vadd.f32 %v4163, %v4164
    %v4166 = vsel %vm29, %v3939, 0.0
    %v4167 = vadd.f32 %v4165, %v4166
    %v4168 = vsel %vm29, %v3944, 0.0
    %v4169 = vadd.f32 %v4167, %v4168
    %v4170 = vsel %vm29, %v3949, 0.0
    %v4171 = vadd.f32 %v4169, %v4170
    %v4172 = vsel %vm29, %v3954, 0.0
    %v4173 = vadd.f32 %v4171, %v4172
    %v4174 = vsel %vm29, %v3959, 0.0
    %v4175 = vadd.f32 %v4173, %v4174
    %v4176 = vsel %vm29, %v3964, 0.0
    %v4177 = vadd.f32 %v4175, %v4176
    %v4178 = vsel %vm29, %v3969, 0.0
    %v4179 = vadd.f32 %v4177, %v4178
    %v4180 = vsel %vm29, %v3974, 0.0
    %v4181 = vadd.f32 %v4179, %v4180
    %v4182 = vsel %vm29, %v3979, 0.0
    %v4183 = vadd.f32 %v4181, %v4182
    %v4184 = vsel %vm29, %v3984, 0.0
    %v4185 = vadd.f32 %v4183, %v4184
    %v4186 = vsel %vm29, %v3989, 0.0
    %v4187 = vadd.f32 %v4185, %v4186
    %v4188 = vsel %vm29, %v3994, 0.0
    %v4189 = vadd.f32 %v4187, %v4188
    %v4190 = vsel %vm29, %v3999, 0.0
    %v4191 = vadd.f32 %v4189, %v4190
    %v4192 = vsel %vm29, %v4004, 0.0
    %v4193 = vadd.f32 %v4191, %v4192
    %v4194 = vsel %vm29, %v4009, 0.0
    %v4195 = vadd.f32 %v4193, %v4194
    %v4196 = vsel %vm29, %v4014, 0.0
    %v4197 = vadd.f32 %v4195, %v4196
    %v4198 = vsel %vm29, %v4019, 0.0
    %v4199 = vadd.f32 %v4197, %v4198
    %v4200 = vsel %vm29, %v4024, 0.0
    %v4201 = vadd.f32 %v4199, %v4200
    %v4202 = vsel %vm29, %v4029, 0.0
    %v4203 = vadd.f32 %v4201, %v4202
    %v4204 = vsel %vm29, %v4034, 0.0
    %v4205 = vadd.f32 %v4203, %v4204
    %v4206 = vsel %vm29, %v4039, 0.0
    %v4207 = vadd.f32 %v4205, %v4206
    %v4208 = vsel %vm29, %v4044, 0.0
    %v4209 = vadd.f32 %v4207, %v4208
    %v4210 = vsel %vm29, %v4049, 0.0
    %v4211 = vadd.f32 %v4209, %v4210
    %v4212 = vsel %vm29, %v4054, 0.0
    %v4213 = vadd.f32 %v4211, %v4212
    %v4214 = vsel %vm29, %v4059, 0.0
    %v4215 = vadd.f32 %v4213, %v4214
    %v4216 = vsel %vm29, %v4064, 0.0
    %v4217 = vadd.f32 %v4215, %v4216
    %v4218 = vsel %vm29, %v4069, 0.0
    %v4219 = vadd.f32 %v4217, %v4218
    %v4220 = vsel %vm29, %v4074, 0.0
    %v4221 = vadd.f32 %v4219, %v4220
    %v4222 = vsel %vm29, %v4079, 0.0
    %v4223 = vadd.f32 %v4221, %v4222
    %v4224 = vsel %vm29, %v4084, 0.0
    %v4225 = vadd.f32 %v4223, %v4224
    %v4226 = vsel %vm29, %v4089, 0.0
    %v4227 = vadd.f32 %v4225, %v4226
    %v4228 = vsel %vm29, %v4094, 0.0
    %v4229 = vadd.f32 %v4227, %v4228
    %v4230 = vsel %vm29, %v4099, 0.0
    %v4231 = vadd.f32 %v4229, %v4230
    %v4232 = vsel %vm29, %v4104, 0.0
    %v4233 = vadd.f32 %v4231, %v4232
    %v4234 = vrot.slane %v4233, 4
    %v4235 = vadd.f32 %v4233, %v4234
    %v4236 = vrot.slane %v4235, 2
    %v4237 = vadd.f32 %v4235, %v4236
    %v4238 = vrot.slane %v4237, 1
    %v4239 = vadd.f32 %v4237, %v4238
    %v4240 = vmul.f32 %v3789, %v3789
    %v4241 = vmul.f32 %v3794, %v3794
    %v4242 = vmul.f32 %v3799, %v3799
    %v4243 = vmul.f32 %v3804, %v3804
    %v4244 = vmul.f32 %v3809, %v3809
    %v4245 = vmul.f32 %v3814, %v3814
    %v4246 = vmul.f32 %v3819, %v3819
    %v4247 = vmul.f32 %v3824, %v3824
    %v4248 = vmul.f32 %v3829, %v3829
    %v4249 = vmul.f32 %v3834, %v3834
    %v4250 = vmul.f32 %v3839, %v3839
    %v4251 = vmul.f32 %v3844, %v3844
    %v4252 = vmul.f32 %v3849, %v3849
    %v4253 = vmul.f32 %v3854, %v3854
    %v4254 = vmul.f32 %v3859, %v3859
    %v4255 = vmul.f32 %v3864, %v3864
    %v4256 = vmul.f32 %v3869, %v3869
    %v4257 = vmul.f32 %v3874, %v3874
    %v4258 = vmul.f32 %v3879, %v3879
    %v4259 = vmul.f32 %v3884, %v3884
    %v4260 = vmul.f32 %v3889, %v3889
    %v4261 = vmul.f32 %v3894, %v3894
    %v4262 = vmul.f32 %v3899, %v3899
    %v4263 = vmul.f32 %v3904, %v3904
    %v4264 = vmul.f32 %v3909, %v3909
    %v4265 = vmul.f32 %v3914, %v3914
    %v4266 = vmul.f32 %v3919, %v3919
    %v4267 = vmul.f32 %v3924, %v3924
    %v4268 = vmul.f32 %v3929, %v3929
    %v4269 = vmul.f32 %v3934, %v3934
    %v4270 = vmul.f32 %v3939, %v3939
    %v4271 = vmul.f32 %v3944, %v3944
    %v4272 = vmul.f32 %v3949, %v3949
    %v4273 = vmul.f32 %v3954, %v3954
    %v4274 = vmul.f32 %v3959, %v3959
    %v4275 = vmul.f32 %v3964, %v3964
    %v4276 = vmul.f32 %v3969, %v3969
    %v4277 = vmul.f32 %v3974, %v3974
    %v4278 = vmul.f32 %v3979, %v3979
    %v4279 = vmul.f32 %v3984, %v3984
    %v4280 = vmul.f32 %v3989, %v3989
    %v4281 = vmul.f32 %v3994, %v3994
    %v4282 = vmul.f32 %v3999, %v3999
    %v4283 = vmul.f32 %v4004, %v4004
    %v4284 = vmul.f32 %v4009, %v4009
    %v4285 = vmul.f32 %v4014, %v4014
    %v4286 = vmul.f32 %v4019, %v4019
    %v4287 = vmul.f32 %v4024, %v4024
    %v4288 = vmul.f32 %v4029, %v4029
    %v4289 = vmul.f32 %v4034, %v4034
    %v4290 = vmul.f32 %v4039, %v4039
    %v4291 = vmul.f32 %v4044, %v4044
    %v4292 = vmul.f32 %v4049, %v4049
    %v4293 = vmul.f32 %v4054, %v4054
    %v4294 = vmul.f32 %v4059, %v4059
    %v4295 = vmul.f32 %v4064, %v4064
    %v4296 = vmul.f32 %v4069, %v4069
    %v4297 = vmul.f32 %v4074, %v4074
    %v4298 = vmul.f32 %v4079, %v4079
    %v4299 = vmul.f32 %v4084, %v4084
    %v4300 = vmul.f32 %v4089, %v4089
    %v4301 = vmul.f32 %v4094, %v4094
    %v4302 = vmul.f32 %v4099, %v4099
    %v4303 = vmul.f32 %v4104, %v4104
    %v4304 = vsel %vm29, %v4240, 0.0
    %v4305 = vsel %vm29, %v4241, 0.0
    %v4306 = vadd.f32 %v4304, %v4305
    %v4307 = vsel %vm29, %v4242, 0.0
    %v4308 = vadd.f32 %v4306, %v4307
    %v4309 = vsel %vm29, %v4243, 0.0
    %v4310 = vadd.f32 %v4308, %v4309
    %v4311 = vsel %vm29, %v4244, 0.0
    %v4312 = vadd.f32 %v4310, %v4311
    %v4313 = vsel %vm29, %v4245, 0.0
    %v4314 = vadd.f32 %v4312, %v4313
    %v4315 = vsel %vm29, %v4246, 0.0
    %v4316 = vadd.f32 %v4314, %v4315
    %v4317 = vsel %vm29, %v4247, 0.0
    %v4318 = vadd.f32 %v4316, %v4317
    %v4319 = vsel %vm29, %v4248, 0.0
    %v4320 = vadd.f32 %v4318, %v4319
    %v4321 = vsel %vm29, %v4249, 0.0
    %v4322 = vadd.f32 %v4320, %v4321
    %v4323 = vsel %vm29, %v4250, 0.0
    %v4324 = vadd.f32 %v4322, %v4323
    %v4325 = vsel %vm29, %v4251, 0.0
    %v4326 = vadd.f32 %v4324, %v4325
    %v4327 = vsel %vm29, %v4252, 0.0
    %v4328 = vadd.f32 %v4326, %v4327
    %v4329 = vsel %vm29, %v4253, 0.0
    %v4330 = vadd.f32 %v4328, %v4329
    %v4331 = vsel %vm29, %v4254, 0.0
    %v4332 = vadd.f32 %v4330, %v4331
    %v4333 = vsel %vm29, %v4255, 0.0
    %v4334 = vadd.f32 %v4332, %v4333
    %v4335 = vsel %vm29, %v4256, 0.0
    %v4336 = vadd.f32 %v4334, %v4335
    %v4337 = vsel %vm29, %v4257, 0.0
    %v4338 = vadd.f32 %v4336, %v4337
    %v4339 = vsel %vm29, %v4258, 0.0
    %v4340 = vadd.f32 %v4338, %v4339
    %v4341 = vsel %vm29, %v4259, 0.0
    %v4342 = vadd.f32 %v4340, %v4341
    %v4343 = vsel %vm29, %v4260, 0.0
    %v4344 = vadd.f32 %v4342, %v4343
    %v4345 = vsel %vm29, %v4261, 0.0
    %v4346 = vadd.f32 %v4344, %v4345
    %v4347 = vsel %vm29, %v4262, 0.0
    %v4348 = vadd.f32 %v4346, %v4347
    %v4349 = vsel %vm29, %v4263, 0.0
    %v4350 = vadd.f32 %v4348, %v4349
    %v4351 = vsel %vm29, %v4264, 0.0
    %v4352 = vadd.f32 %v4350, %v4351
    %v4353 = vsel %vm29, %v4265, 0.0
    %v4354 = vadd.f32 %v4352, %v4353
    %v4355 = vsel %vm29, %v4266, 0.0
    %v4356 = vadd.f32 %v4354, %v4355
    %v4357 = vsel %vm29, %v4267, 0.0
    %v4358 = vadd.f32 %v4356, %v4357
    %v4359 = vsel %vm29, %v4268, 0.0
    %v4360 = vadd.f32 %v4358, %v4359
    %v4361 = vsel %vm29, %v4269, 0.0
    %v4362 = vadd.f32 %v4360, %v4361
    %v4363 = vsel %vm29, %v4270, 0.0
    %v4364 = vadd.f32 %v4362, %v4363
    %v4365 = vsel %vm29, %v4271, 0.0
    %v4366 = vadd.f32 %v4364, %v4365
    %v4367 = vsel %vm29, %v4272, 0.0
    %v4368 = vadd.f32 %v4366, %v4367
    %v4369 = vsel %vm29, %v4273, 0.0
    %v4370 = vadd.f32 %v4368, %v4369
    %v4371 = vsel %vm29, %v4274, 0.0
    %v4372 = vadd.f32 %v4370, %v4371
    %v4373 = vsel %vm29, %v4275, 0.0
    %v4374 = vadd.f32 %v4372, %v4373
    %v4375 = vsel %vm29, %v4276, 0.0
    %v4376 = vadd.f32 %v4374, %v4375
    %v4377 = vsel %vm29, %v4277, 0.0
    %v4378 = vadd.f32 %v4376, %v4377
    %v4379 = vsel %vm29, %v4278, 0.0
    %v4380 = vadd.f32 %v4378, %v4379
    %v4381 = vsel %vm29, %v4279, 0.0
    %v4382 = vadd.f32 %v4380, %v4381
    %v4383 = vsel %vm29, %v4280, 0.0
    %v4384 = vadd.f32 %v4382, %v4383
    %v4385 = vsel %vm29, %v4281, 0.0
    %v4386 = vadd.f32 %v4384, %v4385
    %v4387 = vsel %vm29, %v4282, 0.0
    %v4388 = vadd.f32 %v4386, %v4387
    %v4389 = vsel %vm29, %v4283, 0.0
    %v4390 = vadd.f32 %v4388, %v4389
    %v4391 = vsel %vm29, %v4284, 0.0
    %v4392 = vadd.f32 %v4390, %v4391
    %v4393 = vsel %vm29, %v4285, 0.0
    %v4394 = vadd.f32 %v4392, %v4393
    %v4395 = vsel %vm29, %v4286, 0.0
    %v4396 = vadd.f32 %v4394, %v4395
    %v4397 = vsel %vm29, %v4287, 0.0
    %v4398 = vadd.f32 %v4396, %v4397
    %v4399 = vsel %vm29, %v4288, 0.0
    %v4400 = vadd.f32 %v4398, %v4399
    %v4401 = vsel %vm29, %v4289, 0.0
    %v4402 = vadd.f32 %v4400, %v4401
    %v4403 = vsel %vm29, %v4290, 0.0
    %v4404 = vadd.f32 %v4402, %v4403
    %v4405 = vsel %vm29, %v4291, 0.0
    %v4406 = vadd.f32 %v4404, %v4405
    %v4407 = vsel %vm29, %v4292, 0.0
    %v4408 = vadd.f32 %v4406, %v4407
    %v4409 = vsel %vm29, %v4293, 0.0
    %v4410 = vadd.f32 %v4408, %v4409
    %v4411 = vsel %vm29, %v4294, 0.0
    %v4412 = vadd.f32 %v4410, %v4411
    %v4413 = vsel %vm29, %v4295, 0.0
    %v4414 = vadd.f32 %v4412, %v4413
    %v4415 = vsel %vm29, %v4296, 0.0
    %v4416 = vadd.f32 %v4414, %v4415
    %v4417 = vsel %vm29, %v4297, 0.0
    %v4418 = vadd.f32 %v4416, %v4417
    %v4419 = vsel %vm29, %v4298, 0.0
    %v4420 = vadd.f32 %v4418, %v4419
    %v4421 = vsel %vm29, %v4299, 0.0
    %v4422 = vadd.f32 %v4420, %v4421
    %v4423 = vsel %vm29, %v4300, 0.0
    %v4424 = vadd.f32 %v4422, %v4423
    %v4425 = vsel %vm29, %v4301, 0.0
    %v4426 = vadd.f32 %v4424, %v4425
    %v4427 = vsel %vm29, %v4302, 0.0
    %v4428 = vadd.f32 %v4426, %v4427
    %v4429 = vsel %vm29, %v4303, 0.0
    %v4430 = vadd.f32 %v4428, %v4429
    %v4431 = vrot.slane %v4430, 4
    %v4432 = vadd.f32 %v4430, %v4431
    %v4433 = vrot.slane %v4432, 2
    %v4434 = vadd.f32 %v4432, %v4433
    %v4435 = vrot.slane %v4434, 1
    %v4436 = vadd.f32 %v4434, %v4435
    %v4437 = vmul.f32 %v4239, 0.001953125
    %v4438 = vmul.f32 %v4436, 0.001953125
    %v4439 = vmul.f32 %v4437, %v4437
    %v4440 = vsub.f32 %v4438, %v4439
    %v4441 = vld [vmem:[%s2] sm:$0x1]
    %v4442 = vadd.f32 %v4440, 1e-05
    %v4443 = vrsqrt.pop %v4442
    %v4444 = vmul.f32 %v4441, %v4443
    %v4445 = vld [vmem:[%s3] sm:$0x1]
    %v4446 = vmul.f32 %v4437, %v4444
    %v4447 = vsub.f32 %v4445, %v4446
    %v4449 = vlaneseq
    %v4450 = vshrl.u32 %v4449, 7
    %v4451 = vsub.s32 0, %v4450
    %v4452 = vrot.slane %v4444, %v4451
    %v4454 = vmul.f32 %v3789, %v4452
    %v4455 = vmul.f32 %v3794, %v4452
    %v4456 = vmul.f32 %v3799, %v4452
    %v4457 = vmul.f32 %v3804, %v4452
    %v4458 = vmul.f32 %v3809, %v4452
    %v4459 = vmul.f32 %v3814, %v4452
    %v4460 = vmul.f32 %v3819, %v4452
    %v4461 = vmul.f32 %v3824, %v4452
    %v4462 = vmul.f32 %v3829, %v4452
    %v4463 = vmul.f32 %v3834, %v4452
    %v4464 = vmul.f32 %v3839, %v4452
    %v4465 = vmul.f32 %v3844, %v4452
    %v4466 = vmul.f32 %v3849, %v4452
    %v4467 = vmul.f32 %v3854, %v4452
    %v4468 = vmul.f32 %v3859, %v4452
    %v4469 = vmul.f32 %v3864, %v4452
    %v4470 = vmul.f32 %v3869, %v4452
    %v4471 = vmul.f32 %v3874, %v4452
    %v4472 = vmul.f32 %v3879, %v4452
    %v4473 = vmul.f32 %v3884, %v4452
    %v4474 = vmul.f32 %v3889, %v4452
    %v4475 = vmul.f32 %v3894, %v4452
    %v4476 = vmul.f32 %v3899, %v4452
    %v4477 = vmul.f32 %v3904, %v4452
    %v4478 = vmul.f32 %v3909, %v4452
    %v4479 = vmul.f32 %v3914, %v4452
    %v4480 = vmul.f32 %v3919, %v4452
    %v4481 = vmul.f32 %v3924, %v4452
    %v4482 = vmul.f32 %v3929, %v4452
    %v4483 = vmul.f32 %v3934, %v4452
    %v4484 = vmul.f32 %v3939, %v4452
    %v4485 = vmul.f32 %v3944, %v4452
    %v4486 = vmul.f32 %v3949, %v4452
    %v4487 = vmul.f32 %v3954, %v4452
    %v4488 = vmul.f32 %v3959, %v4452
    %v4489 = vmul.f32 %v3964, %v4452
    %v4490 = vmul.f32 %v3969, %v4452
    %v4491 = vmul.f32 %v3974, %v4452
    %v4492 = vmul.f32 %v3979, %v4452
    %v4493 = vmul.f32 %v3984, %v4452
    %v4494 = vmul.f32 %v3989, %v4452
    %v4495 = vmul.f32 %v3994, %v4452
    %v4496 = vmul.f32 %v3999, %v4452
    %v4497 = vmul.f32 %v4004, %v4452
    %v4498 = vmul.f32 %v4009, %v4452
    %v4499 = vmul.f32 %v4014, %v4452
    %v4500 = vmul.f32 %v4019, %v4452
    %v4501 = vmul.f32 %v4024, %v4452
    %v4502 = vmul.f32 %v4029, %v4452
    %v4503 = vmul.f32 %v4034, %v4452
    %v4504 = vmul.f32 %v4039, %v4452
    %v4505 = vmul.f32 %v4044, %v4452
    %v4506 = vmul.f32 %v4049, %v4452
    %v4507 = vmul.f32 %v4054, %v4452
    %v4508 = vmul.f32 %v4059, %v4452
    %v4509 = vmul.f32 %v4064, %v4452
    %v4510 = vmul.f32 %v4069, %v4452
    %v4511 = vmul.f32 %v4074, %v4452
    %v4512 = vmul.f32 %v4079, %v4452
    %v4513 = vmul.f32 %v4084, %v4452
    %v4514 = vmul.f32 %v4089, %v4452
    %v4515 = vmul.f32 %v4094, %v4452
    %v4516 = vmul.f32 %v4099, %v4452
    %v4517 = vmul.f32 %v4104, %v4452
    %v4519 = vlaneseq
    %v4520 = vshrl.u32 %v4519, 7
    %v4521 = vsub.s32 0, %v4520
    %v4522 = vrot.slane %v4447, %v4521
    %v4524 = vadd.f32 %v4454, %v4522
    %v4525 = vadd.f32 %v4455, %v4522
    %v4526 = vadd.f32 %v4456, %v4522
    %v4527 = vadd.f32 %v4457, %v4522
    %v4528 = vadd.f32 %v4458, %v4522
    %v4529 = vadd.f32 %v4459, %v4522
    %v4530 = vadd.f32 %v4460, %v4522
    %v4531 = vadd.f32 %v4461, %v4522
    %v4532 = vadd.f32 %v4462, %v4522
    %v4533 = vadd.f32 %v4463, %v4522
    %v4534 = vadd.f32 %v4464, %v4522
    %v4535 = vadd.f32 %v4465, %v4522
    %v4536 = vadd.f32 %v4466, %v4522
    %v4537 = vadd.f32 %v4467, %v4522
    %v4538 = vadd.f32 %v4468, %v4522
    %v4539 = vadd.f32 %v4469, %v4522
    %v4540 = vadd.f32 %v4470, %v4522
    %v4541 = vadd.f32 %v4471, %v4522
    %v4542 = vadd.f32 %v4472, %v4522
    %v4543 = vadd.f32 %v4473, %v4522
    %v4544 = vadd.f32 %v4474, %v4522
    %v4545 = vadd.f32 %v4475, %v4522
    %v4546 = vadd.f32 %v4476, %v4522
    %v4547 = vadd.f32 %v4477, %v4522
    %v4548 = vadd.f32 %v4478, %v4522
    %v4549 = vadd.f32 %v4479, %v4522
    %v4550 = vadd.f32 %v4480, %v4522
    %v4551 = vadd.f32 %v4481, %v4522
    %v4552 = vadd.f32 %v4482, %v4522
    %v4553 = vadd.f32 %v4483, %v4522
    %v4554 = vadd.f32 %v4484, %v4522
    %v4555 = vadd.f32 %v4485, %v4522
    %v4556 = vadd.f32 %v4486, %v4522
    %v4557 = vadd.f32 %v4487, %v4522
    %v4558 = vadd.f32 %v4488, %v4522
    %v4559 = vadd.f32 %v4489, %v4522
    %v4560 = vadd.f32 %v4490, %v4522
    %v4561 = vadd.f32 %v4491, %v4522
    %v4562 = vadd.f32 %v4492, %v4522
    %v4563 = vadd.f32 %v4493, %v4522
    %v4564 = vadd.f32 %v4494, %v4522
    %v4565 = vadd.f32 %v4495, %v4522
    %v4566 = vadd.f32 %v4496, %v4522
    %v4567 = vadd.f32 %v4497, %v4522
    %v4568 = vadd.f32 %v4498, %v4522
    %v4569 = vadd.f32 %v4499, %v4522
    %v4570 = vadd.f32 %v4500, %v4522
    %v4571 = vadd.f32 %v4501, %v4522
    %v4572 = vadd.f32 %v4502, %v4522
    %v4573 = vadd.f32 %v4503, %v4522
    %v4574 = vadd.f32 %v4504, %v4522
    %v4575 = vadd.f32 %v4505, %v4522
    %v4576 = vadd.f32 %v4506, %v4522
    %v4577 = vadd.f32 %v4507, %v4522
    %v4578 = vadd.f32 %v4508, %v4522
    %v4579 = vadd.f32 %v4509, %v4522
    %v4580 = vadd.f32 %v4510, %v4522
    %v4581 = vadd.f32 %v4511, %v4522
    %v4582 = vadd.f32 %v4512, %v4522
    %v4583 = vadd.f32 %v4513, %v4522
    %v4584 = vadd.f32 %v4514, %v4522
    %v4585 = vadd.f32 %v4515, %v4522
    %v4586 = vadd.f32 %v4516, %v4522
    %v4587 = vadd.f32 %v4517, %v4522
    %v4588 = vmax.f32 %v4524, 0.0
    %v4589 = vmax.f32 %v4525, 0.0
    %v4590 = vmax.f32 %v4526, 0.0
    %v4591 = vmax.f32 %v4527, 0.0
    %v4592 = vmax.f32 %v4528, 0.0
    %v4593 = vmax.f32 %v4529, 0.0
    %v4594 = vmax.f32 %v4530, 0.0
    %v4595 = vmax.f32 %v4531, 0.0
    %v4596 = vmax.f32 %v4532, 0.0
    %v4597 = vmax.f32 %v4533, 0.0
    %v4598 = vmax.f32 %v4534, 0.0
    %v4599 = vmax.f32 %v4535, 0.0
    %v4600 = vmax.f32 %v4536, 0.0
    %v4601 = vmax.f32 %v4537, 0.0
    %v4602 = vmax.f32 %v4538, 0.0
    %v4603 = vmax.f32 %v4539, 0.0
    %v4604 = vmax.f32 %v4540, 0.0
    %v4605 = vmax.f32 %v4541, 0.0
    %v4606 = vmax.f32 %v4542, 0.0
    %v4607 = vmax.f32 %v4543, 0.0
    %v4608 = vmax.f32 %v4544, 0.0
    %v4609 = vmax.f32 %v4545, 0.0
    %v4610 = vmax.f32 %v4546, 0.0
    %v4611 = vmax.f32 %v4547, 0.0
    %v4612 = vmax.f32 %v4548, 0.0
    %v4613 = vmax.f32 %v4549, 0.0
    %v4614 = vmax.f32 %v4550, 0.0
    %v4615 = vmax.f32 %v4551, 0.0
    %v4616 = vmax.f32 %v4552, 0.0
    %v4617 = vmax.f32 %v4553, 0.0
    %v4618 = vmax.f32 %v4554, 0.0
    %v4619 = vmax.f32 %v4555, 0.0
    %v4620 = vmax.f32 %v4556, 0.0
    %v4621 = vmax.f32 %v4557, 0.0
    %v4622 = vmax.f32 %v4558, 0.0
    %v4623 = vmax.f32 %v4559, 0.0
    %v4624 = vmax.f32 %v4560, 0.0
    %v4625 = vmax.f32 %v4561, 0.0
    %v4626 = vmax.f32 %v4562, 0.0
    %v4627 = vmax.f32 %v4563, 0.0
    %v4628 = vmax.f32 %v4564, 0.0
    %v4629 = vmax.f32 %v4565, 0.0
    %v4630 = vmax.f32 %v4566, 0.0
    %v4631 = vmax.f32 %v4567, 0.0
    %v4632 = vmax.f32 %v4568, 0.0
    %v4633 = vmax.f32 %v4569, 0.0
    %v4634 = vmax.f32 %v4570, 0.0
    %v4635 = vmax.f32 %v4571, 0.0
    %v4636 = vmax.f32 %v4572, 0.0
    %v4637 = vmax.f32 %v4573, 0.0
    %v4638 = vmax.f32 %v4574, 0.0
    %v4639 = vmax.f32 %v4575, 0.0
    %v4640 = vmax.f32 %v4576, 0.0
    %v4641 = vmax.f32 %v4577, 0.0
    %v4642 = vmax.f32 %v4578, 0.0
    %v4643 = vmax.f32 %v4579, 0.0
    %v4644 = vmax.f32 %v4580, 0.0
    %v4645 = vmax.f32 %v4581, 0.0
    %v4646 = vmax.f32 %v4582, 0.0
    %v4647 = vmax.f32 %v4583, 0.0
    %v4648 = vmax.f32 %v4584, 0.0
    %v4649 = vmax.f32 %v4585, 0.0
    %v4650 = vmax.f32 %v4586, 0.0
    %v4651 = vmax.f32 %v4587, 0.0
    %4652 = vst.msk [vmem:[%s181 + $0x1] sm:$0xff] %vm29, %v4588
    %4653 = vst.msk [vmem:[%s181 + $0x9] sm:$0xff] %vm29, %v4589
    %4654 = vst.msk [vmem:[%s181 + $0x19] sm:$0xff] %vm29, %v4590
    %4655 = vst.msk [vmem:[%s181 + $0x21] sm:$0xff] %vm29, %v4591
    %4656 = vst.msk [vmem:[%s181 + $0x31] sm:$0xff] %vm29, %v4592
    %4657 = vst.msk [vmem:[%s181 + $0x39] sm:$0xff] %vm29, %v4593
    %4658 = vst.msk [vmem:[%s181 + $0x49] sm:$0xff] %vm29, %v4594
    %4659 = vst.msk [vmem:[%s181 + $0x51] sm:$0xff] %vm29, %v4595
    %4660 = vst.msk [vmem:[%s181 + $0x61] sm:$0xff] %vm29, %v4596
    %4661 = vst.msk [vmem:[%s181 + $0x69] sm:$0xff] %vm29, %v4597
    %4662 = vst.msk [vmem:[%s181 + $0x79] sm:$0xff] %vm29, %v4598
    %4663 = vst.msk [vmem:[%s181 + $0x81] sm:$0xff] %vm29, %v4599
    %4664 = vst.msk [vmem:[%s181 + $0x91] sm:$0xff] %vm29, %v4600
    %4665 = vst.msk [vmem:[%s181 + $0x99] sm:$0xff] %vm29, %v4601
    %4666 = vst.msk [vmem:[%s181 + $0xa9] sm:$0xff] %vm29, %v4602
    %4667 = vst.msk [vmem:[%s181 + $0xb1] sm:$0xff] %vm29, %v4603
    %4668 = vst.msk [vmem:[%s181 + $0xc1] sm:$0xff] %vm29, %v4604
    %4669 = vst.msk [vmem:[%s181 + $0xc9] sm:$0xff] %vm29, %v4605
    %4670 = vst.msk [vmem:[%s181 + $0xd9] sm:$0xff] %vm29, %v4606
    %4671 = vst.msk [vmem:[%s181 + $0xe1] sm:$0xff] %vm29, %v4607
    %4672 = vst.msk [vmem:[%s181 + $0xf1] sm:$0xff] %vm29, %v4608
    %4673 = vst.msk [vmem:[%s181 + $0xf9] sm:$0xff] %vm29, %v4609
    %4674 = vst.msk [vmem:[%s181 + $0x109] sm:$0xff] %vm29, %v4610
    %4675 = vst.msk [vmem:[%s181 + $0x111] sm:$0xff] %vm29, %v4611
    %4676 = vst.msk [vmem:[%s181 + $0x121] sm:$0xff] %vm29, %v4612
    %4677 = vst.msk [vmem:[%s181 + $0x129] sm:$0xff] %vm29, %v4613
    %4678 = vst.msk [vmem:[%s181 + $0x139] sm:$0xff] %vm29, %v4614
    %4679 = vst.msk [vmem:[%s181 + $0x141] sm:$0xff] %vm29, %v4615
    %4680 = vst.msk [vmem:[%s181 + $0x151] sm:$0xff] %vm29, %v4616
    %4681 = vst.msk [vmem:[%s181 + $0x159] sm:$0xff] %vm29, %v4617
    %4682 = vst.msk [vmem:[%s181 + $0x169] sm:$0xff] %vm29, %v4618
    %4683 = vst.msk [vmem:[%s181 + $0x171] sm:$0xff] %vm29, %v4619
    %4684 = vst.msk [vmem:[%s181 + $0x1b1] sm:$0xff] %vm29, %v4620
    %4685 = vst.msk [vmem:[%s181 + $0x1b9] sm:$0xff] %vm29, %v4621
    %4686 = vst.msk [vmem:[%s181 + $0x1c9] sm:$0xff] %vm29, %v4622
    %4687 = vst.msk [vmem:[%s181 + $0x1d1] sm:$0xff] %vm29, %v4623
    %4688 = vst.msk [vmem:[%s181 + $0x1e1] sm:$0xff] %vm29, %v4624
    %4689 = vst.msk [vmem:[%s181 + $0x1e9] sm:$0xff] %vm29, %v4625
    %4690 = vst.msk [vmem:[%s181 + $0x1f9] sm:$0xff] %vm29, %v4626
    %4691 = vst.msk [vmem:[%s181 + $0x201] sm:$0xff] %vm29, %v4627
    %4692 = vst.msk [vmem:[%s181 + $0x211] sm:$0xff] %vm29, %v4628
    %4693 = vst.msk [vmem:[%s181 + $0x219] sm:$0xff] %vm29, %v4629
    %4694 = vst.msk [vmem:[%s181 + $0x229] sm:$0xff] %vm29, %v4630
    %4695 = vst.msk [vmem:[%s181 + $0x231] sm:$0xff] %vm29, %v4631
    %4696 = vst.msk [vmem:[%s181 + $0x241] sm:$0xff] %vm29, %v4632
    %4697 = vst.msk [vmem:[%s181 + $0x249] sm:$0xff] %vm29, %v4633
    %4698 = vst.msk [vmem:[%s181 + $0x259] sm:$0xff] %vm29, %v4634
    %4699 = vst.msk [vmem:[%s181 + $0x261] sm:$0xff] %vm29, %v4635
    %4700 = vst.msk [vmem:[%s181 + $0x271] sm:$0xff] %vm29, %v4636
    %4701 = vst.msk [vmem:[%s181 + $0x279] sm:$0xff] %vm29, %v4637
    %4702 = vst.msk [vmem:[%s181 + $0x289] sm:$0xff] %vm29, %v4638
    %4703 = vst.msk [vmem:[%s181 + $0x291] sm:$0xff] %vm29, %v4639
    %4704 = vst.msk [vmem:[%s181 + $0x2a1] sm:$0xff] %vm29, %v4640
    %4705 = vst.msk [vmem:[%s181 + $0x2a9] sm:$0xff] %vm29, %v4641
    %4706 = vst.msk [vmem:[%s181 + $0x2b9] sm:$0xff] %vm29, %v4642
    %4707 = vst.msk [vmem:[%s181 + $0x2c1] sm:$0xff] %vm29, %v4643
    %4708 = vst.msk [vmem:[%s181 + $0x2d1] sm:$0xff] %vm29, %v4644
    %4709 = vst.msk [vmem:[%s181 + $0x2d9] sm:$0xff] %vm29, %v4645
    %4710 = vst.msk [vmem:[%s181 + $0x2e9] sm:$0xff] %vm29, %v4646
    %4711 = vst.msk [vmem:[%s181 + $0x2f1] sm:$0xff] %vm29, %v4647
    %4712 = vst.msk [vmem:[%s181 + $0x301] sm:$0xff] %vm29, %v4648
    %4713 = vst.msk [vmem:[%s181 + $0x309] sm:$0xff] %vm29, %v4649
    %4714 = vst.msk [vmem:[%s181 + $0x319] sm:$0xff] %vm29, %v4650
    %4715 = vst.msk [vmem:[%s181 + $0x321] sm:$0xff] %vm29, %v4651
    %v4716 = vld [vmem:[#allocation2] sm:$0xff]
    %v4717 = vld [vmem:[#allocation2 + $0x8] sm:$0xff]
    %v4718 = vld [vmem:[#allocation2 + $0x18] sm:$0xff]
    %v4719 = vld [vmem:[#allocation2 + $0x20] sm:$0xff]
    %v4720 = vld [vmem:[#allocation2 + $0x30] sm:$0xff]
    %v4721 = vld [vmem:[#allocation2 + $0x38] sm:$0xff]
    %v4722 = vld [vmem:[#allocation2 + $0x48] sm:$0xff]
    %v4723 = vld [vmem:[#allocation2 + $0x50] sm:$0xff]
    %v4724 = vld [vmem:[#allocation2 + $0x60] sm:$0xff]
    %v4725 = vld [vmem:[#allocation2 + $0x68] sm:$0xff]
    %v4726 = vld [vmem:[#allocation2 + $0x78] sm:$0xff]
    %v4727 = vld [vmem:[#allocation2 + $0x80] sm:$0xff]
    %v4728 = vld [vmem:[#allocation2 + $0x90] sm:$0xff]
    %v4729 = vld [vmem:[#allocation2 + $0x98] sm:$0xff]
    %v4730 = vld [vmem:[#allocation2 + $0xa8] sm:$0xff]
    %v4731 = vld [vmem:[#allocation2 + $0xb0] sm:$0xff]
    %v4732 = vld [vmem:[#allocation2 + $0xc0] sm:$0xff]
    %v4733 = vld [vmem:[#allocation2 + $0xc8] sm:$0xff]
    %v4734 = vld [vmem:[#allocation2 + $0xd8] sm:$0xff]
    %v4735 = vld [vmem:[#allocation2 + $0xe0] sm:$0xff]
    %v4736 = vld [vmem:[#allocation2 + $0xf0] sm:$0xff]
    %v4737 = vld [vmem:[#allocation2 + $0xf8] sm:$0xff]
    %v4738 = vld [vmem:[#allocation2 + $0x108] sm:$0xff]
    %v4739 = vld [vmem:[#allocation2 + $0x110] sm:$0xff]
    %v4740 = vld [vmem:[#allocation2 + $0x120] sm:$0xff]
    %v4741 = vld [vmem:[#allocation2 + $0x128] sm:$0xff]
    %v4742 = vld [vmem:[#allocation2 + $0x138] sm:$0xff]
    %v4743 = vld [vmem:[#allocation2 + $0x140] sm:$0xff]
    %v4744 = vld [vmem:[#allocation2 + $0x150] sm:$0xff]
    %v4745 = vld [vmem:[#allocation2 + $0x158] sm:$0xff]
    %v4746 = vld [vmem:[#allocation2 + $0x168] sm:$0xff]
    %v4747 = vld [vmem:[#allocation2 + $0x170] sm:$0xff]
    %v4748 = vld [vmem:[#allocation2 + $0x1b0] sm:$0xff]
    %v4749 = vld [vmem:[#allocation2 + $0x1b8] sm:$0xff]
    %v4750 = vld [vmem:[#allocation2 + $0x1c8] sm:$0xff]
    %v4751 = vld [vmem:[#allocation2 + $0x1d0] sm:$0xff]
    %v4752 = vld [vmem:[#allocation2 + $0x1e0] sm:$0xff]
    %v4753 = vld [vmem:[#allocation2 + $0x1e8] sm:$0xff]
    %v4754 = vld [vmem:[#allocation2 + $0x1f8] sm:$0xff]
    %v4755 = vld [vmem:[#allocation2 + $0x200] sm:$0xff]
    %v4756 = vld [vmem:[#allocation2 + $0x210] sm:$0xff]
    %v4757 = vld [vmem:[#allocation2 + $0x218] sm:$0xff]
    %v4758 = vld [vmem:[#allocation2 + $0x228] sm:$0xff]
    %v4759 = vld [vmem:[#allocation2 + $0x230] sm:$0xff]
    %v4760 = vld [vmem:[#allocation2 + $0x240] sm:$0xff]
    %v4761 = vld [vmem:[#allocation2 + $0x248] sm:$0xff]
    %v4762 = vld [vmem:[#allocation2 + $0x258] sm:$0xff]
    %v4763 = vld [vmem:[#allocation2 + $0x260] sm:$0xff]
    %v4764 = vld [vmem:[#allocation2 + $0x270] sm:$0xff]
    %v4765 = vld [vmem:[#allocation2 + $0x278] sm:$0xff]
    %v4766 = vld [vmem:[#allocation2 + $0x288] sm:$0xff]
    %v4767 = vld [vmem:[#allocation2 + $0x290] sm:$0xff]
    %v4768 = vld [vmem:[#allocation2 + $0x2a0] sm:$0xff]
    %v4769 = vld [vmem:[#allocation2 + $0x2a8] sm:$0xff]
    %v4770 = vld [vmem:[#allocation2 + $0x2b8] sm:$0xff]
    %v4771 = vld [vmem:[#allocation2 + $0x2c0] sm:$0xff]
    %v4772 = vld [vmem:[#allocation2 + $0x2d0] sm:$0xff]
    %v4773 = vld [vmem:[#allocation2 + $0x2d8] sm:$0xff]
    %v4774 = vld [vmem:[#allocation2 + $0x2e8] sm:$0xff]
    %v4775 = vld [vmem:[#allocation2 + $0x2f0] sm:$0xff]
    %v4776 = vld [vmem:[#allocation2 + $0x300] sm:$0xff]
    %v4777 = vld [vmem:[#allocation2 + $0x308] sm:$0xff]
    %v4778 = vld [vmem:[#allocation2 + $0x318] sm:$0xff]
    %v4779 = vld [vmem:[#allocation2 + $0x320] sm:$0xff]
    %4780 = vst.msk [vmem:[#allocation3] sm:$0xff] %vm29, %v4716
    %4781 = vst.msk [vmem:[#allocation3 + $0x8] sm:$0xff] %vm29, %v4717
    %4782 = vst.msk [vmem:[#allocation3 + $0x10] sm:$0xff] %vm29, %v4718
    %4783 = vst.msk [vmem:[#allocation3 + $0x18] sm:$0xff] %vm29, %v4719
    %4784 = vst.msk [vmem:[#allocation3 + $0x20] sm:$0xff] %vm29, %v4720
    %4785 = vst.msk [vmem:[#allocation3 + $0x28] sm:$0xff] %vm29, %v4721
    %4786 = vst.msk [vmem:[#allocation3 + $0x30] sm:$0xff] %vm29, %v4722
    %4787 = vst.msk [vmem:[#allocation3 + $0x38] sm:$0xff] %vm29, %v4723
    %4788 = vst.msk [vmem:[#allocation3 + $0x40] sm:$0xff] %vm29, %v4724
    %4789 = vst.msk [vmem:[#allocation3 + $0x48] sm:$0xff] %vm29, %v4725
    %4790 = vst.msk [vmem:[#allocation3 + $0x50] sm:$0xff] %vm29, %v4726
    %4791 = vst.msk [vmem:[#allocation3 + $0x58] sm:$0xff] %vm29, %v4727
    %4792 = vst.msk [vmem:[#allocation3 + $0x60] sm:$0xff] %vm29, %v4728
    %4793 = vst.msk [vmem:[#allocation3 + $0x68] sm:$0xff] %vm29, %v4729
    %4794 = vst.msk [vmem:[#allocation3 + $0x70] sm:$0xff] %vm29, %v4730
    %4795 = vst.msk [vmem:[#allocation3 + $0x78] sm:$0xff] %vm29, %v4731
    %4796 = vst.msk [vmem:[#allocation3 + $0x80] sm:$0xff] %vm29, %v4732
    %4797 = vst.msk [vmem:[#allocation3 + $0x88] sm:$0xff] %vm29, %v4733
    %4798 = vst.msk [vmem:[#allocation3 + $0x90] sm:$0xff] %vm29, %v4734
    %4799 = vst.msk [vmem:[#allocation3 + $0x98] sm:$0xff] %vm29, %v4735
    %4800 = vst.msk [vmem:[#allocation3 + $0xa0] sm:$0xff] %vm29, %v4736
    %4801 = vst.msk [vmem:[#allocation3 + $0xa8] sm:$0xff] %vm29, %v4737
    %4802 = vst.msk [vmem:[#allocation3 + $0xb0] sm:$0xff] %vm29, %v4738
    %4803 = vst.msk [vmem:[#allocation3 + $0xb8] sm:$0xff] %vm29, %v4739
    %4804 = vst.msk [vmem:[#allocation3 + $0xc0] sm:$0xff] %vm29, %v4740
    %4805 = vst.msk [vmem:[#allocation3 + $0xc8] sm:$0xff] %vm29, %v4741
    %4806 = vst.msk [vmem:[#allocation3 + $0xd0] sm:$0xff] %vm29, %v4742
    %4807 = vst.msk [vmem:[#allocation3 + $0xd8] sm:$0xff] %vm29, %v4743
    %4808 = vst.msk [vmem:[#allocation3 + $0xe0] sm:$0xff] %vm29, %v4744
    %4809 = vst.msk [vmem:[#allocation3 + $0xe8] sm:$0xff] %vm29, %v4745
    %4810 = vst.msk [vmem:[#allocation3 + $0xf0] sm:$0xff] %vm29, %v4746
    %4811 = vst.msk [vmem:[#allocation3 + $0xf8] sm:$0xff] %vm29, %v4747
    %4812 = vst.msk [vmem:[#allocation3 + $0x100] sm:$0xff] %vm29, %v4748
    %4813 = vst.msk [vmem:[#allocation3 + $0x108] sm:$0xff] %vm29, %v4749
    %4814 = vst.msk [vmem:[#allocation3 + $0x110] sm:$0xff] %vm29, %v4750
    %4815 = vst.msk [vmem:[#allocation3 + $0x118] sm:$0xff] %vm29, %v4751
    %4816 = vst.msk [vmem:[#allocation3 + $0x120] sm:$0xff] %vm29, %v4752
    %4817 = vst.msk [vmem:[#allocation3 + $0x128] sm:$0xff] %vm29, %v4753
    %4818 = vst.msk [vmem:[#allocation3 + $0x130] sm:$0xff] %vm29, %v4754
    %4819 = vst.msk [vmem:[#allocation3 + $0x138] sm:$0xff] %vm29, %v4755
    %4820 = vst.msk [vmem:[#allocation3 + $0x140] sm:$0xff] %vm29, %v4756
    %4821 = vst.msk [vmem:[#allocation3 + $0x148] sm:$0xff] %vm29, %v4757
    %4822 = vst.msk [vmem:[#allocation3 + $0x150] sm:$0xff] %vm29, %v4758
    %4823 = vst.msk [vmem:[#allocation3 + $0x158] sm:$0xff] %vm29, %v4759
    %4824 = vst.msk [vmem:[#allocation3 + $0x160] sm:$0xff] %vm29, %v4760
    %4825 = vst.msk [vmem:[#allocation3 + $0x168] sm:$0xff] %vm29, %v4761
    %4826 = vst.msk [vmem:[#allocation3 + $0x170] sm:$0xff] %vm29, %v4762
    %4827 = vst.msk [vmem:[#allocation3 + $0x178] sm:$0xff] %vm29, %v4763
    %4828 = vst.msk [vmem:[#allocation3 + $0x180] sm:$0xff] %vm29, %v4764
    %4829 = vst.msk [vmem:[#allocation3 + $0x188] sm:$0xff] %vm29, %v4765
    %4830 = vst.msk [vmem:[#allocation3 + $0x190] sm:$0xff] %vm29, %v4766
    %4831 = vst.msk [vmem:[#allocation3 + $0x198] sm:$0xff] %vm29, %v4767
    %4832 = vst.msk [vmem:[#allocation3 + $0x1a0] sm:$0xff] %vm29, %v4768
    %4833 = vst.msk [vmem:[#allocation3 + $0x1a8] sm:$0xff] %vm29, %v4769
    %4834 = vst.msk [vmem:[#allocation3 + $0x1b0] sm:$0xff] %vm29, %v4770
    %4835 = vst.msk [vmem:[#allocation3 + $0x1b8] sm:$0xff] %vm29, %v4771
    %4836 = vst.msk [vmem:[#allocation3 + $0x1c0] sm:$0xff] %vm29, %v4772
    %4837 = vst.msk [vmem:[#allocation3 + $0x1c8] sm:$0xff] %vm29, %v4773
    %4838 = vst.msk [vmem:[#allocation3 + $0x1d0] sm:$0xff] %vm29, %v4774
    %4839 = vst.msk [vmem:[#allocation3 + $0x1d8] sm:$0xff] %vm29, %v4775
    %4840 = vst.msk [vmem:[#allocation3 + $0x1e0] sm:$0xff] %vm29, %v4776
    %4841 = vst.msk [vmem:[#allocation3 + $0x1e8] sm:$0xff] %vm29, %v4777
    %4842 = vst.msk [vmem:[#allocation3 + $0x1f0] sm:$0xff] %vm29, %v4778
    %4843 = vst.msk [vmem:[#allocation3 + $0x1f8] sm:$0xff] %vm29, %v4779
    %v4844 = vld [vmem:[#allocation2 + $0x1] sm:$0xff]
    %v4845 = vld [vmem:[#allocation2 + $0x9] sm:$0xff]
    %v4846 = vld [vmem:[#allocation2 + $0x19] sm:$0xff]
    %v4847 = vld [vmem:[#allocation2 + $0x21] sm:$0xff]
    %v4848 = vld [vmem:[#allocation2 + $0x31] sm:$0xff]
    %v4849 = vld [vmem:[#allocation2 + $0x39] sm:$0xff]
    %v4850 = vld [vmem:[#allocation2 + $0x49] sm:$0xff]
    %v4851 = vld [vmem:[#allocation2 + $0x51] sm:$0xff]
    %v4852 = vld [vmem:[#allocation2 + $0x61] sm:$0xff]
    %v4853 = vld [vmem:[#allocation2 + $0x69] sm:$0xff]
    %v4854 = vld [vmem:[#allocation2 + $0x79] sm:$0xff]
    %v4855 = vld [vmem:[#allocation2 + $0x81] sm:$0xff]
    %v4856 = vld [vmem:[#allocation2 + $0x91] sm:$0xff]
    %v4857 = vld [vmem:[#allocation2 + $0x99] sm:$0xff]
    %v4858 = vld [vmem:[#allocation2 + $0xa9] sm:$0xff]
    %v4859 = vld [vmem:[#allocation2 + $0xb1] sm:$0xff]
    %v4860 = vld [vmem:[#allocation2 + $0xc1] sm:$0xff]
    %v4861 = vld [vmem:[#allocation2 + $0xc9] sm:$0xff]
    %v4862 = vld [vmem:[#allocation2 + $0xd9] sm:$0xff]
    %v4863 = vld [vmem:[#allocation2 + $0xe1] sm:$0xff]
    %v4864 = vld [vmem:[#allocation2 + $0xf1] sm:$0xff]
    %v4865 = vld [vmem:[#allocation2 + $0xf9] sm:$0xff]
    %v4866 = vld [vmem:[#allocation2 + $0x109] sm:$0xff]
    %v4867 = vld [vmem:[#allocation2 + $0x111] sm:$0xff]
    %v4868 = vld [vmem:[#allocation2 + $0x121] sm:$0xff]
    %v4869 = vld [vmem:[#allocation2 + $0x129] sm:$0xff]
    %v4870 = vld [vmem:[#allocation2 + $0x139] sm:$0xff]
    %v4871 = vld [vmem:[#allocation2 + $0x141] sm:$0xff]
    %v4872 = vld [vmem:[#allocation2 + $0x151] sm:$0xff]
    %v4873 = vld [vmem:[#allocation2 + $0x159] sm:$0xff]
    %v4874 = vld [vmem:[#allocation2 + $0x169] sm:$0xff]
    %v4875 = vld [vmem:[#allocation2 + $0x171] sm:$0xff]
    %v4876 = vld [vmem:[#allocation2 + $0x1b1] sm:$0xff]
    %v4877 = vld [vmem:[#allocation2 + $0x1b9] sm:$0xff]
    %v4878 = vld [vmem:[#allocation2 + $0x1c9] sm:$0xff]
    %v4879 = vld [vmem:[#allocation2 + $0x1d1] sm:$0xff]
    %v4880 = vld [vmem:[#allocation2 + $0x1e1] sm:$0xff]
    %v4881 = vld [vmem:[#allocation2 + $0x1e9] sm:$0xff]
    %v4882 = vld [vmem:[#allocation2 + $0x1f9] sm:$0xff]
    %v4883 = vld [vmem:[#allocation2 + $0x201] sm:$0xff]
    %v4884 = vld [vmem:[#allocation2 + $0x211] sm:$0xff]
    %v4885 = vld [vmem:[#allocation2 + $0x219] sm:$0xff]
    %v4886 = vld [vmem:[#allocation2 + $0x229] sm:$0xff]
    %v4887 = vld [vmem:[#allocation2 + $0x231] sm:$0xff]
    %v4888 = vld [vmem:[#allocation2 + $0x241] sm:$0xff]
    %v4889 = vld [vmem:[#allocation2 + $0x249] sm:$0xff]
    %v4890 = vld [vmem:[#allocation2 + $0x259] sm:$0xff]
    %v4891 = vld [vmem:[#allocation2 + $0x261] sm:$0xff]
    %v4892 = vld [vmem:[#allocation2 + $0x271] sm:$0xff]
    %v4893 = vld [vmem:[#allocation2 + $0x279] sm:$0xff]
    %v4894 = vld [vmem:[#allocation2 + $0x289] sm:$0xff]
    %v4895 = vld [vmem:[#allocation2 + $0x291] sm:$0xff]
    %v4896 = vld [vmem:[#allocation2 + $0x2a1] sm:$0xff]
    %v4897 = vld [vmem:[#allocation2 + $0x2a9] sm:$0xff]
    %v4898 = vld [vmem:[#allocation2 + $0x2b9] sm:$0xff]
    %v4899 = vld [vmem:[#allocation2 + $0x2c1] sm:$0xff]
    %v4900 = vld [vmem:[#allocation2 + $0x2d1] sm:$0xff]
    %v4901 = vld [vmem:[#allocation2 + $0x2d9] sm:$0xff]
    %v4902 = vld [vmem:[#allocation2 + $0x2e9] sm:$0xff]
    %v4903 = vld [vmem:[#allocation2 + $0x2f1] sm:$0xff]
    %v4904 = vld [vmem:[#allocation2 + $0x301] sm:$0xff]
    %v4905 = vld [vmem:[#allocation2 + $0x309] sm:$0xff]
    %v4906 = vld [vmem:[#allocation2 + $0x319] sm:$0xff]
    %v4907 = vld [vmem:[#allocation2 + $0x321] sm:$0xff]
    %4972 = vrot.lane.b32.xlu0 %v4844, 8
    %v4973 = vpop.permute.xlu0 %4972
    %4974 = vrot.lane.b32.xlu0 %v4845, 8
    %v4975 = vpop.permute.xlu0 %4974
    %4976 = vrot.lane.b32.xlu0 %v4846, 8
    %v4977 = vpop.permute.xlu0 %4976
    %4978 = vrot.lane.b32.xlu0 %v4847, 8
    %v4979 = vpop.permute.xlu0 %4978
    %4980 = vrot.lane.b32.xlu0 %v4848, 8
    %v4981 = vpop.permute.xlu0 %4980
    %4982 = vrot.lane.b32.xlu0 %v4849, 8
    %v4983 = vpop.permute.xlu0 %4982
    %4984 = vrot.lane.b32.xlu0 %v4850, 8
    %v4985 = vpop.permute.xlu0 %4984
    %4986 = vrot.lane.b32.xlu0 %v4851, 8
    %v4987 = vpop.permute.xlu0 %4986
    %4988 = vrot.lane.b32.xlu0 %v4852, 8
    %v4989 = vpop.permute.xlu0 %4988
    %4990 = vrot.lane.b32.xlu0 %v4853, 8
    %v4991 = vpop.permute.xlu0 %4990
    %4992 = vrot.lane.b32.xlu0 %v4854, 8
    %v4993 = vpop.permute.xlu0 %4992
    %4994 = vrot.lane.b32.xlu0 %v4855, 8
    %v4995 = vpop.permute.xlu0 %4994
    %4996 = vrot.lane.b32.xlu0 %v4856, 8
    %v4997 = vpop.permute.xlu0 %4996
    %4998 = vrot.lane.b32.xlu0 %v4857, 8
    %v4999 = vpop.permute.xlu0 %4998
    %5000 = vrot.lane.b32.xlu0 %v4858, 8
    %v5001 = vpop.permute.xlu0 %5000
    %5002 = vrot.lane.b32.xlu0 %v4859, 8
    %v5003 = vpop.permute.xlu0 %5002
    %5004 = vrot.lane.b32.xlu0 %v4860, 8
    %v5005 = vpop.permute.xlu0 %5004
    %5006 = vrot.lane.b32.xlu0 %v4861, 8
    %v5007 = vpop.permute.xlu0 %5006
    %5008 = vrot.lane.b32.xlu0 %v4862, 8
    %v5009 = vpop.permute.xlu0 %5008
    %5010 = vrot.lane.b32.xlu0 %v4863, 8
    %v5011 = vpop.permute.xlu0 %5010
    %5012 = vrot.lane.b32.xlu0 %v4864, 8
    %v5013 = vpop.permute.xlu0 %5012
    %5014 = vrot.lane.b32.xlu0 %v4865, 8
    %v5015 = vpop.permute.xlu0 %5014
    %5016 = vrot.lane.b32.xlu0 %v4866, 8
    %v5017 = vpop.permute.xlu0 %5016
    %5018 = vrot.lane.b32.xlu0 %v4867, 8
    %v5019 = vpop.permute.xlu0 %5018
    %5020 = vrot.lane.b32.xlu0 %v4868, 8
    %v5021 = vpop.permute.xlu0 %5020
    %5022 = vrot.lane.b32.xlu0 %v4869, 8
    %v5023 = vpop.permute.xlu0 %5022
    %5024 = vrot.lane.b32.xlu0 %v4870, 8
    %v5025 = vpop.permute.xlu0 %5024
    %5026 = vrot.lane.b32.xlu0 %v4871, 8
    %v5027 = vpop.permute.xlu0 %5026
    %5028 = vrot.lane.b32.xlu0 %v4872, 8
    %v5029 = vpop.permute.xlu0 %5028
    %5030 = vrot.lane.b32.xlu0 %v4873, 8
    %v5031 = vpop.permute.xlu0 %5030
    %5032 = vrot.lane.b32.xlu0 %v4874, 8
    %v5033 = vpop.permute.xlu0 %5032
    %5034 = vrot.lane.b32.xlu0 %v4875, 8
    %v5035 = vpop.permute.xlu0 %5034
    %5036 = vrot.lane.b32.xlu0 %v4876, 8
    %v5037 = vpop.permute.xlu0 %5036
    %5038 = vrot.lane.b32.xlu0 %v4877, 8
    %v5039 = vpop.permute.xlu0 %5038
    %5040 = vrot.lane.b32.xlu0 %v4878, 8
    %v5041 = vpop.permute.xlu0 %5040
    %5042 = vrot.lane.b32.xlu0 %v4879, 8
    %v5043 = vpop.permute.xlu0 %5042
    %5044 = vrot.lane.b32.xlu0 %v4880, 8
    %v5045 = vpop.permute.xlu0 %5044
    %5046 = vrot.lane.b32.xlu0 %v4881, 8
    %v5047 = vpop.permute.xlu0 %5046
    %5048 = vrot.lane.b32.xlu0 %v4882, 8
    %v5049 = vpop.permute.xlu0 %5048
    %5050 = vrot.lane.b32.xlu0 %v4883, 8
    %v5051 = vpop.permute.xlu0 %5050
    %5052 = vrot.lane.b32.xlu0 %v4884, 8
    %v5053 = vpop.permute.xlu0 %5052
    %5054 = vrot.lane.b32.xlu0 %v4885, 8
    %v5055 = vpop.permute.xlu0 %5054
    %5056 = vrot.lane.b32.xlu0 %v4886, 8
    %v5057 = vpop.permute.xlu0 %5056
    %5058 = vrot.lane.b32.xlu0 %v4887, 8
    %v5059 = vpop.permute.xlu0 %5058
    %5060 = vrot.lane.b32.xlu0 %v4888, 8
    %v5061 = vpop.permute.xlu0 %5060
    %5062 = vrot.lane.b32.xlu0 %v4889, 8
    %v5063 = vpop.permute.xlu0 %5062
    %5064 = vrot.lane.b32.xlu0 %v4890, 8
    %v5065 = vpop.permute.xlu0 %5064
    %5066 = vrot.lane.b32.xlu0 %v4891, 8
    %v5067 = vpop.permute.xlu0 %5066
    %5068 = vrot.lane.b32.xlu0 %v4892, 8
    %v5069 = vpop.permute.xlu0 %5068
    %5070 = vrot.lane.b32.xlu0 %v4893, 8
    %v5071 = vpop.permute.xlu0 %5070
    %5072 = vrot.lane.b32.xlu0 %v4894, 8
    %v5073 = vpop.permute.xlu0 %5072
    %5074 = vrot.lane.b32.xlu0 %v4895, 8
    %v5075 = vpop.permute.xlu0 %5074
    %5076 = vrot.lane.b32.xlu0 %v4896, 8
    %v5077 = vpop.permute.xlu0 %5076
    %5078 = vrot.lane.b32.xlu0 %v4897, 8
    %v5079 = vpop.permute.xlu0 %5078
    %5080 = vrot.lane.b32.xlu0 %v4898, 8
    %v5081 = vpop.permute.xlu0 %5080
    %5082 = vrot.lane.b32.xlu0 %v4899, 8
    %v5083 = vpop.permute.xlu0 %5082
    %5084 = vrot.lane.b32.xlu0 %v4900, 8
    %v5085 = vpop.permute.xlu0 %5084
    %5086 = vrot.lane.b32.xlu0 %v4901, 8
    %v5087 = vpop.permute.xlu0 %5086
    %5088 = vrot.lane.b32.xlu0 %v4902, 8
    %v5089 = vpop.permute.xlu0 %5088
    %5090 = vrot.lane.b32.xlu0 %v4903, 8
    %v5091 = vpop.permute.xlu0 %5090
    %5092 = vrot.lane.b32.xlu0 %v4904, 8
    %v5093 = vpop.permute.xlu0 %5092
    %5094 = vrot.lane.b32.xlu0 %v4905, 8
    %v5095 = vpop.permute.xlu0 %5094
    %5096 = vrot.lane.b32.xlu0 %v4906, 8
    %v5097 = vpop.permute.xlu0 %5096
    %5098 = vrot.lane.b32.xlu0 %v4907, 8
    %v5099 = vpop.permute.xlu0 %5098
    %vm5164 = vcmask 130112
    %5165 = vst.msk [vmem:[#allocation3] sm:$0xff] %vm5164, %v4973
    %5166 = vst.msk [vmem:[#allocation3 + $0x8] sm:$0xff] %vm5164, %v4975
    %5167 = vst.msk [vmem:[#allocation3 + $0x10] sm:$0xff] %vm5164, %v4977
    %5168 = vst.msk [vmem:[#allocation3 + $0x18] sm:$0xff] %vm5164, %v4979
    %5169 = vst.msk [vmem:[#allocation3 + $0x20] sm:$0xff] %vm5164, %v4981
    %5170 = vst.msk [vmem:[#allocation3 + $0x28] sm:$0xff] %vm5164, %v4983
    %5171 = vst.msk [vmem:[#allocation3 + $0x30] sm:$0xff] %vm5164, %v4985
    %5172 = vst.msk [vmem:[#allocation3 + $0x38] sm:$0xff] %vm5164, %v4987
    %5173 = vst.msk [vmem:[#allocation3 + $0x40] sm:$0xff] %vm5164, %v4989
    %5174 = vst.msk [vmem:[#allocation3 + $0x48] sm:$0xff] %vm5164, %v4991
    %5175 = vst.msk [vmem:[#allocation3 + $0x50] sm:$0xff] %vm5164, %v4993
    %5176 = vst.msk [vmem:[#allocation3 + $0x58] sm:$0xff] %vm5164, %v4995
    %5177 = vst.msk [vmem:[#allocation3 + $0x60] sm:$0xff] %vm5164, %v4997
    %5178 = vst.msk [vmem:[#allocation3 + $0x68] sm:$0xff] %vm5164, %v4999
    %5179 = vst.msk [vmem:[#allocation3 + $0x70] sm:$0xff] %vm5164, %v5001
    %5180 = vst.msk [vmem:[#allocation3 + $0x78] sm:$0xff] %vm5164, %v5003
    %5181 = vst.msk [vmem:[#allocation3 + $0x80] sm:$0xff] %vm5164, %v5005
    %5182 = vst.msk [vmem:[#allocation3 + $0x88] sm:$0xff] %vm5164, %v5007
    %5183 = vst.msk [vmem:[#allocation3 + $0x90] sm:$0xff] %vm5164, %v5009
    %5184 = vst.msk [vmem:[#allocation3 + $0x98] sm:$0xff] %vm5164, %v5011
    %5185 = vst.msk [vmem:[#allocation3 + $0xa0] sm:$0xff] %vm5164, %v5013
    %5186 = vst.msk [vmem:[#allocation3 + $0xa8] sm:$0xff] %vm5164, %v5015
    %5187 = vst.msk [vmem:[#allocation3 + $0xb0] sm:$0xff] %vm5164, %v5017
    %5188 = vst.msk [vmem:[#allocation3 + $0xb8] sm:$0xff] %vm5164, %v5019
    %5189 = vst.msk [vmem:[#allocation3 + $0xc0] sm:$0xff] %vm5164, %v5021
    %5190 = vst.msk [vmem:[#allocation3 + $0xc8] sm:$0xff] %vm5164, %v5023
    %5191 = vst.msk [vmem:[#allocation3 + $0xd0] sm:$0xff] %vm5164, %v5025
    %5192 = vst.msk [vmem:[#allocation3 + $0xd8] sm:$0xff] %vm5164, %v5027
    %5193 = vst.msk [vmem:[#allocation3 + $0xe0] sm:$0xff] %vm5164, %v5029
    %5194 = vst.msk [vmem:[#allocation3 + $0xe8] sm:$0xff] %vm5164, %v5031
    %5195 = vst.msk [vmem:[#allocation3 + $0xf0] sm:$0xff] %vm5164, %v5033
    %5196 = vst.msk [vmem:[#allocation3 + $0xf8] sm:$0xff] %vm5164, %v5035
    %5197 = vst.msk [vmem:[#allocation3 + $0x100] sm:$0xff] %vm5164, %v5037
    %5198 = vst.msk [vmem:[#allocation3 + $0x108] sm:$0xff] %vm5164, %v5039
    %5199 = vst.msk [vmem:[#allocation3 + $0x110] sm:$0xff] %vm5164, %v5041
    %5200 = vst.msk [vmem:[#allocation3 + $0x118] sm:$0xff] %vm5164, %v5043
    %5201 = vst.msk [vmem:[#allocation3 + $0x120] sm:$0xff] %vm5164, %v5045
    %5202 = vst.msk [vmem:[#allocation3 + $0x128] sm:$0xff] %vm5164, %v5047
    %5203 = vst.msk [vmem:[#allocation3 + $0x130] sm:$0xff] %vm5164, %v5049
    %5204 = vst.msk [vmem:[#allocation3 + $0x138] sm:$0xff] %vm5164, %v5051
    %5205 = vst.msk [vmem:[#allocation3 + $0x140] sm:$0xff] %vm5164, %v5053
    %5206 = vst.msk [vmem:[#allocation3 + $0x148] sm:$0xff] %vm5164, %v5055
    %5207 = vst.msk [vmem:[#allocation3 + $0x150] sm:$0xff] %vm5164, %v5057
    %5208 = vst.msk [vmem:[#allocation3 + $0x158] sm:$0xff] %vm5164, %v5059
    %5209 = vst.msk [vmem:[#allocation3 + $0x160] sm:$0xff] %vm5164, %v5061
    %5210 = vst.msk [vmem:[#allocation3 + $0x168] sm:$0xff] %vm5164, %v5063
    %5211 = vst.msk [vmem:[#allocation3 + $0x170] sm:$0xff] %vm5164, %v5065
    %5212 = vst.msk [vmem:[#allocation3 + $0x178] sm:$0xff] %vm5164, %v5067
    %5213 = vst.msk [vmem:[#allocation3 + $0x180] sm:$0xff] %vm5164, %v5069
    %5214 = vst.msk [vmem:[#allocation3 + $0x188] sm:$0xff] %vm5164, %v5071
    %5215 = vst.msk [vmem:[#allocation3 + $0x190] sm:$0xff] %vm5164, %v5073
    %5216 = vst.msk [vmem:[#allocation3 + $0x198] sm:$0xff] %vm5164, %v5075
    %5217 = vst.msk [vmem:[#allocation3 + $0x1a0] sm:$0xff] %vm5164, %v5077
    %5218 = vst.msk [vmem:[#allocation3 + $0x1a8] sm:$0xff] %vm5164, %v5079
    %5219 = vst.msk [vmem:[#allocation3 + $0x1b0] sm:$0xff] %vm5164, %v5081
    %5220 = vst.msk [vmem:[#allocation3 + $0x1b8] sm:$0xff] %vm5164, %v5083
    %5221 = vst.msk [vmem:[#allocation3 + $0x1c0] sm:$0xff] %vm5164, %v5085
    %5222 = vst.msk [vmem:[#allocation3 + $0x1c8] sm:$0xff] %vm5164, %v5087
    %5223 = vst.msk [vmem:[#allocation3 + $0x1d0] sm:$0xff] %vm5164, %v5089
    %5224 = vst.msk [vmem:[#allocation3 + $0x1d8] sm:$0xff] %vm5164, %v5091
    %5225 = vst.msk [vmem:[#allocation3 + $0x1e0] sm:$0xff] %vm5164, %v5093
    %5226 = vst.msk [vmem:[#allocation3 + $0x1e8] sm:$0xff] %vm5164, %v5095
    %5227 = vst.msk [vmem:[#allocation3 + $0x1f0] sm:$0xff] %vm5164, %v5097
    %5228 = vst.msk [vmem:[#allocation3 + $0x1f8] sm:$0xff] %vm5164, %v5099
    %v5229 = vld [vmem:[#allocation2 + $0x2] sm:$0xff]
    %v5230 = vld [vmem:[#allocation2 + $0xa] sm:$0xff]
    %v5231 = vld [vmem:[#allocation2 + $0x1a] sm:$0xff]
    %v5232 = vld [vmem:[#allocation2 + $0x22] sm:$0xff]
    %v5233 = vld [vmem:[#allocation2 + $0x32] sm:$0xff]
    %v5234 = vld [vmem:[#allocation2 + $0x3a] sm:$0xff]
    %v5235 = vld [vmem:[#allocation2 + $0x4a] sm:$0xff]
    %v5236 = vld [vmem:[#allocation2 + $0x52] sm:$0xff]
    %v5237 = vld [vmem:[#allocation2 + $0x62] sm:$0xff]
    %v5238 = vld [vmem:[#allocation2 + $0x6a] sm:$0xff]
    %v5239 = vld [vmem:[#allocation2 + $0x7a] sm:$0xff]
    %v5240 = vld [vmem:[#allocation2 + $0x82] sm:$0xff]
    %v5241 = vld [vmem:[#allocation2 + $0x92] sm:$0xff]
    %v5242 = vld [vmem:[#allocation2 + $0x9a] sm:$0xff]
    %v5243 = vld [vmem:[#allocation2 + $0xaa] sm:$0xff]
    %v5244 = vld [vmem:[#allocation2 + $0xb2] sm:$0xff]
    %v5245 = vld [vmem:[#allocation2 + $0xc2] sm:$0xff]
    %v5246 = vld [vmem:[#allocation2 + $0xca] sm:$0xff]
    %v5247 = vld [vmem:[#allocation2 + $0xda] sm:$0xff]
    %v5248 = vld [vmem:[#allocation2 + $0xe2] sm:$0xff]
    %v5249 = vld [vmem:[#allocation2 + $0xf2] sm:$0xff]
    %v5250 = vld [vmem:[#allocation2 + $0xfa] sm:$0xff]
    %v5251 = vld [vmem:[#allocation2 + $0x10a] sm:$0xff]
    %v5252 = vld [vmem:[#allocation2 + $0x112] sm:$0xff]
    %v5253 = vld [vmem:[#allocation2 + $0x122] sm:$0xff]
    %v5254 = vld [vmem:[#allocation2 + $0x12a] sm:$0xff]
    %v5255 = vld [vmem:[#allocation2 + $0x13a] sm:$0xff]
    %v5256 = vld [vmem:[#allocation2 + $0x142] sm:$0xff]
    %v5257 = vld [vmem:[#allocation2 + $0x152] sm:$0xff]
    %v5258 = vld [vmem:[#allocation2 + $0x15a] sm:$0xff]
    %v5259 = vld [vmem:[#allocation2 + $0x16a] sm:$0xff]
    %v5260 = vld [vmem:[#allocation2 + $0x172] sm:$0xff]
    %v5261 = vld [vmem:[#allocation2 + $0x1b2] sm:$0xff]
    %v5262 = vld [vmem:[#allocation2 + $0x1ba] sm:$0xff]
    %v5263 = vld [vmem:[#allocation2 + $0x1ca] sm:$0xff]
    %v5264 = vld [vmem:[#allocation2 + $0x1d2] sm:$0xff]
    %v5265 = vld [vmem:[#allocation2 + $0x1e2] sm:$0xff]
    %v5266 = vld [vmem:[#allocation2 + $0x1ea] sm:$0xff]
    %v5267 = vld [vmem:[#allocation2 + $0x1fa] sm:$0xff]
    %v5268 = vld [vmem:[#allocation2 + $0x202] sm:$0xff]
    %v5269 = vld [vmem:[#allocation2 + $0x212] sm:$0xff]
    %v5270 = vld [vmem:[#allocation2 + $0x21a] sm:$0xff]
    %v5271 = vld [vmem:[#allocation2 + $0x22a] sm:$0xff]
    %v5272 = vld [vmem:[#allocation2 + $0x232] sm:$0xff]
    %v5273 = vld [vmem:[#allocation2 + $0x242] sm:$0xff]
    %v5274 = vld [vmem:[#allocation2 + $0x24a] sm:$0xff]
    %v5275 = vld [vmem:[#allocation2 + $0x25a] sm:$0xff]
    %v5276 = vld [vmem:[#allocation2 + $0x262] sm:$0xff]
    %v5277 = vld [vmem:[#allocation2 + $0x272] sm:$0xff]
    %v5278 = vld [vmem:[#allocation2 + $0x27a] sm:$0xff]
    %v5279 = vld [vmem:[#allocation2 + $0x28a] sm:$0xff]
    %v5280 = vld [vmem:[#allocation2 + $0x292] sm:$0xff]
    %v5281 = vld [vmem:[#allocation2 + $0x2a2] sm:$0xff]
    %v5282 = vld [vmem:[#allocation2 + $0x2aa] sm:$0xff]
    %v5283 = vld [vmem:[#allocation2 + $0x2ba] sm:$0xff]
    %v5284 = vld [vmem:[#allocation2 + $0x2c2] sm:$0xff]
    %v5285 = vld [vmem:[#allocation2 + $0x2d2] sm:$0xff]
    %v5286 = vld [vmem:[#allocation2 + $0x2da] sm:$0xff]
    %v5287 = vld [vmem:[#allocation2 + $0x2ea] sm:$0xff]
    %v5288 = vld [vmem:[#allocation2 + $0x2f2] sm:$0xff]
    %v5289 = vld [vmem:[#allocation2 + $0x302] sm:$0xff]
    %v5290 = vld [vmem:[#allocation2 + $0x30a] sm:$0xff]
    %v5291 = vld [vmem:[#allocation2 + $0x31a] sm:$0xff]
    %v5292 = vld [vmem:[#allocation2 + $0x322] sm:$0xff]
    %5357 = vrot.lane.b32.xlu0 %v5229, 16
    %v5358 = vpop.permute.xlu0 %5357
    %5359 = vrot.lane.b32.xlu0 %v5230, 16
    %v5360 = vpop.permute.xlu0 %5359
    %5361 = vrot.lane.b32.xlu0 %v5231, 16
    %v5362 = vpop.permute.xlu0 %5361
    %5363 = vrot.lane.b32.xlu0 %v5232, 16
    %v5364 = vpop.permute.xlu0 %5363
    %5365 = vrot.lane.b32.xlu0 %v5233, 16
    %v5366 = vpop.permute.xlu0 %5365
    %5367 = vrot.lane.b32.xlu0 %v5234, 16
    %v5368 = vpop.permute.xlu0 %5367
    %5369 = vrot.lane.b32.xlu0 %v5235, 16
    %v5370 = vpop.permute.xlu0 %5369
    %5371 = vrot.lane.b32.xlu0 %v5236, 16
    %v5372 = vpop.permute.xlu0 %5371
    %5373 = vrot.lane.b32.xlu0 %v5237, 16
    %v5374 = vpop.permute.xlu0 %5373
    %5375 = vrot.lane.b32.xlu0 %v5238, 16
    %v5376 = vpop.permute.xlu0 %5375
    %5377 = vrot.lane.b32.xlu0 %v5239, 16
    %v5378 = vpop.permute.xlu0 %5377
    %5379 = vrot.lane.b32.xlu0 %v5240, 16
    %v5380 = vpop.permute.xlu0 %5379
    %5381 = vrot.lane.b32.xlu0 %v5241, 16
    %v5382 = vpop.permute.xlu0 %5381
    %5383 = vrot.lane.b32.xlu0 %v5242, 16
    %v5384 = vpop.permute.xlu0 %5383
    %5385 = vrot.lane.b32.xlu0 %v5243, 16
    %v5386 = vpop.permute.xlu0 %5385
    %5387 = vrot.lane.b32.xlu0 %v5244, 16
    %v5388 = vpop.permute.xlu0 %5387
    %5389 = vrot.lane.b32.xlu0 %v5245, 16
    %v5390 = vpop.permute.xlu0 %5389
    %5391 = vrot.lane.b32.xlu0 %v5246, 16
    %v5392 = vpop.permute.xlu0 %5391
    %5393 = vrot.lane.b32.xlu0 %v5247, 16
    %v5394 = vpop.permute.xlu0 %5393
    %5395 = vrot.lane.b32.xlu0 %v5248, 16
    %v5396 = vpop.permute.xlu0 %5395
    %5397 = vrot.lane.b32.xlu0 %v5249, 16
    %v5398 = vpop.permute.xlu0 %5397
    %5399 = vrot.lane.b32.xlu0 %v5250, 16
    %v5400 = vpop.permute.xlu0 %5399
    %5401 = vrot.lane.b32.xlu0 %v5251, 16
    %v5402 = vpop.permute.xlu0 %5401
    %5403 = vrot.lane.b32.xlu0 %v5252, 16
    %v5404 = vpop.permute.xlu0 %5403
    %5405 = vrot.lane.b32.xlu0 %v5253, 16
    %v5406 = vpop.permute.xlu0 %5405
    %5407 = vrot.lane.b32.xlu0 %v5254, 16
    %v5408 = vpop.permute.xlu0 %5407
    %5409 = vrot.lane.b32.xlu0 %v5255, 16
    %v5410 = vpop.permute.xlu0 %5409
    %5411 = vrot.lane.b32.xlu0 %v5256, 16
    %v5412 = vpop.permute.xlu0 %5411
    %5413 = vrot.lane.b32.xlu0 %v5257, 16
    %v5414 = vpop.permute.xlu0 %5413
    %5415 = vrot.lane.b32.xlu0 %v5258, 16
    %v5416 = vpop.permute.xlu0 %5415
    %5417 = vrot.lane.b32.xlu0 %v5259, 16
    %v5418 = vpop.permute.xlu0 %5417
    %5419 = vrot.lane.b32.xlu0 %v5260, 16
    %v5420 = vpop.permute.xlu0 %5419
    %5421 = vrot.lane.b32.xlu0 %v5261, 16
    %v5422 = vpop.permute.xlu0 %5421
    %5423 = vrot.lane.b32.xlu0 %v5262, 16
    %v5424 = vpop.permute.xlu0 %5423
    %5425 = vrot.lane.b32.xlu0 %v5263, 16
    %v5426 = vpop.permute.xlu0 %5425
    %5427 = vrot.lane.b32.xlu0 %v5264, 16
    %v5428 = vpop.permute.xlu0 %5427
    %5429 = vrot.lane.b32.xlu0 %v5265, 16
    %v5430 = vpop.permute.xlu0 %5429
    %5431 = vrot.lane.b32.xlu0 %v5266, 16
    %v5432 = vpop.permute.xlu0 %5431
    %5433 = vrot.lane.b32.xlu0 %v5267, 16
    %v5434 = vpop.permute.xlu0 %5433
    %5435 = vrot.lane.b32.xlu0 %v5268, 16
    %v5436 = vpop.permute.xlu0 %5435
    %5437 = vrot.lane.b32.xlu0 %v5269, 16
    %v5438 = vpop.permute.xlu0 %5437
    %5439 = vrot.lane.b32.xlu0 %v5270, 16
    %v5440 = vpop.permute.xlu0 %5439
    %5441 = vrot.lane.b32.xlu0 %v5271, 16
    %v5442 = vpop.permute.xlu0 %5441
    %5443 = vrot.lane.b32.xlu0 %v5272, 16
    %v5444 = vpop.permute.xlu0 %5443
    %5445 = vrot.lane.b32.xlu0 %v5273, 16
    %v5446 = vpop.permute.xlu0 %5445
    %5447 = vrot.lane.b32.xlu0 %v5274, 16
    %v5448 = vpop.permute.xlu0 %5447
    %5449 = vrot.lane.b32.xlu0 %v5275, 16
    %v5450 = vpop.permute.xlu0 %5449
    %5451 = vrot.lane.b32.xlu0 %v5276, 16
    %v5452 = vpop.permute.xlu0 %5451
    %5453 = vrot.lane.b32.xlu0 %v5277, 16
    %v5454 = vpop.permute.xlu0 %5453
    %5455 = vrot.lane.b32.xlu0 %v5278, 16
    %v5456 = vpop.permute.xlu0 %5455
    %5457 = vrot.lane.b32.xlu0 %v5279, 16
    %v5458 = vpop.permute.xlu0 %5457
    %5459 = vrot.lane.b32.xlu0 %v5280, 16
    %v5460 = vpop.permute.xlu0 %5459
    %5461 = vrot.lane.b32.xlu0 %v5281, 16
    %v5462 = vpop.permute.xlu0 %5461
    %5463 = vrot.lane.b32.xlu0 %v5282, 16
    %v5464 = vpop.permute.xlu0 %5463
    %5465 = vrot.lane.b32.xlu0 %v5283, 16
    %v5466 = vpop.permute.xlu0 %5465
    %5467 = vrot.lane.b32.xlu0 %v5284, 16
    %v5468 = vpop.permute.xlu0 %5467
    %5469 = vrot.lane.b32.xlu0 %v5285, 16
    %v5470 = vpop.permute.xlu0 %5469
    %5471 = vrot.lane.b32.xlu0 %v5286, 16
    %v5472 = vpop.permute.xlu0 %5471
    %5473 = vrot.lane.b32.xlu0 %v5287, 16
    %v5474 = vpop.permute.xlu0 %5473
    %5475 = vrot.lane.b32.xlu0 %v5288, 16
    %v5476 = vpop.permute.xlu0 %5475
    %5477 = vrot.lane.b32.xlu0 %v5289, 16
    %v5478 = vpop.permute.xlu0 %5477
    %5479 = vrot.lane.b32.xlu0 %v5290, 16
    %v5480 = vpop.permute.xlu0 %5479
    %5481 = vrot.lane.b32.xlu0 %v5291, 16
    %v5482 = vpop.permute.xlu0 %5481
    %5483 = vrot.lane.b32.xlu0 %v5292, 16
    %v5484 = vpop.permute.xlu0 %5483
    %vm5549 = vcmask 195712
    %5550 = vst.msk [vmem:[#allocation3] sm:$0xff] %vm5549, %v5358
    %5551 = vst.msk [vmem:[#allocation3 + $0x8] sm:$0xff] %vm5549, %v5360
    %5552 = vst.msk [vmem:[#allocation3 + $0x10] sm:$0xff] %vm5549, %v5362
    %5553 = vst.msk [vmem:[#allocation3 + $0x18] sm:$0xff] %vm5549, %v5364
    %5554 = vst.msk [vmem:[#allocation3 + $0x20] sm:$0xff] %vm5549, %v5366
    %5555 = vst.msk [vmem:[#allocation3 + $0x28] sm:$0xff] %vm5549, %v5368
    %5556 = vst.msk [vmem:[#allocation3 + $0x30] sm:$0xff] %vm5549, %v5370
    %5557 = vst.msk [vmem:[#allocation3 + $0x38] sm:$0xff] %vm5549, %v5372
    %5558 = vst.msk [vmem:[#allocation3 + $0x40] sm:$0xff] %vm5549, %v5374
    %5559 = vst.msk [vmem:[#allocation3 + $0x48] sm:$0xff] %vm5549, %v5376
    %5560 = vst.msk [vmem:[#allocation3 + $0x50] sm:$0xff] %vm5549, %v5378
    %5561 = vst.msk [vmem:[#allocation3 + $0x58] sm:$0xff] %vm5549, %v5380
    %5562 = vst.msk [vmem:[#allocation3 + $0x60] sm:$0xff] %vm5549, %v5382
    %5563 = vst.msk [vmem:[#allocation3 + $0x68] sm:$0xff] %vm5549, %v5384
    %5564 = vst.msk [vmem:[#allocation3 + $0x70] sm:$0xff] %vm5549, %v5386
    %5565 = vst.msk [vmem:[#allocation3 + $0x78] sm:$0xff] %vm5549, %v5388
    %5566 = vst.msk [vmem:[#allocation3 + $0x80] sm:$0xff] %vm5549, %v5390
    %5567 = vst.msk [vmem:[#allocation3 + $0x88] sm:$0xff] %vm5549, %v5392
    %5568 = vst.msk [vmem:[#allocation3 + $0x90] sm:$0xff] %vm5549, %v5394
    %5569 = vst.msk [vmem:[#allocation3 + $0x98] sm:$0xff] %vm5549, %v5396
    %5570 = vst.msk [vmem:[#allocation3 + $0xa0] sm:$0xff] %vm5549, %v5398
    %5571 = vst.msk [vmem:[#allocation3 + $0xa8] sm:$0xff] %vm5549, %v5400
    %5572 = vst.msk [vmem:[#allocation3 + $0xb0] sm:$0xff] %vm5549, %v5402
    %5573 = vst.msk [vmem:[#allocation3 + $0xb8] sm:$0xff] %vm5549, %v5404
    %5574 = vst.msk [vmem:[#allocation3 + $0xc0] sm:$0xff] %vm5549, %v5406
    %5575 = vst.msk [vmem:[#allocation3 + $0xc8] sm:$0xff] %vm5549, %v5408
    %5576 = vst.msk [vmem:[#allocation3 + $0xd0] sm:$0xff] %vm5549, %v5410
    %5577 = vst.msk [vmem:[#allocation3 + $0xd8] sm:$0xff] %vm5549, %v5412
    %5578 = vst.msk [vmem:[#allocation3 + $0xe0] sm:$0xff] %vm5549, %v5414
    %5579 = vst.msk [vmem:[#allocation3 + $0xe8] sm:$0xff] %vm5549, %v5416
    %5580 = vst.msk [vmem:[#allocation3 + $0xf0] sm:$0xff] %vm5549, %v5418
    %5581 = vst.msk [vmem:[#allocation3 + $0xf8] sm:$0xff] %vm5549, %v5420
    %5582 = vst.msk [vmem:[#allocation3 + $0x100] sm:$0xff] %vm5549, %v5422
    %5583 = vst.msk [vmem:[#allocation3 + $0x108] sm:$0xff] %vm5549, %v5424
    %5584 = vst.msk [vmem:[#allocation3 + $0x110] sm:$0xff] %vm5549, %v5426
    %5585 = vst.msk [vmem:[#allocation3 + $0x118] sm:$0xff] %vm5549, %v5428
    %5586 = vst.msk [vmem:[#allocation3 + $0x120] sm:$0xff] %vm5549, %v5430
    %5587 = vst.msk [vmem:[#allocation3 + $0x128] sm:$0xff] %vm5549, %v5432
    %5588 = vst.msk [vmem:[#allocation3 + $0x130] sm:$0xff] %vm5549, %v5434
    %5589 = vst.msk [vmem:[#allocation3 + $0x138] sm:$0xff] %vm5549, %v5436
    %5590 = vst.msk [vmem:[#allocation3 + $0x140] sm:$0xff] %vm5549, %v5438
    %5591 = vst.msk [vmem:[#allocation3 + $0x148] sm:$0xff] %vm5549, %v5440
    %5592 = vst.msk [vmem:[#allocation3 + $0x150] sm:$0xff] %vm5549, %v5442
    %5593 = vst.msk [vmem:[#allocation3 + $0x158] sm:$0xff] %vm5549, %v5444
    %5594 = vst.msk [vmem:[#allocation3 + $0x160] sm:$0xff] %vm5549, %v5446
    %5595 = vst.msk [vmem:[#allocation3 + $0x168] sm:$0xff] %vm5549, %v5448
    %5596 = vst.msk [vmem:[#allocation3 + $0x170] sm:$0xff] %vm5549, %v5450
    %5597 = vst.msk [vmem:[#allocation3 + $0x178] sm:$0xff] %vm5549, %v5452
    %5598 = vst.msk [vmem:[#allocation3 + $0x180] sm:$0xff] %vm5549, %v5454
    %5599 = vst.msk [vmem:[#allocation3 + $0x188] sm:$0xff] %vm5549, %v5456
    %5600 = vst.msk [vmem:[#allocation3 + $0x190] sm:$0xff] %vm5549, %v5458
    %5601 = vst.msk [vmem:[#allocation3 + $0x198] sm:$0xff] %vm5549, %v5460
    %5602 = vst.msk [vmem:[#allocation3 + $0x1a0] sm:$0xff] %vm5549, %v5462
    %5603 = vst.msk [vmem:[#allocation3 + $0x1a8] sm:$0xff] %vm5549, %v5464
    %5604 = vst.msk [vmem:[#allocation3 + $0x1b0] sm:$0xff] %vm5549, %v5466
    %5605 = vst.msk [vmem:[#allocation3 + $0x1b8] sm:$0xff] %vm5549, %v5468
    %5606 = vst.msk [vmem:[#allocation3 + $0x1c0] sm:$0xff] %vm5549, %v5470
    %5607 = vst.msk [vmem:[#allocation3 + $0x1c8] sm:$0xff] %vm5549, %v5472
    %5608 = vst.msk [vmem:[#allocation3 + $0x1d0] sm:$0xff] %vm5549, %v5474
    %5609 = vst.msk [vmem:[#allocation3 + $0x1d8] sm:$0xff] %vm5549, %v5476
    %5610 = vst.msk [vmem:[#allocation3 + $0x1e0] sm:$0xff] %vm5549, %v5478
    %5611 = vst.msk [vmem:[#allocation3 + $0x1e8] sm:$0xff] %vm5549, %v5480
    %5612 = vst.msk [vmem:[#allocation3 + $0x1f0] sm:$0xff] %vm5549, %v5482
    %5613 = vst.msk [vmem:[#allocation3 + $0x1f8] sm:$0xff] %vm5549, %v5484
    %v5614 = vld [vmem:[%s181] sm:$0xff]
    %v5615 = vld [vmem:[%s181 + $0x8] sm:$0xff]
    %v5616 = vld [vmem:[%s181 + $0x18] sm:$0xff]
    %v5617 = vld [vmem:[%s181 + $0x20] sm:$0xff]
    %v5618 = vld [vmem:[%s181 + $0x30] sm:$0xff]
    %v5619 = vld [vmem:[%s181 + $0x38] sm:$0xff]
    %v5620 = vld [vmem:[%s181 + $0x48] sm:$0xff]
    %v5621 = vld [vmem:[%s181 + $0x50] sm:$0xff]
    %v5622 = vld [vmem:[%s181 + $0x60] sm:$0xff]
    %v5623 = vld [vmem:[%s181 + $0x68] sm:$0xff]
    %v5624 = vld [vmem:[%s181 + $0x78] sm:$0xff]
    %v5625 = vld [vmem:[%s181 + $0x80] sm:$0xff]
    %v5626 = vld [vmem:[%s181 + $0x90] sm:$0xff]
    %v5627 = vld [vmem:[%s181 + $0x98] sm:$0xff]
    %v5628 = vld [vmem:[%s181 + $0xa8] sm:$0xff]
    %v5629 = vld [vmem:[%s181 + $0xb0] sm:$0xff]
    %v5630 = vld [vmem:[%s181 + $0xc0] sm:$0xff]
    %v5631 = vld [vmem:[%s181 + $0xc8] sm:$0xff]
    %v5632 = vld [vmem:[%s181 + $0xd8] sm:$0xff]
    %v5633 = vld [vmem:[%s181 + $0xe0] sm:$0xff]
    %v5634 = vld [vmem:[%s181 + $0xf0] sm:$0xff]
    %v5635 = vld [vmem:[%s181 + $0xf8] sm:$0xff]
    %v5636 = vld [vmem:[%s181 + $0x108] sm:$0xff]
    %v5637 = vld [vmem:[%s181 + $0x110] sm:$0xff]
    %v5638 = vld [vmem:[%s181 + $0x120] sm:$0xff]
    %v5639 = vld [vmem:[%s181 + $0x128] sm:$0xff]
    %v5640 = vld [vmem:[%s181 + $0x138] sm:$0xff]
    %v5641 = vld [vmem:[%s181 + $0x140] sm:$0xff]
    %v5642 = vld [vmem:[%s181 + $0x150] sm:$0xff]
    %v5643 = vld [vmem:[%s181 + $0x158] sm:$0xff]
    %v5644 = vld [vmem:[%s181 + $0x168] sm:$0xff]
    %v5645 = vld [vmem:[%s181 + $0x170] sm:$0xff]
    %v5646 = vld [vmem:[%s181 + $0x1b0] sm:$0xff]
    %v5647 = vld [vmem:[%s181 + $0x1b8] sm:$0xff]
    %v5648 = vld [vmem:[%s181 + $0x1c8] sm:$0xff]
    %v5649 = vld [vmem:[%s181 + $0x1d0] sm:$0xff]
    %v5650 = vld [vmem:[%s181 + $0x1e0] sm:$0xff]
    %v5651 = vld [vmem:[%s181 + $0x1e8] sm:$0xff]
    %v5652 = vld [vmem:[%s181 + $0x1f8] sm:$0xff]
    %v5653 = vld [vmem:[%s181 + $0x200] sm:$0xff]
    %v5654 = vld [vmem:[%s181 + $0x210] sm:$0xff]
    %v5655 = vld [vmem:[%s181 + $0x218] sm:$0xff]
    %v5656 = vld [vmem:[%s181 + $0x228] sm:$0xff]
    %v5657 = vld [vmem:[%s181 + $0x230] sm:$0xff]
    %v5658 = vld [vmem:[%s181 + $0x240] sm:$0xff]
    %v5659 = vld [vmem:[%s181 + $0x248] sm:$0xff]
    %v5660 = vld [vmem:[%s181 + $0x258] sm:$0xff]
    %v5661 = vld [vmem:[%s181 + $0x260] sm:$0xff]
    %v5662 = vld [vmem:[%s181 + $0x270] sm:$0xff]
    %v5663 = vld [vmem:[%s181 + $0x278] sm:$0xff]
    %v5664 = vld [vmem:[%s181 + $0x288] sm:$0xff]
    %v5665 = vld [vmem:[%s181 + $0x290] sm:$0xff]
    %v5666 = vld [vmem:[%s181 + $0x2a0] sm:$0xff]
    %v5667 = vld [vmem:[%s181 + $0x2a8] sm:$0xff]
    %v5668 = vld [vmem:[%s181 + $0x2b8] sm:$0xff]
    %v5669 = vld [vmem:[%s181 + $0x2c0] sm:$0xff]
    %v5670 = vld [vmem:[%s181 + $0x2d0] sm:$0xff]
    %v5671 = vld [vmem:[%s181 + $0x2d8] sm:$0xff]
    %v5672 = vld [vmem:[%s181 + $0x2e8] sm:$0xff]
    %v5673 = vld [vmem:[%s181 + $0x2f0] sm:$0xff]
    %v5674 = vld [vmem:[%s181 + $0x300] sm:$0xff]
    %v5675 = vld [vmem:[%s181 + $0x308] sm:$0xff]
    %v5676 = vld [vmem:[%s181 + $0x318] sm:$0xff]
    %v5677 = vld [vmem:[%s181 + $0x320] sm:$0xff]
    %5742 = vrot.lane.b32.xlu0 %v5614, 24
    %v5743 = vpop.permute.xlu0 %5742
    %5744 = vrot.lane.b32.xlu0 %v5615, 24
    %v5745 = vpop.permute.xlu0 %5744
    %5746 = vrot.lane.b32.xlu0 %v5616, 24
    %v5747 = vpop.permute.xlu0 %5746
    %5748 = vrot.lane.b32.xlu0 %v5617, 24
    %v5749 = vpop.permute.xlu0 %5748
    %5750 = vrot.lane.b32.xlu0 %v5618, 24
    %v5751 = vpop.permute.xlu0 %5750
    %5752 = vrot.lane.b32.xlu0 %v5619, 24
    %v5753 = vpop.permute.xlu0 %5752
    %5754 = vrot.lane.b32.xlu0 %v5620, 24
    %v5755 = vpop.permute.xlu0 %5754
    %5756 = vrot.lane.b32.xlu0 %v5621, 24
    %v5757 = vpop.permute.xlu0 %5756
    %5758 = vrot.lane.b32.xlu0 %v5622, 24
    %v5759 = vpop.permute.xlu0 %5758
    %5760 = vrot.lane.b32.xlu0 %v5623, 24
    %v5761 = vpop.permute.xlu0 %5760
    %5762 = vrot.lane.b32.xlu0 %v5624, 24
    %v5763 = vpop.permute.xlu0 %5762
    %5764 = vrot.lane.b32.xlu0 %v5625, 24
    %v5765 = vpop.permute.xlu0 %5764
    %5766 = vrot.lane.b32.xlu0 %v5626, 24
    %v5767 = vpop.permute.xlu0 %5766
    %5768 = vrot.lane.b32.xlu0 %v5627, 24
    %v5769 = vpop.permute.xlu0 %5768
    %5770 = vrot.lane.b32.xlu0 %v5628, 24
    %v5771 = vpop.permute.xlu0 %5770
    %5772 = vrot.lane.b32.xlu0 %v5629, 24
    %v5773 = vpop.permute.xlu0 %5772
    %5774 = vrot.lane.b32.xlu0 %v5630, 24
    %v5775 = vpop.permute.xlu0 %5774
    %5776 = vrot.lane.b32.xlu0 %v5631, 24
    %v5777 = vpop.permute.xlu0 %5776
    %5778 = vrot.lane.b32.xlu0 %v5632, 24
    %v5779 = vpop.permute.xlu0 %5778
    %5780 = vrot.lane.b32.xlu0 %v5633, 24
    %v5781 = vpop.permute.xlu0 %5780
    %5782 = vrot.lane.b32.xlu0 %v5634, 24
    %v5783 = vpop.permute.xlu0 %5782
    %5784 = vrot.lane.b32.xlu0 %v5635, 24
    %v5785 = vpop.permute.xlu0 %5784
    %5786 = vrot.lane.b32.xlu0 %v5636, 24
    %v5787 = vpop.permute.xlu0 %5786
    %5788 = vrot.lane.b32.xlu0 %v5637, 24
    %v5789 = vpop.permute.xlu0 %5788
    %5790 = vrot.lane.b32.xlu0 %v5638, 24
    %v5791 = vpop.permute.xlu0 %5790
    %5792 = vrot.lane.b32.xlu0 %v5639, 24
    %v5793 = vpop.permute.xlu0 %5792
    %5794 = vrot.lane.b32.xlu0 %v5640, 24
    %v5795 = vpop.permute.xlu0 %5794
    %5796 = vrot.lane.b32.xlu0 %v5641, 24
    %v5797 = vpop.permute.xlu0 %5796
    %5798 = vrot.lane.b32.xlu0 %v5642, 24
    %v5799 = vpop.permute.xlu0 %5798
    %5800 = vrot.lane.b32.xlu0 %v5643, 24
    %v5801 = vpop.permute.xlu0 %5800
    %5802 = vrot.lane.b32.xlu0 %v5644, 24
    %v5803 = vpop.permute.xlu0 %5802
    %5804 = vrot.lane.b32.xlu0 %v5645, 24
    %v5805 = vpop.permute.xlu0 %5804
    %5806 = vrot.lane.b32.xlu0 %v5646, 24
    %v5807 = vpop.permute.xlu0 %5806
    %5808 = vrot.lane.b32.xlu0 %v5647, 24
    %v5809 = vpop.permute.xlu0 %5808
    %5810 = vrot.lane.b32.xlu0 %v5648, 24
    %v5811 = vpop.permute.xlu0 %5810
    %5812 = vrot.lane.b32.xlu0 %v5649, 24
    %v5813 = vpop.permute.xlu0 %5812
    %5814 = vrot.lane.b32.xlu0 %v5650, 24
    %v5815 = vpop.permute.xlu0 %5814
    %5816 = vrot.lane.b32.xlu0 %v5651, 24
    %v5817 = vpop.permute.xlu0 %5816
    %5818 = vrot.lane.b32.xlu0 %v5652, 24
    %v5819 = vpop.permute.xlu0 %5818
    %5820 = vrot.lane.b32.xlu0 %v5653, 24
    %v5821 = vpop.permute.xlu0 %5820
    %5822 = vrot.lane.b32.xlu0 %v5654, 24
    %v5823 = vpop.permute.xlu0 %5822
    %5824 = vrot.lane.b32.xlu0 %v5655, 24
    %v5825 = vpop.permute.xlu0 %5824
    %5826 = vrot.lane.b32.xlu0 %v5656, 24
    %v5827 = vpop.permute.xlu0 %5826
    %5828 = vrot.lane.b32.xlu0 %v5657, 24
    %v5829 = vpop.permute.xlu0 %5828
    %5830 = vrot.lane.b32.xlu0 %v5658, 24
    %v5831 = vpop.permute.xlu0 %5830
    %5832 = vrot.lane.b32.xlu0 %v5659, 24
    %v5833 = vpop.permute.xlu0 %5832
    %5834 = vrot.lane.b32.xlu0 %v5660, 24
    %v5835 = vpop.permute.xlu0 %5834
    %5836 = vrot.lane.b32.xlu0 %v5661, 24
    %v5837 = vpop.permute.xlu0 %5836
    %5838 = vrot.lane.b32.xlu0 %v5662, 24
    %v5839 = vpop.permute.xlu0 %5838
    %5840 = vrot.lane.b32.xlu0 %v5663, 24
    %v5841 = vpop.permute.xlu0 %5840
    %5842 = vrot.lane.b32.xlu0 %v5664, 24
    %v5843 = vpop.permute.xlu0 %5842
    %5844 = vrot.lane.b32.xlu0 %v5665, 24
    %v5845 = vpop.permute.xlu0 %5844
    %5846 = vrot.lane.b32.xlu0 %v5666, 24
    %v5847 = vpop.permute.xlu0 %5846
    %5848 = vrot.lane.b32.xlu0 %v5667, 24
    %v5849 = vpop.permute.xlu0 %5848
    %5850 = vrot.lane.b32.xlu0 %v5668, 24
    %v5851 = vpop.permute.xlu0 %5850
    %5852 = vrot.lane.b32.xlu0 %v5669, 24
    %v5853 = vpop.permute.xlu0 %5852
    %5854 = vrot.lane.b32.xlu0 %v5670, 24
    %v5855 = vpop.permute.xlu0 %5854
    %5856 = vrot.lane.b32.xlu0 %v5671, 24
    %v5857 = vpop.permute.xlu0 %5856
    %5858 = vrot.lane.b32.xlu0 %v5672, 24
    %v5859 = vpop.permute.xlu0 %5858
    %5860 = vrot.lane.b32.xlu0 %v5673, 24
    %v5861 = vpop.permute.xlu0 %5860
    %5862 = vrot.lane.b32.xlu0 %v5674, 24
    %v5863 = vpop.permute.xlu0 %5862
    %5864 = vrot.lane.b32.xlu0 %v5675, 24
    %v5865 = vpop.permute.xlu0 %5864
    %5866 = vrot.lane.b32.xlu0 %v5676, 24
    %v5867 = vpop.permute.xlu0 %5866
    %5868 = vrot.lane.b32.xlu0 %v5677, 24
    %v5869 = vpop.permute.xlu0 %5868
    %vm5934 = vcmask 261312
    %5935 = vst.msk [vmem:[#allocation3] sm:$0xff] %vm5934, %v5743
    %5936 = vst.msk [vmem:[#allocation3 + $0x8] sm:$0xff] %vm5934, %v5745
    %5937 = vst.msk [vmem:[#allocation3 + $0x10] sm:$0xff] %vm5934, %v5747
    %5938 = vst.msk [vmem:[#allocation3 + $0x18] sm:$0xff] %vm5934, %v5749
    %5939 = vst.msk [vmem:[#allocation3 + $0x20] sm:$0xff] %vm5934, %v5751
    %5940 = vst.msk [vmem:[#allocation3 + $0x28] sm:$0xff] %vm5934, %v5753
    %5941 = vst.msk [vmem:[#allocation3 + $0x30] sm:$0xff] %vm5934, %v5755
    %5942 = vst.msk [vmem:[#allocation3 + $0x38] sm:$0xff] %vm5934, %v5757
    %5943 = vst.msk [vmem:[#allocation3 + $0x40] sm:$0xff] %vm5934, %v5759
    %5944 = vst.msk [vmem:[#allocation3 + $0x48] sm:$0xff] %vm5934, %v5761
    %5945 = vst.msk [vmem:[#allocation3 + $0x50] sm:$0xff] %vm5934, %v5763
    %5946 = vst.msk [vmem:[#allocation3 + $0x58] sm:$0xff] %vm5934, %v5765
    %5947 = vst.msk [vmem:[#allocation3 + $0x60] sm:$0xff] %vm5934, %v5767
    %5948 = vst.msk [vmem:[#allocation3 + $0x68] sm:$0xff] %vm5934, %v5769
    %5949 = vst.msk [vmem:[#allocation3 + $0x70] sm:$0xff] %vm5934, %v5771
    %5950 = vst.msk [vmem:[#allocation3 + $0x78] sm:$0xff] %vm5934, %v5773
    %5951 = vst.msk [vmem:[#allocation3 + $0x80] sm:$0xff] %vm5934, %v5775
    %5952 = vst.msk [vmem:[#allocation3 + $0x88] sm:$0xff] %vm5934, %v5777
    %5953 = vst.msk [vmem:[#allocation3 + $0x90] sm:$0xff] %vm5934, %v5779
    %5954 = vst.msk [vmem:[#allocation3 + $0x98] sm:$0xff] %vm5934, %v5781
    %5955 = vst.msk [vmem:[#allocation3 + $0xa0] sm:$0xff] %vm5934, %v5783
    %5956 = vst.msk [vmem:[#allocation3 + $0xa8] sm:$0xff] %vm5934, %v5785
    %5957 = vst.msk [vmem:[#allocation3 + $0xb0] sm:$0xff] %vm5934, %v5787
    %5958 = vst.msk [vmem:[#allocation3 + $0xb8] sm:$0xff] %vm5934, %v5789
    %5959 = vst.msk [vmem:[#allocation3 + $0xc0] sm:$0xff] %vm5934, %v5791
    %5960 = vst.msk [vmem:[#allocation3 + $0xc8] sm:$0xff] %vm5934, %v5793
    %5961 = vst.msk [vmem:[#allocation3 + $0xd0] sm:$0xff] %vm5934, %v5795
    %5962 = vst.msk [vmem:[#allocation3 + $0xd8] sm:$0xff] %vm5934, %v5797
    %5963 = vst.msk [vmem:[#allocation3 + $0xe0] sm:$0xff] %vm5934, %v5799
    %5964 = vst.msk [vmem:[#allocation3 + $0xe8] sm:$0xff] %vm5934, %v5801
    %5965 = vst.msk [vmem:[#allocation3 + $0xf0] sm:$0xff] %vm5934, %v5803
    %5966 = vst.msk [vmem:[#allocation3 + $0xf8] sm:$0xff] %vm5934, %v5805
    %5967 = vst.msk [vmem:[#allocation3 + $0x100] sm:$0xff] %vm5934, %v5807
    %5968 = vst.msk [vmem:[#allocation3 + $0x108] sm:$0xff] %vm5934, %v5809
    %5969 = vst.msk [vmem:[#allocation3 + $0x110] sm:$0xff] %vm5934, %v5811
    %5970 = vst.msk [vmem:[#allocation3 + $0x118] sm:$0xff] %vm5934, %v5813
    %5971 = vst.msk [vmem:[#allocation3 + $0x120] sm:$0xff] %vm5934, %v5815
    %5972 = vst.msk [vmem:[#allocation3 + $0x128] sm:$0xff] %vm5934, %v5817
    %5973 = vst.msk [vmem:[#allocation3 + $0x130] sm:$0xff] %vm5934, %v5819
    %5974 = vst.msk [vmem:[#allocation3 + $0x138] sm:$0xff] %vm5934, %v5821
    %5975 = vst.msk [vmem:[#allocation3 + $0x140] sm:$0xff] %vm5934, %v5823
    %5976 = vst.msk [vmem:[#allocation3 + $0x148] sm:$0xff] %vm5934, %v5825
    %5977 = vst.msk [vmem:[#allocation3 + $0x150] sm:$0xff] %vm5934, %v5827
    %5978 = vst.msk [vmem:[#allocation3 + $0x158] sm:$0xff] %vm5934, %v5829
    %5979 = vst.msk [vmem:[#allocation3 + $0x160] sm:$0xff] %vm5934, %v5831
    %5980 = vst.msk [vmem:[#allocation3 + $0x168] sm:$0xff] %vm5934, %v5833
    %5981 = vst.msk [vmem:[#allocation3 + $0x170] sm:$0xff] %vm5934, %v5835
    %5982 = vst.msk [vmem:[#allocation3 + $0x178] sm:$0xff] %vm5934, %v5837
    %5983 = vst.msk [vmem:[#allocation3 + $0x180] sm:$0xff] %vm5934, %v5839
    %5984 = vst.msk [vmem:[#allocation3 + $0x188] sm:$0xff] %vm5934, %v5841
    %5985 = vst.msk [vmem:[#allocation3 + $0x190] sm:$0xff] %vm5934, %v5843
    %5986 = vst.msk [vmem:[#allocation3 + $0x198] sm:$0xff] %vm5934, %v5845
    %5987 = vst.msk [vmem:[#allocation3 + $0x1a0] sm:$0xff] %vm5934, %v5847
    %5988 = vst.msk [vmem:[#allocation3 + $0x1a8] sm:$0xff] %vm5934, %v5849
    %5989 = vst.msk [vmem:[#allocation3 + $0x1b0] sm:$0xff] %vm5934, %v5851
    %5990 = vst.msk [vmem:[#allocation3 + $0x1b8] sm:$0xff] %vm5934, %v5853
    %5991 = vst.msk [vmem:[#allocation3 + $0x1c0] sm:$0xff] %vm5934, %v5855
    %5992 = vst.msk [vmem:[#allocation3 + $0x1c8] sm:$0xff] %vm5934, %v5857
    %5993 = vst.msk [vmem:[#allocation3 + $0x1d0] sm:$0xff] %vm5934, %v5859
    %5994 = vst.msk [vmem:[#allocation3 + $0x1d8] sm:$0xff] %vm5934, %v5861
    %5995 = vst.msk [vmem:[#allocation3 + $0x1e0] sm:$0xff] %vm5934, %v5863
    %5996 = vst.msk [vmem:[#allocation3 + $0x1e8] sm:$0xff] %vm5934, %v5865
    %5997 = vst.msk [vmem:[#allocation3 + $0x1f0] sm:$0xff] %vm5934, %v5867
    %5998 = vst.msk [vmem:[#allocation3 + $0x1f8] sm:$0xff] %vm5934, %v5869
    %v5999 = vld [vmem:[%s181 + $0x1] sm:$0xff]
    %v6000 = vld [vmem:[%s181 + $0x9] sm:$0xff]
    %v6001 = vld [vmem:[%s181 + $0x19] sm:$0xff]
    %v6002 = vld [vmem:[%s181 + $0x21] sm:$0xff]
    %v6003 = vld [vmem:[%s181 + $0x31] sm:$0xff]
    %v6004 = vld [vmem:[%s181 + $0x39] sm:$0xff]
    %v6005 = vld [vmem:[%s181 + $0x49] sm:$0xff]
    %v6006 = vld [vmem:[%s181 + $0x51] sm:$0xff]
    %v6007 = vld [vmem:[%s181 + $0x61] sm:$0xff]
    %v6008 = vld [vmem:[%s181 + $0x69] sm:$0xff]
    %v6009 = vld [vmem:[%s181 + $0x79] sm:$0xff]
    %v6010 = vld [vmem:[%s181 + $0x81] sm:$0xff]
    %v6011 = vld [vmem:[%s181 + $0x91] sm:$0xff]
    %v6012 = vld [vmem:[%s181 + $0x99] sm:$0xff]
    %v6013 = vld [vmem:[%s181 + $0xa9] sm:$0xff]
    %v6014 = vld [vmem:[%s181 + $0xb1] sm:$0xff]
    %v6015 = vld [vmem:[%s181 + $0xc1] sm:$0xff]
    %v6016 = vld [vmem:[%s181 + $0xc9] sm:$0xff]
    %v6017 = vld [vmem:[%s181 + $0xd9] sm:$0xff]
    %v6018 = vld [vmem:[%s181 + $0xe1] sm:$0xff]
    %v6019 = vld [vmem:[%s181 + $0xf1] sm:$0xff]
    %v6020 = vld [vmem:[%s181 + $0xf9] sm:$0xff]
    %v6021 = vld [vmem:[%s181 + $0x109] sm:$0xff]
    %v6022 = vld [vmem:[%s181 + $0x111] sm:$0xff]
    %v6023 = vld [vmem:[%s181 + $0x121] sm:$0xff]
    %v6024 = vld [vmem:[%s181 + $0x129] sm:$0xff]
    %v6025 = vld [vmem:[%s181 + $0x139] sm:$0xff]
    %v6026 = vld [vmem:[%s181 + $0x141] sm:$0xff]
    %v6027 = vld [vmem:[%s181 + $0x151] sm:$0xff]
    %v6028 = vld [vmem:[%s181 + $0x159] sm:$0xff]
    %v6029 = vld [vmem:[%s181 + $0x169] sm:$0xff]
    %v6030 = vld [vmem:[%s181 + $0x171] sm:$0xff]
    %v6031 = vld [vmem:[%s181 + $0x1b1] sm:$0xff]
    %v6032 = vld [vmem:[%s181 + $0x1b9] sm:$0xff]
    %v6033 = vld [vmem:[%s181 + $0x1c9] sm:$0xff]
    %v6034 = vld [vmem:[%s181 + $0x1d1] sm:$0xff]
    %v6035 = vld [vmem:[%s181 + $0x1e1] sm:$0xff]
    %v6036 = vld [vmem:[%s181 + $0x1e9] sm:$0xff]
    %v6037 = vld [vmem:[%s181 + $0x1f9] sm:$0xff]
    %v6038 = vld [vmem:[%s181 + $0x201] sm:$0xff]
    %v6039 = vld [vmem:[%s181 + $0x211] sm:$0xff]
    %v6040 = vld [vmem:[%s181 + $0x219] sm:$0xff]
    %v6041 = vld [vmem:[%s181 + $0x229] sm:$0xff]
    %v6042 = vld [vmem:[%s181 + $0x231] sm:$0xff]
    %v6043 = vld [vmem:[%s181 + $0x241] sm:$0xff]
    %v6044 = vld [vmem:[%s181 + $0x249] sm:$0xff]
    %v6045 = vld [vmem:[%s181 + $0x259] sm:$0xff]
    %v6046 = vld [vmem:[%s181 + $0x261] sm:$0xff]
    %v6047 = vld [vmem:[%s181 + $0x271] sm:$0xff]
    %v6048 = vld [vmem:[%s181 + $0x279] sm:$0xff]
    %v6049 = vld [vmem:[%s181 + $0x289] sm:$0xff]
    %v6050 = vld [vmem:[%s181 + $0x291] sm:$0xff]
    %v6051 = vld [vmem:[%s181 + $0x2a1] sm:$0xff]
    %v6052 = vld [vmem:[%s181 + $0x2a9] sm:$0xff]
    %v6053 = vld [vmem:[%s181 + $0x2b9] sm:$0xff]
    %v6054 = vld [vmem:[%s181 + $0x2c1] sm:$0xff]
    %v6055 = vld [vmem:[%s181 + $0x2d1] sm:$0xff]
    %v6056 = vld [vmem:[%s181 + $0x2d9] sm:$0xff]
    %v6057 = vld [vmem:[%s181 + $0x2e9] sm:$0xff]
    %v6058 = vld [vmem:[%s181 + $0x2f1] sm:$0xff]
    %v6059 = vld [vmem:[%s181 + $0x301] sm:$0xff]
    %v6060 = vld [vmem:[%s181 + $0x309] sm:$0xff]
    %v6061 = vld [vmem:[%s181 + $0x319] sm:$0xff]
    %v6062 = vld [vmem:[%s181 + $0x321] sm:$0xff]
    %6127 = vrot.lane.b32.xlu0 %v5999, 32
    %v6128 = vpop.permute.xlu0 %6127
    %6129 = vrot.lane.b32.xlu0 %v6000, 32
    %v6130 = vpop.permute.xlu0 %6129
    %6131 = vrot.lane.b32.xlu0 %v6001, 32
    %v6132 = vpop.permute.xlu0 %6131
    %6133 = vrot.lane.b32.xlu0 %v6002, 32
    %v6134 = vpop.permute.xlu0 %6133
    %6135 = vrot.lane.b32.xlu0 %v6003, 32
    %v6136 = vpop.permute.xlu0 %6135
    %6137 = vrot.lane.b32.xlu0 %v6004, 32
    %v6138 = vpop.permute.xlu0 %6137
    %6139 = vrot.lane.b32.xlu0 %v6005, 32
    %v6140 = vpop.permute.xlu0 %6139
    %6141 = vrot.lane.b32.xlu0 %v6006, 32
    %v6142 = vpop.permute.xlu0 %6141
    %6143 = vrot.lane.b32.xlu0 %v6007, 32
    %v6144 = vpop.permute.xlu0 %6143
    %6145 = vrot.lane.b32.xlu0 %v6008, 32
    %v6146 = vpop.permute.xlu0 %6145
    %6147 = vrot.lane.b32.xlu0 %v6009, 32
    %v6148 = vpop.permute.xlu0 %6147
    %6149 = vrot.lane.b32.xlu0 %v6010, 32
    %v6150 = vpop.permute.xlu0 %6149
    %6151 = vrot.lane.b32.xlu0 %v6011, 32
    %v6152 = vpop.permute.xlu0 %6151
    %6153 = vrot.lane.b32.xlu0 %v6012, 32
    %v6154 = vpop.permute.xlu0 %6153
    %6155 = vrot.lane.b32.xlu0 %v6013, 32
    %v6156 = vpop.permute.xlu0 %6155
    %6157 = vrot.lane.b32.xlu0 %v6014, 32
    %v6158 = vpop.permute.xlu0 %6157
    %6159 = vrot.lane.b32.xlu0 %v6015, 32
    %v6160 = vpop.permute.xlu0 %6159
    %6161 = vrot.lane.b32.xlu0 %v6016, 32
    %v6162 = vpop.permute.xlu0 %6161
    %6163 = vrot.lane.b32.xlu0 %v6017, 32
    %v6164 = vpop.permute.xlu0 %6163
    %6165 = vrot.lane.b32.xlu0 %v6018, 32
    %v6166 = vpop.permute.xlu0 %6165
    %6167 = vrot.lane.b32.xlu0 %v6019, 32
    %v6168 = vpop.permute.xlu0 %6167
    %6169 = vrot.lane.b32.xlu0 %v6020, 32
    %v6170 = vpop.permute.xlu0 %6169
    %6171 = vrot.lane.b32.xlu0 %v6021, 32
    %v6172 = vpop.permute.xlu0 %6171
    %6173 = vrot.lane.b32.xlu0 %v6022, 32
    %v6174 = vpop.permute.xlu0 %6173
    %6175 = vrot.lane.b32.xlu0 %v6023, 32
    %v6176 = vpop.permute.xlu0 %6175
    %6177 = vrot.lane.b32.xlu0 %v6024, 32
    %v6178 = vpop.permute.xlu0 %6177
    %6179 = vrot.lane.b32.xlu0 %v6025, 32
    %v6180 = vpop.permute.xlu0 %6179
    %6181 = vrot.lane.b32.xlu0 %v6026, 32
    %v6182 = vpop.permute.xlu0 %6181
    %6183 = vrot.lane.b32.xlu0 %v6027, 32
    %v6184 = vpop.permute.xlu0 %6183
    %6185 = vrot.lane.b32.xlu0 %v6028, 32
    %v6186 = vpop.permute.xlu0 %6185
    %6187 = vrot.lane.b32.xlu0 %v6029, 32
    %v6188 = vpop.permute.xlu0 %6187
    %6189 = vrot.lane.b32.xlu0 %v6030, 32
    %v6190 = vpop.permute.xlu0 %6189
    %6191 = vrot.lane.b32.xlu0 %v6031, 32
    %v6192 = vpop.permute.xlu0 %6191
    %6193 = vrot.lane.b32.xlu0 %v6032, 32
    %v6194 = vpop.permute.xlu0 %6193
    %6195 = vrot.lane.b32.xlu0 %v6033, 32
    %v6196 = vpop.permute.xlu0 %6195
    %6197 = vrot.lane.b32.xlu0 %v6034, 32
    %v6198 = vpop.permute.xlu0 %6197
    %6199 = vrot.lane.b32.xlu0 %v6035, 32
    %v6200 = vpop.permute.xlu0 %6199
    %6201 = vrot.lane.b32.xlu0 %v6036, 32
    %v6202 = vpop.permute.xlu0 %6201
    %6203 = vrot.lane.b32.xlu0 %v6037, 32
    %v6204 = vpop.permute.xlu0 %6203
    %6205 = vrot.lane.b32.xlu0 %v6038, 32
    %v6206 = vpop.permute.xlu0 %6205
    %6207 = vrot.lane.b32.xlu0 %v6039, 32
    %v6208 = vpop.permute.xlu0 %6207
    %6209 = vrot.lane.b32.xlu0 %v6040, 32
    %v6210 = vpop.permute.xlu0 %6209
    %6211 = vrot.lane.b32.xlu0 %v6041, 32
    %v6212 = vpop.permute.xlu0 %6211
    %6213 = vrot.lane.b32.xlu0 %v6042, 32
    %v6214 = vpop.permute.xlu0 %6213
    %6215 = vrot.lane.b32.xlu0 %v6043, 32
    %v6216 = vpop.permute.xlu0 %6215
    %6217 = vrot.lane.b32.xlu0 %v6044, 32
    %v6218 = vpop.permute.xlu0 %6217
    %6219 = vrot.lane.b32.xlu0 %v6045, 32
    %v6220 = vpop.permute.xlu0 %6219
    %6221 = vrot.lane.b32.xlu0 %v6046, 32
    %v6222 = vpop.permute.xlu0 %6221
    %6223 = vrot.lane.b32.xlu0 %v6047, 32
    %v6224 = vpop.permute.xlu0 %6223
    %6225 = vrot.lane.b32.xlu0 %v6048, 32
    %v6226 = vpop.permute.xlu0 %6225
    %6227 = vrot.lane.b32.xlu0 %v6049, 32
    %v6228 = vpop.permute.xlu0 %6227
    %6229 = vrot.lane.b32.xlu0 %v6050, 32
    %v6230 = vpop.permute.xlu0 %6229
    %6231 = vrot.lane.b32.xlu0 %v6051, 32
    %v6232 = vpop.permute.xlu0 %6231
    %6233 = vrot.lane.b32.xlu0 %v6052, 32
    %v6234 = vpop.permute.xlu0 %6233
    %6235 = vrot.lane.b32.xlu0 %v6053, 32
    %v6236 = vpop.permute.xlu0 %6235
    %6237 = vrot.lane.b32.xlu0 %v6054, 32
    %v6238 = vpop.permute.xlu0 %6237
    %6239 = vrot.lane.b32.xlu0 %v6055, 32
    %v6240 = vpop.permute.xlu0 %6239
    %6241 = vrot.lane.b32.xlu0 %v6056, 32
    %v6242 = vpop.permute.xlu0 %6241
    %6243 = vrot.lane.b32.xlu0 %v6057, 32
    %v6244 = vpop.permute.xlu0 %6243
    %6245 = vrot.lane.b32.xlu0 %v6058, 32
    %v6246 = vpop.permute.xlu0 %6245
    %6247 = vrot.lane.b32.xlu0 %v6059, 32
    %v6248 = vpop.permute.xlu0 %6247
    %6249 = vrot.lane.b32.xlu0 %v6060, 32
    %v6250 = vpop.permute.xlu0 %6249
    %6251 = vrot.lane.b32.xlu0 %v6061, 32
    %v6252 = vpop.permute.xlu0 %6251
    %6253 = vrot.lane.b32.xlu0 %v6062, 32
    %v6254 = vpop.permute.xlu0 %6253
    %vm6319 = vcmask 326912
    %6320 = vst.msk [vmem:[#allocation3] sm:$0xff] %vm6319, %v6128
    %6321 = vst.msk [vmem:[#allocation3 + $0x8] sm:$0xff] %vm6319, %v6130
    %6322 = vst.msk [vmem:[#allocation3 + $0x10] sm:$0xff] %vm6319, %v6132
    %6323 = vst.msk [vmem:[#allocation3 + $0x18] sm:$0xff] %vm6319, %v6134
    %6324 = vst.msk [vmem:[#allocation3 + $0x20] sm:$0xff] %vm6319, %v6136
    %6325 = vst.msk [vmem:[#allocation3 + $0x28] sm:$0xff] %vm6319, %v6138
    %6326 = vst.msk [vmem:[#allocation3 + $0x30] sm:$0xff] %vm6319, %v6140
    %6327 = vst.msk [vmem:[#allocation3 + $0x38] sm:$0xff] %vm6319, %v6142
    %6328 = vst.msk [vmem:[#allocation3 + $0x40] sm:$0xff] %vm6319, %v6144
    %6329 = vst.msk [vmem:[#allocation3 + $0x48] sm:$0xff] %vm6319, %v6146
    %6330 = vst.msk [vmem:[#allocation3 + $0x50] sm:$0xff] %vm6319, %v6148
    %6331 = vst.msk [vmem:[#allocation3 + $0x58] sm:$0xff] %vm6319, %v6150
    %6332 = vst.msk [vmem:[#allocation3 + $0x60] sm:$0xff] %vm6319, %v6152
    %6333 = vst.msk [vmem:[#allocation3 + $0x68] sm:$0xff] %vm6319, %v6154
    %6334 = vst.msk [vmem:[#allocation3 + $0x70] sm:$0xff] %vm6319, %v6156
    %6335 = vst.msk [vmem:[#allocation3 + $0x78] sm:$0xff] %vm6319, %v6158
    %6336 = vst.msk [vmem:[#allocation3 + $0x80] sm:$0xff] %vm6319, %v6160
    %6337 = vst.msk [vmem:[#allocation3 + $0x88] sm:$0xff] %vm6319, %v6162
    %6338 = vst.msk [vmem:[#allocation3 + $0x90] sm:$0xff] %vm6319, %v6164
    %6339 = vst.msk [vmem:[#allocation3 + $0x98] sm:$0xff] %vm6319, %v6166
    %6340 = vst.msk [vmem:[#allocation3 + $0xa0] sm:$0xff] %vm6319, %v6168
    %6341 = vst.msk [vmem:[#allocation3 + $0xa8] sm:$0xff] %vm6319, %v6170
    %6342 = vst.msk [vmem:[#allocation3 + $0xb0] sm:$0xff] %vm6319, %v6172
    %6343 = vst.msk [vmem:[#allocation3 + $0xb8] sm:$0xff] %vm6319, %v6174
    %6344 = vst.msk [vmem:[#allocation3 + $0xc0] sm:$0xff] %vm6319, %v6176
    %6345 = vst.msk [vmem:[#allocation3 + $0xc8] sm:$0xff] %vm6319, %v6178
    %6346 = vst.msk [vmem:[#allocation3 + $0xd0] sm:$0xff] %vm6319, %v6180
    %6347 = vst.msk [vmem:[#allocation3 + $0xd8] sm:$0xff] %vm6319, %v6182
    %6348 = vst.msk [vmem:[#allocation3 + $0xe0] sm:$0xff] %vm6319, %v6184
    %6349 = vst.msk [vmem:[#allocation3 + $0xe8] sm:$0xff] %vm6319, %v6186
    %6350 = vst.msk [vmem:[#allocation3 + $0xf0] sm:$0xff] %vm6319, %v6188
    %6351 = vst.msk [vmem:[#allocation3 + $0xf8] sm:$0xff] %vm6319, %v6190
    %6352 = vst.msk [vmem:[#allocation3 + $0x100] sm:$0xff] %vm6319, %v6192
    %6353 = vst.msk [vmem:[#allocation3 + $0x108] sm:$0xff] %vm6319, %v6194
    %6354 = vst.msk [vmem:[#allocation3 + $0x110] sm:$0xff] %vm6319, %v6196
    %6355 = vst.msk [vmem:[#allocation3 + $0x118] sm:$0xff] %vm6319, %v6198
    %6356 = vst.msk [vmem:[#allocation3 + $0x120] sm:$0xff] %vm6319, %v6200
    %6357 = vst.msk [vmem:[#allocation3 + $0x128] sm:$0xff] %vm6319, %v6202
    %6358 = vst.msk [vmem:[#allocation3 + $0x130] sm:$0xff] %vm6319, %v6204
    %6359 = vst.msk [vmem:[#allocation3 + $0x138] sm:$0xff] %vm6319, %v6206
    %6360 = vst.msk [vmem:[#allocation3 + $0x140] sm:$0xff] %vm6319, %v6208
    %6361 = vst.msk [vmem:[#allocation3 + $0x148] sm:$0xff] %vm6319, %v6210
    %6362 = vst.msk [vmem:[#allocation3 + $0x150] sm:$0xff] %vm6319, %v6212
    %6363 = vst.msk [vmem:[#allocation3 + $0x158] sm:$0xff] %vm6319, %v6214
    %6364 = vst.msk [vmem:[#allocation3 + $0x160] sm:$0xff] %vm6319, %v6216
    %6365 = vst.msk [vmem:[#allocation3 + $0x168] sm:$0xff] %vm6319, %v6218
    %6366 = vst.msk [vmem:[#allocation3 + $0x170] sm:$0xff] %vm6319, %v6220
    %6367 = vst.msk [vmem:[#allocation3 + $0x178] sm:$0xff] %vm6319, %v6222
    %6368 = vst.msk [vmem:[#allocation3 + $0x180] sm:$0xff] %vm6319, %v6224
    %6369 = vst.msk [vmem:[#allocation3 + $0x188] sm:$0xff] %vm6319, %v6226
    %6370 = vst.msk [vmem:[#allocation3 + $0x190] sm:$0xff] %vm6319, %v6228
    %6371 = vst.msk [vmem:[#allocation3 + $0x198] sm:$0xff] %vm6319, %v6230
    %6372 = vst.msk [vmem:[#allocation3 + $0x1a0] sm:$0xff] %vm6319, %v6232
    %6373 = vst.msk [vmem:[#allocation3 + $0x1a8] sm:$0xff] %vm6319, %v6234
    %6374 = vst.msk [vmem:[#allocation3 + $0x1b0] sm:$0xff] %vm6319, %v6236
    %6375 = vst.msk [vmem:[#allocation3 + $0x1b8] sm:$0xff] %vm6319, %v6238
    %6376 = vst.msk [vmem:[#allocation3 + $0x1c0] sm:$0xff] %vm6319, %v6240
    %6377 = vst.msk [vmem:[#allocation3 + $0x1c8] sm:$0xff] %vm6319, %v6242
    %6378 = vst.msk [vmem:[#allocation3 + $0x1d0] sm:$0xff] %vm6319, %v6244
    %6379 = vst.msk [vmem:[#allocation3 + $0x1d8] sm:$0xff] %vm6319, %v6246
    %6380 = vst.msk [vmem:[#allocation3 + $0x1e0] sm:$0xff] %vm6319, %v6248
    %6381 = vst.msk [vmem:[#allocation3 + $0x1e8] sm:$0xff] %vm6319, %v6250
    %6382 = vst.msk [vmem:[#allocation3 + $0x1f0] sm:$0xff] %vm6319, %v6252
    %6383 = vst.msk [vmem:[#allocation3 + $0x1f8] sm:$0xff] %vm6319, %v6254
    %v6384 = vld [vmem:[%s181 + $0x2] sm:$0xff]
    %v6385 = vld [vmem:[%s181 + $0xa] sm:$0xff]
    %v6386 = vld [vmem:[%s181 + $0x1a] sm:$0xff]
    %v6387 = vld [vmem:[%s181 + $0x22] sm:$0xff]
    %v6388 = vld [vmem:[%s181 + $0x32] sm:$0xff]
    %v6389 = vld [vmem:[%s181 + $0x3a] sm:$0xff]
    %v6390 = vld [vmem:[%s181 + $0x4a] sm:$0xff]
    %v6391 = vld [vmem:[%s181 + $0x52] sm:$0xff]
    %v6392 = vld [vmem:[%s181 + $0x62] sm:$0xff]
    %v6393 = vld [vmem:[%s181 + $0x6a] sm:$0xff]
    %v6394 = vld [vmem:[%s181 + $0x7a] sm:$0xff]
    %v6395 = vld [vmem:[%s181 + $0x82] sm:$0xff]
    %v6396 = vld [vmem:[%s181 + $0x92] sm:$0xff]
    %v6397 = vld [vmem:[%s181 + $0x9a] sm:$0xff]
    %v6398 = vld [vmem:[%s181 + $0xaa] sm:$0xff]
    %v6399 = vld [vmem:[%s181 + $0xb2] sm:$0xff]
    %v6400 = vld [vmem:[%s181 + $0xc2] sm:$0xff]
    %v6401 = vld [vmem:[%s181 + $0xca] sm:$0xff]
    %v6402 = vld [vmem:[%s181 + $0xda] sm:$0xff]
    %v6403 = vld [vmem:[%s181 + $0xe2] sm:$0xff]
    %v6404 = vld [vmem:[%s181 + $0xf2] sm:$0xff]
    %v6405 = vld [vmem:[%s181 + $0xfa] sm:$0xff]
    %v6406 = vld [vmem:[%s181 + $0x10a] sm:$0xff]
    %v6407 = vld [vmem:[%s181 + $0x112] sm:$0xff]
    %v6408 = vld [vmem:[%s181 + $0x122] sm:$0xff]
    %v6409 = vld [vmem:[%s181 + $0x12a] sm:$0xff]
    %v6410 = vld [vmem:[%s181 + $0x13a] sm:$0xff]
    %v6411 = vld [vmem:[%s181 + $0x142] sm:$0xff]
    %v6412 = vld [vmem:[%s181 + $0x152] sm:$0xff]
    %v6413 = vld [vmem:[%s181 + $0x15a] sm:$0xff]
    %v6414 = vld [vmem:[%s181 + $0x16a] sm:$0xff]
    %v6415 = vld [vmem:[%s181 + $0x172] sm:$0xff]
    %v6416 = vld [vmem:[%s181 + $0x1b2] sm:$0xff]
    %v6417 = vld [vmem:[%s181 + $0x1ba] sm:$0xff]
    %v6418 = vld [vmem:[%s181 + $0x1ca] sm:$0xff]
    %v6419 = vld [vmem:[%s181 + $0x1d2] sm:$0xff]
    %v6420 = vld [vmem:[%s181 + $0x1e2] sm:$0xff]
    %v6421 = vld [vmem:[%s181 + $0x1ea] sm:$0xff]
    %v6422 = vld [vmem:[%s181 + $0x1fa] sm:$0xff]
    %v6423 = vld [vmem:[%s181 + $0x202] sm:$0xff]
    %v6424 = vld [vmem:[%s181 + $0x212] sm:$0xff]
    %v6425 = vld [vmem:[%s181 + $0x21a] sm:$0xff]
    %v6426 = vld [vmem:[%s181 + $0x22a] sm:$0xff]
    %v6427 = vld [vmem:[%s181 + $0x232] sm:$0xff]
    %v6428 = vld [vmem:[%s181 + $0x242] sm:$0xff]
    %v6429 = vld [vmem:[%s181 + $0x24a] sm:$0xff]
    %v6430 = vld [vmem:[%s181 + $0x25a] sm:$0xff]
    %v6431 = vld [vmem:[%s181 + $0x262] sm:$0xff]
    %v6432 = vld [vmem:[%s181 + $0x272] sm:$0xff]
    %v6433 = vld [vmem:[%s181 + $0x27a] sm:$0xff]
    %v6434 = vld [vmem:[%s181 + $0x28a] sm:$0xff]
    %v6435 = vld [vmem:[%s181 + $0x292] sm:$0xff]
    %v6436 = vld [vmem:[%s181 + $0x2a2] sm:$0xff]
    %v6437 = vld [vmem:[%s181 + $0x2aa] sm:$0xff]
    %v6438 = vld [vmem:[%s181 + $0x2ba] sm:$0xff]
    %v6439 = vld [vmem:[%s181 + $0x2c2] sm:$0xff]
    %v6440 = vld [vmem:[%s181 + $0x2d2] sm:$0xff]
    %v6441 = vld [vmem:[%s181 + $0x2da] sm:$0xff]
    %v6442 = vld [vmem:[%s181 + $0x2ea] sm:$0xff]
    %v6443 = vld [vmem:[%s181 + $0x2f2] sm:$0xff]
    %v6444 = vld [vmem:[%s181 + $0x302] sm:$0xff]
    %v6445 = vld [vmem:[%s181 + $0x30a] sm:$0xff]
    %v6446 = vld [vmem:[%s181 + $0x31a] sm:$0xff]
    %v6447 = vld [vmem:[%s181 + $0x322] sm:$0xff]
    %6512 = vrot.lane.b32.xlu0 %v6384, 40
    %v6513 = vpop.permute.xlu0 %6512
    %6514 = vrot.lane.b32.xlu0 %v6385, 40
    %v6515 = vpop.permute.xlu0 %6514
    %6516 = vrot.lane.b32.xlu0 %v6386, 40
    %v6517 = vpop.permute.xlu0 %6516
    %6518 = vrot.lane.b32.xlu0 %v6387, 40
    %v6519 = vpop.permute.xlu0 %6518
    %6520 = vrot.lane.b32.xlu0 %v6388, 40
    %v6521 = vpop.permute.xlu0 %6520
    %6522 = vrot.lane.b32.xlu0 %v6389, 40
    %v6523 = vpop.permute.xlu0 %6522
    %6524 = vrot.lane.b32.xlu0 %v6390, 40
    %v6525 = vpop.permute.xlu0 %6524
    %6526 = vrot.lane.b32.xlu0 %v6391, 40
    %v6527 = vpop.permute.xlu0 %6526
    %6528 = vrot.lane.b32.xlu0 %v6392, 40
    %v6529 = vpop.permute.xlu0 %6528
    %6530 = vrot.lane.b32.xlu0 %v6393, 40
    %v6531 = vpop.permute.xlu0 %6530
    %6532 = vrot.lane.b32.xlu0 %v6394, 40
    %v6533 = vpop.permute.xlu0 %6532
    %6534 = vrot.lane.b32.xlu0 %v6395, 40
    %v6535 = vpop.permute.xlu0 %6534
    %6536 = vrot.lane.b32.xlu0 %v6396, 40
    %v6537 = vpop.permute.xlu0 %6536
    %6538 = vrot.lane.b32.xlu0 %v6397, 40
    %v6539 = vpop.permute.xlu0 %6538
    %6540 = vrot.lane.b32.xlu0 %v6398, 40
    %v6541 = vpop.permute.xlu0 %6540
    %6542 = vrot.lane.b32.xlu0 %v6399, 40
    %v6543 = vpop.permute.xlu0 %6542
    %6544 = vrot.lane.b32.xlu0 %v6400, 40
    %v6545 = vpop.permute.xlu0 %6544
    %6546 = vrot.lane.b32.xlu0 %v6401, 40
    %v6547 = vpop.permute.xlu0 %6546
    %6548 = vrot.lane.b32.xlu0 %v6402, 40
    %v6549 = vpop.permute.xlu0 %6548
    %6550 = vrot.lane.b32.xlu0 %v6403, 40
    %v6551 = vpop.permute.xlu0 %6550
    %6552 = vrot.lane.b32.xlu0 %v6404, 40
    %v6553 = vpop.permute.xlu0 %6552
    %6554 = vrot.lane.b32.xlu0 %v6405, 40
    %v6555 = vpop.permute.xlu0 %6554
    %6556 = vrot.lane.b32.xlu0 %v6406, 40
    %v6557 = vpop.permute.xlu0 %6556
    %6558 = vrot.lane.b32.xlu0 %v6407, 40
    %v6559 = vpop.permute.xlu0 %6558
    %6560 = vrot.lane.b32.xlu0 %v6408, 40
    %v6561 = vpop.permute.xlu0 %6560
    %6562 = vrot.lane.b32.xlu0 %v6409, 40
    %v6563 = vpop.permute.xlu0 %6562
    %6564 = vrot.lane.b32.xlu0 %v6410, 40
    %v6565 = vpop.permute.xlu0 %6564
    %6566 = vrot.lane.b32.xlu0 %v6411, 40
    %v6567 = vpop.permute.xlu0 %6566
    %6568 = vrot.lane.b32.xlu0 %v6412, 40
    %v6569 = vpop.permute.xlu0 %6568
    %6570 = vrot.lane.b32.xlu0 %v6413, 40
    %v6571 = vpop.permute.xlu0 %6570
    %6572 = vrot.lane.b32.xlu0 %v6414, 40
    %v6573 = vpop.permute.xlu0 %6572
    %6574 = vrot.lane.b32.xlu0 %v6415, 40
    %v6575 = vpop.permute.xlu0 %6574
    %6576 = vrot.lane.b32.xlu0 %v6416, 40
    %v6577 = vpop.permute.xlu0 %6576
    %6578 = vrot.lane.b32.xlu0 %v6417, 40
    %v6579 = vpop.permute.xlu0 %6578
    %6580 = vrot.lane.b32.xlu0 %v6418, 40
    %v6581 = vpop.permute.xlu0 %6580
    %6582 = vrot.lane.b32.xlu0 %v6419, 40
    %v6583 = vpop.permute.xlu0 %6582
    %6584 = vrot.lane.b32.xlu0 %v6420, 40
    %v6585 = vpop.permute.xlu0 %6584
    %6586 = vrot.lane.b32.xlu0 %v6421, 40
    %v6587 = vpop.permute.xlu0 %6586
    %6588 = vrot.lane.b32.xlu0 %v6422, 40
    %v6589 = vpop.permute.xlu0 %6588
    %6590 = vrot.lane.b32.xlu0 %v6423, 40
    %v6591 = vpop.permute.xlu0 %6590
    %6592 = vrot.lane.b32.xlu0 %v6424, 40
    %v6593 = vpop.permute.xlu0 %6592
    %6594 = vrot.lane.b32.xlu0 %v6425, 40
    %v6595 = vpop.permute.xlu0 %6594
    %6596 = vrot.lane.b32.xlu0 %v6426, 40
    %v6597 = vpop.permute.xlu0 %6596
    %6598 = vrot.lane.b32.xlu0 %v6427, 40
    %v6599 = vpop.permute.xlu0 %6598
    %6600 = vrot.lane.b32.xlu0 %v6428, 40
    %v6601 = vpop.permute.xlu0 %6600
    %6602 = vrot.lane.b32.xlu0 %v6429, 40
    %v6603 = vpop.permute.xlu0 %6602
    %6604 = vrot.lane.b32.xlu0 %v6430, 40
    %v6605 = vpop.permute.xlu0 %6604
    %6606 = vrot.lane.b32.xlu0 %v6431, 40
    %v6607 = vpop.permute.xlu0 %6606
    %6608 = vrot.lane.b32.xlu0 %v6432, 40
    %v6609 = vpop.permute.xlu0 %6608
    %6610 = vrot.lane.b32.xlu0 %v6433, 40
    %v6611 = vpop.permute.xlu0 %6610
    %6612 = vrot.lane.b32.xlu0 %v6434, 40
    %v6613 = vpop.permute.xlu0 %6612
    %6614 = vrot.lane.b32.xlu0 %v6435, 40
    %v6615 = vpop.permute.xlu0 %6614
    %6616 = vrot.lane.b32.xlu0 %v6436, 40
    %v6617 = vpop.permute.xlu0 %6616
    %6618 = vrot.lane.b32.xlu0 %v6437, 40
    %v6619 = vpop.permute.xlu0 %6618
    %6620 = vrot.lane.b32.xlu0 %v6438, 40
    %v6621 = vpop.permute.xlu0 %6620
    %6622 = vrot.lane.b32.xlu0 %v6439, 40
    %v6623 = vpop.permute.xlu0 %6622
    %6624 = vrot.lane.b32.xlu0 %v6440, 40
    %v6625 = vpop.permute.xlu0 %6624
    %6626 = vrot.lane.b32.xlu0 %v6441, 40
    %v6627 = vpop.permute.xlu0 %6626
    %6628 = vrot.lane.b32.xlu0 %v6442, 40
    %v6629 = vpop.permute.xlu0 %6628
    %6630 = vrot.lane.b32.xlu0 %v6443, 40
    %v6631 = vpop.permute.xlu0 %6630
    %6632 = vrot.lane.b32.xlu0 %v6444, 40
    %v6633 = vpop.permute.xlu0 %6632
    %6634 = vrot.lane.b32.xlu0 %v6445, 40
    %v6635 = vpop.permute.xlu0 %6634
    %6636 = vrot.lane.b32.xlu0 %v6446, 40
    %v6637 = vpop.permute.xlu0 %6636
    %6638 = vrot.lane.b32.xlu0 %v6447, 40
    %v6639 = vpop.permute.xlu0 %6638
    %vm6704 = vcmask 392512
    %6705 = vst.msk [vmem:[#allocation3] sm:$0xff] %vm6704, %v6513
    %6706 = vst.msk [vmem:[#allocation3 + $0x8] sm:$0xff] %vm6704, %v6515
    %6707 = vst.msk [vmem:[#allocation3 + $0x10] sm:$0xff] %vm6704, %v6517
    %6708 = vst.msk [vmem:[#allocation3 + $0x18] sm:$0xff] %vm6704, %v6519
    %6709 = vst.msk [vmem:[#allocation3 + $0x20] sm:$0xff] %vm6704, %v6521
    %6710 = vst.msk [vmem:[#allocation3 + $0x28] sm:$0xff] %vm6704, %v6523
    %6711 = vst.msk [vmem:[#allocation3 + $0x30] sm:$0xff] %vm6704, %v6525
    %6712 = vst.msk [vmem:[#allocation3 + $0x38] sm:$0xff] %vm6704, %v6527
    %6713 = vst.msk [vmem:[#allocation3 + $0x40] sm:$0xff] %vm6704, %v6529
    %6714 = vst.msk [vmem:[#allocation3 + $0x48] sm:$0xff] %vm6704, %v6531
    %6715 = vst.msk [vmem:[#allocation3 + $0x50] sm:$0xff] %vm6704, %v6533
    %6716 = vst.msk [vmem:[#allocation3 + $0x58] sm:$0xff] %vm6704, %v6535
    %6717 = vst.msk [vmem:[#allocation3 + $0x60] sm:$0xff] %vm6704, %v6537
    %6718 = vst.msk [vmem:[#allocation3 + $0x68] sm:$0xff] %vm6704, %v6539
    %6719 = vst.msk [vmem:[#allocation3 + $0x70] sm:$0xff] %vm6704, %v6541
    %6720 = vst.msk [vmem:[#allocation3 + $0x78] sm:$0xff] %vm6704, %v6543
    %6721 = vst.msk [vmem:[#allocation3 + $0x80] sm:$0xff] %vm6704, %v6545
    %6722 = vst.msk [vmem:[#allocation3 + $0x88] sm:$0xff] %vm6704, %v6547
    %6723 = vst.msk [vmem:[#allocation3 + $0x90] sm:$0xff] %vm6704, %v6549
    %6724 = vst.msk [vmem:[#allocation3 + $0x98] sm:$0xff] %vm6704, %v6551
    %6725 = vst.msk [vmem:[#allocation3 + $0xa0] sm:$0xff] %vm6704, %v6553
    %6726 = vst.msk [vmem:[#allocation3 + $0xa8] sm:$0xff] %vm6704, %v6555
    %6727 = vst.msk [vmem:[#allocation3 + $0xb0] sm:$0xff] %vm6704, %v6557
    %6728 = vst.msk [vmem:[#allocation3 + $0xb8] sm:$0xff] %vm6704, %v6559
    %6729 = vst.msk [vmem:[#allocation3 + $0xc0] sm:$0xff] %vm6704, %v6561
    %6730 = vst.msk [vmem:[#allocation3 + $0xc8] sm:$0xff] %vm6704, %v6563
    %6731 = vst.msk [vmem:[#allocation3 + $0xd0] sm:$0xff] %vm6704, %v6565
    %6732 = vst.msk [vmem:[#allocation3 + $0xd8] sm:$0xff] %vm6704, %v6567
    %6733 = vst.msk [vmem:[#allocation3 + $0xe0] sm:$0xff] %vm6704, %v6569
    %6734 = vst.msk [vmem:[#allocation3 + $0xe8] sm:$0xff] %vm6704, %v6571
    %6735 = vst.msk [vmem:[#allocation3 + $0xf0] sm:$0xff] %vm6704, %v6573
    %6736 = vst.msk [vmem:[#allocation3 + $0xf8] sm:$0xff] %vm6704, %v6575
    %6737 = vst.msk [vmem:[#allocation3 + $0x100] sm:$0xff] %vm6704, %v6577
    %6738 = vst.msk [vmem:[#allocation3 + $0x108] sm:$0xff] %vm6704, %v6579
    %6739 = vst.msk [vmem:[#allocation3 + $0x110] sm:$0xff] %vm6704, %v6581
    %6740 = vst.msk [vmem:[#allocation3 + $0x118] sm:$0xff] %vm6704, %v6583
    %6741 = vst.msk [vmem:[#allocation3 + $0x120] sm:$0xff] %vm6704, %v6585
    %6742 = vst.msk [vmem:[#allocation3 + $0x128] sm:$0xff] %vm6704, %v6587
    %6743 = vst.msk [vmem:[#allocation3 + $0x130] sm:$0xff] %vm6704, %v6589
    %6744 = vst.msk [vmem:[#allocation3 + $0x138] sm:$0xff] %vm6704, %v6591
    %6745 = vst.msk [vmem:[#allocation3 + $0x140] sm:$0xff] %vm6704, %v6593
    %6746 = vst.msk [vmem:[#allocation3 + $0x148] sm:$0xff] %vm6704, %v6595
    %6747 = vst.msk [vmem:[#allocation3 + $0x150] sm:$0xff] %vm6704, %v6597
    %6748 = vst.msk [vmem:[#allocation3 + $0x158] sm:$0xff] %vm6704, %v6599
    %6749 = vst.msk [vmem:[#allocation3 + $0x160] sm:$0xff] %vm6704, %v6601
    %6750 = vst.msk [vmem:[#allocation3 + $0x168] sm:$0xff] %vm6704, %v6603
    %6751 = vst.msk [vmem:[#allocation3 + $0x170] sm:$0xff] %vm6704, %v6605
    %6752 = vst.msk [vmem:[#allocation3 + $0x178] sm:$0xff] %vm6704, %v6607
    %6753 = vst.msk [vmem:[#allocation3 + $0x180] sm:$0xff] %vm6704, %v6609
    %6754 = vst.msk [vmem:[#allocation3 + $0x188] sm:$0xff] %vm6704, %v6611
    %6755 = vst.msk [vmem:[#allocation3 + $0x190] sm:$0xff] %vm6704, %v6613
    %6756 = vst.msk [vmem:[#allocation3 + $0x198] sm:$0xff] %vm6704, %v6615
    %6757 = vst.msk [vmem:[#allocation3 + $0x1a0] sm:$0xff] %vm6704, %v6617
    %6758 = vst.msk [vmem:[#allocation3 + $0x1a8] sm:$0xff] %vm6704, %v6619
    %6759 = vst.msk [vmem:[#allocation3 + $0x1b0] sm:$0xff] %vm6704, %v6621
    %6760 = vst.msk [vmem:[#allocation3 + $0x1b8] sm:$0xff] %vm6704, %v6623
    %6761 = vst.msk [vmem:[#allocation3 + $0x1c0] sm:$0xff] %vm6704, %v6625
    %6762 = vst.msk [vmem:[#allocation3 + $0x1c8] sm:$0xff] %vm6704, %v6627
    %6763 = vst.msk [vmem:[#allocation3 + $0x1d0] sm:$0xff] %vm6704, %v6629
    %6764 = vst.msk [vmem:[#allocation3 + $0x1d8] sm:$0xff] %vm6704, %v6631
    %6765 = vst.msk [vmem:[#allocation3 + $0x1e0] sm:$0xff] %vm6704, %v6633
    %6766 = vst.msk [vmem:[#allocation3 + $0x1e8] sm:$0xff] %vm6704, %v6635
    %6767 = vst.msk [vmem:[#allocation3 + $0x1f0] sm:$0xff] %vm6704, %v6637
    %6768 = vst.msk [vmem:[#allocation3 + $0x1f8] sm:$0xff] %vm6704, %v6639
    %v6769 = vld [vmem:[%s2300] sm:$0xff]
    %v6770 = vld [vmem:[%s2300 + $0x8] sm:$0xff]
    %v6771 = vld [vmem:[%s2300 + $0x18] sm:$0xff]
    %v6772 = vld [vmem:[%s2300 + $0x20] sm:$0xff]
    %v6773 = vld [vmem:[%s2300 + $0x30] sm:$0xff]
    %v6774 = vld [vmem:[%s2300 + $0x38] sm:$0xff]
    %v6775 = vld [vmem:[%s2300 + $0x48] sm:$0xff]
    %v6776 = vld [vmem:[%s2300 + $0x50] sm:$0xff]
    %v6777 = vld [vmem:[%s2300 + $0x60] sm:$0xff]
    %v6778 = vld [vmem:[%s2300 + $0x68] sm:$0xff]
    %v6779 = vld [vmem:[%s2300 + $0x78] sm:$0xff]
    %v6780 = vld [vmem:[%s2300 + $0x80] sm:$0xff]
    %v6781 = vld [vmem:[%s2300 + $0x90] sm:$0xff]
    %v6782 = vld [vmem:[%s2300 + $0x98] sm:$0xff]
    %v6783 = vld [vmem:[%s2300 + $0xa8] sm:$0xff]
    %v6784 = vld [vmem:[%s2300 + $0xb0] sm:$0xff]
    %v6785 = vld [vmem:[%s2300 + $0xc0] sm:$0xff]
    %v6786 = vld [vmem:[%s2300 + $0xc8] sm:$0xff]
    %v6787 = vld [vmem:[%s2300 + $0xd8] sm:$0xff]
    %v6788 = vld [vmem:[%s2300 + $0xe0] sm:$0xff]
    %v6789 = vld [vmem:[%s2300 + $0xf0] sm:$0xff]
    %v6790 = vld [vmem:[%s2300 + $0xf8] sm:$0xff]
    %v6791 = vld [vmem:[%s2300 + $0x108] sm:$0xff]
    %v6792 = vld [vmem:[%s2300 + $0x110] sm:$0xff]
    %v6793 = vld [vmem:[%s2300 + $0x120] sm:$0xff]
    %v6794 = vld [vmem:[%s2300 + $0x128] sm:$0xff]
    %v6795 = vld [vmem:[%s2300 + $0x138] sm:$0xff]
    %v6796 = vld [vmem:[%s2300 + $0x140] sm:$0xff]
    %v6797 = vld [vmem:[%s2300 + $0x150] sm:$0xff]
    %v6798 = vld [vmem:[%s2300 + $0x158] sm:$0xff]
    %v6799 = vld [vmem:[%s2300 + $0x168] sm:$0xff]
    %v6800 = vld [vmem:[%s2300 + $0x170] sm:$0xff]
    %v6801 = vld [vmem:[%s2300 + $0x1b0] sm:$0xff]
    %v6802 = vld [vmem:[%s2300 + $0x1b8] sm:$0xff]
    %v6803 = vld [vmem:[%s2300 + $0x1c8] sm:$0xff]
    %v6804 = vld [vmem:[%s2300 + $0x1d0] sm:$0xff]
    %v6805 = vld [vmem:[%s2300 + $0x1e0] sm:$0xff]
    %v6806 = vld [vmem:[%s2300 + $0x1e8] sm:$0xff]
    %v6807 = vld [vmem:[%s2300 + $0x1f8] sm:$0xff]
    %v6808 = vld [vmem:[%s2300 + $0x200] sm:$0xff]
    %v6809 = vld [vmem:[%s2300 + $0x210] sm:$0xff]
    %v6810 = vld [vmem:[%s2300 + $0x218] sm:$0xff]
    %v6811 = vld [vmem:[%s2300 + $0x228] sm:$0xff]
    %v6812 = vld [vmem:[%s2300 + $0x230] sm:$0xff]
    %v6813 = vld [vmem:[%s2300 + $0x240] sm:$0xff]
    %v6814 = vld [vmem:[%s2300 + $0x248] sm:$0xff]
    %v6815 = vld [vmem:[%s2300 + $0x258] sm:$0xff]
    %v6816 = vld [vmem:[%s2300 + $0x260] sm:$0xff]
    %v6817 = vld [vmem:[%s2300 + $0x270] sm:$0xff]
    %v6818 = vld [vmem:[%s2300 + $0x278] sm:$0xff]
    %v6819 = vld [vmem:[%s2300 + $0x288] sm:$0xff]
    %v6820 = vld [vmem:[%s2300 + $0x290] sm:$0xff]
    %v6821 = vld [vmem:[%s2300 + $0x2a0] sm:$0xff]
    %v6822 = vld [vmem:[%s2300 + $0x2a8] sm:$0xff]
    %v6823 = vld [vmem:[%s2300 + $0x2b8] sm:$0xff]
    %v6824 = vld [vmem:[%s2300 + $0x2c0] sm:$0xff]
    %v6825 = vld [vmem:[%s2300 + $0x2d0] sm:$0xff]
    %v6826 = vld [vmem:[%s2300 + $0x2d8] sm:$0xff]
    %v6827 = vld [vmem:[%s2300 + $0x2e8] sm:$0xff]
    %v6828 = vld [vmem:[%s2300 + $0x2f0] sm:$0xff]
    %v6829 = vld [vmem:[%s2300 + $0x300] sm:$0xff]
    %v6830 = vld [vmem:[%s2300 + $0x308] sm:$0xff]
    %v6831 = vld [vmem:[%s2300 + $0x318] sm:$0xff]
    %v6832 = vld [vmem:[%s2300 + $0x320] sm:$0xff]
    %6897 = vrot.lane.b32.xlu0 %v6769, 48
    %v6898 = vpop.permute.xlu0 %6897
    %6899 = vrot.lane.b32.xlu0 %v6770, 48
    %v6900 = vpop.permute.xlu0 %6899
    %6901 = vrot.lane.b32.xlu0 %v6771, 48
    %v6902 = vpop.permute.xlu0 %6901
    %6903 = vrot.lane.b32.xlu0 %v6772, 48
    %v6904 = vpop.permute.xlu0 %6903
    %6905 = vrot.lane.b32.xlu0 %v6773, 48
    %v6906 = vpop.permute.xlu0 %6905
    %6907 = vrot.lane.b32.xlu0 %v6774, 48
    %v6908 = vpop.permute.xlu0 %6907
    %6909 = vrot.lane.b32.xlu0 %v6775, 48
    %v6910 = vpop.permute.xlu0 %6909
    %6911 = vrot.lane.b32.xlu0 %v6776, 48
    %v6912 = vpop.permute.xlu0 %6911
    %6913 = vrot.lane.b32.xlu0 %v6777, 48
    %v6914 = vpop.permute.xlu0 %6913
    %6915 = vrot.lane.b32.xlu0 %v6778, 48
    %v6916 = vpop.permute.xlu0 %6915
    %6917 = vrot.lane.b32.xlu0 %v6779, 48
    %v6918 = vpop.permute.xlu0 %6917
    %6919 = vrot.lane.b32.xlu0 %v6780, 48
    %v6920 = vpop.permute.xlu0 %6919
    %6921 = vrot.lane.b32.xlu0 %v6781, 48
    %v6922 = vpop.permute.xlu0 %6921
    %6923 = vrot.lane.b32.xlu0 %v6782, 48
    %v6924 = vpop.permute.xlu0 %6923
    %6925 = vrot.lane.b32.xlu0 %v6783, 48
    %v6926 = vpop.permute.xlu0 %6925
    %6927 = vrot.lane.b32.xlu0 %v6784, 48
    %v6928 = vpop.permute.xlu0 %6927
    %6929 = vrot.lane.b32.xlu0 %v6785, 48
    %v6930 = vpop.permute.xlu0 %6929
    %6931 = vrot.lane.b32.xlu0 %v6786, 48
    %v6932 = vpop.permute.xlu0 %6931
    %6933 = vrot.lane.b32.xlu0 %v6787, 48
    %v6934 = vpop.permute.xlu0 %6933
    %6935 = vrot.lane.b32.xlu0 %v6788, 48
    %v6936 = vpop.permute.xlu0 %6935
    %6937 = vrot.lane.b32.xlu0 %v6789, 48
    %v6938 = vpop.permute.xlu0 %6937
    %6939 = vrot.lane.b32.xlu0 %v6790, 48
    %v6940 = vpop.permute.xlu0 %6939
    %6941 = vrot.lane.b32.xlu0 %v6791, 48
    %v6942 = vpop.permute.xlu0 %6941
    %6943 = vrot.lane.b32.xlu0 %v6792, 48
    %v6944 = vpop.permute.xlu0 %6943
    %6945 = vrot.lane.b32.xlu0 %v6793, 48
    %v6946 = vpop.permute.xlu0 %6945
    %6947 = vrot.lane.b32.xlu0 %v6794, 48
    %v6948 = vpop.permute.xlu0 %6947
    %6949 = vrot.lane.b32.xlu0 %v6795, 48
    %v6950 = vpop.permute.xlu0 %6949
    %6951 = vrot.lane.b32.xlu0 %v6796, 48
    %v6952 = vpop.permute.xlu0 %6951
    %6953 = vrot.lane.b32.xlu0 %v6797, 48
    %v6954 = vpop.permute.xlu0 %6953
    %6955 = vrot.lane.b32.xlu0 %v6798, 48
    %v6956 = vpop.permute.xlu0 %6955
    %6957 = vrot.lane.b32.xlu0 %v6799, 48
    %v6958 = vpop.permute.xlu0 %6957
    %6959 = vrot.lane.b32.xlu0 %v6800, 48
    %v6960 = vpop.permute.xlu0 %6959
    %6961 = vrot.lane.b32.xlu0 %v6801, 48
    %v6962 = vpop.permute.xlu0 %6961
    %6963 = vrot.lane.b32.xlu0 %v6802, 48
    %v6964 = vpop.permute.xlu0 %6963
    %6965 = vrot.lane.b32.xlu0 %v6803, 48
    %v6966 = vpop.permute.xlu0 %6965
    %6967 = vrot.lane.b32.xlu0 %v6804, 48
    %v6968 = vpop.permute.xlu0 %6967
    %6969 = vrot.lane.b32.xlu0 %v6805, 48
    %v6970 = vpop.permute.xlu0 %6969
    %6971 = vrot.lane.b32.xlu0 %v6806, 48
    %v6972 = vpop.permute.xlu0 %6971
    %6973 = vrot.lane.b32.xlu0 %v6807, 48
    %v6974 = vpop.permute.xlu0 %6973
    %6975 = vrot.lane.b32.xlu0 %v6808, 48
    %v6976 = vpop.permute.xlu0 %6975
    %6977 = vrot.lane.b32.xlu0 %v6809, 48
    %v6978 = vpop.permute.xlu0 %6977
    %6979 = vrot.lane.b32.xlu0 %v6810, 48
    %v6980 = vpop.permute.xlu0 %6979
    %6981 = vrot.lane.b32.xlu0 %v6811, 48
    %v6982 = vpop.permute.xlu0 %6981
    %6983 = vrot.lane.b32.xlu0 %v6812, 48
    %v6984 = vpop.permute.xlu0 %6983
    %6985 = vrot.lane.b32.xlu0 %v6813, 48
    %v6986 = vpop.permute.xlu0 %6985
    %6987 = vrot.lane.b32.xlu0 %v6814, 48
    %v6988 = vpop.permute.xlu0 %6987
    %6989 = vrot.lane.b32.xlu0 %v6815, 48
    %v6990 = vpop.permute.xlu0 %6989
    %6991 = vrot.lane.b32.xlu0 %v6816, 48
    %v6992 = vpop.permute.xlu0 %6991
    %6993 = vrot.lane.b32.xlu0 %v6817, 48
    %v6994 = vpop.permute.xlu0 %6993
    %6995 = vrot.lane.b32.xlu0 %v6818, 48
    %v6996 = vpop.permute.xlu0 %6995
    %6997 = vrot.lane.b32.xlu0 %v6819, 48
    %v6998 = vpop.permute.xlu0 %6997
    %6999 = vrot.lane.b32.xlu0 %v6820, 48
    %v7000 = vpop.permute.xlu0 %6999
    %7001 = vrot.lane.b32.xlu0 %v6821, 48
    %v7002 = vpop.permute.xlu0 %7001
    %7003 = vrot.lane.b32.xlu0 %v6822, 48
    %v7004 = vpop.permute.xlu0 %7003
    %7005 = vrot.lane.b32.xlu0 %v6823, 48
    %v7006 = vpop.permute.xlu0 %7005
    %7007 = vrot.lane.b32.xlu0 %v6824, 48
    %v7008 = vpop.permute.xlu0 %7007
    %7009 = vrot.lane.b32.xlu0 %v6825, 48
    %v7010 = vpop.permute.xlu0 %7009
    %7011 = vrot.lane.b32.xlu0 %v6826, 48
    %v7012 = vpop.permute.xlu0 %7011
    %7013 = vrot.lane.b32.xlu0 %v6827, 48
    %v7014 = vpop.permute.xlu0 %7013
    %7015 = vrot.lane.b32.xlu0 %v6828, 48
    %v7016 = vpop.permute.xlu0 %7015
    %7017 = vrot.lane.b32.xlu0 %v6829, 48
    %v7018 = vpop.permute.xlu0 %7017
    %7019 = vrot.lane.b32.xlu0 %v6830, 48
    %v7020 = vpop.permute.xlu0 %7019
    %7021 = vrot.lane.b32.xlu0 %v6831, 48
    %v7022 = vpop.permute.xlu0 %7021
    %7023 = vrot.lane.b32.xlu0 %v6832, 48
    %v7024 = vpop.permute.xlu0 %7023
    %vm7089 = vcmask 458112
    %7090 = vst.msk [vmem:[#allocation3] sm:$0xff] %vm7089, %v6898
    %7091 = vst.msk [vmem:[#allocation3 + $0x8] sm:$0xff] %vm7089, %v6900
    %7092 = vst.msk [vmem:[#allocation3 + $0x10] sm:$0xff] %vm7089, %v6902
    %7093 = vst.msk [vmem:[#allocation3 + $0x18] sm:$0xff] %vm7089, %v6904
    %7094 = vst.msk [vmem:[#allocation3 + $0x20] sm:$0xff] %vm7089, %v6906
    %7095 = vst.msk [vmem:[#allocation3 + $0x28] sm:$0xff] %vm7089, %v6908
    %7096 = vst.msk [vmem:[#allocation3 + $0x30] sm:$0xff] %vm7089, %v6910
    %7097 = vst.msk [vmem:[#allocation3 + $0x38] sm:$0xff] %vm7089, %v6912
    %7098 = vst.msk [vmem:[#allocation3 + $0x40] sm:$0xff] %vm7089, %v6914
    %7099 = vst.msk [vmem:[#allocation3 + $0x48] sm:$0xff] %vm7089, %v6916
    %7100 = vst.msk [vmem:[#allocation3 + $0x50] sm:$0xff] %vm7089, %v6918
    %7101 = vst.msk [vmem:[#allocation3 + $0x58] sm:$0xff] %vm7089, %v6920
    %7102 = vst.msk [vmem:[#allocation3 + $0x60] sm:$0xff] %vm7089, %v6922
    %7103 = vst.msk [vmem:[#allocation3 + $0x68] sm:$0xff] %vm7089, %v6924
    %7104 = vst.msk [vmem:[#allocation3 + $0x70] sm:$0xff] %vm7089, %v6926
    %7105 = vst.msk [vmem:[#allocation3 + $0x78] sm:$0xff] %vm7089, %v6928
    %7106 = vst.msk [vmem:[#allocation3 + $0x80] sm:$0xff] %vm7089, %v6930
    %7107 = vst.msk [vmem:[#allocation3 + $0x88] sm:$0xff] %vm7089, %v6932
    %7108 = vst.msk [vmem:[#allocation3 + $0x90] sm:$0xff] %vm7089, %v6934
    %7109 = vst.msk [vmem:[#allocation3 + $0x98] sm:$0xff] %vm7089, %v6936
    %7110 = vst.msk [vmem:[#allocation3 + $0xa0] sm:$0xff] %vm7089, %v6938
    %7111 = vst.msk [vmem:[#allocation3 + $0xa8] sm:$0xff] %vm7089, %v6940
    %7112 = vst.msk [vmem:[#allocation3 + $0xb0] sm:$0xff] %vm7089, %v6942
    %7113 = vst.msk [vmem:[#allocation3 + $0xb8] sm:$0xff] %vm7089, %v6944
    %7114 = vst.msk [vmem:[#allocation3 + $0xc0] sm:$0xff] %vm7089, %v6946
    %7115 = vst.msk [vmem:[#allocation3 + $0xc8] sm:$0xff] %vm7089, %v6948
    %7116 = vst.msk [vmem:[#allocation3 + $0xd0] sm:$0xff] %vm7089, %v6950
    %7117 = vst.msk [vmem:[#allocation3 + $0xd8] sm:$0xff] %vm7089, %v6952
    %7118 = vst.msk [vmem:[#allocation3 + $0xe0] sm:$0xff] %vm7089, %v6954
    %7119 = vst.msk [vmem:[#allocation3 + $0xe8] sm:$0xff] %vm7089, %v6956
    %7120 = vst.msk [vmem:[#allocation3 + $0xf0] sm:$0xff] %vm7089, %v6958
    %7121 = vst.msk [vmem:[#allocation3 + $0xf8] sm:$0xff] %vm7089, %v6960
    %7122 = vst.msk [vmem:[#allocation3 + $0x100] sm:$0xff] %vm7089, %v6962
    %7123 = vst.msk [vmem:[#allocation3 + $0x108] sm:$0xff] %vm7089, %v6964
    %7124 = vst.msk [vmem:[#allocation3 + $0x110] sm:$0xff] %vm7089, %v6966
    %7125 = vst.msk [vmem:[#allocation3 + $0x118] sm:$0xff] %vm7089, %v6968
    %7126 = vst.msk [vmem:[#allocation3 + $0x120] sm:$0xff] %vm7089, %v6970
    %7127 = vst.msk [vmem:[#allocation3 + $0x128] sm:$0xff] %vm7089, %v6972
    %7128 = vst.msk [vmem:[#allocation3 + $0x130] sm:$0xff] %vm7089, %v6974
    %7129 = vst.msk [vmem:[#allocation3 + $0x138] sm:$0xff] %vm7089, %v6976
    %7130 = vst.msk [vmem:[#allocation3 + $0x140] sm:$0xff] %vm7089, %v6978
    %7131 = vst.msk [vmem:[#allocation3 + $0x148] sm:$0xff] %vm7089, %v6980
    %7132 = vst.msk [vmem:[#allocation3 + $0x150] sm:$0xff] %vm7089, %v6982
    %7133 = vst.msk [vmem:[#allocation3 + $0x158] sm:$0xff] %vm7089, %v6984
    %7134 = vst.msk [vmem:[#allocation3 + $0x160] sm:$0xff] %vm7089, %v6986
    %7135 = vst.msk [vmem:[#allocation3 + $0x168] sm:$0xff] %vm7089, %v6988
    %7136 = vst.msk [vmem:[#allocation3 + $0x170] sm:$0xff] %vm7089, %v6990
    %7137 = vst.msk [vmem:[#allocation3 + $0x178] sm:$0xff] %vm7089, %v6992
    %7138 = vst.msk [vmem:[#allocation3 + $0x180] sm:$0xff] %vm7089, %v6994
    %7139 = vst.msk [vmem:[#allocation3 + $0x188] sm:$0xff] %vm7089, %v6996
    %7140 = vst.msk [vmem:[#allocation3 + $0x190] sm:$0xff] %vm7089, %v6998
    %7141 = vst.msk [vmem:[#allocation3 + $0x198] sm:$0xff] %vm7089, %v7000
    %7142 = vst.msk [vmem:[#allocation3 + $0x1a0] sm:$0xff] %vm7089, %v7002
    %7143 = vst.msk [vmem:[#allocation3 + $0x1a8] sm:$0xff] %vm7089, %v7004
    %7144 = vst.msk [vmem:[#allocation3 + $0x1b0] sm:$0xff] %vm7089, %v7006
    %7145 = vst.msk [vmem:[#allocation3 + $0x1b8] sm:$0xff] %vm7089, %v7008
    %7146 = vst.msk [vmem:[#allocation3 + $0x1c0] sm:$0xff] %vm7089, %v7010
    %7147 = vst.msk [vmem:[#allocation3 + $0x1c8] sm:$0xff] %vm7089, %v7012
    %7148 = vst.msk [vmem:[#allocation3 + $0x1d0] sm:$0xff] %vm7089, %v7014
    %7149 = vst.msk [vmem:[#allocation3 + $0x1d8] sm:$0xff] %vm7089, %v7016
    %7150 = vst.msk [vmem:[#allocation3 + $0x1e0] sm:$0xff] %vm7089, %v7018
    %7151 = vst.msk [vmem:[#allocation3 + $0x1e8] sm:$0xff] %vm7089, %v7020
    %7152 = vst.msk [vmem:[#allocation3 + $0x1f0] sm:$0xff] %vm7089, %v7022
    %7153 = vst.msk [vmem:[#allocation3 + $0x1f8] sm:$0xff] %vm7089, %v7024
    %v7154 = vld [vmem:[%s2300 + $0x1] sm:$0xff]
    %v7155 = vld [vmem:[%s2300 + $0x9] sm:$0xff]
    %v7156 = vld [vmem:[%s2300 + $0x19] sm:$0xff]
    %v7157 = vld [vmem:[%s2300 + $0x21] sm:$0xff]
    %v7158 = vld [vmem:[%s2300 + $0x31] sm:$0xff]
    %v7159 = vld [vmem:[%s2300 + $0x39] sm:$0xff]
    %v7160 = vld [vmem:[%s2300 + $0x49] sm:$0xff]
    %v7161 = vld [vmem:[%s2300 + $0x51] sm:$0xff]
    %v7162 = vld [vmem:[%s2300 + $0x61] sm:$0xff]
    %v7163 = vld [vmem:[%s2300 + $0x69] sm:$0xff]
    %v7164 = vld [vmem:[%s2300 + $0x79] sm:$0xff]
    %v7165 = vld [vmem:[%s2300 + $0x81] sm:$0xff]
    %v7166 = vld [vmem:[%s2300 + $0x91] sm:$0xff]
    %v7167 = vld [vmem:[%s2300 + $0x99] sm:$0xff]
    %v7168 = vld [vmem:[%s2300 + $0xa9] sm:$0xff]
    %v7169 = vld [vmem:[%s2300 + $0xb1] sm:$0xff]
    %v7170 = vld [vmem:[%s2300 + $0xc1] sm:$0xff]
    %v7171 = vld [vmem:[%s2300 + $0xc9] sm:$0xff]
    %v7172 = vld [vmem:[%s2300 + $0xd9] sm:$0xff]
    %v7173 = vld [vmem:[%s2300 + $0xe1] sm:$0xff]
    %v7174 = vld [vmem:[%s2300 + $0xf1] sm:$0xff]
    %v7175 = vld [vmem:[%s2300 + $0xf9] sm:$0xff]
    %v7176 = vld [vmem:[%s2300 + $0x109] sm:$0xff]
    %v7177 = vld [vmem:[%s2300 + $0x111] sm:$0xff]
    %v7178 = vld [vmem:[%s2300 + $0x121] sm:$0xff]
    %v7179 = vld [vmem:[%s2300 + $0x129] sm:$0xff]
    %v7180 = vld [vmem:[%s2300 + $0x139] sm:$0xff]
    %v7181 = vld [vmem:[%s2300 + $0x141] sm:$0xff]
    %v7182 = vld [vmem:[%s2300 + $0x151] sm:$0xff]
    %v7183 = vld [vmem:[%s2300 + $0x159] sm:$0xff]
    %v7184 = vld [vmem:[%s2300 + $0x169] sm:$0xff]
    %v7185 = vld [vmem:[%s2300 + $0x171] sm:$0xff]
    %v7186 = vld [vmem:[%s2300 + $0x1b1] sm:$0xff]
    %v7187 = vld [vmem:[%s2300 + $0x1b9] sm:$0xff]
    %v7188 = vld [vmem:[%s2300 + $0x1c9] sm:$0xff]
    %v7189 = vld [vmem:[%s2300 + $0x1d1] sm:$0xff]
    %v7190 = vld [vmem:[%s2300 + $0x1e1] sm:$0xff]
    %v7191 = vld [vmem:[%s2300 + $0x1e9] sm:$0xff]
    %v7192 = vld [vmem:[%s2300 + $0x1f9] sm:$0xff]
    %v7193 = vld [vmem:[%s2300 + $0x201] sm:$0xff]
    %v7194 = vld [vmem:[%s2300 + $0x211] sm:$0xff]
    %v7195 = vld [vmem:[%s2300 + $0x219] sm:$0xff]
    %v7196 = vld [vmem:[%s2300 + $0x229] sm:$0xff]
    %v7197 = vld [vmem:[%s2300 + $0x231] sm:$0xff]
    %v7198 = vld [vmem:[%s2300 + $0x241] sm:$0xff]
    %v7199 = vld [vmem:[%s2300 + $0x249] sm:$0xff]
    %v7200 = vld [vmem:[%s2300 + $0x259] sm:$0xff]
    %v7201 = vld [vmem:[%s2300 + $0x261] sm:$0xff]
    %v7202 = vld [vmem:[%s2300 + $0x271] sm:$0xff]
    %v7203 = vld [vmem:[%s2300 + $0x279] sm:$0xff]
    %v7204 = vld [vmem:[%s2300 + $0x289] sm:$0xff]
    %v7205 = vld [vmem:[%s2300 + $0x291] sm:$0xff]
    %v7206 = vld [vmem:[%s2300 + $0x2a1] sm:$0xff]
    %v7207 = vld [vmem:[%s2300 + $0x2a9] sm:$0xff]
    %v7208 = vld [vmem:[%s2300 + $0x2b9] sm:$0xff]
    %v7209 = vld [vmem:[%s2300 + $0x2c1] sm:$0xff]
    %v7210 = vld [vmem:[%s2300 + $0x2d1] sm:$0xff]
    %v7211 = vld [vmem:[%s2300 + $0x2d9] sm:$0xff]
    %v7212 = vld [vmem:[%s2300 + $0x2e9] sm:$0xff]
    %v7213 = vld [vmem:[%s2300 + $0x2f1] sm:$0xff]
    %v7214 = vld [vmem:[%s2300 + $0x301] sm:$0xff]
    %v7215 = vld [vmem:[%s2300 + $0x309] sm:$0xff]
    %v7216 = vld [vmem:[%s2300 + $0x319] sm:$0xff]
    %v7217 = vld [vmem:[%s2300 + $0x321] sm:$0xff]
    %7282 = vrot.lane.b32.xlu0 %v7154, 56
    %v7283 = vpop.permute.xlu0 %7282
    %7284 = vrot.lane.b32.xlu0 %v7155, 56
    %v7285 = vpop.permute.xlu0 %7284
    %7286 = vrot.lane.b32.xlu0 %v7156, 56
    %v7287 = vpop.permute.xlu0 %7286
    %7288 = vrot.lane.b32.xlu0 %v7157, 56
    %v7289 = vpop.permute.xlu0 %7288
    %7290 = vrot.lane.b32.xlu0 %v7158, 56
    %v7291 = vpop.permute.xlu0 %7290
    %7292 = vrot.lane.b32.xlu0 %v7159, 56
    %v7293 = vpop.permute.xlu0 %7292
    %7294 = vrot.lane.b32.xlu0 %v7160, 56
    %v7295 = vpop.permute.xlu0 %7294
    %7296 = vrot.lane.b32.xlu0 %v7161, 56
    %v7297 = vpop.permute.xlu0 %7296
    %7298 = vrot.lane.b32.xlu0 %v7162, 56
    %v7299 = vpop.permute.xlu0 %7298
    %7300 = vrot.lane.b32.xlu0 %v7163, 56
    %v7301 = vpop.permute.xlu0 %7300
    %7302 = vrot.lane.b32.xlu0 %v7164, 56
    %v7303 = vpop.permute.xlu0 %7302
    %7304 = vrot.lane.b32.xlu0 %v7165, 56
    %v7305 = vpop.permute.xlu0 %7304
    %7306 = vrot.lane.b32.xlu0 %v7166, 56
    %v7307 = vpop.permute.xlu0 %7306
    %7308 = vrot.lane.b32.xlu0 %v7167, 56
    %v7309 = vpop.permute.xlu0 %7308
    %7310 = vrot.lane.b32.xlu0 %v7168, 56
    %v7311 = vpop.permute.xlu0 %7310
    %7312 = vrot.lane.b32.xlu0 %v7169, 56
    %v7313 = vpop.permute.xlu0 %7312
    %7314 = vrot.lane.b32.xlu0 %v7170, 56
    %v7315 = vpop.permute.xlu0 %7314
    %7316 = vrot.lane.b32.xlu0 %v7171, 56
    %v7317 = vpop.permute.xlu0 %7316
    %7318 = vrot.lane.b32.xlu0 %v7172, 56
    %v7319 = vpop.permute.xlu0 %7318
    %7320 = vrot.lane.b32.xlu0 %v7173, 56
    %v7321 = vpop.permute.xlu0 %7320
    %7322 = vrot.lane.b32.xlu0 %v7174, 56
    %v7323 = vpop.permute.xlu0 %7322
    %7324 = vrot.lane.b32.xlu0 %v7175, 56
    %v7325 = vpop.permute.xlu0 %7324
    %7326 = vrot.lane.b32.xlu0 %v7176, 56
    %v7327 = vpop.permute.xlu0 %7326
    %7328 = vrot.lane.b32.xlu0 %v7177, 56
    %v7329 = vpop.permute.xlu0 %7328
    %7330 = vrot.lane.b32.xlu0 %v7178, 56
    %v7331 = vpop.permute.xlu0 %7330
    %7332 = vrot.lane.b32.xlu0 %v7179, 56
    %v7333 = vpop.permute.xlu0 %7332
    %7334 = vrot.lane.b32.xlu0 %v7180, 56
    %v7335 = vpop.permute.xlu0 %7334
    %7336 = vrot.lane.b32.xlu0 %v7181, 56
    %v7337 = vpop.permute.xlu0 %7336
    %7338 = vrot.lane.b32.xlu0 %v7182, 56
    %v7339 = vpop.permute.xlu0 %7338
    %7340 = vrot.lane.b32.xlu0 %v7183, 56
    %v7341 = vpop.permute.xlu0 %7340
    %7342 = vrot.lane.b32.xlu0 %v7184, 56
    %v7343 = vpop.permute.xlu0 %7342
    %7344 = vrot.lane.b32.xlu0 %v7185, 56
    %v7345 = vpop.permute.xlu0 %7344
    %7346 = vrot.lane.b32.xlu0 %v7186, 56
    %v7347 = vpop.permute.xlu0 %7346
    %7348 = vrot.lane.b32.xlu0 %v7187, 56
    %v7349 = vpop.permute.xlu0 %7348
    %7350 = vrot.lane.b32.xlu0 %v7188, 56
    %v7351 = vpop.permute.xlu0 %7350
    %7352 = vrot.lane.b32.xlu0 %v7189, 56
    %v7353 = vpop.permute.xlu0 %7352
    %7354 = vrot.lane.b32.xlu0 %v7190, 56
    %v7355 = vpop.permute.xlu0 %7354
    %7356 = vrot.lane.b32.xlu0 %v7191, 56
    %v7357 = vpop.permute.xlu0 %7356
    %7358 = vrot.lane.b32.xlu0 %v7192, 56
    %v7359 = vpop.permute.xlu0 %7358
    %7360 = vrot.lane.b32.xlu0 %v7193, 56
    %v7361 = vpop.permute.xlu0 %7360
    %7362 = vrot.lane.b32.xlu0 %v7194, 56
    %v7363 = vpop.permute.xlu0 %7362
    %7364 = vrot.lane.b32.xlu0 %v7195, 56
    %v7365 = vpop.permute.xlu0 %7364
    %7366 = vrot.lane.b32.xlu0 %v7196, 56
    %v7367 = vpop.permute.xlu0 %7366
    %7368 = vrot.lane.b32.xlu0 %v7197, 56
    %v7369 = vpop.permute.xlu0 %7368
    %7370 = vrot.lane.b32.xlu0 %v7198, 56
    %v7371 = vpop.permute.xlu0 %7370
    %7372 = vrot.lane.b32.xlu0 %v7199, 56
    %v7373 = vpop.permute.xlu0 %7372
    %7374 = vrot.lane.b32.xlu0 %v7200, 56
    %v7375 = vpop.permute.xlu0 %7374
    %7376 = vrot.lane.b32.xlu0 %v7201, 56
    %v7377 = vpop.permute.xlu0 %7376
    %7378 = vrot.lane.b32.xlu0 %v7202, 56
    %v7379 = vpop.permute.xlu0 %7378
    %7380 = vrot.lane.b32.xlu0 %v7203, 56
    %v7381 = vpop.permute.xlu0 %7380
    %7382 = vrot.lane.b32.xlu0 %v7204, 56
    %v7383 = vpop.permute.xlu0 %7382
    %7384 = vrot.lane.b32.xlu0 %v7205, 56
    %v7385 = vpop.permute.xlu0 %7384
    %7386 = vrot.lane.b32.xlu0 %v7206, 56
    %v7387 = vpop.permute.xlu0 %7386
    %7388 = vrot.lane.b32.xlu0 %v7207, 56
    %v7389 = vpop.permute.xlu0 %7388
    %7390 = vrot.lane.b32.xlu0 %v7208, 56
    %v7391 = vpop.permute.xlu0 %7390
    %7392 = vrot.lane.b32.xlu0 %v7209, 56
    %v7393 = vpop.permute.xlu0 %7392
    %7394 = vrot.lane.b32.xlu0 %v7210, 56
    %v7395 = vpop.permute.xlu0 %7394
    %7396 = vrot.lane.b32.xlu0 %v7211, 56
    %v7397 = vpop.permute.xlu0 %7396
    %7398 = vrot.lane.b32.xlu0 %v7212, 56
    %v7399 = vpop.permute.xlu0 %7398
    %7400 = vrot.lane.b32.xlu0 %v7213, 56
    %v7401 = vpop.permute.xlu0 %7400
    %7402 = vrot.lane.b32.xlu0 %v7214, 56
    %v7403 = vpop.permute.xlu0 %7402
    %7404 = vrot.lane.b32.xlu0 %v7215, 56
    %v7405 = vpop.permute.xlu0 %7404
    %7406 = vrot.lane.b32.xlu0 %v7216, 56
    %v7407 = vpop.permute.xlu0 %7406
    %7408 = vrot.lane.b32.xlu0 %v7217, 56
    %v7409 = vpop.permute.xlu0 %7408
    %vm7474 = vcmask 523712
    %7475 = vst.msk [vmem:[#allocation3] sm:$0xff] %vm7474, %v7283
    %7476 = vst.msk [vmem:[#allocation3 + $0x8] sm:$0xff] %vm7474, %v7285
    %7477 = vst.msk [vmem:[#allocation3 + $0x10] sm:$0xff] %vm7474, %v7287
    %7478 = vst.msk [vmem:[#allocation3 + $0x18] sm:$0xff] %vm7474, %v7289
    %7479 = vst.msk [vmem:[#allocation3 + $0x20] sm:$0xff] %vm7474, %v7291
    %7480 = vst.msk [vmem:[#allocation3 + $0x28] sm:$0xff] %vm7474, %v7293
    %7481 = vst.msk [vmem:[#allocation3 + $0x30] sm:$0xff] %vm7474, %v7295
    %7482 = vst.msk [vmem:[#allocation3 + $0x38] sm:$0xff] %vm7474, %v7297
    %7483 = vst.msk [vmem:[#allocation3 + $0x40] sm:$0xff] %vm7474, %v7299
    %7484 = vst.msk [vmem:[#allocation3 + $0x48] sm:$0xff] %vm7474, %v7301
    %7485 = vst.msk [vmem:[#allocation3 + $0x50] sm:$0xff] %vm7474, %v7303
    %7486 = vst.msk [vmem:[#allocation3 + $0x58] sm:$0xff] %vm7474, %v7305
    %7487 = vst.msk [vmem:[#allocation3 + $0x60] sm:$0xff] %vm7474, %v7307
    %7488 = vst.msk [vmem:[#allocation3 + $0x68] sm:$0xff] %vm7474, %v7309
    %7489 = vst.msk [vmem:[#allocation3 + $0x70] sm:$0xff] %vm7474, %v7311
    %7490 = vst.msk [vmem:[#allocation3 + $0x78] sm:$0xff] %vm7474, %v7313
    %7491 = vst.msk [vmem:[#allocation3 + $0x80] sm:$0xff] %vm7474, %v7315
    %7492 = vst.msk [vmem:[#allocation3 + $0x88] sm:$0xff] %vm7474, %v7317
    %7493 = vst.msk [vmem:[#allocation3 + $0x90] sm:$0xff] %vm7474, %v7319
    %7494 = vst.msk [vmem:[#allocation3 + $0x98] sm:$0xff] %vm7474, %v7321
    %7495 = vst.msk [vmem:[#allocation3 + $0xa0] sm:$0xff] %vm7474, %v7323
    %7496 = vst.msk [vmem:[#allocation3 + $0xa8] sm:$0xff] %vm7474, %v7325
    %7497 = vst.msk [vmem:[#allocation3 + $0xb0] sm:$0xff] %vm7474, %v7327
    %7498 = vst.msk [vmem:[#allocation3 + $0xb8] sm:$0xff] %vm7474, %v7329
    %7499 = vst.msk [vmem:[#allocation3 + $0xc0] sm:$0xff] %vm7474, %v7331
    %7500 = vst.msk [vmem:[#allocation3 + $0xc8] sm:$0xff] %vm7474, %v7333
    %7501 = vst.msk [vmem:[#allocation3 + $0xd0] sm:$0xff] %vm7474, %v7335
    %7502 = vst.msk [vmem:[#allocation3 + $0xd8] sm:$0xff] %vm7474, %v7337
    %7503 = vst.msk [vmem:[#allocation3 + $0xe0] sm:$0xff] %vm7474, %v7339
    %7504 = vst.msk [vmem:[#allocation3 + $0xe8] sm:$0xff] %vm7474, %v7341
    %7505 = vst.msk [vmem:[#allocation3 + $0xf0] sm:$0xff] %vm7474, %v7343
    %7506 = vst.msk [vmem:[#allocation3 + $0xf8] sm:$0xff] %vm7474, %v7345
    %7507 = vst.msk [vmem:[#allocation3 + $0x100] sm:$0xff] %vm7474, %v7347
    %7508 = vst.msk [vmem:[#allocation3 + $0x108] sm:$0xff] %vm7474, %v7349
    %7509 = vst.msk [vmem:[#allocation3 + $0x110] sm:$0xff] %vm7474, %v7351
    %7510 = vst.msk [vmem:[#allocation3 + $0x118] sm:$0xff] %vm7474, %v7353
    %7511 = vst.msk [vmem:[#allocation3 + $0x120] sm:$0xff] %vm7474, %v7355
    %7512 = vst.msk [vmem:[#allocation3 + $0x128] sm:$0xff] %vm7474, %v7357
    %7513 = vst.msk [vmem:[#allocation3 + $0x130] sm:$0xff] %vm7474, %v7359
    %7514 = vst.msk [vmem:[#allocation3 + $0x138] sm:$0xff] %vm7474, %v7361
    %7515 = vst.msk [vmem:[#allocation3 + $0x140] sm:$0xff] %vm7474, %v7363
    %7516 = vst.msk [vmem:[#allocation3 + $0x148] sm:$0xff] %vm7474, %v7365
    %7517 = vst.msk [vmem:[#allocation3 + $0x150] sm:$0xff] %vm7474, %v7367
    %7518 = vst.msk [vmem:[#allocation3 + $0x158] sm:$0xff] %vm7474, %v7369
    %7519 = vst.msk [vmem:[#allocation3 + $0x160] sm:$0xff] %vm7474, %v7371
    %7520 = vst.msk [vmem:[#allocation3 + $0x168] sm:$0xff] %vm7474, %v7373
    %7521 = vst.msk [vmem:[#allocation3 + $0x170] sm:$0xff] %vm7474, %v7375
    %7522 = vst.msk [vmem:[#allocation3 + $0x178] sm:$0xff] %vm7474, %v7377
    %7523 = vst.msk [vmem:[#allocation3 + $0x180] sm:$0xff] %vm7474, %v7379
    %7524 = vst.msk [vmem:[#allocation3 + $0x188] sm:$0xff] %vm7474, %v7381
    %7525 = vst.msk [vmem:[#allocation3 + $0x190] sm:$0xff] %vm7474, %v7383
    %7526 = vst.msk [vmem:[#allocation3 + $0x198] sm:$0xff] %vm7474, %v7385
    %7527 = vst.msk [vmem:[#allocation3 + $0x1a0] sm:$0xff] %vm7474, %v7387
    %7528 = vst.msk [vmem:[#allocation3 + $0x1a8] sm:$0xff] %vm7474, %v7389
    %7529 = vst.msk [vmem:[#allocation3 + $0x1b0] sm:$0xff] %vm7474, %v7391
    %7530 = vst.msk [vmem:[#allocation3 + $0x1b8] sm:$0xff] %vm7474, %v7393
    %7531 = vst.msk [vmem:[#allocation3 + $0x1c0] sm:$0xff] %vm7474, %v7395
    %7532 = vst.msk [vmem:[#allocation3 + $0x1c8] sm:$0xff] %vm7474, %v7397
    %7533 = vst.msk [vmem:[#allocation3 + $0x1d0] sm:$0xff] %vm7474, %v7399
    %7534 = vst.msk [vmem:[#allocation3 + $0x1d8] sm:$0xff] %vm7474, %v7401
    %7535 = vst.msk [vmem:[#allocation3 + $0x1e0] sm:$0xff] %vm7474, %v7403
    %7536 = vst.msk [vmem:[#allocation3 + $0x1e8] sm:$0xff] %vm7474, %v7405
    %7537 = vst.msk [vmem:[#allocation3 + $0x1f0] sm:$0xff] %vm7474, %v7407
    %7538 = vst.msk [vmem:[#allocation3 + $0x1f8] sm:$0xff] %vm7474, %v7409
    %v7539 = vld [vmem:[%s2300 + $0x2] sm:$0xff]
    %v7540 = vld [vmem:[%s2300 + $0xa] sm:$0xff]
    %v7541 = vld [vmem:[%s2300 + $0x1a] sm:$0xff]
    %v7542 = vld [vmem:[%s2300 + $0x22] sm:$0xff]
    %v7543 = vld [vmem:[%s2300 + $0x32] sm:$0xff]
    %v7544 = vld [vmem:[%s2300 + $0x3a] sm:$0xff]
    %v7545 = vld [vmem:[%s2300 + $0x4a] sm:$0xff]
    %v7546 = vld [vmem:[%s2300 + $0x52] sm:$0xff]
    %v7547 = vld [vmem:[%s2300 + $0x62] sm:$0xff]
    %v7548 = vld [vmem:[%s2300 + $0x6a] sm:$0xff]
    %v7549 = vld [vmem:[%s2300 + $0x7a] sm:$0xff]
    %v7550 = vld [vmem:[%s2300 + $0x82] sm:$0xff]
    %v7551 = vld [vmem:[%s2300 + $0x92] sm:$0xff]
    %v7552 = vld [vmem:[%s2300 + $0x9a] sm:$0xff]
    %v7553 = vld [vmem:[%s2300 + $0xaa] sm:$0xff]
    %v7554 = vld [vmem:[%s2300 + $0xb2] sm:$0xff]
    %v7555 = vld [vmem:[%s2300 + $0xc2] sm:$0xff]
    %v7556 = vld [vmem:[%s2300 + $0xca] sm:$0xff]
    %v7557 = vld [vmem:[%s2300 + $0xda] sm:$0xff]
    %v7558 = vld [vmem:[%s2300 + $0xe2] sm:$0xff]
    %v7559 = vld [vmem:[%s2300 + $0xf2] sm:$0xff]
    %v7560 = vld [vmem:[%s2300 + $0xfa] sm:$0xff]
    %v7561 = vld [vmem:[%s2300 + $0x10a] sm:$0xff]
    %v7562 = vld [vmem:[%s2300 + $0x112] sm:$0xff]
    %v7563 = vld [vmem:[%s2300 + $0x122] sm:$0xff]
    %v7564 = vld [vmem:[%s2300 + $0x12a] sm:$0xff]
    %v7565 = vld [vmem:[%s2300 + $0x13a] sm:$0xff]
    %v7566 = vld [vmem:[%s2300 + $0x142] sm:$0xff]
    %v7567 = vld [vmem:[%s2300 + $0x152] sm:$0xff]
    %v7568 = vld [vmem:[%s2300 + $0x15a] sm:$0xff]
    %v7569 = vld [vmem:[%s2300 + $0x16a] sm:$0xff]
    %v7570 = vld [vmem:[%s2300 + $0x172] sm:$0xff]
    %v7571 = vld [vmem:[%s2300 + $0x1b2] sm:$0xff]
    %v7572 = vld [vmem:[%s2300 + $0x1ba] sm:$0xff]
    %v7573 = vld [vmem:[%s2300 + $0x1ca] sm:$0xff]
    %v7574 = vld [vmem:[%s2300 + $0x1d2] sm:$0xff]
    %v7575 = vld [vmem:[%s2300 + $0x1e2] sm:$0xff]
    %v7576 = vld [vmem:[%s2300 + $0x1ea] sm:$0xff]
    %v7577 = vld [vmem:[%s2300 + $0x1fa] sm:$0xff]
    %v7578 = vld [vmem:[%s2300 + $0x202] sm:$0xff]
    %v7579 = vld [vmem:[%s2300 + $0x212] sm:$0xff]
    %v7580 = vld [vmem:[%s2300 + $0x21a] sm:$0xff]
    %v7581 = vld [vmem:[%s2300 + $0x22a] sm:$0xff]
    %v7582 = vld [vmem:[%s2300 + $0x232] sm:$0xff]
    %v7583 = vld [vmem:[%s2300 + $0x242] sm:$0xff]
    %v7584 = vld [vmem:[%s2300 + $0x24a] sm:$0xff]
    %v7585 = vld [vmem:[%s2300 + $0x25a] sm:$0xff]
    %v7586 = vld [vmem:[%s2300 + $0x262] sm:$0xff]
    %v7587 = vld [vmem:[%s2300 + $0x272] sm:$0xff]
    %v7588 = vld [vmem:[%s2300 + $0x27a] sm:$0xff]
    %v7589 = vld [vmem:[%s2300 + $0x28a] sm:$0xff]
    %v7590 = vld [vmem:[%s2300 + $0x292] sm:$0xff]
    %v7591 = vld [vmem:[%s2300 + $0x2a2] sm:$0xff]
    %v7592 = vld [vmem:[%s2300 + $0x2aa] sm:$0xff]
    %v7593 = vld [vmem:[%s2300 + $0x2ba] sm:$0xff]
    %v7594 = vld [vmem:[%s2300 + $0x2c2] sm:$0xff]
    %v7595 = vld [vmem:[%s2300 + $0x2d2] sm:$0xff]
    %v7596 = vld [vmem:[%s2300 + $0x2da] sm:$0xff]
    %v7597 = vld [vmem:[%s2300 + $0x2ea] sm:$0xff]
    %v7598 = vld [vmem:[%s2300 + $0x2f2] sm:$0xff]
    %v7599 = vld [vmem:[%s2300 + $0x302] sm:$0xff]
    %v7600 = vld [vmem:[%s2300 + $0x30a] sm:$0xff]
    %v7601 = vld [vmem:[%s2300 + $0x31a] sm:$0xff]
    %v7602 = vld [vmem:[%s2300 + $0x322] sm:$0xff]
    %7667 = vrot.lane.b32.xlu0 %v7539, 64
    %v7668 = vpop.permute.xlu0 %7667
    %7669 = vrot.lane.b32.xlu0 %v7540, 64
    %v7670 = vpop.permute.xlu0 %7669
    %7671 = vrot.lane.b32.xlu0 %v7541, 64
    %v7672 = vpop.permute.xlu0 %7671
    %7673 = vrot.lane.b32.xlu0 %v7542, 64
    %v7674 = vpop.permute.xlu0 %7673
    %7675 = vrot.lane.b32.xlu0 %v7543, 64
    %v7676 = vpop.permute.xlu0 %7675
    %7677 = vrot.lane.b32.xlu0 %v7544, 64
    %v7678 = vpop.permute.xlu0 %7677
    %7679 = vrot.lane.b32.xlu0 %v7545, 64
    %v7680 = vpop.permute.xlu0 %7679
    %7681 = vrot.lane.b32.xlu0 %v7546, 64
    %v7682 = vpop.permute.xlu0 %7681
    %7683 = vrot.lane.b32.xlu0 %v7547, 64
    %v7684 = vpop.permute.xlu0 %7683
    %7685 = vrot.lane.b32.xlu0 %v7548, 64
    %v7686 = vpop.permute.xlu0 %7685
    %7687 = vrot.lane.b32.xlu0 %v7549, 64
    %v7688 = vpop.permute.xlu0 %7687
    %7689 = vrot.lane.b32.xlu0 %v7550, 64
    %v7690 = vpop.permute.xlu0 %7689
    %7691 = vrot.lane.b32.xlu0 %v7551, 64
    %v7692 = vpop.permute.xlu0 %7691
    %7693 = vrot.lane.b32.xlu0 %v7552, 64
    %v7694 = vpop.permute.xlu0 %7693
    %7695 = vrot.lane.b32.xlu0 %v7553, 64
    %v7696 = vpop.permute.xlu0 %7695
    %7697 = vrot.lane.b32.xlu0 %v7554, 64
    %v7698 = vpop.permute.xlu0 %7697
    %7699 = vrot.lane.b32.xlu0 %v7555, 64
    %v7700 = vpop.permute.xlu0 %7699
    %7701 = vrot.lane.b32.xlu0 %v7556, 64
    %v7702 = vpop.permute.xlu0 %7701
    %7703 = vrot.lane.b32.xlu0 %v7557, 64
    %v7704 = vpop.permute.xlu0 %7703
    %7705 = vrot.lane.b32.xlu0 %v7558, 64
    %v7706 = vpop.permute.xlu0 %7705
    %7707 = vrot.lane.b32.xlu0 %v7559, 64
    %v7708 = vpop.permute.xlu0 %7707
    %7709 = vrot.lane.b32.xlu0 %v7560, 64
    %v7710 = vpop.permute.xlu0 %7709
    %7711 = vrot.lane.b32.xlu0 %v7561, 64
    %v7712 = vpop.permute.xlu0 %7711
    %7713 = vrot.lane.b32.xlu0 %v7562, 64
    %v7714 = vpop.permute.xlu0 %7713
    %7715 = vrot.lane.b32.xlu0 %v7563, 64
    %v7716 = vpop.permute.xlu0 %7715
    %7717 = vrot.lane.b32.xlu0 %v7564, 64
    %v7718 = vpop.permute.xlu0 %7717
    %7719 = vrot.lane.b32.xlu0 %v7565, 64
    %v7720 = vpop.permute.xlu0 %7719
    %7721 = vrot.lane.b32.xlu0 %v7566, 64
    %v7722 = vpop.permute.xlu0 %7721
    %7723 = vrot.lane.b32.xlu0 %v7567, 64
    %v7724 = vpop.permute.xlu0 %7723
    %7725 = vrot.lane.b32.xlu0 %v7568, 64
    %v7726 = vpop.permute.xlu0 %7725
    %7727 = vrot.lane.b32.xlu0 %v7569, 64
    %v7728 = vpop.permute.xlu0 %7727
    %7729 = vrot.lane.b32.xlu0 %v7570, 64
    %v7730 = vpop.permute.xlu0 %7729
    %7731 = vrot.lane.b32.xlu0 %v7571, 64
    %v7732 = vpop.permute.xlu0 %7731
    %7733 = vrot.lane.b32.xlu0 %v7572, 64
    %v7734 = vpop.permute.xlu0 %7733
    %7735 = vrot.lane.b32.xlu0 %v7573, 64
    %v7736 = vpop.permute.xlu0 %7735
    %7737 = vrot.lane.b32.xlu0 %v7574, 64
    %v7738 = vpop.permute.xlu0 %7737
    %7739 = vrot.lane.b32.xlu0 %v7575, 64
    %v7740 = vpop.permute.xlu0 %7739
    %7741 = vrot.lane.b32.xlu0 %v7576, 64
    %v7742 = vpop.permute.xlu0 %7741
    %7743 = vrot.lane.b32.xlu0 %v7577, 64
    %v7744 = vpop.permute.xlu0 %7743
    %7745 = vrot.lane.b32.xlu0 %v7578, 64
    %v7746 = vpop.permute.xlu0 %7745
    %7747 = vrot.lane.b32.xlu0 %v7579, 64
    %v7748 = vpop.permute.xlu0 %7747
    %7749 = vrot.lane.b32.xlu0 %v7580, 64
    %v7750 = vpop.permute.xlu0 %7749
    %7751 = vrot.lane.b32.xlu0 %v7581, 64
    %v7752 = vpop.permute.xlu0 %7751
    %7753 = vrot.lane.b32.xlu0 %v7582, 64
    %v7754 = vpop.permute.xlu0 %7753
    %7755 = vrot.lane.b32.xlu0 %v7583, 64
    %v7756 = vpop.permute.xlu0 %7755
    %7757 = vrot.lane.b32.xlu0 %v7584, 64
    %v7758 = vpop.permute.xlu0 %7757
    %7759 = vrot.lane.b32.xlu0 %v7585, 64
    %v7760 = vpop.permute.xlu0 %7759
    %7761 = vrot.lane.b32.xlu0 %v7586, 64
    %v7762 = vpop.permute.xlu0 %7761
    %7763 = vrot.lane.b32.xlu0 %v7587, 64
    %v7764 = vpop.permute.xlu0 %7763
    %7765 = vrot.lane.b32.xlu0 %v7588, 64
    %v7766 = vpop.permute.xlu0 %7765
    %7767 = vrot.lane.b32.xlu0 %v7589, 64
    %v7768 = vpop.permute.xlu0 %7767
    %7769 = vrot.lane.b32.xlu0 %v7590, 64
    %v7770 = vpop.permute.xlu0 %7769
    %7771 = vrot.lane.b32.xlu0 %v7591, 64
    %v7772 = vpop.permute.xlu0 %7771
    %7773 = vrot.lane.b32.xlu0 %v7592, 64
    %v7774 = vpop.permute.xlu0 %7773
    %7775 = vrot.lane.b32.xlu0 %v7593, 64
    %v7776 = vpop.permute.xlu0 %7775
    %7777 = vrot.lane.b32.xlu0 %v7594, 64
    %v7778 = vpop.permute.xlu0 %7777
    %7779 = vrot.lane.b32.xlu0 %v7595, 64
    %v7780 = vpop.permute.xlu0 %7779
    %7781 = vrot.lane.b32.xlu0 %v7596, 64
    %v7782 = vpop.permute.xlu0 %7781
    %7783 = vrot.lane.b32.xlu0 %v7597, 64
    %v7784 = vpop.permute.xlu0 %7783
    %7785 = vrot.lane.b32.xlu0 %v7598, 64
    %v7786 = vpop.permute.xlu0 %7785
    %7787 = vrot.lane.b32.xlu0 %v7599, 64
    %v7788 = vpop.permute.xlu0 %7787
    %7789 = vrot.lane.b32.xlu0 %v7600, 64
    %v7790 = vpop.permute.xlu0 %7789
    %7791 = vrot.lane.b32.xlu0 %v7601, 64
    %v7792 = vpop.permute.xlu0 %7791
    %7793 = vrot.lane.b32.xlu0 %v7602, 64
    %v7794 = vpop.permute.xlu0 %7793
    %vm7859 = vcmask 589312
    %7860 = vst.msk [vmem:[#allocation3] sm:$0xff] %vm7859, %v7668
    %7861 = vst.msk [vmem:[#allocation3 + $0x8] sm:$0xff] %vm7859, %v7670
    %7862 = vst.msk [vmem:[#allocation3 + $0x10] sm:$0xff] %vm7859, %v7672
    %7863 = vst.msk [vmem:[#allocation3 + $0x18] sm:$0xff] %vm7859, %v7674
    %7864 = vst.msk [vmem:[#allocation3 + $0x20] sm:$0xff] %vm7859, %v7676
    %7865 = vst.msk [vmem:[#allocation3 + $0x28] sm:$0xff] %vm7859, %v7678
    %7866 = vst.msk [vmem:[#allocation3 + $0x30] sm:$0xff] %vm7859, %v7680
    %7867 = vst.msk [vmem:[#allocation3 + $0x38] sm:$0xff] %vm7859, %v7682
    %7868 = vst.msk [vmem:[#allocation3 + $0x40] sm:$0xff] %vm7859, %v7684
    %7869 = vst.msk [vmem:[#allocation3 + $0x48] sm:$0xff] %vm7859, %v7686
    %7870 = vst.msk [vmem:[#allocation3 + $0x50] sm:$0xff] %vm7859, %v7688
    %7871 = vst.msk [vmem:[#allocation3 + $0x58] sm:$0xff] %vm7859, %v7690
    %7872 = vst.msk [vmem:[#allocation3 + $0x60] sm:$0xff] %vm7859, %v7692
    %7873 = vst.msk [vmem:[#allocation3 + $0x68] sm:$0xff] %vm7859, %v7694
    %7874 = vst.msk [vmem:[#allocation3 + $0x70] sm:$0xff] %vm7859, %v7696
    %7875 = vst.msk [vmem:[#allocation3 + $0x78] sm:$0xff] %vm7859, %v7698
    %7876 = vst.msk [vmem:[#allocation3 + $0x80] sm:$0xff] %vm7859, %v7700
    %7877 = vst.msk [vmem:[#allocation3 + $0x88] sm:$0xff] %vm7859, %v7702
    %7878 = vst.msk [vmem:[#allocation3 + $0x90] sm:$0xff] %vm7859, %v7704
    %7879 = vst.msk [vmem:[#allocation3 + $0x98] sm:$0xff] %vm7859, %v7706
    %7880 = vst.msk [vmem:[#allocation3 + $0xa0] sm:$0xff] %vm7859, %v7708
    %7881 = vst.msk [vmem:[#allocation3 + $0xa8] sm:$0xff] %vm7859, %v7710
    %7882 = vst.msk [vmem:[#allocation3 + $0xb0] sm:$0xff] %vm7859, %v7712
    %7883 = vst.msk [vmem:[#allocation3 + $0xb8] sm:$0xff] %vm7859, %v7714
    %7884 = vst.msk [vmem:[#allocation3 + $0xc0] sm:$0xff] %vm7859, %v7716
    %7885 = vst.msk [vmem:[#allocation3 + $0xc8] sm:$0xff] %vm7859, %v7718
    %7886 = vst.msk [vmem:[#allocation3 + $0xd0] sm:$0xff] %vm7859, %v7720
    %7887 = vst.msk [vmem:[#allocation3 + $0xd8] sm:$0xff] %vm7859, %v7722
    %7888 = vst.msk [vmem:[#allocation3 + $0xe0] sm:$0xff] %vm7859, %v7724
    %7889 = vst.msk [vmem:[#allocation3 + $0xe8] sm:$0xff] %vm7859, %v7726
    %7890 = vst.msk [vmem:[#allocation3 + $0xf0] sm:$0xff] %vm7859, %v7728
    %7891 = vst.msk [vmem:[#allocation3 + $0xf8] sm:$0xff] %vm7859, %v7730
    %7892 = vst.msk [vmem:[#allocation3 + $0x100] sm:$0xff] %vm7859, %v7732
    %7893 = vst.msk [vmem:[#allocation3 + $0x108] sm:$0xff] %vm7859, %v7734
    %7894 = vst.msk [vmem:[#allocation3 + $0x110] sm:$0xff] %vm7859, %v7736
    %7895 = vst.msk [vmem:[#allocation3 + $0x118] sm:$0xff] %vm7859, %v7738
    %7896 = vst.msk [vmem:[#allocation3 + $0x120] sm:$0xff] %vm7859, %v7740
    %7897 = vst.msk [vmem:[#allocation3 + $0x128] sm:$0xff] %vm7859, %v7742
    %7898 = vst.msk [vmem:[#allocation3 + $0x130] sm:$0xff] %vm7859, %v7744
    %7899 = vst.msk [vmem:[#allocation3 + $0x138] sm:$0xff] %vm7859, %v7746
    %7900 = vst.msk [vmem:[#allocation3 + $0x140] sm:$0xff] %vm7859, %v7748
    %7901 = vst.msk [vmem:[#allocation3 + $0x148] sm:$0xff] %vm7859, %v7750
    %7902 = vst.msk [vmem:[#allocation3 + $0x150] sm:$0xff] %vm7859, %v7752
    %7903 = vst.msk [vmem:[#allocation3 + $0x158] sm:$0xff] %vm7859, %v7754
    %7904 = vst.msk [vmem:[#allocation3 + $0x160] sm:$0xff] %vm7859, %v7756
    %7905 = vst.msk [vmem:[#allocation3 + $0x168] sm:$0xff] %vm7859, %v7758
    %7906 = vst.msk [vmem:[#allocation3 + $0x170] sm:$0xff] %vm7859, %v7760
    %7907 = vst.msk [vmem:[#allocation3 + $0x178] sm:$0xff] %vm7859, %v7762
    %7908 = vst.msk [vmem:[#allocation3 + $0x180] sm:$0xff] %vm7859, %v7764
    %7909 = vst.msk [vmem:[#allocation3 + $0x188] sm:$0xff] %vm7859, %v7766
    %7910 = vst.msk [vmem:[#allocation3 + $0x190] sm:$0xff] %vm7859, %v7768
    %7911 = vst.msk [vmem:[#allocation3 + $0x198] sm:$0xff] %vm7859, %v7770
    %7912 = vst.msk [vmem:[#allocation3 + $0x1a0] sm:$0xff] %vm7859, %v7772
    %7913 = vst.msk [vmem:[#allocation3 + $0x1a8] sm:$0xff] %vm7859, %v7774
    %7914 = vst.msk [vmem:[#allocation3 + $0x1b0] sm:$0xff] %vm7859, %v7776
    %7915 = vst.msk [vmem:[#allocation3 + $0x1b8] sm:$0xff] %vm7859, %v7778
    %7916 = vst.msk [vmem:[#allocation3 + $0x1c0] sm:$0xff] %vm7859, %v7780
    %7917 = vst.msk [vmem:[#allocation3 + $0x1c8] sm:$0xff] %vm7859, %v7782
    %7918 = vst.msk [vmem:[#allocation3 + $0x1d0] sm:$0xff] %vm7859, %v7784
    %7919 = vst.msk [vmem:[#allocation3 + $0x1d8] sm:$0xff] %vm7859, %v7786
    %7920 = vst.msk [vmem:[#allocation3 + $0x1e0] sm:$0xff] %vm7859, %v7788
    %7921 = vst.msk [vmem:[#allocation3 + $0x1e8] sm:$0xff] %vm7859, %v7790
    %7922 = vst.msk [vmem:[#allocation3 + $0x1f0] sm:$0xff] %vm7859, %v7792
    %7923 = vst.msk [vmem:[#allocation3 + $0x1f8] sm:$0xff] %vm7859, %v7794
    %v7924 = vld [vmem:[#allocation3] sm:$0xff]
    %v7925 = vld [vmem:[#allocation3 + $0x8] sm:$0xff]
    %v7926 = vld [vmem:[#allocation3 + $0x10] sm:$0xff]
    %v7927 = vld [vmem:[#allocation3 + $0x18] sm:$0xff]
    %v7928 = vld [vmem:[#allocation3 + $0x20] sm:$0xff]
    %v7929 = vld [vmem:[#allocation3 + $0x28] sm:$0xff]
    %v7930 = vld [vmem:[#allocation3 + $0x30] sm:$0xff]
    %v7931 = vld [vmem:[#allocation3 + $0x38] sm:$0xff]
    %v7932 = vld [vmem:[#allocation3 + $0x40] sm:$0xff]
    %v7933 = vld [vmem:[#allocation3 + $0x48] sm:$0xff]
    %v7934 = vld [vmem:[#allocation3 + $0x50] sm:$0xff]
    %v7935 = vld [vmem:[#allocation3 + $0x58] sm:$0xff]
    %v7936 = vld [vmem:[#allocation3 + $0x60] sm:$0xff]
    %v7937 = vld [vmem:[#allocation3 + $0x68] sm:$0xff]
    %v7938 = vld [vmem:[#allocation3 + $0x70] sm:$0xff]
    %v7939 = vld [vmem:[#allocation3 + $0x78] sm:$0xff]
    %v7940 = vld [vmem:[#allocation3 + $0x80] sm:$0xff]
    %v7941 = vld [vmem:[#allocation3 + $0x88] sm:$0xff]
    %v7942 = vld [vmem:[#allocation3 + $0x90] sm:$0xff]
    %v7943 = vld [vmem:[#allocation3 + $0x98] sm:$0xff]
    %v7944 = vld [vmem:[#allocation3 + $0xa0] sm:$0xff]
    %v7945 = vld [vmem:[#allocation3 + $0xa8] sm:$0xff]
    %v7946 = vld [vmem:[#allocation3 + $0xb0] sm:$0xff]
    %v7947 = vld [vmem:[#allocation3 + $0xb8] sm:$0xff]
    %v7948 = vld [vmem:[#allocation3 + $0xc0] sm:$0xff]
    %v7949 = vld [vmem:[#allocation3 + $0xc8] sm:$0xff]
    %v7950 = vld [vmem:[#allocation3 + $0xd0] sm:$0xff]
    %v7951 = vld [vmem:[#allocation3 + $0xd8] sm:$0xff]
    %v7952 = vld [vmem:[#allocation3 + $0xe0] sm:$0xff]
    %v7953 = vld [vmem:[#allocation3 + $0xe8] sm:$0xff]
    %v7954 = vld [vmem:[#allocation3 + $0xf0] sm:$0xff]
    %v7955 = vld [vmem:[#allocation3 + $0xf8] sm:$0xff]
    %v7956 = vld [vmem:[#allocation3 + $0x100] sm:$0xff]
    %v7957 = vld [vmem:[#allocation3 + $0x108] sm:$0xff]
    %v7958 = vld [vmem:[#allocation3 + $0x110] sm:$0xff]
    %v7959 = vld [vmem:[#allocation3 + $0x118] sm:$0xff]
    %v7960 = vld [vmem:[#allocation3 + $0x120] sm:$0xff]
    %v7961 = vld [vmem:[#allocation3 + $0x128] sm:$0xff]
    %v7962 = vld [vmem:[#allocation3 + $0x130] sm:$0xff]
    %v7963 = vld [vmem:[#allocation3 + $0x138] sm:$0xff]
    %v7964 = vld [vmem:[#allocation3 + $0x140] sm:$0xff]
    %v7965 = vld [vmem:[#allocation3 + $0x148] sm:$0xff]
    %v7966 = vld [vmem:[#allocation3 + $0x150] sm:$0xff]
    %v7967 = vld [vmem:[#allocation3 + $0x158] sm:$0xff]
    %v7968 = vld [vmem:[#allocation3 + $0x160] sm:$0xff]
    %v7969 = vld [vmem:[#allocation3 + $0x168] sm:$0xff]
    %v7970 = vld [vmem:[#allocation3 + $0x170] sm:$0xff]
    %v7971 = vld [vmem:[#allocation3 + $0x178] sm:$0xff]
    %v7972 = vld [vmem:[#allocation3 + $0x180] sm:$0xff]
    %v7973 = vld [vmem:[#allocation3 + $0x188] sm:$0xff]
    %v7974 = vld [vmem:[#allocation3 + $0x190] sm:$0xff]
    %v7975 = vld [vmem:[#allocation3 + $0x198] sm:$0xff]
    %v7976 = vld [vmem:[#allocation3 + $0x1a0] sm:$0xff]
    %v7977 = vld [vmem:[#allocation3 + $0x1a8] sm:$0xff]
    %v7978 = vld [vmem:[#allocation3 + $0x1b0] sm:$0xff]
    %v7979 = vld [vmem:[#allocation3 + $0x1b8] sm:$0xff]
    %v7980 = vld [vmem:[#allocation3 + $0x1c0] sm:$0xff]
    %v7981 = vld [vmem:[#allocation3 + $0x1c8] sm:$0xff]
    %v7982 = vld [vmem:[#allocation3 + $0x1d0] sm:$0xff]
    %v7983 = vld [vmem:[#allocation3 + $0x1d8] sm:$0xff]
    %v7984 = vld [vmem:[#allocation3 + $0x1e0] sm:$0xff]
    %v7985 = vld [vmem:[#allocation3 + $0x1e8] sm:$0xff]
    %v7986 = vld [vmem:[#allocation3 + $0x1f0] sm:$0xff]
    %v7987 = vld [vmem:[#allocation3 + $0x1f8] sm:$0xff]
    %v7988 = vld [vmem:[%s4] sm:$0xff]
    %v7989 = vld [vmem:[%s4 + $0x8] sm:$0xff]
    %v7990 = vld [vmem:[%s4 + $0x10] sm:$0xff]
    %v7991 = vld [vmem:[%s4 + $0x18] sm:$0xff]
    %v7992 = vld [vmem:[%s4 + $0x20] sm:$0xff]
    %v7993 = vld [vmem:[%s4 + $0x28] sm:$0xff]
    %v7994 = vld [vmem:[%s4 + $0x30] sm:$0xff]
    %v7995 = vld [vmem:[%s4 + $0x38] sm:$0xff]
    %v7996 = vld [vmem:[%s4 + $0x40] sm:$0xff]
    %vm7997 = vcmask 588800
    %v7999 = vsel %vm7997, %v7924, 0
    %v8002 = vsel %vm7997, %v7925, 0
    %v8005 = vsel %vm7997, %v7926, 0
    %v8008 = vsel %vm7997, %v7927, 0
    %v8011 = vsel %vm7997, %v7928, 0
    %v8014 = vsel %vm7997, %v7929, 0
    %v8017 = vsel %vm7997, %v7930, 0
    %v8020 = vsel %vm7997, %v7931, 0
    %v8023 = vsel %vm7997, %v7932, 0
    %v8026 = vsel %vm7997, %v7933, 0
    %v8029 = vsel %vm7997, %v7934, 0
    %v8032 = vsel %vm7997, %v7935, 0
    %v8035 = vsel %vm7997, %v7936, 0
    %v8038 = vsel %vm7997, %v7937, 0
    %v8041 = vsel %vm7997, %v7938, 0
    %v8044 = vsel %vm7997, %v7939, 0
    %v8047 = vsel %vm7997, %v7940, 0
    %v8050 = vsel %vm7997, %v7941, 0
    %v8053 = vsel %vm7997, %v7942, 0
    %v8056 = vsel %vm7997, %v7943, 0
    %v8059 = vsel %vm7997, %v7944, 0
    %v8062 = vsel %vm7997, %v7945, 0
    %v8065 = vsel %vm7997, %v7946, 0
    %v8068 = vsel %vm7997, %v7947, 0
    %v8071 = vsel %vm7997, %v7948, 0
    %v8074 = vsel %vm7997, %v7949, 0
    %v8077 = vsel %vm7997, %v7950, 0
    %v8080 = vsel %vm7997, %v7951, 0
    %v8083 = vsel %vm7997, %v7952, 0
    %v8086 = vsel %vm7997, %v7953, 0
    %v8089 = vsel %vm7997, %v7954, 0
    %v8092 = vsel %vm7997, %v7955, 0
    %v8095 = vsel %vm7997, %v7956, 0
    %v8098 = vsel %vm7997, %v7957, 0
    %v8101 = vsel %vm7997, %v7958, 0
    %v8104 = vsel %vm7997, %v7959, 0
    %v8107 = vsel %vm7997, %v7960, 0
    %v8110 = vsel %vm7997, %v7961, 0
    %v8113 = vsel %vm7997, %v7962, 0
    %v8116 = vsel %vm7997, %v7963, 0
    %v8119 = vsel %vm7997, %v7964, 0
    %v8122 = vsel %vm7997, %v7965, 0
    %v8125 = vsel %vm7997, %v7966, 0
    %v8128 = vsel %vm7997, %v7967, 0
    %v8131 = vsel %vm7997, %v7968, 0
    %v8134 = vsel %vm7997, %v7969, 0
    %v8137 = vsel %vm7997, %v7970, 0
    %v8140 = vsel %vm7997, %v7971, 0
    %v8143 = vsel %vm7997, %v7972, 0
    %v8146 = vsel %vm7997, %v7973, 0
    %v8149 = vsel %vm7997, %v7974, 0
    %v8152 = vsel %vm7997, %v7975, 0
    %v8155 = vsel %vm7997, %v7976, 0
    %v8158 = vsel %vm7997, %v7977, 0
    %v8161 = vsel %vm7997, %v7978, 0
    %v8164 = vsel %vm7997, %v7979, 0
    %v8167 = vsel %vm7997, %v7980, 0
    %v8170 = vsel %vm7997, %v7981, 0
    %v8173 = vsel %vm7997, %v7982, 0
    %v8176 = vsel %vm7997, %v7983, 0
    %v8179 = vsel %vm7997, %v7984, 0
    %v8182 = vsel %vm7997, %v7985, 0
    %v8185 = vsel %vm7997, %v7986, 0
    %v8188 = vsel %vm7997, %v7987, 0
    %8190 = vmatprep.subr.mxu0 0.0
    %8191 = vmatpush1.msra.mxu0 %v7988
    %8192 = vmatprep.subr.mxu0 0.0
    %8193 = vmatpush1.msra.mxu0 %v7989
    %8194 = vmatprep.subr.mxu0 0.0
    %8195 = vmatpush1.msra.mxu0 %v7990
    %8196 = vmatprep.subr.mxu0 0.0
    %8197 = vmatpush1.msra.mxu0 %v7991
    %8198 = vmatprep.subr.mxu0 0.0
    %8199 = vmatpush1.msra.mxu0 %v7992
    %8200 = vmatprep.subr.mxu0 0.0
    %8201 = vmatpush1.msra.mxu0 %v7993
    %8202 = vmatprep.subr.mxu0 0.0
    %8203 = vmatpush1.msra.mxu0 %v7994
    %8204 = vmatprep.subr.mxu0 0.0
    %8205 = vmatpush1.msra.mxu0 %v7995
    %8206 = vmatprep.subr.mxu0 0.0
    %8207 = vmatpush1.msra.mxu0 %v7996
    %8208 = vmatprep.subr.mxu0 0.0
    %8209 = vmatpush1.msra.mxu0 0.0
    %8210 = vmatprep.subr.mxu0 0.0
    %8211 = vmatpush1.msra.mxu0 0.0
    %8212 = vmatprep.subr.mxu0 0.0
    %8213 = vmatpush1.msra.mxu0 0.0
    %8214 = vmatprep.subr.mxu0 0.0
    %8215 = vmatpush1.msra.mxu0 0.0
    %8216 = vmatprep.subr.mxu0 0.0
    %8217 = vmatpush1.msra.mxu0 0.0
    %8218 = vmatprep.subr.mxu0 0.0
    %8219 = vmatpush1.msra.mxu0 0.0
    %8220 = vmatprep.subr.mxu0 0.0
    %8221 = vmatpush1.msra.mxu0 0.0
    %8222 = vmatprep.subr.mxu0 0.0
    %8223 = vmatpush1.msra.mxu0 0.0
    %8224 = vmatprep.subr.mxu0 0.0
    %8225 = vmatpush1.msra.mxu0 0.0
    %8226 = vmatprep.subr.mxu0 0.0
    %8227 = vmatpush1.msra.mxu0 0.0
    %8228 = vmatprep.subr.mxu0 0.0
    %8229 = vmatpush1.msra.mxu0 0.0
    %8230 = vmatprep.subr.mxu0 0.0
    %8231 = vmatpush1.msra.mxu0 0.0
    %8232 = vmatprep.subr.mxu0 0.0
    %8233 = vmatpush1.msra.mxu0 0.0
    %8234 = vmatprep.subr.mxu0 0.0
    %8235 = vmatpush1.msra.mxu0 0.0
    %8236 = vmatprep.subr.mxu0 0.0
    %8237 = vmatpush1.msra.mxu0 0.0
    %8238 = vmatprep.subr.mxu0 0.0
    %8239 = vmatpush1.msra.mxu0 0.0
    %8240 = vmatprep.subr.mxu0 0.0
    %8241 = vmatpush1.msra.mxu0 0.0
    %8242 = vmatprep.subr.mxu0 0.0
    %8243 = vmatpush1.msra.mxu0 0.0
    %8244 = vmatprep.subr.mxu0 0.0
    %8245 = vmatpush1.msra.mxu0 0.0
    %8246 = vmatprep.subr.mxu0 0.0
    %8247 = vmatpush1.msra.mxu0 0.0
    %8248 = vmatprep.subr.mxu0 0.0
    %8249 = vmatpush1.msra.mxu0 0.0
    %8250 = vmatprep.subr.mxu0 0.0
    %8251 = vmatpush1.msra.mxu0 0.0
    %8252 = vmatprep.subr.mxu0 0.0
    %8253 = vmatpush1.msra.mxu0 0.0
    %8254 = vmatprep.mubr.f32.mxu0 0.0
    %8255 = vmatmul.mubr.f32.gmra.mrb[0].mxu0 %v7999
    %v8256 = vpop.f32.mrb[0].mxu0
    %v8257 = vadd.f32 0.0, %v8256
    %v8258 = vpop.f32.mrb[0].mxu0
    %8259 = vmatprep.mubr.f32.mxu0 0.0
    %8260 = vmatmul.mubr.f32.gmra.mrb[0].mxu0 %v8002
    %v8261 = vpop.f32.mrb[0].mxu0
    %v8262 = vadd.f32 0.0, %v8261
    %v8263 = vpop.f32.mrb[0].mxu0
    %8264 = vmatprep.mubr.f32.mxu0 0.0
    %8265 = vmatmul.mubr.f32.gmra.mrb[0].mxu0 %v8005
    %v8266 = vpop.f32.mrb[0].mxu0
    %v8267 = vadd.f32 0.0, %v8266
    %v8268 = vpop.f32.mrb[0].mxu0
    %8269 = vmatprep.mubr.f32.mxu0 0.0
    %8270 = vmatmul.mubr.f32.gmra.mrb[0].mxu0 %v8008
    %v8271 = vpop.f32.mrb[0].mxu0
    %v8272 = vadd.f32 0.0, %v8271
    %v8273 = vpop.f32.mrb[0].mxu0
    %8274 = vmatprep.mubr.f32.mxu0 0.0
    %8275 = vmatmul.mubr.f32.gmra.mrb[0].mxu0 %v8011
    %v8276 = vpop.f32.mrb[0].mxu0
    %v8277 = vadd.f32 0.0, %v8276
    %v8278 = vpop.f32.mrb[0].mxu0
    %8279 = vmatprep.mubr.f32.mxu0 0.0
    %8280 = vmatmul.mubr.f32.gmra.mrb[0].mxu0 %v8014
    %v8281 = vpop.f32.mrb[0].mxu0
    %v8282 = vadd.f32 0.0, %v8281
    %v8283 = vpop.f32.mrb[0].mxu0
    %8284 = vmatprep.mubr.f32.mxu0 0.0
    %8285 = vmatmul.mubr.f32.gmra.mrb[0].mxu0 %v8017
    %v8286 = vpop.f32.mrb[0].mxu0
    %v8287 = vadd.f32 0.0, %v8286
    %v8288 = vpop.f32.mrb[0].mxu0
    %8289 = vmatprep.mubr.f32.mxu0 0.0
    %8290 = vmatmul.mubr.f32.gmra.mrb[0].mxu0 %v8020
    %v8291 = vpop.f32.mrb[0].mxu0
    %v8292 = vadd.f32 0.0, %v8291
    %v8293 = vpop.f32.mrb[0].mxu0
    %8294 = vmatprep.mubr.f32.mxu0 0.0
    %8295 = vmatmul.mubr.f32.gmra.mrb[0].mxu0 %v8023
    %v8296 = vpop.f32.mrb[0].mxu0
    %v8297 = vadd.f32 0.0, %v8296
    %v8298 = vpop.f32.mrb[0].mxu0
    %8299 = vmatprep.mubr.f32.mxu0 0.0
    %8300 = vmatmul.mubr.f32.gmra.mrb[0].mxu0 %v8026
    %v8301 = vpop.f32.mrb[0].mxu0
    %v8302 = vadd.f32 0.0, %v8301
    %v8303 = vpop.f32.mrb[0].mxu0
    %8304 = vmatprep.mubr.f32.mxu0 0.0
    %8305 = vmatmul.mubr.f32.gmra.mrb[0].mxu0 %v8029
    %v8306 = vpop.f32.mrb[0].mxu0
    %v8307 = vadd.f32 0.0, %v8306
    %v8308 = vpop.f32.mrb[0].mxu0
    %8309 = vmatprep.mubr.f32.mxu0 0.0
    %8310 = vmatmul.mubr.f32.gmra.mrb[0].mxu0 %v8032
    %v8311 = vpop.f32.mrb[0].mxu0
    %v8312 = vadd.f32 0.0, %v8311
    %v8313 = vpop.f32.mrb[0].mxu0
    %8314 = vmatprep.mubr.f32.mxu0 0.0
    %8315 = vmatmul.mubr.f32.gmra.mrb[0].mxu0 %v8035
    %v8316 = vpop.f32.mrb[0].mxu0
    %v8317 = vadd.f32 0.0, %v8316
    %v8318 = vpop.f32.mrb[0].mxu0
    %8319 = vmatprep.mubr.f32.mxu0 0.0
    %8320 = vmatmul.mubr.f32.gmra.mrb[0].mxu0 %v8038
    %v8321 = vpop.f32.mrb[0].mxu0
    %v8322 = vadd.f32 0.0, %v8321
    %v8323 = vpop.f32.mrb[0].mxu0
    %8324 = vmatprep.mubr.f32.mxu0 0.0
    %8325 = vmatmul.mubr.f32.gmra.mrb[0].mxu0 %v8041
    %v8326 = vpop.f32.mrb[0].mxu0
    %v8327 = vadd.f32 0.0, %v8326
    %v8328 = vpop.f32.mrb[0].mxu0
    %8329 = vmatprep.mubr.f32.mxu0 0.0
    %8330 = vmatmul.mubr.f32.gmra.mrb[0].mxu0 %v8044
    %v8331 = vpop.f32.mrb[0].mxu0
    %v8332 = vadd.f32 0.0, %v8331
    %v8333 = vpop.f32.mrb[0].mxu0
    %8334 = vmatprep.mubr.f32.mxu0 0.0
    %8335 = vmatmul.mubr.f32.gmra.mrb[0].mxu0 %v8047
    %v8336 = vpop.f32.mrb[0].mxu0
    %v8337 = vadd.f32 0.0, %v8336
    %v8338 = vpop.f32.mrb[0].mxu0
    %8339 = vmatprep.mubr.f32.mxu0 0.0
    %8340 = vmatmul.mubr.f32.gmra.mrb[0].mxu0 %v8050
    %v8341 = vpop.f32.mrb[0].mxu0
    %v8342 = vadd.f32 0.0, %v8341
    %v8343 = vpop.f32.mrb[0].mxu0
    %8344 = vmatprep.mubr.f32.mxu0 0.0
    %8345 = vmatmul.mubr.f32.gmra.mrb[0].mxu0 %v8053
    %v8346 = vpop.f32.mrb[0].mxu0
    %v8347 = vadd.f32 0.0, %v8346
    %v8348 = vpop.f32.mrb[0].mxu0
    %8349 = vmatprep.mubr.f32.mxu0 0.0
    %8350 = vmatmul.mubr.f32.gmra.mrb[0].mxu0 %v8056
    %v8351 = vpop.f32.mrb[0].mxu0
    %v8352 = vadd.f32 0.0, %v8351
    %v8353 = vpop.f32.mrb[0].mxu0
    %8354 = vmatprep.mubr.f32.mxu0 0.0
    %8355 = vmatmul.mubr.f32.gmra.mrb[0].mxu0 %v8059
    %v8356 = vpop.f32.mrb[0].mxu0
    %v8357 = vadd.f32 0.0, %v8356
    %v8358 = vpop.f32.mrb[0].mxu0
    %8359 = vmatprep.mubr.f32.mxu0 0.0
    %8360 = vmatmul.mubr.f32.gmra.mrb[0].mxu0 %v8062
    %v8361 = vpop.f32.mrb[0].mxu0
    %v8362 = vadd.f32 0.0, %v8361
    %v8363 = vpop.f32.mrb[0].mxu0
    %8364 = vmatprep.mubr.f32.mxu0 0.0
    %8365 = vmatmul.mubr.f32.gmra.mrb[0].mxu0 %v8065
    %v8366 = vpop.f32.mrb[0].mxu0
    %v8367 = vadd.f32 0.0, %v8366
    %v8368 = vpop.f32.mrb[0].mxu0
    %8369 = vmatprep.mubr.f32.mxu0 0.0
    %8370 = vmatmul.mubr.f32.gmra.mrb[0].mxu0 %v8068
    %v8371 = vpop.f32.mrb[0].mxu0
    %v8372 = vadd.f32 0.0, %v8371
    %v8373 = vpop.f32.mrb[0].mxu0
    %8374 = vmatprep.mubr.f32.mxu0 0.0
    %8375 = vmatmul.mubr.f32.gmra.mrb[0].mxu0 %v8071
    %v8376 = vpop.f32.mrb[0].mxu0
    %v8377 = vadd.f32 0.0, %v8376
    %v8378 = vpop.f32.mrb[0].mxu0
    %8379 = vmatprep.mubr.f32.mxu0 0.0
    %8380 = vmatmul.mubr.f32.gmra.mrb[0].mxu0 %v8074
    %v8381 = vpop.f32.mrb[0].mxu0
    %v8382 = vadd.f32 0.0, %v8381
    %v8383 = vpop.f32.mrb[0].mxu0
    %8384 = vmatprep.mubr.f32.mxu0 0.0
    %8385 = vmatmul.mubr.f32.gmra.mrb[0].mxu0 %v8077
    %v8386 = vpop.f32.mrb[0].mxu0
    %v8387 = vadd.f32 0.0, %v8386
    %v8388 = vpop.f32.mrb[0].mxu0
    %8389 = vmatprep.mubr.f32.mxu0 0.0
    %8390 = vmatmul.mubr.f32.gmra.mrb[0].mxu0 %v8080
    %v8391 = vpop.f32.mrb[0].mxu0
    %v8392 = vadd.f32 0.0, %v8391
    %v8393 = vpop.f32.mrb[0].mxu0
    %8394 = vmatprep.mubr.f32.mxu0 0.0
    %8395 = vmatmul.mubr.f32.gmra.mrb[0].mxu0 %v8083
    %v8396 = vpop.f32.mrb[0].mxu0
    %v8397 = vadd.f32 0.0, %v8396
    %v8398 = vpop.f32.mrb[0].mxu0
    %8399 = vmatprep.mubr.f32.mxu0 0.0
    %8400 = vmatmul.mubr.f32.gmra.mrb[0].mxu0 %v8086
    %v8401 = vpop.f32.mrb[0].mxu0
    %v8402 = vadd.f32 0.0, %v8401
    %v8403 = vpop.f32.mrb[0].mxu0
    %8404 = vmatprep.mubr.f32.mxu0 0.0
    %8405 = vmatmul.mubr.f32.gmra.mrb[0].mxu0 %v8089
    %v8406 = vpop.f32.mrb[0].mxu0
    %v8407 = vadd.f32 0.0, %v8406
    %v8408 = vpop.f32.mrb[0].mxu0
    %8409 = vmatprep.mubr.f32.mxu0 0.0
    %8410 = vmatmul.mubr.f32.gmra.mrb[0].mxu0 %v8092
    %v8411 = vpop.f32.mrb[0].mxu0
    %v8412 = vadd.f32 0.0, %v8411
    %v8413 = vpop.f32.mrb[0].mxu0
    %8414 = vmatprep.mubr.f32.mxu0 0.0
    %8415 = vmatmul.mubr.f32.gmra.mrb[0].mxu0 %v8095
    %v8416 = vpop.f32.mrb[0].mxu0
    %v8417 = vadd.f32 0.0, %v8416
    %v8418 = vpop.f32.mrb[0].mxu0
    %8419 = vmatprep.mubr.f32.mxu0 0.0
    %8420 = vmatmul.mubr.f32.gmra.mrb[0].mxu0 %v8098
    %v8421 = vpop.f32.mrb[0].mxu0
    %v8422 = vadd.f32 0.0, %v8421
    %v8423 = vpop.f32.mrb[0].mxu0
    %8424 = vmatprep.mubr.f32.mxu0 0.0
    %8425 = vmatmul.mubr.f32.gmra.mrb[0].mxu0 %v8101
    %v8426 = vpop.f32.mrb[0].mxu0
    %v8427 = vadd.f32 0.0, %v8426
    %v8428 = vpop.f32.mrb[0].mxu0
    %8429 = vmatprep.mubr.f32.mxu0 0.0
    %8430 = vmatmul.mubr.f32.gmra.mrb[0].mxu0 %v8104
    %v8431 = vpop.f32.mrb[0].mxu0
    %v8432 = vadd.f32 0.0, %v8431
    %v8433 = vpop.f32.mrb[0].mxu0
    %8434 = vmatprep.mubr.f32.mxu0 0.0
    %8435 = vmatmul.mubr.f32.gmra.mrb[0].mxu0 %v8107
    %v8436 = vpop.f32.mrb[0].mxu0
    %v8437 = vadd.f32 0.0, %v8436
    %v8438 = vpop.f32.mrb[0].mxu0
    %8439 = vmatprep.mubr.f32.mxu0 0.0
    %8440 = vmatmul.mubr.f32.gmra.mrb[0].mxu0 %v8110
    %v8441 = vpop.f32.mrb[0].mxu0
    %v8442 = vadd.f32 0.0, %v8441
    %v8443 = vpop.f32.mrb[0].mxu0
    %8444 = vmatprep.mubr.f32.mxu0 0.0
    %8445 = vmatmul.mubr.f32.gmra.mrb[0].mxu0 %v8113
    %v8446 = vpop.f32.mrb[0].mxu0
    %v8447 = vadd.f32 0.0, %v8446
    %v8448 = vpop.f32.mrb[0].mxu0
    %8449 = vmatprep.mubr.f32.mxu0 0.0
    %8450 = vmatmul.mubr.f32.gmra.mrb[0].mxu0 %v8116
    %v8451 = vpop.f32.mrb[0].mxu0
    %v8452 = vadd.f32 0.0, %v8451
    %v8453 = vpop.f32.mrb[0].mxu0
    %8454 = vmatprep.mubr.f32.mxu0 0.0
    %8455 = vmatmul.mubr.f32.gmra.mrb[0].mxu0 %v8119
    %v8456 = vpop.f32.mrb[0].mxu0
    %v8457 = vadd.f32 0.0, %v8456
    %v8458 = vpop.f32.mrb[0].mxu0
    %8459 = vmatprep.mubr.f32.mxu0 0.0
    %8460 = vmatmul.mubr.f32.gmra.mrb[0].mxu0 %v8122
    %v8461 = vpop.f32.mrb[0].mxu0
    %v8462 = vadd.f32 0.0, %v8461
    %v8463 = vpop.f32.mrb[0].mxu0
    %8464 = vmatprep.mubr.f32.mxu0 0.0
    %8465 = vmatmul.mubr.f32.gmra.mrb[0].mxu0 %v8125
    %v8466 = vpop.f32.mrb[0].mxu0
    %v8467 = vadd.f32 0.0, %v8466
    %v8468 = vpop.f32.mrb[0].mxu0
    %8469 = vmatprep.mubr.f32.mxu0 0.0
    %8470 = vmatmul.mubr.f32.gmra.mrb[0].mxu0 %v8128
    %v8471 = vpop.f32.mrb[0].mxu0
    %v8472 = vadd.f32 0.0, %v8471
    %v8473 = vpop.f32.mrb[0].mxu0
    %8474 = vmatprep.mubr.f32.mxu0 0.0
    %8475 = vmatmul.mubr.f32.gmra.mrb[0].mxu0 %v8131
    %v8476 = vpop.f32.mrb[0].mxu0
    %v8477 = vadd.f32 0.0, %v8476
    %v8478 = vpop.f32.mrb[0].mxu0
    %8479 = vmatprep.mubr.f32.mxu0 0.0
    %8480 = vmatmul.mubr.f32.gmra.mrb[0].mxu0 %v8134
    %v8481 = vpop.f32.mrb[0].mxu0
    %v8482 = vadd.f32 0.0, %v8481
    %v8483 = vpop.f32.mrb[0].mxu0
    %8484 = vmatprep.mubr.f32.mxu0 0.0
    %8485 = vmatmul.mubr.f32.gmra.mrb[0].mxu0 %v8137
    %v8486 = vpop.f32.mrb[0].mxu0
    %v8487 = vadd.f32 0.0, %v8486
    %v8488 = vpop.f32.mrb[0].mxu0
    %8489 = vmatprep.mubr.f32.mxu0 0.0
    %8490 = vmatmul.mubr.f32.gmra.mrb[0].mxu0 %v8140
    %v8491 = vpop.f32.mrb[0].mxu0
    %v8492 = vadd.f32 0.0, %v8491
    %v8493 = vpop.f32.mrb[0].mxu0
    %8494 = vmatprep.mubr.f32.mxu0 0.0
    %8495 = vmatmul.mubr.f32.gmra.mrb[0].mxu0 %v8143
    %v8496 = vpop.f32.mrb[0].mxu0
    %v8497 = vadd.f32 0.0, %v8496
    %v8498 = vpop.f32.mrb[0].mxu0
    %8499 = vmatprep.mubr.f32.mxu0 0.0
    %8500 = vmatmul.mubr.f32.gmra.mrb[0].mxu0 %v8146
    %v8501 = vpop.f32.mrb[0].mxu0
    %v8502 = vadd.f32 0.0, %v8501
    %v8503 = vpop.f32.mrb[0].mxu0
    %8504 = vmatprep.mubr.f32.mxu0 0.0
    %8505 = vmatmul.mubr.f32.gmra.mrb[0].mxu0 %v8149
    %v8506 = vpop.f32.mrb[0].mxu0
    %v8507 = vadd.f32 0.0, %v8506
    %v8508 = vpop.f32.mrb[0].mxu0
    %8509 = vmatprep.mubr.f32.mxu0 0.0
    %8510 = vmatmul.mubr.f32.gmra.mrb[0].mxu0 %v8152
    %v8511 = vpop.f32.mrb[0].mxu0
    %v8512 = vadd.f32 0.0, %v8511
    %v8513 = vpop.f32.mrb[0].mxu0
    %8514 = vmatprep.mubr.f32.mxu0 0.0
    %8515 = vmatmul.mubr.f32.gmra.mrb[0].mxu0 %v8155
    %v8516 = vpop.f32.mrb[0].mxu0
    %v8517 = vadd.f32 0.0, %v8516
    %v8518 = vpop.f32.mrb[0].mxu0
    %8519 = vmatprep.mubr.f32.mxu0 0.0
    %8520 = vmatmul.mubr.f32.gmra.mrb[0].mxu0 %v8158
    %v8521 = vpop.f32.mrb[0].mxu0
    %v8522 = vadd.f32 0.0, %v8521
    %v8523 = vpop.f32.mrb[0].mxu0
    %8524 = vmatprep.mubr.f32.mxu0 0.0
    %8525 = vmatmul.mubr.f32.gmra.mrb[0].mxu0 %v8161
    %v8526 = vpop.f32.mrb[0].mxu0
    %v8527 = vadd.f32 0.0, %v8526
    %v8528 = vpop.f32.mrb[0].mxu0
    %8529 = vmatprep.mubr.f32.mxu0 0.0
    %8530 = vmatmul.mubr.f32.gmra.mrb[0].mxu0 %v8164
    %v8531 = vpop.f32.mrb[0].mxu0
    %v8532 = vadd.f32 0.0, %v8531
    %v8533 = vpop.f32.mrb[0].mxu0
    %8534 = vmatprep.mubr.f32.mxu0 0.0
    %8535 = vmatmul.mubr.f32.gmra.mrb[0].mxu0 %v8167
    %v8536 = vpop.f32.mrb[0].mxu0
    %v8537 = vadd.f32 0.0, %v8536
    %v8538 = vpop.f32.mrb[0].mxu0
    %8539 = vmatprep.mubr.f32.mxu0 0.0
    %8540 = vmatmul.mubr.f32.gmra.mrb[0].mxu0 %v8170
    %v8541 = vpop.f32.mrb[0].mxu0
    %v8542 = vadd.f32 0.0, %v8541
    %v8543 = vpop.f32.mrb[0].mxu0
    %8544 = vmatprep.mubr.f32.mxu0 0.0
    %8545 = vmatmul.mubr.f32.gmra.mrb[0].mxu0 %v8173
    %v8546 = vpop.f32.mrb[0].mxu0
    %v8547 = vadd.f32 0.0, %v8546
    %v8548 = vpop.f32.mrb[0].mxu0
    %8549 = vmatprep.mubr.f32.mxu0 0.0
    %8550 = vmatmul.mubr.f32.gmra.mrb[0].mxu0 %v8176
    %v8551 = vpop.f32.mrb[0].mxu0
    %v8552 = vadd.f32 0.0, %v8551
    %v8553 = vpop.f32.mrb[0].mxu0
    %8554 = vmatprep.mubr.f32.mxu0 0.0
    %8555 = vmatmul.mubr.f32.gmra.mrb[0].mxu0 %v8179
    %v8556 = vpop.f32.mrb[0].mxu0
    %v8557 = vadd.f32 0.0, %v8556
    %v8558 = vpop.f32.mrb[0].mxu0
    %8559 = vmatprep.mubr.f32.mxu0 0.0
    %8560 = vmatmul.mubr.f32.gmra.mrb[0].mxu0 %v8182
    %v8561 = vpop.f32.mrb[0].mxu0
    %v8562 = vadd.f32 0.0, %v8561
    %v8563 = vpop.f32.mrb[0].mxu0
    %8564 = vmatprep.mubr.f32.mxu0 0.0
    %8565 = vmatmul.mubr.f32.gmra.mrb[0].mxu0 %v8185
    %v8566 = vpop.f32.mrb[0].mxu0
    %v8567 = vadd.f32 0.0, %v8566
    %v8568 = vpop.f32.mrb[0].mxu0
    %8569 = vmatprep.mubr.f32.mxu0 0.0
    %8570 = vmatmul.mubr.f32.gmra.mrb[0].mxu0 %v8188
    %v8571 = vpop.f32.mrb[0].mxu0
    %v8572 = vadd.f32 0.0, %v8571
    %v8573 = vpop.f32.mrb[0].mxu0
    %8574 = vdwg.mxu0
    %v8575 = vsel %vm29, %v8257, 0.0
    %v8576 = vsel %vm29, %v8262, 0.0
    %v8577 = vadd.f32 %v8575, %v8576
    %v8578 = vsel %vm29, %v8267, 0.0
    %v8579 = vadd.f32 %v8577, %v8578
    %v8580 = vsel %vm29, %v8272, 0.0
    %v8581 = vadd.f32 %v8579, %v8580
    %v8582 = vsel %vm29, %v8277, 0.0
    %v8583 = vadd.f32 %v8581, %v8582
    %v8584 = vsel %vm29, %v8282, 0.0
    %v8585 = vadd.f32 %v8583, %v8584
    %v8586 = vsel %vm29, %v8287, 0.0
    %v8587 = vadd.f32 %v8585, %v8586
    %v8588 = vsel %vm29, %v8292, 0.0
    %v8589 = vadd.f32 %v8587, %v8588
    %v8590 = vsel %vm29, %v8297, 0.0
    %v8591 = vadd.f32 %v8589, %v8590
    %v8592 = vsel %vm29, %v8302, 0.0
    %v8593 = vadd.f32 %v8591, %v8592
    %v8594 = vsel %vm29, %v8307, 0.0
    %v8595 = vadd.f32 %v8593, %v8594
    %v8596 = vsel %vm29, %v8312, 0.0
    %v8597 = vadd.f32 %v8595, %v8596
    %v8598 = vsel %vm29, %v8317, 0.0
    %v8599 = vadd.f32 %v8597, %v8598
    %v8600 = vsel %vm29, %v8322, 0.0
    %v8601 = vadd.f32 %v8599, %v8600
    %v8602 = vsel %vm29, %v8327, 0.0
    %v8603 = vadd.f32 %v8601, %v8602
    %v8604 = vsel %vm29, %v8332, 0.0
    %v8605 = vadd.f32 %v8603, %v8604
    %v8606 = vsel %vm29, %v8337, 0.0
    %v8607 = vadd.f32 %v8605, %v8606
    %v8608 = vsel %vm29, %v8342, 0.0
    %v8609 = vadd.f32 %v8607, %v8608
    %v8610 = vsel %vm29, %v8347, 0.0
    %v8611 = vadd.f32 %v8609, %v8610
    %v8612 = vsel %vm29, %v8352, 0.0
    %v8613 = vadd.f32 %v8611, %v8612
    %v8614 = vsel %vm29, %v8357, 0.0
    %v8615 = vadd.f32 %v8613, %v8614
    %v8616 = vsel %vm29, %v8362, 0.0
    %v8617 = vadd.f32 %v8615, %v8616
    %v8618 = vsel %vm29, %v8367, 0.0
    %v8619 = vadd.f32 %v8617, %v8618
    %v8620 = vsel %vm29, %v8372, 0.0
    %v8621 = vadd.f32 %v8619, %v8620
    %v8622 = vsel %vm29, %v8377, 0.0
    %v8623 = vadd.f32 %v8621, %v8622
    %v8624 = vsel %vm29, %v8382, 0.0
    %v8625 = vadd.f32 %v8623, %v8624
    %v8626 = vsel %vm29, %v8387, 0.0
    %v8627 = vadd.f32 %v8625, %v8626
    %v8628 = vsel %vm29, %v8392, 0.0
    %v8629 = vadd.f32 %v8627, %v8628
    %v8630 = vsel %vm29, %v8397, 0.0
    %v8631 = vadd.f32 %v8629, %v8630
    %v8632 = vsel %vm29, %v8402, 0.0
    %v8633 = vadd.f32 %v8631, %v8632
    %v8634 = vsel %vm29, %v8407, 0.0
    %v8635 = vadd.f32 %v8633, %v8634
    %v8636 = vsel %vm29, %v8412, 0.0
    %v8637 = vadd.f32 %v8635, %v8636
    %v8638 = vsel %vm29, %v8417, 0.0
    %v8639 = vadd.f32 %v8637, %v8638
    %v8640 = vsel %vm29, %v8422, 0.0
    %v8641 = vadd.f32 %v8639, %v8640
    %v8642 = vsel %vm29, %v8427, 0.0
    %v8643 = vadd.f32 %v8641, %v8642
    %v8644 = vsel %vm29, %v8432, 0.0
    %v8645 = vadd.f32 %v8643, %v8644
    %v8646 = vsel %vm29, %v8437, 0.0
    %v8647 = vadd.f32 %v8645, %v8646
    %v8648 = vsel %vm29, %v8442, 0.0
    %v8649 = vadd.f32 %v8647, %v8648
    %v8650 = vsel %vm29, %v8447, 0.0
    %v8651 = vadd.f32 %v8649, %v8650
    %v8652 = vsel %vm29, %v8452, 0.0
    %v8653 = vadd.f32 %v8651, %v8652
    %v8654 = vsel %vm29, %v8457, 0.0
    %v8655 = vadd.f32 %v8653, %v8654
    %v8656 = vsel %vm29, %v8462, 0.0
    %v8657 = vadd.f32 %v8655, %v8656
    %v8658 = vsel %vm29, %v8467, 0.0
    %v8659 = vadd.f32 %v8657, %v8658
    %v8660 = vsel %vm29, %v8472, 0.0
    %v8661 = vadd.f32 %v8659, %v8660
    %v8662 = vsel %vm29, %v8477, 0.0
    %v8663 = vadd.f32 %v8661, %v8662
    %v8664 = vsel %vm29, %v8482, 0.0
    %v8665 = vadd.f32 %v8663, %v8664
    %v8666 = vsel %vm29, %v8487, 0.0
    %v8667 = vadd.f32 %v8665, %v8666
    %v8668 = vsel %vm29, %v8492, 0.0
    %v8669 = vadd.f32 %v8667, %v8668
    %v8670 = vsel %vm29, %v8497, 0.0
    %v8671 = vadd.f32 %v8669, %v8670
    %v8672 = vsel %vm29, %v8502, 0.0
    %v8673 = vadd.f32 %v8671, %v8672
    %v8674 = vsel %vm29, %v8507, 0.0
    %v8675 = vadd.f32 %v8673, %v8674
    %v8676 = vsel %vm29, %v8512, 0.0
    %v8677 = vadd.f32 %v8675, %v8676
    %v8678 = vsel %vm29, %v8517, 0.0
    %v8679 = vadd.f32 %v8677, %v8678
    %v8680 = vsel %vm29, %v8522, 0.0
    %v8681 = vadd.f32 %v8679, %v8680
    %v8682 = vsel %vm29, %v8527, 0.0
    %v8683 = vadd.f32 %v8681, %v8682
    %v8684 = vsel %vm29, %v8532, 0.0
    %v8685 = vadd.f32 %v8683, %v8684
    %v8686 = vsel %vm29, %v8537, 0.0
    %v8687 = vadd.f32 %v8685, %v8686
    %v8688 = vsel %vm29, %v8542, 0.0
    %v8689 = vadd.f32 %v8687, %v8688
    %v8690 = vsel %vm29, %v8547, 0.0
    %v8691 = vadd.f32 %v8689, %v8690
    %v8692 = vsel %vm29, %v8552, 0.0
    %v8693 = vadd.f32 %v8691, %v8692
    %v8694 = vsel %vm29, %v8557, 0.0
    %v8695 = vadd.f32 %v8693, %v8694
    %v8696 = vsel %vm29, %v8562, 0.0
    %v8697 = vadd.f32 %v8695, %v8696
    %v8698 = vsel %vm29, %v8567, 0.0
    %v8699 = vadd.f32 %v8697, %v8698
    %v8700 = vsel %vm29, %v8572, 0.0
    %v8701 = vadd.f32 %v8699, %v8700
    %v8702 = vrot.slane %v8701, 4
    %v8703 = vadd.f32 %v8701, %v8702
    %v8704 = vrot.slane %v8703, 2
    %v8705 = vadd.f32 %v8703, %v8704
    %v8706 = vrot.slane %v8705, 1
    %v8707 = vadd.f32 %v8705, %v8706
    %v8708 = vmul.f32 %v8257, %v8257
    %v8709 = vmul.f32 %v8262, %v8262
    %v8710 = vmul.f32 %v8267, %v8267
    %v8711 = vmul.f32 %v8272, %v8272
    %v8712 = vmul.f32 %v8277, %v8277
    %v8713 = vmul.f32 %v8282, %v8282
    %v8714 = vmul.f32 %v8287, %v8287
    %v8715 = vmul.f32 %v8292, %v8292
    %v8716 = vmul.f32 %v8297, %v8297
    %v8717 = vmul.f32 %v8302, %v8302
    %v8718 = vmul.f32 %v8307, %v8307
    %v8719 = vmul.f32 %v8312, %v8312
    %v8720 = vmul.f32 %v8317, %v8317
    %v8721 = vmul.f32 %v8322, %v8322
    %v8722 = vmul.f32 %v8327, %v8327
    %v8723 = vmul.f32 %v8332, %v8332
    %v8724 = vmul.f32 %v8337, %v8337
    %v8725 = vmul.f32 %v8342, %v8342
    %v8726 = vmul.f32 %v8347, %v8347
    %v8727 = vmul.f32 %v8352, %v8352
    %v8728 = vmul.f32 %v8357, %v8357
    %v8729 = vmul.f32 %v8362, %v8362
    %v8730 = vmul.f32 %v8367, %v8367
    %v8731 = vmul.f32 %v8372, %v8372
    %v8732 = vmul.f32 %v8377, %v8377
    %v8733 = vmul.f32 %v8382, %v8382
    %v8734 = vmul.f32 %v8387, %v8387
    %v8735 = vmul.f32 %v8392, %v8392
    %v8736 = vmul.f32 %v8397, %v8397
    %v8737 = vmul.f32 %v8402, %v8402
    %v8738 = vmul.f32 %v8407, %v8407
    %v8739 = vmul.f32 %v8412, %v8412
    %v8740 = vmul.f32 %v8417, %v8417
    %v8741 = vmul.f32 %v8422, %v8422
    %v8742 = vmul.f32 %v8427, %v8427
    %v8743 = vmul.f32 %v8432, %v8432
    %v8744 = vmul.f32 %v8437, %v8437
    %v8745 = vmul.f32 %v8442, %v8442
    %v8746 = vmul.f32 %v8447, %v8447
    %v8747 = vmul.f32 %v8452, %v8452
    %v8748 = vmul.f32 %v8457, %v8457
    %v8749 = vmul.f32 %v8462, %v8462
    %v8750 = vmul.f32 %v8467, %v8467
    %v8751 = vmul.f32 %v8472, %v8472
    %v8752 = vmul.f32 %v8477, %v8477
    %v8753 = vmul.f32 %v8482, %v8482
    %v8754 = vmul.f32 %v8487, %v8487
    %v8755 = vmul.f32 %v8492, %v8492
    %v8756 = vmul.f32 %v8497, %v8497
    %v8757 = vmul.f32 %v8502, %v8502
    %v8758 = vmul.f32 %v8507, %v8507
    %v8759 = vmul.f32 %v8512, %v8512
    %v8760 = vmul.f32 %v8517, %v8517
    %v8761 = vmul.f32 %v8522, %v8522
    %v8762 = vmul.f32 %v8527, %v8527
    %v8763 = vmul.f32 %v8532, %v8532
    %v8764 = vmul.f32 %v8537, %v8537
    %v8765 = vmul.f32 %v8542, %v8542
    %v8766 = vmul.f32 %v8547, %v8547
    %v8767 = vmul.f32 %v8552, %v8552
    %v8768 = vmul.f32 %v8557, %v8557
    %v8769 = vmul.f32 %v8562, %v8562
    %v8770 = vmul.f32 %v8567, %v8567
    %v8771 = vmul.f32 %v8572, %v8572
    %v8772 = vsel %vm29, %v8708, 0.0
    %v8773 = vsel %vm29, %v8709, 0.0
    %v8774 = vadd.f32 %v8772, %v8773
    %v8775 = vsel %vm29, %v8710, 0.0
    %v8776 = vadd.f32 %v8774, %v8775
    %v8777 = vsel %vm29, %v8711, 0.0
    %v8778 = vadd.f32 %v8776, %v8777
    %v8779 = vsel %vm29, %v8712, 0.0
    %v8780 = vadd.f32 %v8778, %v8779
    %v8781 = vsel %vm29, %v8713, 0.0
    %v8782 = vadd.f32 %v8780, %v8781
    %v8783 = vsel %vm29, %v8714, 0.0
    %v8784 = vadd.f32 %v8782, %v8783
    %v8785 = vsel %vm29, %v8715, 0.0
    %v8786 = vadd.f32 %v8784, %v8785
    %v8787 = vsel %vm29, %v8716, 0.0
    %v8788 = vadd.f32 %v8786, %v8787
    %v8789 = vsel %vm29, %v8717, 0.0
    %v8790 = vadd.f32 %v8788, %v8789
    %v8791 = vsel %vm29, %v8718, 0.0
    %v8792 = vadd.f32 %v8790, %v8791
    %v8793 = vsel %vm29, %v8719, 0.0
    %v8794 = vadd.f32 %v8792, %v8793
    %v8795 = vsel %vm29, %v8720, 0.0
    %v8796 = vadd.f32 %v8794, %v8795
    %v8797 = vsel %vm29, %v8721, 0.0
    %v8798 = vadd.f32 %v8796, %v8797
    %v8799 = vsel %vm29, %v8722, 0.0
    %v8800 = vadd.f32 %v8798, %v8799
    %v8801 = vsel %vm29, %v8723, 0.0
    %v8802 = vadd.f32 %v8800, %v8801
    %v8803 = vsel %vm29, %v8724, 0.0
    %v8804 = vadd.f32 %v8802, %v8803
    %v8805 = vsel %vm29, %v8725, 0.0
    %v8806 = vadd.f32 %v8804, %v8805
    %v8807 = vsel %vm29, %v8726, 0.0
    %v8808 = vadd.f32 %v8806, %v8807
    %v8809 = vsel %vm29, %v8727, 0.0
    %v8810 = vadd.f32 %v8808, %v8809
    %v8811 = vsel %vm29, %v8728, 0.0
    %v8812 = vadd.f32 %v8810, %v8811
    %v8813 = vsel %vm29, %v8729, 0.0
    %v8814 = vadd.f32 %v8812, %v8813
    %v8815 = vsel %vm29, %v8730, 0.0
    %v8816 = vadd.f32 %v8814, %v8815
    %v8817 = vsel %vm29, %v8731, 0.0
    %v8818 = vadd.f32 %v8816, %v8817
    %v8819 = vsel %vm29, %v8732, 0.0
    %v8820 = vadd.f32 %v8818, %v8819
    %v8821 = vsel %vm29, %v8733, 0.0
    %v8822 = vadd.f32 %v8820, %v8821
    %v8823 = vsel %vm29, %v8734, 0.0
    %v8824 = vadd.f32 %v8822, %v8823
    %v8825 = vsel %vm29, %v8735, 0.0
    %v8826 = vadd.f32 %v8824, %v8825
    %v8827 = vsel %vm29, %v8736, 0.0
    %v8828 = vadd.f32 %v8826, %v8827
    %v8829 = vsel %vm29, %v8737, 0.0
    %v8830 = vadd.f32 %v8828, %v8829
    %v8831 = vsel %vm29, %v8738, 0.0
    %v8832 = vadd.f32 %v8830, %v8831
    %v8833 = vsel %vm29, %v8739, 0.0
    %v8834 = vadd.f32 %v8832, %v8833
    %v8835 = vsel %vm29, %v8740, 0.0
    %v8836 = vadd.f32 %v8834, %v8835
    %v8837 = vsel %vm29, %v8741, 0.0
    %v8838 = vadd.f32 %v8836, %v8837
    %v8839 = vsel %vm29, %v8742, 0.0
    %v8840 = vadd.f32 %v8838, %v8839
    %v8841 = vsel %vm29, %v8743, 0.0
    %v8842 = vadd.f32 %v8840, %v8841
    %v8843 = vsel %vm29, %v8744, 0.0
    %v8844 = vadd.f32 %v8842, %v8843
    %v8845 = vsel %vm29, %v8745, 0.0
    %v8846 = vadd.f32 %v8844, %v8845
    %v8847 = vsel %vm29, %v8746, 0.0
    %v8848 = vadd.f32 %v8846, %v8847
    %v8849 = vsel %vm29, %v8747, 0.0
    %v8850 = vadd.f32 %v8848, %v8849
    %v8851 = vsel %vm29, %v8748, 0.0
    %v8852 = vadd.f32 %v8850, %v8851
    %v8853 = vsel %vm29, %v8749, 0.0
    %v8854 = vadd.f32 %v8852, %v8853
    %v8855 = vsel %vm29, %v8750, 0.0
    %v8856 = vadd.f32 %v8854, %v8855
    %v8857 = vsel %vm29, %v8751, 0.0
    %v8858 = vadd.f32 %v8856, %v8857
    %v8859 = vsel %vm29, %v8752, 0.0
    %v8860 = vadd.f32 %v8858, %v8859
    %v8861 = vsel %vm29, %v8753, 0.0
    %v8862 = vadd.f32 %v8860, %v8861
    %v8863 = vsel %vm29, %v8754, 0.0
    %v8864 = vadd.f32 %v8862, %v8863
    %v8865 = vsel %vm29, %v8755, 0.0
    %v8866 = vadd.f32 %v8864, %v8865
    %v8867 = vsel %vm29, %v8756, 0.0
    %v8868 = vadd.f32 %v8866, %v8867
    %v8869 = vsel %vm29, %v8757, 0.0
    %v8870 = vadd.f32 %v8868, %v8869
    %v8871 = vsel %vm29, %v8758, 0.0
    %v8872 = vadd.f32 %v8870, %v8871
    %v8873 = vsel %vm29, %v8759, 0.0
    %v8874 = vadd.f32 %v8872, %v8873
    %v8875 = vsel %vm29, %v8760, 0.0
    %v8876 = vadd.f32 %v8874, %v8875
    %v8877 = vsel %vm29, %v8761, 0.0
    %v8878 = vadd.f32 %v8876, %v8877
    %v8879 = vsel %vm29, %v8762, 0.0
    %v8880 = vadd.f32 %v8878, %v8879
    %v8881 = vsel %vm29, %v8763, 0.0
    %v8882 = vadd.f32 %v8880, %v8881
    %v8883 = vsel %vm29, %v8764, 0.0
    %v8884 = vadd.f32 %v8882, %v8883
    %v8885 = vsel %vm29, %v8765, 0.0
    %v8886 = vadd.f32 %v8884, %v8885
    %v8887 = vsel %vm29, %v8766, 0.0
    %v8888 = vadd.f32 %v8886, %v8887
    %v8889 = vsel %vm29, %v8767, 0.0
    %v8890 = vadd.f32 %v8888, %v8889
    %v8891 = vsel %vm29, %v8768, 0.0
    %v8892 = vadd.f32 %v8890, %v8891
    %v8893 = vsel %vm29, %v8769, 0.0
    %v8894 = vadd.f32 %v8892, %v8893
    %v8895 = vsel %vm29, %v8770, 0.0
    %v8896 = vadd.f32 %v8894, %v8895
    %v8897 = vsel %vm29, %v8771, 0.0
    %v8898 = vadd.f32 %v8896, %v8897
    %v8899 = vrot.slane %v8898, 4
    %v8900 = vadd.f32 %v8898, %v8899
    %v8901 = vrot.slane %v8900, 2
    %v8902 = vadd.f32 %v8900, %v8901
    %v8903 = vrot.slane %v8902, 1
    %v8904 = vadd.f32 %v8902, %v8903
    %v8905 = vmul.f32 %v8707, 0.001953125
    %v8906 = vmul.f32 %v8904, 0.001953125
    %v8907 = vmul.f32 %v8905, %v8905
    %v8908 = vsub.f32 %v8906, %v8907
    %v8909 = vld [vmem:[%s5] sm:$0x1]
    %v8910 = vadd.f32 %v8908, 1e-05
    %v8911 = vrsqrt.pop %v8910
    %v8912 = vmul.f32 %v8909, %v8911
    %v8913 = vld [vmem:[%s6] sm:$0x1]
    %v8914 = vmul.f32 %v8905, %v8912
    %v8915 = vsub.f32 %v8913, %v8914
    %v8917 = vlaneseq
    %v8918 = vshrl.u32 %v8917, 7
    %v8919 = vsub.s32 0, %v8918
    %v8920 = vrot.slane %v8912, %v8919
    %v8922 = vmul.f32 %v8257, %v8920
    %v8923 = vmul.f32 %v8262, %v8920
    %v8924 = vmul.f32 %v8267, %v8920
    %v8925 = vmul.f32 %v8272, %v8920
    %v8926 = vmul.f32 %v8277, %v8920
    %v8927 = vmul.f32 %v8282, %v8920
    %v8928 = vmul.f32 %v8287, %v8920
    %v8929 = vmul.f32 %v8292, %v8920
    %v8930 = vmul.f32 %v8297, %v8920
    %v8931 = vmul.f32 %v8302, %v8920
    %v8932 = vmul.f32 %v8307, %v8920
    %v8933 = vmul.f32 %v8312, %v8920
    %v8934 = vmul.f32 %v8317, %v8920
    %v8935 = vmul.f32 %v8322, %v8920
    %v8936 = vmul.f32 %v8327, %v8920
    %v8937 = vmul.f32 %v8332, %v8920
    %v8938 = vmul.f32 %v8337, %v8920
    %v8939 = vmul.f32 %v8342, %v8920
    %v8940 = vmul.f32 %v8347, %v8920
    %v8941 = vmul.f32 %v8352, %v8920
    %v8942 = vmul.f32 %v8357, %v8920
    %v8943 = vmul.f32 %v8362, %v8920
    %v8944 = vmul.f32 %v8367, %v8920
    %v8945 = vmul.f32 %v8372, %v8920
    %v8946 = vmul.f32 %v8377, %v8920
    %v8947 = vmul.f32 %v8382, %v8920
    %v8948 = vmul.f32 %v8387, %v8920
    %v8949 = vmul.f32 %v8392, %v8920
    %v8950 = vmul.f32 %v8397, %v8920
    %v8951 = vmul.f32 %v8402, %v8920
    %v8952 = vmul.f32 %v8407, %v8920
    %v8953 = vmul.f32 %v8412, %v8920
    %v8954 = vmul.f32 %v8417, %v8920
    %v8955 = vmul.f32 %v8422, %v8920
    %v8956 = vmul.f32 %v8427, %v8920
    %v8957 = vmul.f32 %v8432, %v8920
    %v8958 = vmul.f32 %v8437, %v8920
    %v8959 = vmul.f32 %v8442, %v8920
    %v8960 = vmul.f32 %v8447, %v8920
    %v8961 = vmul.f32 %v8452, %v8920
    %v8962 = vmul.f32 %v8457, %v8920
    %v8963 = vmul.f32 %v8462, %v8920
    %v8964 = vmul.f32 %v8467, %v8920
    %v8965 = vmul.f32 %v8472, %v8920
    %v8966 = vmul.f32 %v8477, %v8920
    %v8967 = vmul.f32 %v8482, %v8920
    %v8968 = vmul.f32 %v8487, %v8920
    %v8969 = vmul.f32 %v8492, %v8920
    %v8970 = vmul.f32 %v8497, %v8920
    %v8971 = vmul.f32 %v8502, %v8920
    %v8972 = vmul.f32 %v8507, %v8920
    %v8973 = vmul.f32 %v8512, %v8920
    %v8974 = vmul.f32 %v8517, %v8920
    %v8975 = vmul.f32 %v8522, %v8920
    %v8976 = vmul.f32 %v8527, %v8920
    %v8977 = vmul.f32 %v8532, %v8920
    %v8978 = vmul.f32 %v8537, %v8920
    %v8979 = vmul.f32 %v8542, %v8920
    %v8980 = vmul.f32 %v8547, %v8920
    %v8981 = vmul.f32 %v8552, %v8920
    %v8982 = vmul.f32 %v8557, %v8920
    %v8983 = vmul.f32 %v8562, %v8920
    %v8984 = vmul.f32 %v8567, %v8920
    %v8985 = vmul.f32 %v8572, %v8920
    %v8987 = vlaneseq
    %v8988 = vshrl.u32 %v8987, 7
    %v8989 = vsub.s32 0, %v8988
    %v8990 = vrot.slane %v8915, %v8989
    %v8992 = vadd.f32 %v8922, %v8990
    %v8993 = vadd.f32 %v8923, %v8990
    %v8994 = vadd.f32 %v8924, %v8990
    %v8995 = vadd.f32 %v8925, %v8990
    %v8996 = vadd.f32 %v8926, %v8990
    %v8997 = vadd.f32 %v8927, %v8990
    %v8998 = vadd.f32 %v8928, %v8990
    %v8999 = vadd.f32 %v8929, %v8990
    %v9000 = vadd.f32 %v8930, %v8990
    %v9001 = vadd.f32 %v8931, %v8990
    %v9002 = vadd.f32 %v8932, %v8990
    %v9003 = vadd.f32 %v8933, %v8990
    %v9004 = vadd.f32 %v8934, %v8990
    %v9005 = vadd.f32 %v8935, %v8990
    %v9006 = vadd.f32 %v8936, %v8990
    %v9007 = vadd.f32 %v8937, %v8990
    %v9008 = vadd.f32 %v8938, %v8990
    %v9009 = vadd.f32 %v8939, %v8990
    %v9010 = vadd.f32 %v8940, %v8990
    %v9011 = vadd.f32 %v8941, %v8990
    %v9012 = vadd.f32 %v8942, %v8990
    %v9013 = vadd.f32 %v8943, %v8990
    %v9014 = vadd.f32 %v8944, %v8990
    %v9015 = vadd.f32 %v8945, %v8990
    %v9016 = vadd.f32 %v8946, %v8990
    %v9017 = vadd.f32 %v8947, %v8990
    %v9018 = vadd.f32 %v8948, %v8990
    %v9019 = vadd.f32 %v8949, %v8990
    %v9020 = vadd.f32 %v8950, %v8990
    %v9021 = vadd.f32 %v8951, %v8990
    %v9022 = vadd.f32 %v8952, %v8990
    %v9023 = vadd.f32 %v8953, %v8990
    %v9024 = vadd.f32 %v8954, %v8990
    %v9025 = vadd.f32 %v8955, %v8990
    %v9026 = vadd.f32 %v8956, %v8990
    %v9027 = vadd.f32 %v8957, %v8990
    %v9028 = vadd.f32 %v8958, %v8990
    %v9029 = vadd.f32 %v8959, %v8990
    %v9030 = vadd.f32 %v8960, %v8990
    %v9031 = vadd.f32 %v8961, %v8990
    %v9032 = vadd.f32 %v8962, %v8990
    %v9033 = vadd.f32 %v8963, %v8990
    %v9034 = vadd.f32 %v8964, %v8990
    %v9035 = vadd.f32 %v8965, %v8990
    %v9036 = vadd.f32 %v8966, %v8990
    %v9037 = vadd.f32 %v8967, %v8990
    %v9038 = vadd.f32 %v8968, %v8990
    %v9039 = vadd.f32 %v8969, %v8990
    %v9040 = vadd.f32 %v8970, %v8990
    %v9041 = vadd.f32 %v8971, %v8990
    %v9042 = vadd.f32 %v8972, %v8990
    %v9043 = vadd.f32 %v8973, %v8990
    %v9044 = vadd.f32 %v8974, %v8990
    %v9045 = vadd.f32 %v8975, %v8990
    %v9046 = vadd.f32 %v8976, %v8990
    %v9047 = vadd.f32 %v8977, %v8990
    %v9048 = vadd.f32 %v8978, %v8990
    %v9049 = vadd.f32 %v8979, %v8990
    %v9050 = vadd.f32 %v8980, %v8990
    %v9051 = vadd.f32 %v8981, %v8990
    %v9052 = vadd.f32 %v8982, %v8990
    %v9053 = vadd.f32 %v8983, %v8990
    %v9054 = vadd.f32 %v8984, %v8990
    %v9055 = vadd.f32 %v8985, %v8990
    %v9056 = vmax.f32 %v8992, 0.0
    %v9057 = vmax.f32 %v8993, 0.0
    %v9058 = vmax.f32 %v8994, 0.0
    %v9059 = vmax.f32 %v8995, 0.0
    %v9060 = vmax.f32 %v8996, 0.0
    %v9061 = vmax.f32 %v8997, 0.0
    %v9062 = vmax.f32 %v8998, 0.0
    %v9063 = vmax.f32 %v8999, 0.0
    %v9064 = vmax.f32 %v9000, 0.0
    %v9065 = vmax.f32 %v9001, 0.0
    %v9066 = vmax.f32 %v9002, 0.0
    %v9067 = vmax.f32 %v9003, 0.0
    %v9068 = vmax.f32 %v9004, 0.0
    %v9069 = vmax.f32 %v9005, 0.0
    %v9070 = vmax.f32 %v9006, 0.0
    %v9071 = vmax.f32 %v9007, 0.0
    %v9072 = vmax.f32 %v9008, 0.0
    %v9073 = vmax.f32 %v9009, 0.0
    %v9074 = vmax.f32 %v9010, 0.0
    %v9075 = vmax.f32 %v9011, 0.0
    %v9076 = vmax.f32 %v9012, 0.0
    %v9077 = vmax.f32 %v9013, 0.0
    %v9078 = vmax.f32 %v9014, 0.0
    %v9079 = vmax.f32 %v9015, 0.0
    %v9080 = vmax.f32 %v9016, 0.0
    %v9081 = vmax.f32 %v9017, 0.0
    %v9082 = vmax.f32 %v9018, 0.0
    %v9083 = vmax.f32 %v9019, 0.0
    %v9084 = vmax.f32 %v9020, 0.0
    %v9085 = vmax.f32 %v9021, 0.0
    %v9086 = vmax.f32 %v9022, 0.0
    %v9087 = vmax.f32 %v9023, 0.0
    %v9088 = vmax.f32 %v9024, 0.0
    %v9089 = vmax.f32 %v9025, 0.0
    %v9090 = vmax.f32 %v9026, 0.0
    %v9091 = vmax.f32 %v9027, 0.0
    %v9092 = vmax.f32 %v9028, 0.0
    %v9093 = vmax.f32 %v9029, 0.0
    %v9094 = vmax.f32 %v9030, 0.0
    %v9095 = vmax.f32 %v9031, 0.0
    %v9096 = vmax.f32 %v9032, 0.0
    %v9097 = vmax.f32 %v9033, 0.0
    %v9098 = vmax.f32 %v9034, 0.0
    %v9099 = vmax.f32 %v9035, 0.0
    %v9100 = vmax.f32 %v9036, 0.0
    %v9101 = vmax.f32 %v9037, 0.0
    %v9102 = vmax.f32 %v9038, 0.0
    %v9103 = vmax.f32 %v9039, 0.0
    %v9104 = vmax.f32 %v9040, 0.0
    %v9105 = vmax.f32 %v9041, 0.0
    %v9106 = vmax.f32 %v9042, 0.0
    %v9107 = vmax.f32 %v9043, 0.0
    %v9108 = vmax.f32 %v9044, 0.0
    %v9109 = vmax.f32 %v9045, 0.0
    %v9110 = vmax.f32 %v9046, 0.0
    %v9111 = vmax.f32 %v9047, 0.0
    %v9112 = vmax.f32 %v9048, 0.0
    %v9113 = vmax.f32 %v9049, 0.0
    %v9114 = vmax.f32 %v9050, 0.0
    %v9115 = vmax.f32 %v9051, 0.0
    %v9116 = vmax.f32 %v9052, 0.0
    %v9117 = vmax.f32 %v9053, 0.0
    %v9118 = vmax.f32 %v9054, 0.0
    %v9119 = vmax.f32 %v9055, 0.0
    %9120 = vst.msk [vmem:[%s7] sm:$0xff] %vm29, %v9056
    %9121 = vst.msk [vmem:[%s7 + $0x8] sm:$0xff] %vm29, %v9057
    %9122 = vst.msk [vmem:[%s7 + $0x10] sm:$0xff] %vm29, %v9058
    %9123 = vst.msk [vmem:[%s7 + $0x18] sm:$0xff] %vm29, %v9059
    %9124 = vst.msk [vmem:[%s7 + $0x20] sm:$0xff] %vm29, %v9060
    %9125 = vst.msk [vmem:[%s7 + $0x28] sm:$0xff] %vm29, %v9061
    %9126 = vst.msk [vmem:[%s7 + $0x30] sm:$0xff] %vm29, %v9062
    %9127 = vst.msk [vmem:[%s7 + $0x38] sm:$0xff] %vm29, %v9063
    %9128 = vst.msk [vmem:[%s7 + $0x40] sm:$0xff] %vm29, %v9064
    %9129 = vst.msk [vmem:[%s7 + $0x48] sm:$0xff] %vm29, %v9065
    %9130 = vst.msk [vmem:[%s7 + $0x50] sm:$0xff] %vm29, %v9066
    %9131 = vst.msk [vmem:[%s7 + $0x58] sm:$0xff] %vm29, %v9067
    %9132 = vst.msk [vmem:[%s7 + $0x60] sm:$0xff] %vm29, %v9068
    %9133 = vst.msk [vmem:[%s7 + $0x68] sm:$0xff] %vm29, %v9069
    %9134 = vst.msk [vmem:[%s7 + $0x70] sm:$0xff] %vm29, %v9070
    %9135 = vst.msk [vmem:[%s7 + $0x78] sm:$0xff] %vm29, %v9071
    %9136 = vst.msk [vmem:[%s7 + $0x80] sm:$0xff] %vm29, %v9072
    %9137 = vst.msk [vmem:[%s7 + $0x88] sm:$0xff] %vm29, %v9073
    %9138 = vst.msk [vmem:[%s7 + $0x90] sm:$0xff] %vm29, %v9074
    %9139 = vst.msk [vmem:[%s7 + $0x98] sm:$0xff] %vm29, %v9075
    %9140 = vst.msk [vmem:[%s7 + $0xa0] sm:$0xff] %vm29, %v9076
    %9141 = vst.msk [vmem:[%s7 + $0xa8] sm:$0xff] %vm29, %v9077
    %9142 = vst.msk [vmem:[%s7 + $0xb0] sm:$0xff] %vm29, %v9078
    %9143 = vst.msk [vmem:[%s7 + $0xb8] sm:$0xff] %vm29, %v9079
    %9144 = vst.msk [vmem:[%s7 + $0xc0] sm:$0xff] %vm29, %v9080
    %9145 = vst.msk [vmem:[%s7 + $0xc8] sm:$0xff] %vm29, %v9081
    %9146 = vst.msk [vmem:[%s7 + $0xd0] sm:$0xff] %vm29, %v9082
    %9147 = vst.msk [vmem:[%s7 + $0xd8] sm:$0xff] %vm29, %v9083
    %9148 = vst.msk [vmem:[%s7 + $0xe0] sm:$0xff] %vm29, %v9084
    %9149 = vst.msk [vmem:[%s7 + $0xe8] sm:$0xff] %vm29, %v9085
    %9150 = vst.msk [vmem:[%s7 + $0xf0] sm:$0xff] %vm29, %v9086
    %9151 = vst.msk [vmem:[%s7 + $0xf8] sm:$0xff] %vm29, %v9087
    %9152 = vst.msk [vmem:[%s7 + $0x100] sm:$0xff] %vm29, %v9088
    %9153 = vst.msk [vmem:[%s7 + $0x108] sm:$0xff] %vm29, %v9089
    %9154 = vst.msk [vmem:[%s7 + $0x110] sm:$0xff] %vm29, %v9090
    %9155 = vst.msk [vmem:[%s7 + $0x118] sm:$0xff] %vm29, %v9091
    %9156 = vst.msk [vmem:[%s7 + $0x120] sm:$0xff] %vm29, %v9092
    %9157 = vst.msk [vmem:[%s7 + $0x128] sm:$0xff] %vm29, %v9093
    %9158 = vst.msk [vmem:[%s7 + $0x130] sm:$0xff] %vm29, %v9094
    %9159 = vst.msk [vmem:[%s7 + $0x138] sm:$0xff] %vm29, %v9095
    %9160 = vst.msk [vmem:[%s7 + $0x140] sm:$0xff] %vm29, %v9096
    %9161 = vst.msk [vmem:[%s7 + $0x148] sm:$0xff] %vm29, %v9097
    %9162 = vst.msk [vmem:[%s7 + $0x150] sm:$0xff] %vm29, %v9098
    %9163 = vst.msk [vmem:[%s7 + $0x158] sm:$0xff] %vm29, %v9099
    %9164 = vst.msk [vmem:[%s7 + $0x160] sm:$0xff] %vm29, %v9100
    %9165 = vst.msk [vmem:[%s7 + $0x168] sm:$0xff] %vm29, %v9101
    %9166 = vst.msk [vmem:[%s7 + $0x170] sm:$0xff] %vm29, %v9102
    %9167 = vst.msk [vmem:[%s7 + $0x178] sm:$0xff] %vm29, %v9103
    %9168 = vst.msk [vmem:[%s7 + $0x180] sm:$0xff] %vm29, %v9104
    %9169 = vst.msk [vmem:[%s7 + $0x188] sm:$0xff] %vm29, %v9105
    %9170 = vst.msk [vmem:[%s7 + $0x190] sm:$0xff] %vm29, %v9106
    %9171 = vst.msk [vmem:[%s7 + $0x198] sm:$0xff] %vm29, %v9107
    %9172 = vst.msk [vmem:[%s7 + $0x1a0] sm:$0xff] %vm29, %v9108
    %9173 = vst.msk [vmem:[%s7 + $0x1a8] sm:$0xff] %vm29, %v9109
    %9174 = vst.msk [vmem:[%s7 + $0x1b0] sm:$0xff] %vm29, %v9110
    %9175 = vst.msk [vmem:[%s7 + $0x1b8] sm:$0xff] %vm29, %v9111
    %9176 = vst.msk [vmem:[%s7 + $0x1c0] sm:$0xff] %vm29, %v9112
    %9177 = vst.msk [vmem:[%s7 + $0x1c8] sm:$0xff] %vm29, %v9113
    %9178 = vst.msk [vmem:[%s7 + $0x1d0] sm:$0xff] %vm29, %v9114
    %9179 = vst.msk [vmem:[%s7 + $0x1d8] sm:$0xff] %vm29, %v9115
    %9180 = vst.msk [vmem:[%s7 + $0x1e0] sm:$0xff] %vm29, %v9116
    %9181 = vst.msk [vmem:[%s7 + $0x1e8] sm:$0xff] %vm29, %v9117
    %9182 = vst.msk [vmem:[%s7 + $0x1f0] sm:$0xff] %vm29, %v9118
    %9183 = vst.msk [vmem:[%s7 + $0x1f8] sm:$0xff] %vm29, %v9119
    %v9184 = vmax.f32 %v9056, %v9058
    %v9185 = vmax.f32 %v9057, %v9059
    %v9186 = vmax.f32 %v9060, %v9062
    %v9187 = vmax.f32 %v9061, %v9063
    %v9188 = vmax.f32 %v9064, %v9066
    %v9189 = vmax.f32 %v9065, %v9067
    %v9190 = vmax.f32 %v9068, %v9070
    %v9191 = vmax.f32 %v9069, %v9071
    %v9192 = vmax.f32 %v9072, %v9074
    %v9193 = vmax.f32 %v9073, %v9075
    %v9194 = vmax.f32 %v9076, %v9078
    %v9195 = vmax.f32 %v9077, %v9079
    %v9196 = vmax.f32 %v9080, %v9082
    %v9197 = vmax.f32 %v9081, %v9083
    %v9198 = vmax.f32 %v9084, %v9086
    %v9199 = vmax.f32 %v9085, %v9087
    %v9200 = vmax.f32 %v9088, %v9090
    %v9201 = vmax.f32 %v9089, %v9091
    %v9202 = vmax.f32 %v9092, %v9094
    %v9203 = vmax.f32 %v9093, %v9095
    %v9204 = vmax.f32 %v9096, %v9098
    %v9205 = vmax.f32 %v9097, %v9099
    %v9206 = vmax.f32 %v9100, %v9102
    %v9207 = vmax.f32 %v9101, %v9103
    %v9208 = vmax.f32 %v9104, %v9106
    %v9209 = vmax.f32 %v9105, %v9107
    %v9210 = vmax.f32 %v9108, %v9110
    %v9211 = vmax.f32 %v9109, %v9111
    %v9212 = vmax.f32 %v9112, %v9114
    %v9213 = vmax.f32 %v9113, %v9115
    %v9214 = vmax.f32 %v9116, %v9118
    %v9215 = vmax.f32 %v9117, %v9119
    %9216 = vst.msk [vmem:[#allocation2] sm:$0xff] %vm29, %v9184
    %9217 = vst.msk [vmem:[#allocation2 + $0x8] sm:$0xff] %vm29, %v9185
    %9218 = vst.msk [vmem:[#allocation2 + $0x18] sm:$0xff] %vm29, %v9186
    %9219 = vst.msk [vmem:[#allocation2 + $0x20] sm:$0xff] %vm29, %v9187
    %9220 = vst.msk [vmem:[#allocation2 + $0x30] sm:$0xff] %vm29, %v9188
    %9221 = vst.msk [vmem:[#allocation2 + $0x38] sm:$0xff] %vm29, %v9189
    %9222 = vst.msk [vmem:[#allocation2 + $0x48] sm:$0xff] %vm29, %v9190
    %9223 = vst.msk [vmem:[#allocation2 + $0x50] sm:$0xff] %vm29, %v9191
    %9224 = vst.msk [vmem:[#allocation2 + $0x60] sm:$0xff] %vm29, %v9192
    %9225 = vst.msk [vmem:[#allocation2 + $0x68] sm:$0xff] %vm29, %v9193
    %9226 = vst.msk [vmem:[#allocation2 + $0x78] sm:$0xff] %vm29, %v9194
    %9227 = vst.msk [vmem:[#allocation2 + $0x80] sm:$0xff] %vm29, %v9195
    %9228 = vst.msk [vmem:[#allocation2 + $0x90] sm:$0xff] %vm29, %v9196
    %9229 = vst.msk [vmem:[#allocation2 + $0x98] sm:$0xff] %vm29, %v9197
    %9230 = vst.msk [vmem:[#allocation2 + $0xa8] sm:$0xff] %vm29, %v9198
    %9231 = vst.msk [vmem:[#allocation2 + $0xb0] sm:$0xff] %vm29, %v9199
    %9232 = vst.msk [vmem:[#allocation2 + $0x1b0] sm:$0xff] %vm29, %v9200
    %9233 = vst.msk [vmem:[#allocation2 + $0x1b8] sm:$0xff] %vm29, %v9201
    %9234 = vst.msk [vmem:[#allocation2 + $0x1c8] sm:$0xff] %vm29, %v9202
    %9235 = vst.msk [vmem:[#allocation2 + $0x1d0] sm:$0xff] %vm29, %v9203
    %9236 = vst.msk [vmem:[#allocation2 + $0x1e0] sm:$0xff] %vm29, %v9204
    %9237 = vst.msk [vmem:[#allocation2 + $0x1e8] sm:$0xff] %vm29, %v9205
    %9238 = vst.msk [vmem:[#allocation2 + $0x1f8] sm:$0xff] %vm29, %v9206
    %9239 = vst.msk [vmem:[#allocation2 + $0x200] sm:$0xff] %vm29, %v9207
    %9240 = vst.msk [vmem:[#allocation2 + $0x210] sm:$0xff] %vm29, %v9208
    %9241 = vst.msk [vmem:[#allocation2 + $0x218] sm:$0xff] %vm29, %v9209
    %9242 = vst.msk [vmem:[#allocation2 + $0x228] sm:$0xff] %vm29, %v9210
    %9243 = vst.msk [vmem:[#allocation2 + $0x230] sm:$0xff] %vm29, %v9211
    %9244 = vst.msk [vmem:[#allocation2 + $0x240] sm:$0xff] %vm29, %v9212
    %9245 = vst.msk [vmem:[#allocation2 + $0x248] sm:$0xff] %vm29, %v9213
    %9246 = vst.msk [vmem:[#allocation2 + $0x258] sm:$0xff] %vm29, %v9214
    %9247 = vst.msk [vmem:[#allocation2 + $0x260] sm:$0xff] %vm29, %v9215
    %v9248 = vld [vmem:[#allocation2] ss:$2 sm:$0xff]
    %s9249 = scalar_lea.vmem [#allocation2], 24
    %v9250 = vld [vmem:[%s9249] ss:$2 sm:$0xff]
    %s9251 = scalar_lea.vmem [#allocation2], 48
    %v9252 = vld [vmem:[%s9251] ss:$2 sm:$0xff]
    %s9253 = scalar_lea.vmem [#allocation2], 72
    %v9254 = vld [vmem:[%s9253] ss:$2 sm:$0xff]
    %s9255 = scalar_lea.vmem [#allocation2], 96
    %v9256 = vld [vmem:[%s9255] ss:$2 sm:$0xff]
    %s9257 = scalar_lea.vmem [#allocation2], 120
    %v9258 = vld [vmem:[%s9257] ss:$2 sm:$0xff]
    %s9259 = scalar_lea.vmem [#allocation2], 144
    %v9260 = vld [vmem:[%s9259] ss:$2 sm:$0xff]
    %s9261 = scalar_lea.vmem [#allocation2], 168
    %v9262 = vld [vmem:[%s9261] ss:$2 sm:$0xff]
    %s9263 = scalar_lea.vmem [#allocation2], 432
    %v9264 = vld [vmem:[%s9263] ss:$2 sm:$0xff]
    %s9265 = scalar_lea.vmem [#allocation2], 456
    %v9266 = vld [vmem:[%s9265] ss:$2 sm:$0xff]
    %s9267 = scalar_lea.vmem [#allocation2], 480
    %v9268 = vld [vmem:[%s9267] ss:$2 sm:$0xff]
    %s9269 = scalar_lea.vmem [#allocation2], 504
    %v9270 = vld [vmem:[%s9269] ss:$2 sm:$0xff]
    %s9271 = scalar_lea.vmem [#allocation2], 528
    %v9272 = vld [vmem:[%s9271] ss:$2 sm:$0xff]
    %s9273 = scalar_lea.vmem [#allocation2], 552
    %v9274 = vld [vmem:[%s9273] ss:$2 sm:$0xff]
    %s9275 = scalar_lea.vmem [#allocation2], 576
    %v9276 = vld [vmem:[%s9275] ss:$2 sm:$0xff]
    %s9277 = scalar_lea.vmem [#allocation2], 600
    %v9278 = vld [vmem:[%s9277] ss:$2 sm:$0xff]
    %s9279 = scalar_lea.vmem [#allocation2], 1
    %v9280 = vld [vmem:[%s9279] ss:$2 sm:$0xff]
    %s9281 = scalar_lea.vmem [#allocation2], 25
    %v9282 = vld [vmem:[%s9281] ss:$2 sm:$0xff]
    %s9283 = scalar_lea.vmem [#allocation2], 49
    %v9284 = vld [vmem:[%s9283] ss:$2 sm:$0xff]
    %s9285 = scalar_lea.vmem [#allocation2], 73
    %v9286 = vld [vmem:[%s9285] ss:$2 sm:$0xff]
    %s9287 = scalar_lea.vmem [#allocation2], 97
    %v9288 = vld [vmem:[%s9287] ss:$2 sm:$0xff]
    %s9289 = scalar_lea.vmem [#allocation2], 121
    %v9290 = vld [vmem:[%s9289] ss:$2 sm:$0xff]
    %s9291 = scalar_lea.vmem [#allocation2], 145
    %v9292 = vld [vmem:[%s9291] ss:$2 sm:$0xff]
    %s9293 = scalar_lea.vmem [#allocation2], 169
    %v9294 = vld [vmem:[%s9293] ss:$2 sm:$0xff]
    %s9295 = scalar_lea.vmem [#allocation2], 433
    %v9296 = vld [vmem:[%s9295] ss:$2 sm:$0xff]
    %s9297 = scalar_lea.vmem [#allocation2], 457
    %v9298 = vld [vmem:[%s9297] ss:$2 sm:$0xff]
    %s9299 = scalar_lea.vmem [#allocation2], 481
    %v9300 = vld [vmem:[%s9299] ss:$2 sm:$0xff]
    %s9301 = scalar_lea.vmem [#allocation2], 505
    %v9302 = vld [vmem:[%s9301] ss:$2 sm:$0xff]
    %s9303 = scalar_lea.vmem [#allocation2], 529
    %v9304 = vld [vmem:[%s9303] ss:$2 sm:$0xff]
    %s9305 = scalar_lea.vmem [#allocation2], 553
    %v9306 = vld [vmem:[%s9305] ss:$2 sm:$0xff]
    %s9307 = scalar_lea.vmem [#allocation2], 577
    %v9308 = vld [vmem:[%s9307] ss:$2 sm:$0xff]
    %s9309 = scalar_lea.vmem [#allocation2], 601
    %v9310 = vld [vmem:[%s9309] ss:$2 sm:$0xff]
    %v9311 = vmax.f32 %v9248, %v9280
    %v9312 = vmax.f32 %v9250, %v9282
    %v9313 = vmax.f32 %v9252, %v9284
    %v9314 = vmax.f32 %v9254, %v9286
    %v9315 = vmax.f32 %v9256, %v9288
    %v9316 = vmax.f32 %v9258, %v9290
    %v9317 = vmax.f32 %v9260, %v9292
    %v9318 = vmax.f32 %v9262, %v9294
    %v9319 = vmax.f32 %v9264, %v9296
    %v9320 = vmax.f32 %v9266, %v9298
    %v9321 = vmax.f32 %v9268, %v9300
    %v9322 = vmax.f32 %v9270, %v9302
    %v9323 = vmax.f32 %v9272, %v9304
    %v9324 = vmax.f32 %v9274, %v9306
    %v9325 = vmax.f32 %v9276, %v9308
    %v9326 = vmax.f32 %v9278, %v9310
    %9327 = vst.msk [vmem:[#allocation4] sm:$0xff] %vm29, %v9311
    %9328 = vst.msk [vmem:[#allocation4 + $0x8] sm:$0xff] %vm29, %v9312
    %9329 = vst.msk [vmem:[#allocation4 + $0x10] sm:$0xff] %vm29, %v9313
    %9330 = vst.msk [vmem:[#allocation4 + $0x18] sm:$0xff] %vm29, %v9314
    %9331 = vst.msk [vmem:[#allocation4 + $0x20] sm:$0xff] %vm29, %v9315
    %9332 = vst.msk [vmem:[#allocation4 + $0x28] sm:$0xff] %vm29, %v9316
    %9333 = vst.msk [vmem:[#allocation4 + $0x30] sm:$0xff] %vm29, %v9317
    %9334 = vst.msk [vmem:[#allocation4 + $0x38] sm:$0xff] %vm29, %v9318
    %9335 = vst.msk [vmem:[#allocation4 + $0x40] sm:$0xff] %vm29, %v9319
    %9336 = vst.msk [vmem:[#allocation4 + $0x48] sm:$0xff] %vm29, %v9320
    %9337 = vst.msk [vmem:[#allocation4 + $0x50] sm:$0xff] %vm29, %v9321
    %9338 = vst.msk [vmem:[#allocation4 + $0x58] sm:$0xff] %vm29, %v9322
    %9339 = vst.msk [vmem:[#allocation4 + $0x60] sm:$0xff] %vm29, %v9323
    %9340 = vst.msk [vmem:[#allocation4 + $0x68] sm:$0xff] %vm29, %v9324
    %9341 = vst.msk [vmem:[#allocation4 + $0x70] sm:$0xff] %vm29, %v9325
    %9342 = vst.msk [vmem:[#allocation4 + $0x78] sm:$0xff] %vm29, %v9326
    // Predicated region
    $region30: #{tpu_custom_call.1} parent=1 // pred_check
      _
    $region31: #{tpu_custom_call.1} parent=1 // pred_check_branch
      %9344 = sbr.rel (0) target = $region33
    $region32: #{tpu_custom_call.1} parent=1 // pred_region
      _
    $region33: #{tpu_custom_call.1} parent=1 // pred_fallthru
      _
    // Predicated region
    $region34: #{tpu_custom_call.1} parent=1 // pred_check
      _
    $region35: #{tpu_custom_call.1} parent=1 // pred_check_branch
      %9346 = sbr.rel (0) target = $region37
    $region36: #{tpu_custom_call.1} parent=1 // pred_region
      %s9348 = ssub.s32 2048, 2048
      %9349 = vsyncadd [#allocation5], %s9348
      %s9350 = sshll.u32 [#allocation4], 4
      %s9351 = int_to_ptr.vmem [resolvable:$true] %s9350
      %9356 = dma.vmem_to_hbm [thread:$0]  %s9351, 2048, %s8, [#allocation5], 128, 128, 8
    $region37: #{tpu_custom_call.1} parent=1 // pred_fallthru
      _
    // Predicated region
    $region38: #{tpu_custom_call.1} parent=1 // pred_check
      _
    $region39: #{tpu_custom_call.1} parent=1 // pred_check_branch
      %9358 = sbr.rel (0) target = $region41
    $region40: #{tpu_custom_call.1} parent=1 // pred_region
      _
    $region41: #{tpu_custom_call.1} parent=1 // pred_fallthru
      _
    // Predicated region
    $region42: #{tpu_custom_call.1} parent=1 // pred_check
      _
    $region43: #{tpu_custom_call.1} parent=1 // pred_check_branch
      %9360 = sbr.rel (0) target = $region45
    $region44: #{tpu_custom_call.1} parent=1 // pred_region
      %9361 = dma.done [#allocation5], 2048
    $region45: #{tpu_custom_call.1} parent=1 // pred_fallthru
      _
    %9362 = vsyncpa [#allocation5], 1

</llo_original>
